<compile_context>
chip_gen: v7x
topology: tpu7x:2x2x1
jax: 0.10.0
libtpu: 0.0.40
codegen_flags: <defaults>
</compile_context>

<pallas_src>
import functools
import math

import jax
import jax.numpy as jnp
from jax.experimental import pallas as pl
from jax.experimental.pallas import tpu as pltpu

LANE = 128
IMG_STACK = 4
# (cin, cout, kernel, stride) for the four convs that keep a stand-alone Pallas GEMM.
CONV_CFG_HEAD = [
    (IMG_STACK, 8, 4, 2),
    (8, 16, 3, 2),
    (16, 32, 3, 2),
    (32, 64, 3, 2),
]
# conv5 (64->128, 3x3, s1) and conv6 (128->256, 3x3, s1) are fused into the tail kernel.


def _round_up(x, m):
    return ((x + m - 1) // m) * m


# ----------------------------------------------------------------------------------
# Fused conv-GEMM Pallas kernel: ReLU(x @ w + b), bf16 MXU inputs, f32 accumulate.
# ----------------------------------------------------------------------------------
def _conv_gemm_kernel(x_ref, w_ref, b_ref, o_ref):
    y = jnp.dot(x_ref[...], w_ref[...], preferred_element_type=jnp.float32)
    o_ref[...] = jnp.maximum(y + b_ref[...], 0.0).astype(o_ref.dtype)


def conv_gemm(x, w, b, out_dtype=jnp.bfloat16):
    """ReLU(x @ w + b).  x: (M, K) bf16, w: (K, Np) bf16, b: (1, Np) f32, Np % 128 == 0."""
    M, K = x.shape
    Kw, Np = w.shape
    assert K == Kw and Np % LANE == 0
    if M > 1024:
        # >=2 row tiles so the parallel grid axis can be sharded across TensorCores,
        # with ~2048-row tiles keeping per-step pipeline overhead negligible.
        ntiles = max(2, pl.cdiv(M, 2048))
        bm = _round_up(pl.cdiv(M, ntiles), 8)      # sublane-aligned row tile
    else:
        bm = M                                     # single full-array tile
    grid = pl.cdiv(M, bm)
    return pl.pallas_call(
        _conv_gemm_kernel,
        grid=(grid,),
        in_specs=[
            pl.BlockSpec((bm, K), lambda i: (i, 0)),    # activation row tile
            pl.BlockSpec((K, Np), lambda i: (0, 0)),    # full weight, VMEM-resident
            pl.BlockSpec((1, Np), lambda i: (0, 0)),    # lane-dense bias row
        ],
        out_specs=pl.BlockSpec((bm, Np), lambda i: (i, 0)),
        out_shape=jax.ShapeDtypeStruct((M, Np), out_dtype),
        compiler_params=pltpu.CompilerParams(dimension_semantics=("parallel",)),
    )(x, w, b)


# ----------------------------------------------------------------------------------
# Fused tail kernel: conv5 + conv6 + value head + fc + alpha/beta heads in one call.
# p5: (9, n, 576) conv5 patch slabs (one per output spatial position, all batches).
# conv6 is a sum over the nine conv5 output positions -> no in-kernel reshapes needed.
# ----------------------------------------------------------------------------------
def _tail_kernel(p5_ref, w5_ref, b5_ref, w6_ref, b6_ref,
                 v1w_ref, v1b_ref, v2w_ref, v2b_ref,
                 fcw_ref, fcb_ref, aw_ref, ab_ref, bw_ref, bb_ref,
                 alpha_ref, beta_ref, v_ref):
    n = p5_ref.shape[1]
    w5 = w5_ref[...]                                        # (576, 128) bf16
    b5 = b5_ref[...]                                        # (1, 128)   f32

    # conv5 + conv6 fused: feat[b,:] = ReLU(sum_q ReLU(p5[q,b] @ w5 + b5) @ w6[q] + b6)
    acc = jnp.zeros((n, 256), jnp.float32)
    for q in range(9):
        hq = jnp.dot(p5_ref[q], w5, preferred_element_type=jnp.float32) + b5
        hq = jnp.maximum(hq, 0.0).astype(jnp.bfloat16)      # (n, 128)
        acc = acc + jnp.dot(hq, w6_ref[q], preferred_element_type=jnp.float32)
    feat = jnp.maximum(acc + b6_ref[...], 0.0).astype(jnp.bfloat16)   # (n, 256)

    # value head: Linear(256,100) -> ReLU -> Linear(100,1)
    hv = jnp.dot(feat, v1w_ref[...], preferred_element_type=jnp.float32) + v1b_ref[...]
    hv = jnp.maximum(hv, 0.0).astype(jnp.bfloat16)
    v_ref[...] = (jnp.dot(hv, v2w_ref[...], preferred_element_type=jnp.float32)
                  + v2b_ref[...])

    # shared fc: Linear(256,100) -> ReLU
    h = jnp.dot(feat, fcw_ref[...], preferred_element_type=jnp.float32) + fcb_ref[...]
    h = jnp.maximum(h, 0.0).astype(jnp.bfloat16)

    def softplus_plus_one(z):                               # stable softplus, then +1
        return jnp.maximum(z, 0.0) + jnp.log(1.0 + jnp.exp(-jnp.abs(z))) + 1.0

    za = jnp.dot(h, aw_ref[...], preferred_element_type=jnp.float32) + ab_ref[...]
    zb = jnp.dot(h, bw_ref[...], preferred_element_type=jnp.float32) + bb_ref[...]
    alpha_ref[...] = softplus_plus_one(za)
    beta_ref[...] = softplus_plus_one(zb)


def tail_forward(p5, p):
    n = p5.shape[1]
    alpha, beta, v = pl.pallas_call(
        _tail_kernel,
        out_shape=(jax.ShapeDtypeStruct((n, 3), jnp.float32),
                   jax.ShapeDtypeStruct((n, 3), jnp.float32),
                   jax.ShapeDtypeStruct((n, 1), jnp.float32)),
    )(p5, p["c5_w"], p["c5_b"], p["c6_w"], p["c6_b"],
      p["v1_w"], p["v1_b"], p["v2_w"], p["v2_b"],
      p["fc_w"], p["fc_b"], p["a_w"], p["a_b"], p["b_w"], p["b_b"])
    return (alpha, beta), v


# ----------------------------------------------------------------------------------
# im2col glue (plain JAX data movement; the matmul hot path stays in Pallas).
# Gathers only the first `c` (true) channels so padded zero lanes never inflate K.
# ----------------------------------------------------------------------------------
def im2col(x, kh, kw, stride, c):
    """x: (N, H, W, C) -> patches (N*Ho*Wo, kh*kw*c) ordered (kh, kw, c)."""
    N, H, W, _ = x.shape
    Ho = (H - kh) // stride + 1
    Wo = (W - kw) // stride + 1
    cols = []
    for i in range(kh):
        for j in range(kw):
            cols.append(x[:, i:i + stride * Ho:stride, j:j + stride * Wo:stride, :c])
    p = jnp.stack(cols, axis=3)                    # (N, Ho, Wo, kh*kw, c)
    return p.reshape(N * Ho * Wo, kh * kw * c), Ho, Wo


# ----------------------------------------------------------------------------------
# Deterministic parameter initialization (mirrors the PyTorch module).
# Conv outputs of layers 1-4 are lane-padded to 128 once here (zero pad => exact results).
# ----------------------------------------------------------------------------------
def init_params(key):
    relu_gain = math.sqrt(2.0)

    def conv_w(key, cin, cout, k):
        key, wk = jax.random.split(key)
        fan_in, fan_out = cin * k * k, cout * k * k
        bound = relu_gain * math.sqrt(6.0 / (fan_in + fan_out))   # xavier_uniform, relu gain
        return key, jax.random.uniform(wk, (k, k, cin, cout), jnp.float32, -bound, bound)

    params = {"conv": []}
    for (cin, cout, k, s) in CONV_CFG_HEAD:
        key, w = conv_w(key, cin, cout, k)
        cout_pad = _round_up(cout, LANE)
        w_pad = jnp.zeros((k, k, cin, cout_pad), jnp.float32).at[..., :cout].set(w)
        b_pad = jnp.zeros((1, cout_pad), jnp.float32).at[:, :cout].set(0.1)
        params["conv"].append(
            (w_pad.reshape(k * k * cin, cout_pad).astype(jnp.bfloat16), b_pad))

    # conv5 / conv6 live inside the fused tail kernel (true widths 128 / 256, no padding).
    key, w5 = conv_w(key, 64, 128, 3)
    params["c5_w"] = w5.reshape(9 * 64, 128).astype(jnp.bfloat16)
    params["c5_b"] = jnp.full((1, 128), 0.1, jnp.float32)
    key, w6 = conv_w(key, 128, 256, 3)
    params["c6_w"] = w6.reshape(9, 128, 256).astype(jnp.bfloat16)
    params["c6_b"] = jnp.full((1, 256), 0.1, jnp.float32)

    def linear(key, fan_in, fan_out):
        key, wk, bk = jax.random.split(key, 3)
        bound = 1.0 / math.sqrt(fan_in)            # PyTorch default Linear init
        w = jax.random.uniform(wk, (fan_in, fan_out), jnp.float32, -bound, bound)
        b = jax.random.uniform(bk, (1, fan_out), jnp.float32, -bound, bound)
        return key, w.astype(jnp.bfloat16), b

    key, params["v1_w"], params["v1_b"] = linear(key, 256, 100)
    key, params["v2_w"], params["v2_b"] = linear(key, 100, 1)
    key, params["fc_w"], params["fc_b"] = linear(key, 256, 100)
    key, params["a_w"], params["a_b"] = linear(key, 100, 3)
    key, params["b_w"], params["b_b"] = linear(key, 100, 3)
    return params


# ----------------------------------------------------------------------------------
# Forward pass
# ----------------------------------------------------------------------------------
def ppo_forward(params, x_nchw):
    x = jnp.transpose(x_nchw, (0, 2, 3, 1)).astype(jnp.bfloat16)   # NCHW -> NHWC, bf16
    n = x.shape[0]

    # TODO(synk): fuse conv1-conv4 into a single kernel with in-kernel (stride-2) patch
    # extraction to remove the remaining im2col HBM materialization entirely.
    c_true = IMG_STACK
    for (w, b), (_, cout, k, s) in zip(params["conv"], CONV_CFG_HEAD):
        patches, ho, wo = im2col(x, k, k, s, c_true)   # only true channels -> compact K
        y = conv_gemm(patches, w, b)                   # fused matmul + bias + ReLU, 128 lanes
        x = y.reshape(n, ho, wo, w.shape[1])           # padded zero channels carried forward
        c_true = cout

    # x is (n, 5, 5, 128) with 64 true channels.  Build the nine conv5 patch slabs
    # (plain-JAX gather) and run conv5 + conv6 + all heads in ONE fused Pallas kernel.
    p5 = jnp.stack(
        [x[:, i:i + 3, j:j + 3, :64].reshape(n, 9 * 64)
         for i in range(3) for j in range(3)],
        axis=0).astype(jnp.bfloat16)                    # (9, n, 576)
    return tail_forward(p5, params)


# ----------------------------------------------------------------------------------
if __name__ == "__main__":
    key = jax.random.PRNGKey(0)
    pkey, xkey = jax.random.split(key)
    params = init_params(pkey)

    # Spatial must be 96x96 for the reference model's x.view(-1, 256); batch kept small.
    x = jax.random.normal(xkey, (2, IMG_STACK, 96, 96), jnp.float32)

    fwd = jax.jit(functools.partial(ppo_forward, params))
    (alpha, beta), v = fwd(x)
    jax.block_until_ready((alpha, beta, v))

    assert alpha.shape == (2, 3) and beta.shape == (2, 3) and v.shape == (2, 1)
    assert bool(jnp.all(alpha >= 1.0)) and bool(jnp.all(beta >= 1.0))
    print("KERNEL_OK")
</pallas_src>

<mosaic_0001>
module attributes {stable_mosaic.version = 11 : i64} {
  func.func @_conv_gemm_kernel(%arg0: i32, %arg1: memref<1480x64xbf16, #tpu.memory_space<vmem>>, %arg2: memref<64x128xbf16, #tpu.memory_space<vmem>>, %arg3: memref<1x128xf32, #tpu.memory_space<vmem>>, %arg4: memref<1480x128xbf16, #tpu.memory_space<vmem>>) attributes {dimension_semantics = [#tpu.dimension_semantics<parallel>], iteration_bounds = array<i64: 3>, scalar_prefetch = 0 : i64, scratch_operands = 0 : i64, tpu.core_type = #tpu.core_type<tc>, window_params = [{transform_indices = @transform_0, window_bounds = array<i64: 1480, 64>}, {pipeline_mode = #tpu.pipeline_mode<synchronous>, transform_indices = @transform_1, window_bounds = array<i64: 64, 128>}, {pipeline_mode = #tpu.pipeline_mode<synchronous>, transform_indices = @transform_2, window_bounds = array<i64: 1, 128>}, {transform_indices = @transform_3, window_bounds = array<i64: 1480, 128>}]} {
    %c0 = arith.constant 0 : index
    %c0_0 = arith.constant 0 : index
    %0 = vector.load %arg1[%c0, %c0_0] : memref<1480x64xbf16, #tpu.memory_space<vmem>>, vector<1480x64xbf16>
    %c0_1 = arith.constant 0 : index
    %c0_2 = arith.constant 0 : index
    %1 = vector.load %arg2[%c0_1, %c0_2] : memref<64x128xbf16, #tpu.memory_space<vmem>>, vector<64x128xbf16>
    %cst = arith.constant dense<0.000000e+00> : vector<1480x128xf32>
    %2 = tpu.matmul %0, %1, %cst {dimension_numbers = #tpu.dot_dimension_numbers<[1], [0], [0], [1], [0, 0, 1, 1], [], []>} : vector<1480x64xbf16>, vector<64x128xbf16>, vector<1480x128xf32> -> vector<1480x128xf32>
    %c0_3 = arith.constant 0 : index
    %c0_4 = arith.constant 0 : index
    %3 = vector.load %arg3[%c0_3, %c0_4] : memref<1x128xf32, #tpu.memory_space<vmem>>, vector<1x128xf32>
    %4 = vector.broadcast %3 : vector<1x128xf32> to vector<1480x128xf32>
    %5 = arith.addf %2, %4 : vector<1480x128xf32>
    %cst_5 = arith.constant 0.000000e+00 : f32
    %6 = vector.broadcast %cst_5 : f32 to vector<1480x128xf32>
    %7 = arith.maximumf %5, %6 : vector<1480x128xf32>
    %8 = arith.truncf %7 : vector<1480x128xf32> to vector<1480x128xbf16>
    %c0_6 = arith.constant 0 : index
    %c0_7 = arith.constant 0 : index
    %9 = vector.load %arg4[%c0_6, %c0_7] : memref<1480x128xbf16, #tpu.memory_space<vmem>>, vector<1480x128xbf16>
    tpu.vector_store %arg4[%c0_6, %c0_7], %8 {strides = array<i32>} : memref<1480x128xbf16, #tpu.memory_space<vmem>>, vector<1480x128xbf16>,
    return
  }
  func.func @transform_0(%arg0: i32) -> (i32, i32) {
    %c0_i32 = arith.constant 0 : i32
    %c0_i32_0 = arith.constant 0 : i32
    return %arg0, %c0_i32 : i32, i32
  }
  func.func @transform_1(%arg0: i32) -> (i32, i32) {
    %c0_i32 = arith.constant 0 : i32
    %c0_i32_0 = arith.constant 0 : i32
    %c0_i32_1 = arith.constant 0 : i32
    return %c0_i32, %c0_i32_0 : i32, i32
  }
  func.func @transform_2(%arg0: i32) -> (i32, i32) {
    %c0_i32 = arith.constant 0 : i32
    %c0_i32_0 = arith.constant 0 : i32
    %c0_i32_1 = arith.constant 0 : i32
    return %c0_i32, %c0_i32_0 : i32, i32
  }
  func.func @transform_3(%arg0: i32) -> (i32, i32) {
    %c0_i32 = arith.constant 0 : i32
    %c0_i32_0 = arith.constant 0 : i32
    return %arg0, %c0_i32 : i32, i32
  }
}

module attributes {stable_mosaic.version = 11 : i64} {
  func.func @_conv_gemm_kernel(%arg0: i32, %arg1: memref<536x72xbf16, #tpu.memory_space<vmem>>, %arg2: memref<72x128xbf16, #tpu.memory_space<vmem>>, %arg3: memref<1x128xf32, #tpu.memory_space<vmem>>, %arg4: memref<536x128xbf16, #tpu.memory_space<vmem>>) attributes {dimension_semantics = [#tpu.dimension_semantics<parallel>], iteration_bounds = array<i64: 2>, scalar_prefetch = 0 : i64, scratch_operands = 0 : i64, tpu.core_type = #tpu.core_type<tc>, window_params = [{transform_indices = @transform_0, window_bounds = array<i64: 536, 72>}, {pipeline_mode = #tpu.pipeline_mode<synchronous>, transform_indices = @transform_1, window_bounds = array<i64: 72, 128>}, {pipeline_mode = #tpu.pipeline_mode<synchronous>, transform_indices = @transform_2, window_bounds = array<i64: 1, 128>}, {transform_indices = @transform_3, window_bounds = array<i64: 536, 128>}]} {
    %c0 = arith.constant 0 : index
    %c0_0 = arith.constant 0 : index
    %0 = vector.load %arg1[%c0, %c0_0] : memref<536x72xbf16, #tpu.memory_space<vmem>>, vector<536x72xbf16>
    %c0_1 = arith.constant 0 : index
    %c0_2 = arith.constant 0 : index
    %1 = vector.load %arg2[%c0_1, %c0_2] : memref<72x128xbf16, #tpu.memory_space<vmem>>, vector<72x128xbf16>
    %cst = arith.constant dense<0.000000e+00> : vector<536x128xf32>
    %2 = tpu.matmul %0, %1, %cst {dimension_numbers = #tpu.dot_dimension_numbers<[1], [0], [0], [1], [0, 0, 1, 1], [], []>} : vector<536x72xbf16>, vector<72x128xbf16>, vector<536x128xf32> -> vector<536x128xf32>
    %c0_3 = arith.constant 0 : index
    %c0_4 = arith.constant 0 : index
    %3 = vector.load %arg3[%c0_3, %c0_4] : memref<1x128xf32, #tpu.memory_space<vmem>>, vector<1x128xf32>
    %4 = vector.broadcast %3 : vector<1x128xf32> to vector<536x128xf32>
    %5 = arith.addf %2, %4 : vector<536x128xf32>
    %cst_5 = arith.constant 0.000000e+00 : f32
    %6 = vector.broadcast %cst_5 : f32 to vector<536x128xf32>
    %7 = arith.maximumf %5, %6 : vector<536x128xf32>
    %8 = arith.truncf %7 : vector<536x128xf32> to vector<536x128xbf16>
    %c0_6 = arith.constant 0 : index
    %c0_7 = arith.constant 0 : index
    %9 = vector.load %arg4[%c0_6, %c0_7] : memref<536x128xbf16, #tpu.memory_space<vmem>>, vector<536x128xbf16>
    tpu.vector_store %arg4[%c0_6, %c0_7], %8 {strides = array<i32>} : memref<536x128xbf16, #tpu.memory_space<vmem>>, vector<536x128xbf16>,
    return
  }
  func.func @transform_0(%arg0: i32) -> (i32, i32) {
    %c0_i32 = arith.constant 0 : i32
    %c0_i32_0 = arith.constant 0 : i32
    return %arg0, %c0_i32 : i32, i32
  }
  func.func @transform_1(%arg0: i32) -> (i32, i32) {
    %c0_i32 = arith.constant 0 : i32
    %c0_i32_0 = arith.constant 0 : i32
    %c0_i32_1 = arith.constant 0 : i32
    return %c0_i32, %c0_i32_0 : i32, i32
  }
  func.func @transform_2(%arg0: i32) -> (i32, i32) {
    %c0_i32 = arith.constant 0 : i32
    %c0_i32_0 = arith.constant 0 : i32
    %c0_i32_1 = arith.constant 0 : i32
    return %c0_i32, %c0_i32_0 : i32, i32
  }
  func.func @transform_3(%arg0: i32) -> (i32, i32) {
    %c0_i32 = arith.constant 0 : i32
    %c0_i32_0 = arith.constant 0 : i32
    return %arg0, %c0_i32 : i32, i32
  }
}

module attributes {stable_mosaic.version = 11 : i64} {
  func.func @_conv_gemm_kernel(%arg0: i32, %arg1: memref<242x144xbf16, #tpu.memory_space<vmem>>, %arg2: memref<144x128xbf16, #tpu.memory_space<vmem>>, %arg3: memref<1x128xf32, #tpu.memory_space<vmem>>, %arg4: memref<242x128xbf16, #tpu.memory_space<vmem>>) attributes {dimension_semantics = [#tpu.dimension_semantics<parallel>], iteration_bounds = array<i64: 1>, scalar_prefetch = 0 : i64, scratch_operands = 0 : i64, tpu.core_type = #tpu.core_type<tc>, window_params = [{transform_indices = @transform_0, window_bounds = array<i64: 242, 144>}, {pipeline_mode = #tpu.pipeline_mode<synchronous>, transform_indices = @transform_1, window_bounds = array<i64: 144, 128>}, {pipeline_mode = #tpu.pipeline_mode<synchronous>, transform_indices = @transform_2, window_bounds = array<i64: 1, 128>}, {transform_indices = @transform_3, window_bounds = array<i64: 242, 128>}]} {
    %c0 = arith.constant 0 : index
    %c0_0 = arith.constant 0 : index
    %0 = vector.load %arg1[%c0, %c0_0] : memref<242x144xbf16, #tpu.memory_space<vmem>>, vector<242x144xbf16>
    %c0_1 = arith.constant 0 : index
    %c0_2 = arith.constant 0 : index
    %1 = vector.load %arg2[%c0_1, %c0_2] : memref<144x128xbf16, #tpu.memory_space<vmem>>, vector<144x128xbf16>
    %cst = arith.constant dense<0.000000e+00> : vector<242x128xf32>
    %2 = tpu.matmul %0, %1, %cst {dimension_numbers = #tpu.dot_dimension_numbers<[1], [0], [0], [1], [0, 0, 1, 1], [], []>} : vector<242x144xbf16>, vector<144x128xbf16>, vector<242x128xf32> -> vector<242x128xf32>
    %c0_3 = arith.constant 0 : index
    %c0_4 = arith.constant 0 : index
    %3 = vector.load %arg3[%c0_3, %c0_4] : memref<1x128xf32, #tpu.memory_space<vmem>>, vector<1x128xf32>
    %4 = vector.broadcast %3 : vector<1x128xf32> to vector<242x128xf32>
    %5 = arith.addf %2, %4 : vector<242x128xf32>
    %cst_5 = arith.constant 0.000000e+00 : f32
    %6 = vector.broadcast %cst_5 : f32 to vector<242x128xf32>
    %7 = arith.maximumf %5, %6 : vector<242x128xf32>
    %8 = arith.truncf %7 : vector<242x128xf32> to vector<242x128xbf16>
    %c0_6 = arith.constant 0 : index
    %c0_7 = arith.constant 0 : index
    %9 = vector.load %arg4[%c0_6, %c0_7] : memref<242x128xbf16, #tpu.memory_space<vmem>>, vector<242x128xbf16>
    tpu.vector_store %arg4[%c0_6, %c0_7], %8 {strides = array<i32>} : memref<242x128xbf16, #tpu.memory_space<vmem>>, vector<242x128xbf16>,
    return
  }
  func.func @transform_0(%arg0: i32) -> (i32, i32) {
    %c0_i32 = arith.constant 0 : i32
    %c0_i32_0 = arith.constant 0 : i32
    return %arg0, %c0_i32 : i32, i32
  }
  func.func @transform_1(%arg0: i32) -> (i32, i32) {
    %c0_i32 = arith.constant 0 : i32
    %c0_i32_0 = arith.constant 0 : i32
    %c0_i32_1 = arith.constant 0 : i32
    return %c0_i32, %c0_i32_0 : i32, i32
  }
  func.func @transform_2(%arg0: i32) -> (i32, i32) {
    %c0_i32 = arith.constant 0 : i32
    %c0_i32_0 = arith.constant 0 : i32
    %c0_i32_1 = arith.constant 0 : i32
    return %c0_i32, %c0_i32_0 : i32, i32
  }
  func.func @transform_3(%arg0: i32) -> (i32, i32) {
    %c0_i32 = arith.constant 0 : i32
    %c0_i32_0 = arith.constant 0 : i32
    return %arg0, %c0_i32 : i32, i32
  }
}

module attributes {stable_mosaic.version = 11 : i64} {
  func.func @_conv_gemm_kernel(%arg0: i32, %arg1: memref<50x288xbf16, #tpu.memory_space<vmem>>, %arg2: memref<288x128xbf16, #tpu.memory_space<vmem>>, %arg3: memref<1x128xf32, #tpu.memory_space<vmem>>, %arg4: memref<50x128xbf16, #tpu.memory_space<vmem>>) attributes {dimension_semantics = [#tpu.dimension_semantics<parallel>], iteration_bounds = array<i64: 1>, scalar_prefetch = 0 : i64, scratch_operands = 0 : i64, tpu.core_type = #tpu.core_type<tc>, window_params = [{transform_indices = @transform_0, window_bounds = array<i64: 50, 288>}, {pipeline_mode = #tpu.pipeline_mode<synchronous>, transform_indices = @transform_1, window_bounds = array<i64: 288, 128>}, {pipeline_mode = #tpu.pipeline_mode<synchronous>, transform_indices = @transform_2, window_bounds = array<i64: 1, 128>}, {transform_indices = @transform_3, window_bounds = array<i64: 50, 128>}]} {
    %c0 = arith.constant 0 : index
    %c0_0 = arith.constant 0 : index
    %0 = vector.load %arg1[%c0, %c0_0] : memref<50x288xbf16, #tpu.memory_space<vmem>>, vector<50x288xbf16>
    %c0_1 = arith.constant 0 : index
    %c0_2 = arith.constant 0 : index
    %1 = vector.load %arg2[%c0_1, %c0_2] : memref<288x128xbf16, #tpu.memory_space<vmem>>, vector<288x128xbf16>
    %cst = arith.constant dense<0.000000e+00> : vector<50x128xf32>
    %2 = tpu.matmul %0, %1, %cst {dimension_numbers = #tpu.dot_dimension_numbers<[1], [0], [0], [1], [0, 0, 1, 1], [], []>} : vector<50x288xbf16>, vector<288x128xbf16>, vector<50x128xf32> -> vector<50x128xf32>
    %c0_3 = arith.constant 0 : index
    %c0_4 = arith.constant 0 : index
    %3 = vector.load %arg3[%c0_3, %c0_4] : memref<1x128xf32, #tpu.memory_space<vmem>>, vector<1x128xf32>
    %4 = vector.broadcast %3 : vector<1x128xf32> to vector<50x128xf32>
    %5 = arith.addf %2, %4 : vector<50x128xf32>
    %cst_5 = arith.constant 0.000000e+00 : f32
    %6 = vector.broadcast %cst_5 : f32 to vector<50x128xf32>
    %7 = arith.maximumf %5, %6 : vector<50x128xf32>
    %8 = arith.truncf %7 : vector<50x128xf32> to vector<50x128xbf16>
    %c0_6 = arith.constant 0 : index
    %c0_7 = arith.constant 0 : index
    %9 = vector.load %arg4[%c0_6, %c0_7] : memref<50x128xbf16, #tpu.memory_space<vmem>>, vector<50x128xbf16>
    tpu.vector_store %arg4[%c0_6, %c0_7], %8 {strides = array<i32>} : memref<50x128xbf16, #tpu.memory_space<vmem>>, vector<50x128xbf16>,
    return
  }
  func.func @transform_0(%arg0: i32) -> (i32, i32) {
    %c0_i32 = arith.constant 0 : i32
    %c0_i32_0 = arith.constant 0 : i32
    return %arg0, %c0_i32 : i32, i32
  }
  func.func @transform_1(%arg0: i32) -> (i32, i32) {
    %c0_i32 = arith.constant 0 : i32
    %c0_i32_0 = arith.constant 0 : i32
    %c0_i32_1 = arith.constant 0 : i32
    return %c0_i32, %c0_i32_0 : i32, i32
  }
  func.func @transform_2(%arg0: i32) -> (i32, i32) {
    %c0_i32 = arith.constant 0 : i32
    %c0_i32_0 = arith.constant 0 : i32
    %c0_i32_1 = arith.constant 0 : i32
    return %c0_i32, %c0_i32_0 : i32, i32
  }
  func.func @transform_3(%arg0: i32) -> (i32, i32) {
    %c0_i32 = arith.constant 0 : i32
    %c0_i32_0 = arith.constant 0 : i32
    return %arg0, %c0_i32 : i32, i32
  }
}

module attributes {stable_mosaic.version = 11 : i64} {
  func.func @_tail_kernel(%arg0: memref<9x2x576xbf16, #tpu.memory_space<vmem>>, %arg1: memref<576x128xbf16, #tpu.memory_space<vmem>>, %arg2: memref<1x128xf32, #tpu.memory_space<vmem>>, %arg3: memref<9x128x256xbf16, #tpu.memory_space<vmem>>, %arg4: memref<1x256xf32, #tpu.memory_space<vmem>>, %arg5: memref<256x100xbf16, #tpu.memory_space<vmem>>, %arg6: memref<1x100xf32, #tpu.memory_space<vmem>>, %arg7: memref<100x1xbf16, #tpu.memory_space<vmem>>, %arg8: memref<1x1xf32, #tpu.memory_space<vmem>>, %arg9: memref<256x100xbf16, #tpu.memory_space<vmem>>, %arg10: memref<1x100xf32, #tpu.memory_space<vmem>>, %arg11: memref<100x3xbf16, #tpu.memory_space<vmem>>, %arg12: memref<1x3xf32, #tpu.memory_space<vmem>>, %arg13: memref<100x3xbf16, #tpu.memory_space<vmem>>, %arg14: memref<1x3xf32, #tpu.memory_space<vmem>>, %arg15: memref<2x3xf32, #tpu.memory_space<vmem>>, %arg16: memref<2x3xf32, #tpu.memory_space<vmem>>, %arg17: memref<2x1xf32, #tpu.memory_space<vmem>>) attributes {dimension_semantics = [], scalar_prefetch = 0 : i64, scratch_operands = 0 : i64, tpu.core_type = #tpu.core_type<tc>} {
    %c0 = arith.constant 0 : index
    %c0_0 = arith.constant 0 : index
    %0 = vector.load %arg1[%c0, %c0_0] : memref<576x128xbf16, #tpu.memory_space<vmem>>, vector<576x128xbf16>
    %c0_1 = arith.constant 0 : index
    %c0_2 = arith.constant 0 : index
    %1 = vector.load %arg2[%c0_1, %c0_2] : memref<1x128xf32, #tpu.memory_space<vmem>>, vector<1x128xf32>
    %cst = arith.constant 0.000000e+00 : f32
    %2 = vector.broadcast %cst : f32 to vector<2x256xf32>
    %c0_3 = arith.constant 0 : index
    %c0_4 = arith.constant 0 : index
    %c0_5 = arith.constant 0 : index
    %3 = vector.load %arg0[%c0_3, %c0_4, %c0_5] : memref<9x2x576xbf16, #tpu.memory_space<vmem>>, vector<1x2x576xbf16>
    %4 = vector.shape_cast %3 : vector<1x2x576xbf16> to vector<2x576xbf16>
    %cst_6 = arith.constant dense<0.000000e+00> : vector<2x128xf32>
    %5 = tpu.matmul %4, %0, %cst_6 {dimension_numbers = #tpu.dot_dimension_numbers<[1], [0], [0], [1], [0, 0, 1, 1], [], []>} : vector<2x576xbf16>, vector<576x128xbf16>, vector<2x128xf32> -> vector<2x128xf32>
    %6 = vector.broadcast %1 : vector<1x128xf32> to vector<2x128xf32>
    %7 = arith.addf %5, %6 : vector<2x128xf32>
    %cst_7 = arith.constant 0.000000e+00 : f32
    %8 = vector.broadcast %cst_7 : f32 to vector<2x128xf32>
    %9 = arith.maximumf %7, %8 : vector<2x128xf32>
    %10 = arith.truncf %9 : vector<2x128xf32> to vector<2x128xbf16>
    %c0_8 = arith.constant 0 : index
    %c0_9 = arith.constant 0 : index
    %c0_10 = arith.constant 0 : index
    %11 = vector.load %arg3[%c0_8, %c0_9, %c0_10] : memref<9x128x256xbf16, #tpu.memory_space<vmem>>, vector<1x128x256xbf16>
    %12 = vector.shape_cast %11 : vector<1x128x256xbf16> to vector<128x256xbf16>
    %cst_11 = arith.constant dense<0.000000e+00> : vector<2x256xf32>
    %13 = tpu.matmul %10, %12, %cst_11 {dimension_numbers = #tpu.dot_dimension_numbers<[1], [0], [0], [1], [0, 0, 1, 1], [], []>} : vector<2x128xbf16>, vector<128x256xbf16>, vector<2x256xf32> -> vector<2x256xf32>
    %14 = arith.addf %2, %13 : vector<2x256xf32>
    %c1 = arith.constant 1 : index
    %c0_12 = arith.constant 0 : index
    %c0_13 = arith.constant 0 : index
    %15 = vector.load %arg0[%c1, %c0_12, %c0_13] : memref<9x2x576xbf16, #tpu.memory_space<vmem>>, vector<1x2x576xbf16>
    %16 = vector.shape_cast %15 : vector<1x2x576xbf16> to vector<2x576xbf16>
    %cst_14 = arith.constant dense<0.000000e+00> : vector<2x128xf32>
    %17 = tpu.matmul %16, %0, %cst_14 {dimension_numbers = #tpu.dot_dimension_numbers<[1], [0], [0], [1], [0, 0, 1, 1], [], []>} : vector<2x576xbf16>, vector<576x128xbf16>, vector<2x128xf32> -> vector<2x128xf32>
    %18 = vector.broadcast %1 : vector<1x128xf32> to vector<2x128xf32>
    %19 = arith.addf %17, %18 : vector<2x128xf32>
    %cst_15 = arith.constant 0.000000e+00 : f32
    %20 = vector.broadcast %cst_15 : f32 to vector<2x128xf32>
    %21 = arith.maximumf %19, %20 : vector<2x128xf32>
    %22 = arith.truncf %21 : vector<2x128xf32> to vector<2x128xbf16>
    %c1_16 = arith.constant 1 : index
    %c0_17 = arith.constant 0 : index
    %c0_18 = arith.constant 0 : index
    %23 = vector.load %arg3[%c1_16, %c0_17, %c0_18] : memref<9x128x256xbf16, #tpu.memory_space<vmem>>, vector<1x128x256xbf16>
    %24 = vector.shape_cast %23 : vector<1x128x256xbf16> to vector<128x256xbf16>
    %cst_19 = arith.constant dense<0.000000e+00> : vector<2x256xf32>
    %25 = tpu.matmul %22, %24, %cst_19 {dimension_numbers = #tpu.dot_dimension_numbers<[1], [0], [0], [1], [0, 0, 1, 1], [], []>} : vector<2x128xbf16>, vector<128x256xbf16>, vector<2x256xf32> -> vector<2x256xf32>
    %26 = arith.addf %14, %25 : vector<2x256xf32>
    %c2 = arith.constant 2 : index
    %c0_20 = arith.constant 0 : index
    %c0_21 = arith.constant 0 : index
    %27 = vector.load %arg0[%c2, %c0_20, %c0_21] : memref<9x2x576xbf16, #tpu.memory_space<vmem>>, vector<1x2x576xbf16>
    %28 = vector.shape_cast %27 : vector<1x2x576xbf16> to vector<2x576xbf16>
    %cst_22 = arith.constant dense<0.000000e+00> : vector<2x128xf32>
    %29 = tpu.matmul %28, %0, %cst_22 {dimension_numbers = #tpu.dot_dimension_numbers<[1], [0], [0], [1], [0, 0, 1, 1], [], []>} : vector<2x576xbf16>, vector<576x128xbf16>, vector<2x128xf32> -> vector<2x128xf32>
    %30 = vector.broadcast %1 : vector<1x128xf32> to vector<2x128xf32>
    %31 = arith.addf %29, %30 : vector<2x128xf32>
    %cst_23 = arith.constant 0.000000e+00 : f32
    %32 = vector.broadcast %cst_23 : f32 to vector<2x128xf32>
    %33 = arith.maximumf %31, %32 : vector<2x128xf32>
    %34 = arith.truncf %33 : vector<2x128xf32> to vector<2x128xbf16>
    %c2_24 = arith.constant 2 : index
    %c0_25 = arith.constant 0 : index
    %c0_26 = arith.constant 0 : index
    %35 = vector.load %arg3[%c2_24, %c0_25, %c0_26] : memref<9x128x256xbf16, #tpu.memory_space<vmem>>, vector<1x128x256xbf16>
    %36 = vector.shape_cast %35 : vector<1x128x256xbf16> to vector<128x256xbf16>
    %cst_27 = arith.constant dense<0.000000e+00> : vector<2x256xf32>
    %37 = tpu.matmul %34, %36, %cst_27 {dimension_numbers = #tpu.dot_dimension_numbers<[1], [0], [0], [1], [0, 0, 1, 1], [], []>} : vector<2x128xbf16>, vector<128x256xbf16>, vector<2x256xf32> -> vector<2x256xf32>
    %38 = arith.addf %26, %37 : vector<2x256xf32>
    %c3 = arith.constant 3 : index
    %c0_28 = arith.constant 0 : index
    %c0_29 = arith.constant 0 : index
    %39 = vector.load %arg0[%c3, %c0_28, %c0_29] : memref<9x2x576xbf16, #tpu.memory_space<vmem>>, vector<1x2x576xbf16>
    %40 = vector.shape_cast %39 : vector<1x2x576xbf16> to vector<2x576xbf16>
    %cst_30 = arith.constant dense<0.000000e+00> : vector<2x128xf32>
    %41 = tpu.matmul %40, %0, %cst_30 {dimension_numbers = #tpu.dot_dimension_numbers<[1], [0], [0], [1], [0, 0, 1, 1], [], []>} : vector<2x576xbf16>, vector<576x128xbf16>, vector<2x128xf32> -> vector<2x128xf32>
    %42 = vector.broadcast %1 : vector<1x128xf32> to vector<2x128xf32>
    %43 = arith.addf %41, %42 : vector<2x128xf32>
    %cst_31 = arith.constant 0.000000e+00 : f32
    %44 = vector.broadcast %cst_31 : f32 to vector<2x128xf32>
    %45 = arith.maximumf %43, %44 : vector<2x128xf32>
    %46 = arith.truncf %45 : vector<2x128xf32> to vector<2x128xbf16>
    %c3_32 = arith.constant 3 : index
    %c0_33 = arith.constant 0 : index
    %c0_34 = arith.constant 0 : index
    %47 = vector.load %arg3[%c3_32, %c0_33, %c0_34] : memref<9x128x256xbf16, #tpu.memory_space<vmem>>, vector<1x128x256xbf16>
    %48 = vector.shape_cast %47 : vector<1x128x256xbf16> to vector<128x256xbf16>
    %cst_35 = arith.constant dense<0.000000e+00> : vector<2x256xf32>
    %49 = tpu.matmul %46, %48, %cst_35 {dimension_numbers = #tpu.dot_dimension_numbers<[1], [0], [0], [1], [0, 0, 1, 1], [], []>} : vector<2x128xbf16>, vector<128x256xbf16>, vector<2x256xf32> -> vector<2x256xf32>
    %50 = arith.addf %38, %49 : vector<2x256xf32>
    %c4 = arith.constant 4 : index
    %c0_36 = arith.constant 0 : index
    %c0_37 = arith.constant 0 : index
    %51 = vector.load %arg0[%c4, %c0_36, %c0_37] : memref<9x2x576xbf16, #tpu.memory_space<vmem>>, vector<1x2x576xbf16>
    %52 = vector.shape_cast %51 : vector<1x2x576xbf16> to vector<2x576xbf16>
    %cst_38 = arith.constant dense<0.000000e+00> : vector<2x128xf32>
    %53 = tpu.matmul %52, %0, %cst_38 {dimension_numbers = #tpu.dot_dimension_numbers<[1], [0], [0], [1], [0, 0, 1, 1], [], []>} : vector<2x576xbf16>, vector<576x128xbf16>, vector<2x128xf32> -> vector<2x128xf32>
    %54 = vector.broadcast %1 : vector<1x128xf32> to vector<2x128xf32>
    %55 = arith.addf %53, %54 : vector<2x128xf32>
    %cst_39 = arith.constant 0.000000e+00 : f32
    %56 = vector.broadcast %cst_39 : f32 to vector<2x128xf32>
    %57 = arith.maximumf %55, %56 : vector<2x128xf32>
    %58 = arith.truncf %57 : vector<2x128xf32> to vector<2x128xbf16>
    %c4_40 = arith.constant 4 : index
    %c0_41 = arith.constant 0 : index
    %c0_42 = arith.constant 0 : index
    %59 = vector.load %arg3[%c4_40, %c0_41, %c0_42] : memref<9x128x256xbf16, #tpu.memory_space<vmem>>, vector<1x128x256xbf16>
    %60 = vector.shape_cast %59 : vector<1x128x256xbf16> to vector<128x256xbf16>
    %cst_43 = arith.constant dense<0.000000e+00> : vector<2x256xf32>
    %61 = tpu.matmul %58, %60, %cst_43 {dimension_numbers = #tpu.dot_dimension_numbers<[1], [0], [0], [1], [0, 0, 1, 1], [], []>} : vector<2x128xbf16>, vector<128x256xbf16>, vector<2x256xf32> -> vector<2x256xf32>
    %62 = arith.addf %50, %61 : vector<2x256xf32>
    %c5 = arith.constant 5 : index
    %c0_44 = arith.constant 0 : index
    %c0_45 = arith.constant 0 : index
    %63 = vector.load %arg0[%c5, %c0_44, %c0_45] : memref<9x2x576xbf16, #tpu.memory_space<vmem>>, vector<1x2x576xbf16>
    %64 = vector.shape_cast %63 : vector<1x2x576xbf16> to vector<2x576xbf16>
    %cst_46 = arith.constant dense<0.000000e+00> : vector<2x128xf32>
    %65 = tpu.matmul %64, %0, %cst_46 {dimension_numbers = #tpu.dot_dimension_numbers<[1], [0], [0], [1], [0, 0, 1, 1], [], []>} : vector<2x576xbf16>, vector<576x128xbf16>, vector<2x128xf32> -> vector<2x128xf32>
    %66 = vector.broadcast %1 : vector<1x128xf32> to vector<2x128xf32>
    %67 = arith.addf %65, %66 : vector<2x128xf32>
    %cst_47 = arith.constant 0.000000e+00 : f32
    %68 = vector.broadcast %cst_47 : f32 to vector<2x128xf32>
    %69 = arith.maximumf %67, %68 : vector<2x128xf32>
    %70 = arith.truncf %69 : vector<2x128xf32> to vector<2x128xbf16>
    %c5_48 = arith.constant 5 : index
    %c0_49 = arith.constant 0 : index
    %c0_50 = arith.constant 0 : index
    %71 = vector.load %arg3[%c5_48, %c0_49, %c0_50] : memref<9x128x256xbf16, #tpu.memory_space<vmem>>, vector<1x128x256xbf16>
    %72 = vector.shape_cast %71 : vector<1x128x256xbf16> to vector<128x256xbf16>
    %cst_51 = arith.constant dense<0.000000e+00> : vector<2x256xf32>
    %73 = tpu.matmul %70, %72, %cst_51 {dimension_numbers = #tpu.dot_dimension_numbers<[1], [0], [0], [1], [0, 0, 1, 1], [], []>} : vector<2x128xbf16>, vector<128x256xbf16>, vector<2x256xf32> -> vector<2x256xf32>
    %74 = arith.addf %62, %73 : vector<2x256xf32>
    %c6 = arith.constant 6 : index
    %c0_52 = arith.constant 0 : index
    %c0_53 = arith.constant 0 : index
    %75 = vector.load %arg0[%c6, %c0_52, %c0_53] : memref<9x2x576xbf16, #tpu.memory_space<vmem>>, vector<1x2x576xbf16>
    %76 = vector.shape_cast %75 : vector<1x2x576xbf16> to vector<2x576xbf16>
    %cst_54 = arith.constant dense<0.000000e+00> : vector<2x128xf32>
    %77 = tpu.matmul %76, %0, %cst_54 {dimension_numbers = #tpu.dot_dimension_numbers<[1], [0], [0], [1], [0, 0, 1, 1], [], []>} : vector<2x576xbf16>, vector<576x128xbf16>, vector<2x128xf32> -> vector<2x128xf32>
    %78 = vector.broadcast %1 : vector<1x128xf32> to vector<2x128xf32>
    %79 = arith.addf %77, %78 : vector<2x128xf32>
    %cst_55 = arith.constant 0.000000e+00 : f32
    %80 = vector.broadcast %cst_55 : f32 to vector<2x128xf32>
    %81 = arith.maximumf %79, %80 : vector<2x128xf32>
    %82 = arith.truncf %81 : vector<2x128xf32> to vector<2x128xbf16>
    %c6_56 = arith.constant 6 : index
    %c0_57 = arith.constant 0 : index
    %c0_58 = arith.constant 0 : index
    %83 = vector.load %arg3[%c6_56, %c0_57, %c0_58] : memref<9x128x256xbf16, #tpu.memory_space<vmem>>, vector<1x128x256xbf16>
    %84 = vector.shape_cast %83 : vector<1x128x256xbf16> to vector<128x256xbf16>
    %cst_59 = arith.constant dense<0.000000e+00> : vector<2x256xf32>
    %85 = tpu.matmul %82, %84, %cst_59 {dimension_numbers = #tpu.dot_dimension_numbers<[1], [0], [0], [1], [0, 0, 1, 1], [], []>} : vector<2x128xbf16>, vector<128x256xbf16>, vector<2x256xf32> -> vector<2x256xf32>
    %86 = arith.addf %74, %85 : vector<2x256xf32>
    %c7 = arith.constant 7 : index
    %c0_60 = arith.constant 0 : index
    %c0_61 = arith.constant 0 : index
    %87 = vector.load %arg0[%c7, %c0_60, %c0_61] : memref<9x2x576xbf16, #tpu.memory_space<vmem>>, vector<1x2x576xbf16>
    %88 = vector.shape_cast %87 : vector<1x2x576xbf16> to vector<2x576xbf16>
    %cst_62 = arith.constant dense<0.000000e+00> : vector<2x128xf32>
    %89 = tpu.matmul %88, %0, %cst_62 {dimension_numbers = #tpu.dot_dimension_numbers<[1], [0], [0], [1], [0, 0, 1, 1], [], []>} : vector<2x576xbf16>, vector<576x128xbf16>, vector<2x128xf32> -> vector<2x128xf32>
    %90 = vector.broadcast %1 : vector<1x128xf32> to vector<2x128xf32>
    %91 = arith.addf %89, %90 : vector<2x128xf32>
    %cst_63 = arith.constant 0.000000e+00 : f32
    %92 = vector.broadcast %cst_63 : f32 to vector<2x128xf32>
    %93 = arith.maximumf %91, %92 : vector<2x128xf32>
    %94 = arith.truncf %93 : vector<2x128xf32> to vector<2x128xbf16>
    %c7_64 = arith.constant 7 : index
    %c0_65 = arith.constant 0 : index
    %c0_66 = arith.constant 0 : index
    %95 = vector.load %arg3[%c7_64, %c0_65, %c0_66] : memref<9x128x256xbf16, #tpu.memory_space<vmem>>, vector<1x128x256xbf16>
    %96 = vector.shape_cast %95 : vector<1x128x256xbf16> to vector<128x256xbf16>
    %cst_67 = arith.constant dense<0.000000e+00> : vector<2x256xf32>
    %97 = tpu.matmul %94, %96, %cst_67 {dimension_numbers = #tpu.dot_dimension_numbers<[1], [0], [0], [1], [0, 0, 1, 1], [], []>} : vector<2x128xbf16>, vector<128x256xbf16>, vector<2x256xf32> -> vector<2x256xf32>
    %98 = arith.addf %86, %97 : vector<2x256xf32>
    %c8 = arith.constant 8 : index
    %c0_68 = arith.constant 0 : index
    %c0_69 = arith.constant 0 : index
    %99 = vector.load %arg0[%c8, %c0_68, %c0_69] : memref<9x2x576xbf16, #tpu.memory_space<vmem>>, vector<1x2x576xbf16>
    %100 = vector.shape_cast %99 : vector<1x2x576xbf16> to vector<2x576xbf16>
    %cst_70 = arith.constant dense<0.000000e+00> : vector<2x128xf32>
    %101 = tpu.matmul %100, %0, %cst_70 {dimension_numbers = #tpu.dot_dimension_numbers<[1], [0], [0], [1], [0, 0, 1, 1], [], []>} : vector<2x576xbf16>, vector<576x128xbf16>, vector<2x128xf32> -> vector<2x128xf32>
    %102 = vector.broadcast %1 : vector<1x128xf32> to vector<2x128xf32>
    %103 = arith.addf %101, %102 : vector<2x128xf32>
    %cst_71 = arith.constant 0.000000e+00 : f32
    %104 = vector.broadcast %cst_71 : f32 to vector<2x128xf32>
    %105 = arith.maximumf %103, %104 : vector<2x128xf32>
    %106 = arith.truncf %105 : vector<2x128xf32> to vector<2x128xbf16>
    %c8_72 = arith.constant 8 : index
    %c0_73 = arith.constant 0 : index
    %c0_74 = arith.constant 0 : index
    %107 = vector.load %arg3[%c8_72, %c0_73, %c0_74] : memref<9x128x256xbf16, #tpu.memory_space<vmem>>, vector<1x128x256xbf16>
    %108 = vector.shape_cast %107 : vector<1x128x256xbf16> to vector<128x256xbf16>
    %cst_75 = arith.constant dense<0.000000e+00> : vector<2x256xf32>
    %109 = tpu.matmul %106, %108, %cst_75 {dimension_numbers = #tpu.dot_dimension_numbers<[1], [0], [0], [1], [0, 0, 1, 1], [], []>} : vector<2x128xbf16>, vector<128x256xbf16>, vector<2x256xf32> -> vector<2x256xf32>
    %110 = arith.addf %98, %109 : vector<2x256xf32>
    %c0_76 = arith.constant 0 : index
    %c0_77 = arith.constant 0 : index
    %111 = vector.load %arg4[%c0_76, %c0_77] : memref<1x256xf32, #tpu.memory_space<vmem>>, vector<1x256xf32>
    %112 = vector.broadcast %111 : vector<1x256xf32> to vector<2x256xf32>
    %113 = arith.addf %110, %112 : vector<2x256xf32>
    %cst_78 = arith.constant 0.000000e+00 : f32
    %114 = vector.broadcast %cst_78 : f32 to vector<2x256xf32>
    %115 = arith.maximumf %113, %114 : vector<2x256xf32>
    %116 = arith.truncf %115 : vector<2x256xf32> to vector<2x256xbf16>
    %c0_79 = arith.constant 0 : index
    %c0_80 = arith.constant 0 : index
    %117 = vector.load %arg5[%c0_79, %c0_80] : memref<256x100xbf16, #tpu.memory_space<vmem>>, vector<256x100xbf16>
    %cst_81 = arith.constant dense<0.000000e+00> : vector<2x100xf32>
    %118 = tpu.matmul %116, %117, %cst_81 {dimension_numbers = #tpu.dot_dimension_numbers<[1], [0], [0], [1], [0, 0, 1, 1], [], []>} : vector<2x256xbf16>, vector<256x100xbf16>, vector<2x100xf32> -> vector<2x100xf32>
    %c0_82 = arith.constant 0 : index
    %c0_83 = arith.constant 0 : index
    %119 = vector.load %arg6[%c0_82, %c0_83] : memref<1x100xf32, #tpu.memory_space<vmem>>, vector<1x100xf32>
    %120 = vector.broadcast %119 : vector<1x100xf32> to vector<2x100xf32>
    %121 = arith.addf %118, %120 : vector<2x100xf32>
    %cst_84 = arith.constant 0.000000e+00 : f32
    %122 = vector.broadcast %cst_84 : f32 to vector<2x100xf32>
    %123 = arith.maximumf %121, %122 : vector<2x100xf32>
    %124 = arith.truncf %123 : vector<2x100xf32> to vector<2x100xbf16>
    %c0_85 = arith.constant 0 : index
    %c0_86 = arith.constant 0 : index
    %125 = vector.load %arg7[%c0_85, %c0_86] : memref<100x1xbf16, #tpu.memory_space<vmem>>, vector<100x1xbf16>
    %cst_87 = arith.constant dense<0.000000e+00> : vector<2x1xf32>
    %126 = tpu.matmul %124, %125, %cst_87 {dimension_numbers = #tpu.dot_dimension_numbers<[1], [0], [0], [1], [0, 0, 1, 1], [], []>} : vector<2x100xbf16>, vector<100x1xbf16>, vector<2x1xf32> -> vector<2x1xf32>
    %c0_88 = arith.constant 0 : index
    %c0_89 = arith.constant 0 : index
    %127 = vector.load %arg8[%c0_88, %c0_89] : memref<1x1xf32, #tpu.memory_space<vmem>>, vector<1x1xf32>
    %128 = vector.broadcast %127 : vector<1x1xf32> to vector<2x1xf32>
    %129 = arith.addf %126, %128 : vector<2x1xf32>
    %c0_90 = arith.constant 0 : index
    %c0_91 = arith.constant 0 : index
    %130 = vector.load %arg17[%c0_90, %c0_91] : memref<2x1xf32, #tpu.memory_space<vmem>>, vector<2x1xf32>
    tpu.vector_store %arg17[%c0_90, %c0_91], %129 {strides = array<i32>} : memref<2x1xf32, #tpu.memory_space<vmem>>, vector<2x1xf32>,
    %c0_92 = arith.constant 0 : index
    %c0_93 = arith.constant 0 : index
    %131 = vector.load %arg9[%c0_92, %c0_93] : memref<256x100xbf16, #tpu.memory_space<vmem>>, vector<256x100xbf16>
    %cst_94 = arith.constant dense<0.000000e+00> : vector<2x100xf32>
    %132 = tpu.matmul %116, %131, %cst_94 {dimension_numbers = #tpu.dot_dimension_numbers<[1], [0], [0], [1], [0, 0, 1, 1], [], []>} : vector<2x256xbf16>, vector<256x100xbf16>, vector<2x100xf32> -> vector<2x100xf32>
    %c0_95 = arith.constant 0 : index
    %c0_96 = arith.constant 0 : index
    %133 = vector.load %arg10[%c0_95, %c0_96] : memref<1x100xf32, #tpu.memory_space<vmem>>, vector<1x100xf32>
    %134 = vector.broadcast %133 : vector<1x100xf32> to vector<2x100xf32>
    %135 = arith.addf %132, %134 : vector<2x100xf32>
    %cst_97 = arith.constant 0.000000e+00 : f32
    %136 = vector.broadcast %cst_97 : f32 to vector<2x100xf32>
    %137 = arith.maximumf %135, %136 : vector<2x100xf32>
    %138 = arith.truncf %137 : vector<2x100xf32> to vector<2x100xbf16>
    %c0_98 = arith.constant 0 : index
    %c0_99 = arith.constant 0 : index
    %139 = vector.load %arg11[%c0_98, %c0_99] : memref<100x3xbf16, #tpu.memory_space<vmem>>, vector<100x3xbf16>
    %cst_100 = arith.constant dense<0.000000e+00> : vector<2x3xf32>
    %140 = tpu.matmul %138, %139, %cst_100 {dimension_numbers = #tpu.dot_dimension_numbers<[1], [0], [0], [1], [0, 0, 1, 1], [], []>} : vector<2x100xbf16>, vector<100x3xbf16>, vector<2x3xf32> -> vector<2x3xf32>
    %c0_101 = arith.constant 0 : index
    %c0_102 = arith.constant 0 : index
    %141 = vector.load %arg12[%c0_101, %c0_102] : memref<1x3xf32, #tpu.memory_space<vmem>>, vector<1x3xf32>
    %142 = vector.broadcast %141 : vector<1x3xf32> to vector<2x3xf32>
    %143 = arith.addf %140, %142 : vector<2x3xf32>
    %c0_103 = arith.constant 0 : index
    %c0_104 = arith.constant 0 : index
    %144 = vector.load %arg13[%c0_103, %c0_104] : memref<100x3xbf16, #tpu.memory_space<vmem>>, vector<100x3xbf16>
    %cst_105 = arith.constant dense<0.000000e+00> : vector<2x3xf32>
    %145 = tpu.matmul %138, %144, %cst_105 {dimension_numbers = #tpu.dot_dimension_numbers<[1], [0], [0], [1], [0, 0, 1, 1], [], []>} : vector<2x100xbf16>, vector<100x3xbf16>, vector<2x3xf32> -> vector<2x3xf32>
    %c0_106 = arith.constant 0 : index
    %c0_107 = arith.constant 0 : index
    %146 = vector.load %arg14[%c0_106, %c0_107] : memref<1x3xf32, #tpu.memory_space<vmem>>, vector<1x3xf32>
    %147 = vector.broadcast %146 : vector<1x3xf32> to vector<2x3xf32>
    %148 = arith.addf %145, %147 : vector<2x3xf32>
    %cst_108 = arith.constant 0.000000e+00 : f32
    %149 = vector.broadcast %cst_108 : f32 to vector<2x3xf32>
    %150 = arith.maximumf %143, %149 : vector<2x3xf32>
    %151 = math.absf %143 : vector<2x3xf32>
    %cst_109 = arith.constant 0.000000e+00 : f32
    %152 = vector.broadcast %cst_109 : f32 to vector<2x3xf32>
    %153 = arith.subf %152, %151 : vector<2x3xf32>
    %154 = math.exp %153 : vector<2x3xf32>
    %cst_110 = arith.constant 1.000000e+00 : f32
    %155 = vector.broadcast %cst_110 : f32 to vector<2x3xf32>
    %156 = arith.addf %155, %154 : vector<2x3xf32>
    %157 = math.log %156 : vector<2x3xf32>
    %158 = arith.addf %150, %157 : vector<2x3xf32>
    %cst_111 = arith.constant 1.000000e+00 : f32
    %159 = vector.broadcast %cst_111 : f32 to vector<2x3xf32>
    %160 = arith.addf %158, %159 : vector<2x3xf32>
    %c0_112 = arith.constant 0 : index
    %c0_113 = arith.constant 0 : index
    %161 = vector.load %arg15[%c0_112, %c0_113] : memref<2x3xf32, #tpu.memory_space<vmem>>, vector<2x3xf32>
    tpu.vector_store %arg15[%c0_112, %c0_113], %160 {strides = array<i32>} : memref<2x3xf32, #tpu.memory_space<vmem>>, vector<2x3xf32>,
    %cst_114 = arith.constant 0.000000e+00 : f32
    %162 = vector.broadcast %cst_114 : f32 to vector<2x3xf32>
    %163 = arith.maximumf %148, %162 : vector<2x3xf32>
    %164 = math.absf %148 : vector<2x3xf32>
    %cst_115 = arith.constant 0.000000e+00 : f32
    %165 = vector.broadcast %cst_115 : f32 to vector<2x3xf32>
    %166 = arith.subf %165, %164 : vector<2x3xf32>
    %167 = math.exp %166 : vector<2x3xf32>
    %cst_116 = arith.constant 1.000000e+00 : f32
    %168 = vector.broadcast %cst_116 : f32 to vector<2x3xf32>
    %169 = arith.addf %168, %167 : vector<2x3xf32>
    %170 = math.log %169 : vector<2x3xf32>
    %171 = arith.addf %163, %170 : vector<2x3xf32>
    %cst_117 = arith.constant 1.000000e+00 : f32
    %172 = vector.broadcast %cst_117 : f32 to vector<2x3xf32>
    %173 = arith.addf %171, %172 : vector<2x3xf32>
    %c0_118 = arith.constant 0 : index
    %c0_119 = arith.constant 0 : index
    %174 = vector.load %arg16[%c0_118, %c0_119] : memref<2x3xf32, #tpu.memory_space<vmem>>, vector<2x3xf32>
    tpu.vector_store %arg16[%c0_118, %c0_119], %173 {strides = array<i32>} : memref<2x3xf32, #tpu.memory_space<vmem>>, vector<2x3xf32>,
    return
  }
}

</mosaic_0001>

<llo_original>
// kernel: ppo_forward.5
$region0: #{ppo_forward.5}
  #allocation0 [shape = 'u32[]', space=smem, size = 0x4, offset = 0x4, fixed_abs, tag = 'smem constant byte address 0x4 - core index']
  #allocation1 [shape = 'u32[144,128]{1,0:T(1,128)}', space=vmem, size = 0x12000, scoped, tag = 'internal scratch']
  %s0 = inlined_call_operand.vmem [shape: bf16[4418,64], index: 0, kind: input, shape index: {}]
  %s1 = inlined_call_operand.vmem [shape: bf16[64,128], index: 1, kind: input, shape index: {}]
  %s2 = inlined_call_operand.vmem [shape: f32[1,128], index: 2, kind: input, shape index: {}]
  %s3 = inlined_call_operand.vmem [shape: bf16[4418,128], index: 3, kind: output, shape index: {}]
  %s4 = sld [smem:[#allocation0]]
  $region89: #{ppo_forward.5} parent=0
    _
  %s6 = ssub.s32 1, %s4
  %s7 = scalar_select 0, %s6, %s4
  $region1: #{ppo_forward.5} parent=0
    #allocation2 [shape = 'u8[757760]{0}', space=vmem, size = 0xb9000, scoped, tag = 'output window, operand 0']
    loop: start=0, step=1, limit=5
    $region2: #{ppo_forward.5} parent=1 // loop_pre_header
      _
    $region3: #{ppo_forward.5} parent=1 // loop_header
      %s9 = sphi 0, %s13
      %p10 = scmp.ge.s32.totalorder %s9, 5
      %s19 = sphi 0, %s21
      %s22 = sphi 0, %s19
      %s23 = sphi 0, %s22
      %s39 = sphi 0, %s23
      %s43 = sphi 0, %s43
      %s45 = sphi 0, %s43
      %s46 = sphi 0, %s45
      %s60 = sphi 0, %s46
      %s64 = sphi 0, %s64
      %s66 = sphi 0, %s64
      %s67 = sphi 0, %s66
      %s81 = sphi 0, %s67
      %s87 = sphi 0, %s89
      %s90 = sphi 0, %s87
      %s91 = sphi 0, %s90
      %s107 = sphi 0, %s91
    $region4: #{ppo_forward.5} parent=1 // loop_header_branch
      %12 = sbr.rel (%p10) target = $region8
    $region5: #{ppo_forward.5} parent=1 // loop_body
      %s14 = ssub.s32 %s9, 1
      %s15 = ssub.s32 %s9, 2
      %s16 = sadd.s32 %s9, 1
      %s17 = ssub.s32 %s9, %s16
      %p18 = scmp.eq.s32.totalorder %s17, 0
      %s20 = sadd.s32 %s19, 1
      %s21 = scalar_select %p18, %s19, %s20
      %p24 = pneg %p18
      %p25 = scmp.eq.s32.totalorder %s9, 2
      %p26 = por %p24, %p25
      %p27 = scmp.ne.s32.totalorder %s19, %s22
      %p28 = scmp.eq.s32.totalorder %s9, 0
      %p29 = por %p27, %p28
      %p30 = scmp.ne.s32.totalorder %s19, %s22
      %p31 = scmp.eq.s32.totalorder %s14, 2
      %p32 = por %p30, %p31
      %p33 = scmp.ne.s32.totalorder %s22, %s23
      %p34 = scmp.eq.s32.totalorder %s14, 0
      %p35 = por %p33, %p34
      %p36 = scmp.ne.s32.totalorder %s22, %s23
      %p37 = scmp.eq.s32.totalorder %s15, 2
      %p38 = por %p36, %p37
      %p40 = scmp.ne.s32.totalorder %s23, %s39
      %p41 = scmp.eq.s32.totalorder %s15, 0
      %p42 = por %p40, %p41
      %s44 = sadd.s32 %s43, 1
      %p47 = scmp.eq.s32.totalorder %s9, 2
      %p48 = scmp.ne.s32.totalorder %s43, %s45
      %p49 = scmp.eq.s32.totalorder %s9, 0
      %p50 = por %p48, %p49
      %p51 = scmp.ne.s32.totalorder %s43, %s45
      %p52 = scmp.eq.s32.totalorder %s14, 2
      %p53 = por %p51, %p52
      %p54 = scmp.ne.s32.totalorder %s45, %s46
      %p55 = scmp.eq.s32.totalorder %s14, 0
      %p56 = por %p54, %p55
      %p57 = scmp.ne.s32.totalorder %s45, %s46
      %p58 = scmp.eq.s32.totalorder %s15, 2
      %p59 = por %p57, %p58
      %p61 = scmp.ne.s32.totalorder %s46, %s60
      %p62 = scmp.eq.s32.totalorder %s15, 0
      %p63 = por %p61, %p62
      %s65 = sadd.s32 %s64, 1
      %p68 = scmp.eq.s32.totalorder %s9, 2
      %p69 = scmp.ne.s32.totalorder %s64, %s66
      %p70 = scmp.eq.s32.totalorder %s9, 0
      %p71 = por %p69, %p70
      %p72 = scmp.ne.s32.totalorder %s64, %s66
      %p73 = scmp.eq.s32.totalorder %s14, 2
      %p74 = por %p72, %p73
      %p75 = scmp.ne.s32.totalorder %s66, %s67
      %p76 = scmp.eq.s32.totalorder %s14, 0
      %p77 = por %p75, %p76
      %p78 = scmp.ne.s32.totalorder %s66, %s67
      %p79 = scmp.eq.s32.totalorder %s15, 2
      %p80 = por %p78, %p79
      %p82 = scmp.ne.s32.totalorder %s67, %s81
      %p83 = scmp.eq.s32.totalorder %s15, 0
      %p84 = por %p82, %p83
      %s85 = ssub.s32 %s9, %s16
      %p86 = scmp.eq.s32.totalorder %s85, 0
      %s88 = sadd.s32 %s87, 1
      %s89 = scalar_select %p86, %s87, %s88
      %p92 = pneg %p86
      %p93 = scmp.eq.s32.totalorder %s9, 2
      %p94 = por %p92, %p93
      %p95 = scmp.ne.s32.totalorder %s87, %s90
      %p96 = scmp.eq.s32.totalorder %s9, 0
      %p97 = por %p95, %p96
      %p98 = scmp.ne.s32.totalorder %s87, %s90
      %p99 = scmp.eq.s32.totalorder %s14, 2
      %p100 = por %p98, %p99
      %p101 = scmp.ne.s32.totalorder %s90, %s91
      %p102 = scmp.eq.s32.totalorder %s14, 0
      %p103 = por %p101, %p102
      %p104 = scmp.ne.s32.totalorder %s90, %s91
      %p105 = scmp.eq.s32.totalorder %s15, 2
      %p106 = por %p104, %p105
      %p108 = scmp.ne.s32.totalorder %s91, %s107
      %p109 = scmp.eq.s32.totalorder %s15, 0
      %p110 = por %p108, %p109
      %p111 = scmp.le.s32.totalorder 1, %s9
      %p112 = scmp.lt.s32.totalorder %s9, 4
      %p113 = pnand %p111, %p112
      %p114 = pneg %p113
      // Predicated region
      $region9: #{ppo_forward.5} parent=5 // pred_check
        _
      $region10: #{ppo_forward.5} parent=5 // pred_check_branch
        %116 = sbr.rel (%p113) target = $region12
      $region11: #{ppo_forward.5} parent=5 // pred_region
        %s117 = ssub.s32 %s9, 1
        // Predicated region
        $region13: #{ppo_forward.5} parent=11 // pred_check
          %p118 = pneg %p56
        $region14: #{ppo_forward.5} parent=11 // pred_check_branch
          %120 = sbr.rel (%p118) target = $region16
        $region15: #{ppo_forward.5} parent=11 // pred_region
          _
        $region16: #{ppo_forward.5} parent=11 // pred_fallthru
          _
        // Predicated region
        $region17: #{ppo_forward.5} parent=11 // pred_check
          %p121 = pneg %p77
        $region18: #{ppo_forward.5} parent=11 // pred_check_branch
          %123 = sbr.rel (%p121) target = $region20
        $region19: #{ppo_forward.5} parent=11 // pred_region
          _
        $region20: #{ppo_forward.5} parent=11 // pred_fallthru
          _
      $region12: #{ppo_forward.5} parent=5 // pred_fallthru
        _
      %p124 = scmp.lt.s32.totalorder %s9, 3
      // Predicated region
      $region21: #{ppo_forward.5} parent=5 // pred_check
        %p125 = pneg %p124
      $region22: #{ppo_forward.5} parent=5 // pred_check_branch
        %127 = sbr.rel (%p125) target = $region24
      $region23: #{ppo_forward.5} parent=5 // pred_region
        // Predicated region
        $region25: #{ppo_forward.5} parent=23 // pred_check
          %p128 = pneg %p29
        $region26: #{ppo_forward.5} parent=23 // pred_check_branch
          %130 = sbr.rel (%p128) target = $region28
        $region27: #{ppo_forward.5} parent=23 // pred_region
          %s131 = smul.u32 185, %s9
          %s132 = ssub.s32 553, %s131
          %p133 = scmp.lt.s32.totalorder %s132, 185
          %s134 = scalar_select %p133, %s132, 185
          %s135 = smul.u32 64, %s134
          %p136 = scmp.lt.s32.totalorder %s131, 552
          %s137 = scalar_select %p136, %s131, 552
          %s138 = smul.addr %s137, 4
          %s139 = scalar_lea.vmem %s0, %s138
          %s140 = smul.u32 185, %s9
          %s141 = ssub.s32 553, %s140
          %p142 = scmp.lt.s32.totalorder %s141, 185
          %s143 = scalar_select %p142, %s141, 185
          %s144 = smul.u32 64, %s143
        $region28: #{ppo_forward.5} parent=23 // pred_fallthru
          _
      $region24: #{ppo_forward.5} parent=5 // pred_fallthru
        _
      %p145 = scmp.le.s32.totalorder 1, %s9
      %p146 = scmp.lt.s32.totalorder %s9, 4
      %p147 = pnand %p145, %p146
      %p148 = pneg %p147
      // Predicated region
      $region29: #{ppo_forward.5} parent=5 // pred_check
        _
      $region30: #{ppo_forward.5} parent=5 // pred_check_branch
        %150 = sbr.rel (%p147) target = $region32
      $region31: #{ppo_forward.5} parent=5 // pred_region
        %s151 = ssub.s32 %s9, 1
        %s152 = smul.u32 185, %s14
        %s153 = ssub.s32 553, %s152
        %p154 = scmp.lt.s32.totalorder %s153, 185
        %s155 = scalar_select %p154, %s153, 185
        %s156 = smul.u32 64, %s155
        %p157 = scmp.lt.s32.totalorder %s152, 552
        %s158 = scalar_select %p157, %s152, 552
        %s159 = smul.addr %s158, 4
        %s160 = scalar_lea.vmem %s0, %s159
        %p161 = pneg %p35
        %p162 = pneg %p32
        %p163 = pneg %p56
        %p164 = pneg %p53
        %p165 = pneg %p77
        %p166 = pneg %p74
        %p167 = pneg %p103
        %p168 = pneg %p100
        %s169 = sand.u32 %s90, 1
        %s170 = sand.u32 %s90, 1
        %s171 = smul.addr %s170, 740
        %s172 = scalar_lea.vmem [#allocation2], %s171
        %s173 = smul.u32 185, %s14
        %s174 = ssub.s32 553, %s173
        %p175 = scmp.lt.s32.totalorder %s174, 185
        %s176 = scalar_select %p175, %s174, 185
        %s177 = smul.u32 64, %s176
        %p178 = scmp.lt.s32.totalorder %s173, 552
        %s179 = scalar_select %p178, %s173, 552
        %s180 = smul.addr %s179, 4
        %s181 = scalar_lea.vmem %s0, %s180
        %s182 = smul.u32 185, %s14
        %s183 = ssub.s32 553, %s182
        %p184 = scmp.lt.s32.totalorder %s183, 185
        %s185 = scalar_select %p184, %s183, 185
        %s186 = smul.u32 64, %s185
        %s187 = smul.u32 185, %s14
        %s188 = ssub.s32 553, %s187
        %p189 = scmp.lt.s32.totalorder %s188, 185
        %s190 = scalar_select %p189, %s188, 185
        %s191 = smul.u32 64, %s190
        %v193 = vld [vmem:[%s181] sm:$0xf]
        %v194 = vld [vmem:[%s181 + $0x4] sm:$0xf]
        %v195 = vld [vmem:[%s181 + $0x8] sm:$0xf]
        %v196 = vld [vmem:[%s181 + $0xc] sm:$0xf]
        %v197 = vld [vmem:[%s181 + $0x10] sm:$0xf]
        %v198 = vld [vmem:[%s181 + $0x14] sm:$0xf]
        %v199 = vld [vmem:[%s181 + $0x18] sm:$0xf]
        %v200 = vld [vmem:[%s181 + $0x1c] sm:$0xf]
        %v201 = vld [vmem:[%s181 + $0x20] sm:$0xf]
        %v202 = vld [vmem:[%s181 + $0x24] sm:$0xf]
        %v203 = vld [vmem:[%s181 + $0x28] sm:$0xf]
        %v204 = vld [vmem:[%s181 + $0x2c] sm:$0xf]
        %v205 = vld [vmem:[%s181 + $0x30] sm:$0xf]
        %v206 = vld [vmem:[%s181 + $0x34] sm:$0xf]
        %v207 = vld [vmem:[%s181 + $0x38] sm:$0xf]
        %v208 = vld [vmem:[%s181 + $0x3c] sm:$0xf]
        %v209 = vld [vmem:[%s181 + $0x40] sm:$0xf]
        %v210 = vld [vmem:[%s181 + $0x44] sm:$0xf]
        %v211 = vld [vmem:[%s181 + $0x48] sm:$0xf]
        %v212 = vld [vmem:[%s181 + $0x4c] sm:$0xf]
        %v213 = vld [vmem:[%s181 + $0x50] sm:$0xf]
        %v214 = vld [vmem:[%s181 + $0x54] sm:$0xf]
        %v215 = vld [vmem:[%s181 + $0x58] sm:$0xf]
        %v216 = vld [vmem:[%s181 + $0x5c] sm:$0xf]
        %v217 = vld [vmem:[%s181 + $0x60] sm:$0xf]
        %v218 = vld [vmem:[%s181 + $0x64] sm:$0xf]
        %v219 = vld [vmem:[%s181 + $0x68] sm:$0xf]
        %v220 = vld [vmem:[%s181 + $0x6c] sm:$0xf]
        %v221 = vld [vmem:[%s181 + $0x70] sm:$0xf]
        %v222 = vld [vmem:[%s181 + $0x74] sm:$0xf]
        %v223 = vld [vmem:[%s181 + $0x78] sm:$0xf]
        %v224 = vld [vmem:[%s181 + $0x7c] sm:$0xf]
        %v225 = vld [vmem:[%s181 + $0x80] sm:$0xf]
        %v226 = vld [vmem:[%s181 + $0x84] sm:$0xf]
        %v227 = vld [vmem:[%s181 + $0x88] sm:$0xf]
        %v228 = vld [vmem:[%s181 + $0x8c] sm:$0xf]
        %v229 = vld [vmem:[%s181 + $0x90] sm:$0xf]
        %v230 = vld [vmem:[%s181 + $0x94] sm:$0xf]
        %v231 = vld [vmem:[%s181 + $0x98] sm:$0xf]
        %v232 = vld [vmem:[%s181 + $0x9c] sm:$0xf]
        %v233 = vld [vmem:[%s181 + $0xa0] sm:$0xf]
        %v234 = vld [vmem:[%s181 + $0xa4] sm:$0xf]
        %v235 = vld [vmem:[%s181 + $0xa8] sm:$0xf]
        %v236 = vld [vmem:[%s181 + $0xac] sm:$0xf]
        %v237 = vld [vmem:[%s181 + $0xb0] sm:$0xf]
        %v238 = vld [vmem:[%s181 + $0xb4] sm:$0xf]
        %v239 = vld [vmem:[%s181 + $0xb8] sm:$0xf]
        %v240 = vld [vmem:[%s181 + $0xbc] sm:$0xf]
        %v241 = vld [vmem:[%s181 + $0xc0] sm:$0xf]
        %v242 = vld [vmem:[%s181 + $0xc4] sm:$0xf]
        %v243 = vld [vmem:[%s181 + $0xc8] sm:$0xf]
        %v244 = vld [vmem:[%s181 + $0xcc] sm:$0xf]
        %v245 = vld [vmem:[%s181 + $0xd0] sm:$0xf]
        %v246 = vld [vmem:[%s181 + $0xd4] sm:$0xf]
        %v247 = vld [vmem:[%s181 + $0xd8] sm:$0xf]
        %v248 = vld [vmem:[%s181 + $0xdc] sm:$0xf]
        %v249 = vld [vmem:[%s181 + $0xe0] sm:$0xf]
        %v250 = vld [vmem:[%s181 + $0xe4] sm:$0xf]
        %v251 = vld [vmem:[%s181 + $0xe8] sm:$0xf]
        %v252 = vld [vmem:[%s181 + $0xec] sm:$0xf]
        %v253 = vld [vmem:[%s181 + $0xf0] sm:$0xf]
        %v254 = vld [vmem:[%s181 + $0xf4] sm:$0xf]
        %v255 = vld [vmem:[%s181 + $0xf8] sm:$0xf]
        %v256 = vld [vmem:[%s181 + $0xfc] sm:$0xf]
        %v257 = vld [vmem:[%s181 + $0x100] sm:$0xf]
        %v258 = vld [vmem:[%s181 + $0x104] sm:$0xf]
        %v259 = vld [vmem:[%s181 + $0x108] sm:$0xf]
        %v260 = vld [vmem:[%s181 + $0x10c] sm:$0xf]
        %v261 = vld [vmem:[%s181 + $0x110] sm:$0xf]
        %v262 = vld [vmem:[%s181 + $0x114] sm:$0xf]
        %v263 = vld [vmem:[%s181 + $0x118] sm:$0xf]
        %v264 = vld [vmem:[%s181 + $0x11c] sm:$0xf]
        %v265 = vld [vmem:[%s181 + $0x120] sm:$0xf]
        %v266 = vld [vmem:[%s181 + $0x124] sm:$0xf]
        %v267 = vld [vmem:[%s181 + $0x128] sm:$0xf]
        %v268 = vld [vmem:[%s181 + $0x12c] sm:$0xf]
        %v269 = vld [vmem:[%s181 + $0x130] sm:$0xf]
        %v270 = vld [vmem:[%s181 + $0x134] sm:$0xf]
        %v271 = vld [vmem:[%s181 + $0x138] sm:$0xf]
        %v272 = vld [vmem:[%s181 + $0x13c] sm:$0xf]
        %v273 = vld [vmem:[%s181 + $0x140] sm:$0xf]
        %v274 = vld [vmem:[%s181 + $0x144] sm:$0xf]
        %v275 = vld [vmem:[%s181 + $0x148] sm:$0xf]
        %v276 = vld [vmem:[%s181 + $0x14c] sm:$0xf]
        %v277 = vld [vmem:[%s181 + $0x150] sm:$0xf]
        %v278 = vld [vmem:[%s181 + $0x154] sm:$0xf]
        %v279 = vld [vmem:[%s181 + $0x158] sm:$0xf]
        %v280 = vld [vmem:[%s181 + $0x15c] sm:$0xf]
        %v281 = vld [vmem:[%s181 + $0x160] sm:$0xf]
        %v282 = vld [vmem:[%s181 + $0x164] sm:$0xf]
        %v283 = vld [vmem:[%s181 + $0x168] sm:$0xf]
        %v284 = vld [vmem:[%s181 + $0x16c] sm:$0xf]
        %v285 = vld [vmem:[%s181 + $0x170] sm:$0xf]
        %v286 = vld [vmem:[%s181 + $0x174] sm:$0xf]
        %v287 = vld [vmem:[%s181 + $0x178] sm:$0xf]
        %v288 = vld [vmem:[%s181 + $0x17c] sm:$0xf]
        %v289 = vld [vmem:[%s181 + $0x180] sm:$0xf]
        %v290 = vld [vmem:[%s181 + $0x184] sm:$0xf]
        %v291 = vld [vmem:[%s181 + $0x188] sm:$0xf]
        %v292 = vld [vmem:[%s181 + $0x18c] sm:$0xf]
        %v293 = vld [vmem:[%s181 + $0x190] sm:$0xf]
        %v294 = vld [vmem:[%s181 + $0x194] sm:$0xf]
        %v295 = vld [vmem:[%s181 + $0x198] sm:$0xf]
        %v296 = vld [vmem:[%s181 + $0x19c] sm:$0xf]
        %v297 = vld [vmem:[%s181 + $0x1a0] sm:$0xf]
        %v298 = vld [vmem:[%s181 + $0x1a4] sm:$0xf]
        %v299 = vld [vmem:[%s181 + $0x1a8] sm:$0xf]
        %v300 = vld [vmem:[%s181 + $0x1ac] sm:$0xf]
        %v301 = vld [vmem:[%s181 + $0x1b0] sm:$0xf]
        %v302 = vld [vmem:[%s181 + $0x1b4] sm:$0xf]
        %v303 = vld [vmem:[%s181 + $0x1b8] sm:$0xf]
        %v304 = vld [vmem:[%s181 + $0x1bc] sm:$0xf]
        %v305 = vld [vmem:[%s181 + $0x1c0] sm:$0xf]
        %v306 = vld [vmem:[%s181 + $0x1c4] sm:$0xf]
        %v307 = vld [vmem:[%s181 + $0x1c8] sm:$0xf]
        %v308 = vld [vmem:[%s181 + $0x1cc] sm:$0xf]
        %v309 = vld [vmem:[%s181 + $0x1d0] sm:$0xf]
        %v310 = vld [vmem:[%s181 + $0x1d4] sm:$0xf]
        %v311 = vld [vmem:[%s181 + $0x1d8] sm:$0xf]
        %v312 = vld [vmem:[%s181 + $0x1dc] sm:$0xf]
        %v313 = vld [vmem:[%s181 + $0x1e0] sm:$0xf]
        %v314 = vld [vmem:[%s181 + $0x1e4] sm:$0xf]
        %v315 = vld [vmem:[%s181 + $0x1e8] sm:$0xf]
        %v316 = vld [vmem:[%s181 + $0x1ec] sm:$0xf]
        %v317 = vld [vmem:[%s181 + $0x1f0] sm:$0xf]
        %v318 = vld [vmem:[%s181 + $0x1f4] sm:$0xf]
        %v319 = vld [vmem:[%s181 + $0x1f8] sm:$0xf]
        %v320 = vld [vmem:[%s181 + $0x1fc] sm:$0xf]
        %v321 = vld [vmem:[%s181 + $0x200] sm:$0xf]
        %v322 = vld [vmem:[%s181 + $0x204] sm:$0xf]
        %v323 = vld [vmem:[%s181 + $0x208] sm:$0xf]
        %v324 = vld [vmem:[%s181 + $0x20c] sm:$0xf]
        %v325 = vld [vmem:[%s181 + $0x210] sm:$0xf]
        %v326 = vld [vmem:[%s181 + $0x214] sm:$0xf]
        %v327 = vld [vmem:[%s181 + $0x218] sm:$0xf]
        %v328 = vld [vmem:[%s181 + $0x21c] sm:$0xf]
        %v329 = vld [vmem:[%s181 + $0x220] sm:$0xf]
        %v330 = vld [vmem:[%s181 + $0x224] sm:$0xf]
        %v331 = vld [vmem:[%s181 + $0x228] sm:$0xf]
        %v332 = vld [vmem:[%s181 + $0x22c] sm:$0xf]
        %v333 = vld [vmem:[%s181 + $0x230] sm:$0xf]
        %v334 = vld [vmem:[%s181 + $0x234] sm:$0xf]
        %v335 = vld [vmem:[%s181 + $0x238] sm:$0xf]
        %v336 = vld [vmem:[%s181 + $0x23c] sm:$0xf]
        %v337 = vld [vmem:[%s181 + $0x240] sm:$0xf]
        %v338 = vld [vmem:[%s181 + $0x244] sm:$0xf]
        %v339 = vld [vmem:[%s181 + $0x248] sm:$0xf]
        %v340 = vld [vmem:[%s181 + $0x24c] sm:$0xf]
        %v341 = vld [vmem:[%s181 + $0x250] sm:$0xf]
        %v342 = vld [vmem:[%s181 + $0x254] sm:$0xf]
        %v343 = vld [vmem:[%s181 + $0x258] sm:$0xf]
        %v344 = vld [vmem:[%s181 + $0x25c] sm:$0xf]
        %v345 = vld [vmem:[%s181 + $0x260] sm:$0xf]
        %v346 = vld [vmem:[%s181 + $0x264] sm:$0xf]
        %v347 = vld [vmem:[%s181 + $0x268] sm:$0xf]
        %v348 = vld [vmem:[%s181 + $0x26c] sm:$0xf]
        %v349 = vld [vmem:[%s181 + $0x270] sm:$0xf]
        %v350 = vld [vmem:[%s181 + $0x274] sm:$0xf]
        %v351 = vld [vmem:[%s181 + $0x278] sm:$0xf]
        %v352 = vld [vmem:[%s181 + $0x27c] sm:$0xf]
        %v353 = vld [vmem:[%s181 + $0x280] sm:$0xf]
        %v354 = vld [vmem:[%s181 + $0x284] sm:$0xf]
        %v355 = vld [vmem:[%s181 + $0x288] sm:$0xf]
        %v356 = vld [vmem:[%s181 + $0x28c] sm:$0xf]
        %v357 = vld [vmem:[%s181 + $0x290] sm:$0xf]
        %v358 = vld [vmem:[%s181 + $0x294] sm:$0xf]
        %v359 = vld [vmem:[%s181 + $0x298] sm:$0xf]
        %v360 = vld [vmem:[%s181 + $0x29c] sm:$0xf]
        %v361 = vld [vmem:[%s181 + $0x2a0] sm:$0xf]
        %v362 = vld [vmem:[%s181 + $0x2a4] sm:$0xf]
        %v363 = vld [vmem:[%s181 + $0x2a8] sm:$0xf]
        %v364 = vld [vmem:[%s181 + $0x2ac] sm:$0xf]
        %v365 = vld [vmem:[%s181 + $0x2b0] sm:$0xf]
        %v366 = vld [vmem:[%s181 + $0x2b4] sm:$0xf]
        %v367 = vld [vmem:[%s181 + $0x2b8] sm:$0xf]
        %v368 = vld [vmem:[%s181 + $0x2bc] sm:$0xf]
        %v369 = vld [vmem:[%s181 + $0x2c0] sm:$0xf]
        %v370 = vld [vmem:[%s181 + $0x2c4] sm:$0xf]
        %v371 = vld [vmem:[%s181 + $0x2c8] sm:$0xf]
        %v372 = vld [vmem:[%s181 + $0x2cc] sm:$0xf]
        %v373 = vld [vmem:[%s181 + $0x2d0] sm:$0xf]
        %v374 = vld [vmem:[%s181 + $0x2d4] sm:$0xf]
        %v375 = vld [vmem:[%s181 + $0x2d8] sm:$0xf]
        %v376 = vld [vmem:[%s181 + $0x2dc] sm:$0xf]
        %v377 = vld [vmem:[%s181 + $0x2e0] sm:$0xf]
        %v378 = vld [vmem:[%s1] sm:$0xf]
        %v379 = vld [vmem:[%s1 + $0x4] sm:$0xf]
        %v380 = vld [vmem:[%s1 + $0x8] sm:$0xf]
        %v381 = vld [vmem:[%s1 + $0xc] sm:$0xf]
        %v382 = vld [vmem:[%s1 + $0x10] sm:$0xf]
        %v383 = vld [vmem:[%s1 + $0x14] sm:$0xf]
        %v384 = vld [vmem:[%s1 + $0x18] sm:$0xf]
        %v385 = vld [vmem:[%s1 + $0x1c] sm:$0xf]
        %v386 = vld [vmem:[%s2] sm:$0x1]
        %v388 = vlaneseq
        %v389 = vshrl.u32 %v388, 7
        %v390 = vsub.s32 0, %v389
        %v391 = vrot.slane %v386, %v390
        %v578 = vunpack.c.l.b16 %v193
        %v579 = vunpack.c.l.b16 %v194
        %v580 = vunpack.c.l.b16 %v195
        %v581 = vunpack.c.l.b16 %v196
        %v582 = vunpack.c.l.b16 %v197
        %v583 = vunpack.c.l.b16 %v198
        %v584 = vunpack.c.l.b16 %v199
        %v585 = vunpack.c.l.b16 %v200
        %v586 = vunpack.c.l.b16 %v201
        %v587 = vunpack.c.l.b16 %v202
        %v588 = vunpack.c.l.b16 %v203
        %v589 = vunpack.c.l.b16 %v204
        %v590 = vunpack.c.l.b16 %v205
        %v591 = vunpack.c.l.b16 %v206
        %v592 = vunpack.c.l.b16 %v207
        %v593 = vunpack.c.l.b16 %v208
        %v594 = vunpack.c.l.b16 %v209
        %v595 = vunpack.c.l.b16 %v210
        %v596 = vunpack.c.l.b16 %v211
        %v597 = vunpack.c.l.b16 %v212
        %v598 = vunpack.c.l.b16 %v213
        %v599 = vunpack.c.l.b16 %v214
        %v600 = vunpack.c.l.b16 %v215
        %v601 = vunpack.c.l.b16 %v216
        %v602 = vunpack.c.l.b16 %v217
        %v603 = vunpack.c.l.b16 %v218
        %v604 = vunpack.c.l.b16 %v219
        %v605 = vunpack.c.l.b16 %v220
        %v606 = vunpack.c.l.b16 %v221
        %v607 = vunpack.c.l.b16 %v222
        %v608 = vunpack.c.l.b16 %v223
        %v609 = vunpack.c.l.b16 %v224
        %v610 = vunpack.c.l.b16 %v225
        %v611 = vunpack.c.l.b16 %v226
        %v612 = vunpack.c.l.b16 %v227
        %v613 = vunpack.c.l.b16 %v228
        %v614 = vunpack.c.l.b16 %v229
        %v615 = vunpack.c.l.b16 %v230
        %v616 = vunpack.c.l.b16 %v231
        %v617 = vunpack.c.l.b16 %v232
        %v618 = vunpack.c.l.b16 %v233
        %v619 = vunpack.c.l.b16 %v234
        %v620 = vunpack.c.l.b16 %v235
        %v621 = vunpack.c.l.b16 %v236
        %v622 = vunpack.c.l.b16 %v237
        %v623 = vunpack.c.l.b16 %v238
        %v624 = vunpack.c.l.b16 %v239
        %v625 = vunpack.c.l.b16 %v240
        %v626 = vunpack.c.l.b16 %v241
        %v627 = vunpack.c.l.b16 %v242
        %v628 = vunpack.c.l.b16 %v243
        %v629 = vunpack.c.l.b16 %v244
        %v630 = vunpack.c.l.b16 %v245
        %v631 = vunpack.c.l.b16 %v246
        %v632 = vunpack.c.l.b16 %v247
        %v633 = vunpack.c.l.b16 %v248
        %v634 = vunpack.c.l.b16 %v249
        %v635 = vunpack.c.l.b16 %v250
        %v636 = vunpack.c.l.b16 %v251
        %v637 = vunpack.c.l.b16 %v252
        %v638 = vunpack.c.l.b16 %v253
        %v639 = vunpack.c.l.b16 %v254
        %v640 = vunpack.c.l.b16 %v255
        %v641 = vunpack.c.l.b16 %v256
        %v642 = vunpack.c.l.b16 %v257
        %v643 = vunpack.c.l.b16 %v258
        %v644 = vunpack.c.l.b16 %v259
        %v645 = vunpack.c.l.b16 %v260
        %v646 = vunpack.c.l.b16 %v261
        %v647 = vunpack.c.l.b16 %v262
        %v648 = vunpack.c.l.b16 %v263
        %v649 = vunpack.c.l.b16 %v264
        %v650 = vunpack.c.l.b16 %v265
        %v651 = vunpack.c.l.b16 %v266
        %v652 = vunpack.c.l.b16 %v267
        %v653 = vunpack.c.l.b16 %v268
        %v654 = vunpack.c.l.b16 %v269
        %v655 = vunpack.c.l.b16 %v270
        %v656 = vunpack.c.l.b16 %v271
        %v657 = vunpack.c.l.b16 %v272
        %v658 = vunpack.c.l.b16 %v273
        %v659 = vunpack.c.l.b16 %v274
        %v660 = vunpack.c.l.b16 %v275
        %v661 = vunpack.c.l.b16 %v276
        %v662 = vunpack.c.l.b16 %v277
        %v663 = vunpack.c.l.b16 %v278
        %v664 = vunpack.c.l.b16 %v279
        %v665 = vunpack.c.l.b16 %v280
        %v666 = vunpack.c.l.b16 %v281
        %v667 = vunpack.c.l.b16 %v282
        %v668 = vunpack.c.l.b16 %v283
        %v669 = vunpack.c.l.b16 %v284
        %v670 = vunpack.c.l.b16 %v285
        %v671 = vunpack.c.l.b16 %v286
        %v672 = vunpack.c.l.b16 %v287
        %v673 = vunpack.c.l.b16 %v288
        %v674 = vunpack.c.l.b16 %v289
        %v675 = vunpack.c.l.b16 %v290
        %v676 = vunpack.c.l.b16 %v291
        %v677 = vunpack.c.l.b16 %v292
        %v678 = vunpack.c.l.b16 %v293
        %v679 = vunpack.c.l.b16 %v294
        %v680 = vunpack.c.l.b16 %v295
        %v681 = vunpack.c.l.b16 %v296
        %v682 = vunpack.c.l.b16 %v297
        %v683 = vunpack.c.l.b16 %v298
        %v684 = vunpack.c.l.b16 %v299
        %v685 = vunpack.c.l.b16 %v300
        %v686 = vunpack.c.l.b16 %v301
        %v687 = vunpack.c.l.b16 %v302
        %v688 = vunpack.c.l.b16 %v303
        %v689 = vunpack.c.l.b16 %v304
        %v690 = vunpack.c.l.b16 %v305
        %v691 = vunpack.c.l.b16 %v306
        %v692 = vunpack.c.l.b16 %v307
        %v693 = vunpack.c.l.b16 %v308
        %v694 = vunpack.c.l.b16 %v309
        %v695 = vunpack.c.l.b16 %v310
        %v696 = vunpack.c.l.b16 %v311
        %v697 = vunpack.c.l.b16 %v312
        %v698 = vunpack.c.l.b16 %v313
        %v699 = vunpack.c.l.b16 %v314
        %v700 = vunpack.c.l.b16 %v315
        %v701 = vunpack.c.l.b16 %v316
        %v702 = vunpack.c.l.b16 %v317
        %v703 = vunpack.c.l.b16 %v318
        %v704 = vunpack.c.l.b16 %v319
        %v705 = vunpack.c.l.b16 %v320
        %v706 = vunpack.c.l.b16 %v321
        %v707 = vunpack.c.l.b16 %v322
        %v708 = vunpack.c.l.b16 %v323
        %v709 = vunpack.c.l.b16 %v324
        %v710 = vunpack.c.l.b16 %v325
        %v711 = vunpack.c.l.b16 %v326
        %v712 = vunpack.c.l.b16 %v327
        %v713 = vunpack.c.l.b16 %v328
        %v714 = vunpack.c.l.b16 %v329
        %v715 = vunpack.c.l.b16 %v330
        %v716 = vunpack.c.l.b16 %v331
        %v717 = vunpack.c.l.b16 %v332
        %v718 = vunpack.c.l.b16 %v333
        %v719 = vunpack.c.l.b16 %v334
        %v720 = vunpack.c.l.b16 %v335
        %v721 = vunpack.c.l.b16 %v336
        %v722 = vunpack.c.l.b16 %v337
        %v723 = vunpack.c.l.b16 %v338
        %v724 = vunpack.c.l.b16 %v339
        %v725 = vunpack.c.l.b16 %v340
        %v726 = vunpack.c.l.b16 %v341
        %v727 = vunpack.c.l.b16 %v342
        %v728 = vunpack.c.l.b16 %v343
        %v729 = vunpack.c.l.b16 %v344
        %v730 = vunpack.c.l.b16 %v345
        %v731 = vunpack.c.l.b16 %v346
        %v732 = vunpack.c.l.b16 %v347
        %v733 = vunpack.c.l.b16 %v348
        %v734 = vunpack.c.l.b16 %v349
        %v735 = vunpack.c.l.b16 %v350
        %v736 = vunpack.c.l.b16 %v351
        %v737 = vunpack.c.l.b16 %v352
        %v738 = vunpack.c.l.b16 %v353
        %v739 = vunpack.c.l.b16 %v354
        %v740 = vunpack.c.l.b16 %v355
        %v741 = vunpack.c.l.b16 %v356
        %v742 = vunpack.c.l.b16 %v357
        %v743 = vunpack.c.l.b16 %v358
        %v744 = vunpack.c.l.b16 %v359
        %v745 = vunpack.c.l.b16 %v360
        %v746 = vunpack.c.l.b16 %v361
        %v747 = vunpack.c.l.b16 %v362
        %v748 = vunpack.c.l.b16 %v363
        %v749 = vunpack.c.l.b16 %v364
        %v750 = vunpack.c.l.b16 %v365
        %v751 = vunpack.c.l.b16 %v366
        %v752 = vunpack.c.l.b16 %v367
        %v753 = vunpack.c.l.b16 %v368
        %v754 = vunpack.c.l.b16 %v369
        %v755 = vunpack.c.l.b16 %v370
        %v756 = vunpack.c.l.b16 %v371
        %v757 = vunpack.c.l.b16 %v372
        %v758 = vunpack.c.l.b16 %v373
        %v759 = vunpack.c.l.b16 %v374
        %v760 = vunpack.c.l.b16 %v375
        %v761 = vunpack.c.l.b16 %v376
        %v762 = vunpack.c.l.b16 %v377
        %v763 = vpack.c.b16 %v579, %v578
        %v764 = vpack.c.b16 %v581, %v580
        %v765 = vpack.c.b16 %v583, %v582
        %v766 = vpack.c.b16 %v585, %v584
        %v767 = vpack.c.b16 %v587, %v586
        %v768 = vpack.c.b16 %v589, %v588
        %v769 = vpack.c.b16 %v591, %v590
        %v770 = vpack.c.b16 %v593, %v592
        %v771 = vpack.c.b16 %v595, %v594
        %v772 = vpack.c.b16 %v597, %v596
        %v773 = vpack.c.b16 %v599, %v598
        %v774 = vpack.c.b16 %v601, %v600
        %v775 = vpack.c.b16 %v603, %v602
        %v776 = vpack.c.b16 %v605, %v604
        %v777 = vpack.c.b16 %v607, %v606
        %v778 = vpack.c.b16 %v609, %v608
        %v779 = vpack.c.b16 %v611, %v610
        %v780 = vpack.c.b16 %v613, %v612
        %v781 = vpack.c.b16 %v615, %v614
        %v782 = vpack.c.b16 %v617, %v616
        %v783 = vpack.c.b16 %v619, %v618
        %v784 = vpack.c.b16 %v621, %v620
        %v785 = vpack.c.b16 %v623, %v622
        %v786 = vpack.c.b16 %v625, %v624
        %v787 = vpack.c.b16 %v627, %v626
        %v788 = vpack.c.b16 %v629, %v628
        %v789 = vpack.c.b16 %v631, %v630
        %v790 = vpack.c.b16 %v633, %v632
        %v791 = vpack.c.b16 %v635, %v634
        %v792 = vpack.c.b16 %v637, %v636
        %v793 = vpack.c.b16 %v639, %v638
        %v794 = vpack.c.b16 %v641, %v640
        %v795 = vpack.c.b16 %v643, %v642
        %v796 = vpack.c.b16 %v645, %v644
        %v797 = vpack.c.b16 %v647, %v646
        %v798 = vpack.c.b16 %v649, %v648
        %v799 = vpack.c.b16 %v651, %v650
        %v800 = vpack.c.b16 %v653, %v652
        %v801 = vpack.c.b16 %v655, %v654
        %v802 = vpack.c.b16 %v657, %v656
        %v803 = vpack.c.b16 %v659, %v658
        %v804 = vpack.c.b16 %v661, %v660
        %v805 = vpack.c.b16 %v663, %v662
        %v806 = vpack.c.b16 %v665, %v664
        %v807 = vpack.c.b16 %v667, %v666
        %v808 = vpack.c.b16 %v669, %v668
        %v809 = vpack.c.b16 %v671, %v670
        %v810 = vpack.c.b16 %v673, %v672
        %v811 = vpack.c.b16 %v675, %v674
        %v812 = vpack.c.b16 %v677, %v676
        %v813 = vpack.c.b16 %v679, %v678
        %v814 = vpack.c.b16 %v681, %v680
        %v815 = vpack.c.b16 %v683, %v682
        %v816 = vpack.c.b16 %v685, %v684
        %v817 = vpack.c.b16 %v687, %v686
        %v818 = vpack.c.b16 %v689, %v688
        %v819 = vpack.c.b16 %v691, %v690
        %v820 = vpack.c.b16 %v693, %v692
        %v821 = vpack.c.b16 %v695, %v694
        %v822 = vpack.c.b16 %v697, %v696
        %v823 = vpack.c.b16 %v699, %v698
        %v824 = vpack.c.b16 %v701, %v700
        %v825 = vpack.c.b16 %v703, %v702
        %v826 = vpack.c.b16 %v705, %v704
        %v827 = vpack.c.b16 %v707, %v706
        %v828 = vpack.c.b16 %v709, %v708
        %v829 = vpack.c.b16 %v711, %v710
        %v830 = vpack.c.b16 %v713, %v712
        %v831 = vpack.c.b16 %v715, %v714
        %v832 = vpack.c.b16 %v717, %v716
        %v833 = vpack.c.b16 %v719, %v718
        %v834 = vpack.c.b16 %v721, %v720
        %v835 = vpack.c.b16 %v723, %v722
        %v836 = vpack.c.b16 %v725, %v724
        %v837 = vpack.c.b16 %v727, %v726
        %v838 = vpack.c.b16 %v729, %v728
        %v839 = vpack.c.b16 %v731, %v730
        %v840 = vpack.c.b16 %v733, %v732
        %v841 = vpack.c.b16 %v735, %v734
        %v842 = vpack.c.b16 %v737, %v736
        %v843 = vpack.c.b16 %v739, %v738
        %v844 = vpack.c.b16 %v741, %v740
        %v845 = vpack.c.b16 %v743, %v742
        %v846 = vpack.c.b16 %v745, %v744
        %v847 = vpack.c.b16 %v747, %v746
        %v848 = vpack.c.b16 %v749, %v748
        %v849 = vpack.c.b16 %v751, %v750
        %v850 = vpack.c.b16 %v753, %v752
        %v851 = vpack.c.b16 %v755, %v754
        %v852 = vpack.c.b16 %v757, %v756
        %v853 = vpack.c.b16 %v759, %v758
        %v854 = vpack.c.b16 %v761, %v760
        %v855 = vpack.c.b16 %v762, %v762
        %v864 = vunpack.c.l.b16 %v378
        %v865 = vunpack.c.l.b16 %v379
        %v866 = vunpack.c.l.b16 %v380
        %v867 = vunpack.c.l.b16 %v381
        %v868 = vunpack.c.l.b16 %v382
        %v869 = vunpack.c.l.b16 %v383
        %v870 = vunpack.c.l.b16 %v384
        %v871 = vunpack.c.l.b16 %v385
        %v872 = vpack.c.b16 %v865, %v864
        %v873 = vpack.c.b16 %v867, %v866
        %v874 = vpack.c.b16 %v869, %v868
        %v875 = vpack.c.b16 %v871, %v870
        %vm880 = vcmask 523264
        %v882 = vsel %vm880, %v763, 0
        %v885 = vsel %vm880, %v764, 0
        %v888 = vsel %vm880, %v765, 0
        %v891 = vsel %vm880, %v766, 0
        %v894 = vsel %vm880, %v767, 0
        %v897 = vsel %vm880, %v768, 0
        %v900 = vsel %vm880, %v769, 0
        %v903 = vsel %vm880, %v770, 0
        %v906 = vsel %vm880, %v771, 0
        %v909 = vsel %vm880, %v772, 0
        %v912 = vsel %vm880, %v773, 0
        %v915 = vsel %vm880, %v774, 0
        %v918 = vsel %vm880, %v775, 0
        %v921 = vsel %vm880, %v776, 0
        %v924 = vsel %vm880, %v777, 0
        %v927 = vsel %vm880, %v778, 0
        %v930 = vsel %vm880, %v779, 0
        %v933 = vsel %vm880, %v780, 0
        %v936 = vsel %vm880, %v781, 0
        %v939 = vsel %vm880, %v782, 0
        %v942 = vsel %vm880, %v783, 0
        %v945 = vsel %vm880, %v784, 0
        %v948 = vsel %vm880, %v785, 0
        %v951 = vsel %vm880, %v786, 0
        %v954 = vsel %vm880, %v787, 0
        %v957 = vsel %vm880, %v788, 0
        %v960 = vsel %vm880, %v789, 0
        %v963 = vsel %vm880, %v790, 0
        %v966 = vsel %vm880, %v791, 0
        %v969 = vsel %vm880, %v792, 0
        %v972 = vsel %vm880, %v793, 0
        %v975 = vsel %vm880, %v794, 0
        %v978 = vsel %vm880, %v795, 0
        %v981 = vsel %vm880, %v796, 0
        %v984 = vsel %vm880, %v797, 0
        %v987 = vsel %vm880, %v798, 0
        %v990 = vsel %vm880, %v799, 0
        %v993 = vsel %vm880, %v800, 0
        %v996 = vsel %vm880, %v801, 0
        %v999 = vsel %vm880, %v802, 0
        %v1002 = vsel %vm880, %v803, 0
        %v1005 = vsel %vm880, %v804, 0
        %v1008 = vsel %vm880, %v805, 0
        %v1011 = vsel %vm880, %v806, 0
        %v1014 = vsel %vm880, %v807, 0
        %v1017 = vsel %vm880, %v808, 0
        %v1020 = vsel %vm880, %v809, 0
        %v1023 = vsel %vm880, %v810, 0
        %v1026 = vsel %vm880, %v811, 0
        %v1029 = vsel %vm880, %v812, 0
        %v1032 = vsel %vm880, %v813, 0
        %v1035 = vsel %vm880, %v814, 0
        %v1038 = vsel %vm880, %v815, 0
        %v1041 = vsel %vm880, %v816, 0
        %v1044 = vsel %vm880, %v817, 0
        %v1047 = vsel %vm880, %v818, 0
        %v1050 = vsel %vm880, %v819, 0
        %v1053 = vsel %vm880, %v820, 0
        %v1056 = vsel %vm880, %v821, 0
        %v1059 = vsel %vm880, %v822, 0
        %v1062 = vsel %vm880, %v823, 0
        %v1065 = vsel %vm880, %v824, 0
        %v1068 = vsel %vm880, %v825, 0
        %v1071 = vsel %vm880, %v826, 0
        %v1074 = vsel %vm880, %v827, 0
        %v1077 = vsel %vm880, %v828, 0
        %v1080 = vsel %vm880, %v829, 0
        %v1083 = vsel %vm880, %v830, 0
        %v1086 = vsel %vm880, %v831, 0
        %v1089 = vsel %vm880, %v832, 0
        %v1092 = vsel %vm880, %v833, 0
        %v1095 = vsel %vm880, %v834, 0
        %v1098 = vsel %vm880, %v835, 0
        %v1101 = vsel %vm880, %v836, 0
        %v1104 = vsel %vm880, %v837, 0
        %v1107 = vsel %vm880, %v838, 0
        %v1110 = vsel %vm880, %v839, 0
        %v1113 = vsel %vm880, %v840, 0
        %v1116 = vsel %vm880, %v841, 0
        %v1119 = vsel %vm880, %v842, 0
        %v1122 = vsel %vm880, %v843, 0
        %v1125 = vsel %vm880, %v844, 0
        %v1128 = vsel %vm880, %v845, 0
        %v1131 = vsel %vm880, %v846, 0
        %v1134 = vsel %vm880, %v847, 0
        %v1137 = vsel %vm880, %v848, 0
        %v1140 = vsel %vm880, %v849, 0
        %v1143 = vsel %vm880, %v850, 0
        %v1146 = vsel %vm880, %v851, 0
        %v1149 = vsel %vm880, %v852, 0
        %v1152 = vsel %vm880, %v853, 0
        %v1155 = vsel %vm880, %v854, 0
        %v1158 = vsel %vm880, %v855, 0
        %1160 = vmatprep.subr.bf16.mxu0 0
        %1161 = vmatpush1.bf16.msra.mxu0 %v872
        %1162 = vmatprep.subr.bf16.mxu0 0
        %1163 = vmatpush1.bf16.msra.mxu0 %v873
        %1164 = vmatprep.subr.bf16.mxu0 0
        %1165 = vmatpush1.bf16.msra.mxu0 %v874
        %1166 = vmatprep.subr.bf16.mxu0 0
        %1167 = vmatpush1.bf16.msra.mxu0 %v875
        %1168 = vmatprep.subr.bf16.mxu0 0
        %1169 = vmatpush1.bf16.msra.mxu0 0
        %1170 = vmatprep.subr.bf16.mxu0 0
        %1171 = vmatpush1.bf16.msra.mxu0 0
        %1172 = vmatprep.subr.bf16.mxu0 0
        %1173 = vmatpush1.bf16.msra.mxu0 0
        %1174 = vmatprep.subr.bf16.mxu0 0
        %1175 = vmatpush1.bf16.msra.mxu0 0
        %1176 = vmatprep.subr.bf16.mxu0 0
        %1177 = vmatpush1.bf16.msra.mxu0 0
        %1178 = vmatprep.subr.bf16.mxu0 0
        %1179 = vmatpush1.bf16.msra.mxu0 0
        %1180 = vmatprep.subr.bf16.mxu0 0
        %1181 = vmatpush1.bf16.msra.mxu0 0
        %1182 = vmatprep.subr.bf16.mxu0 0
        %1183 = vmatpush1.bf16.msra.mxu0 0
        %1184 = vmatprep.subr.bf16.mxu0 0
        %1185 = vmatpush1.bf16.msra.mxu0 0
        %1186 = vmatprep.subr.bf16.mxu0 0
        %1187 = vmatpush1.bf16.msra.mxu0 0
        %1188 = vmatprep.subr.bf16.mxu0 0
        %1189 = vmatpush1.bf16.msra.mxu0 0
        %1190 = vmatprep.subr.bf16.mxu0 0
        %1191 = vmatpush1.bf16.msra.mxu0 0
        %1192 = vmatprep.mubr.bf16.mxu0 0
        %1193 = vmatmul.mubr.bf16.gmra.mrb[0].mxu0 %v882
        %v1194 = vpop.f32.mrb[0].mxu0
        %v1195 = vadd.f32 %v391, %v1194
        %v1196 = vpop.f32.mrb[0].mxu0
        %v1197 = vpop.f32.mrb[0].mxu0
        %v1198 = vadd.f32 %v391, %v1197
        %v1199 = vpop.f32.mrb[0].mxu0
        %1200 = vmatprep.mubr.bf16.mxu0 0
        %1201 = vmatmul.mubr.bf16.gmra.mrb[0].mxu0 %v885
        %v1202 = vpop.f32.mrb[0].mxu0
        %v1203 = vadd.f32 %v391, %v1202
        %v1204 = vpop.f32.mrb[0].mxu0
        %v1205 = vpop.f32.mrb[0].mxu0
        %v1206 = vadd.f32 %v391, %v1205
        %v1207 = vpop.f32.mrb[0].mxu0
        %1208 = vmatprep.mubr.bf16.mxu0 0
        %1209 = vmatmul.mubr.bf16.gmra.mrb[0].mxu0 %v888
        %v1210 = vpop.f32.mrb[0].mxu0
        %v1211 = vadd.f32 %v391, %v1210
        %v1212 = vpop.f32.mrb[0].mxu0
        %v1213 = vpop.f32.mrb[0].mxu0
        %v1214 = vadd.f32 %v391, %v1213
        %v1215 = vpop.f32.mrb[0].mxu0
        %1216 = vmatprep.mubr.bf16.mxu0 0
        %1217 = vmatmul.mubr.bf16.gmra.mrb[0].mxu0 %v891
        %v1218 = vpop.f32.mrb[0].mxu0
        %v1219 = vadd.f32 %v391, %v1218
        %v1220 = vpop.f32.mrb[0].mxu0
        %v1221 = vpop.f32.mrb[0].mxu0
        %v1222 = vadd.f32 %v391, %v1221
        %v1223 = vpop.f32.mrb[0].mxu0
        %1224 = vmatprep.mubr.bf16.mxu0 0
        %1225 = vmatmul.mubr.bf16.gmra.mrb[0].mxu0 %v894
        %v1226 = vpop.f32.mrb[0].mxu0
        %v1227 = vadd.f32 %v391, %v1226
        %v1228 = vpop.f32.mrb[0].mxu0
        %v1229 = vpop.f32.mrb[0].mxu0
        %v1230 = vadd.f32 %v391, %v1229
        %v1231 = vpop.f32.mrb[0].mxu0
        %1232 = vmatprep.mubr.bf16.mxu0 0
        %1233 = vmatmul.mubr.bf16.gmra.mrb[0].mxu0 %v897
        %v1234 = vpop.f32.mrb[0].mxu0
        %v1235 = vadd.f32 %v391, %v1234
        %v1236 = vpop.f32.mrb[0].mxu0
        %v1237 = vpop.f32.mrb[0].mxu0
        %v1238 = vadd.f32 %v391, %v1237
        %v1239 = vpop.f32.mrb[0].mxu0
        %1240 = vmatprep.mubr.bf16.mxu0 0
        %1241 = vmatmul.mubr.bf16.gmra.mrb[0].mxu0 %v900
        %v1242 = vpop.f32.mrb[0].mxu0
        %v1243 = vadd.f32 %v391, %v1242
        %v1244 = vpop.f32.mrb[0].mxu0
        %v1245 = vpop.f32.mrb[0].mxu0
        %v1246 = vadd.f32 %v391, %v1245
        %v1247 = vpop.f32.mrb[0].mxu0
        %1248 = vmatprep.mubr.bf16.mxu0 0
        %1249 = vmatmul.mubr.bf16.gmra.mrb[0].mxu0 %v903
        %v1250 = vpop.f32.mrb[0].mxu0
        %v1251 = vadd.f32 %v391, %v1250
        %v1252 = vpop.f32.mrb[0].mxu0
        %v1253 = vpop.f32.mrb[0].mxu0
        %v1254 = vadd.f32 %v391, %v1253
        %v1255 = vpop.f32.mrb[0].mxu0
        %1256 = vmatprep.mubr.bf16.mxu0 0
        %1257 = vmatmul.mubr.bf16.gmra.mrb[0].mxu0 %v906
        %v1258 = vpop.f32.mrb[0].mxu0
        %v1259 = vadd.f32 %v391, %v1258
        %v1260 = vpop.f32.mrb[0].mxu0
        %v1261 = vpop.f32.mrb[0].mxu0
        %v1262 = vadd.f32 %v391, %v1261
        %v1263 = vpop.f32.mrb[0].mxu0
        %1264 = vmatprep.mubr.bf16.mxu0 0
        %1265 = vmatmul.mubr.bf16.gmra.mrb[0].mxu0 %v909
        %v1266 = vpop.f32.mrb[0].mxu0
        %v1267 = vadd.f32 %v391, %v1266
        %v1268 = vpop.f32.mrb[0].mxu0
        %v1269 = vpop.f32.mrb[0].mxu0
        %v1270 = vadd.f32 %v391, %v1269
        %v1271 = vpop.f32.mrb[0].mxu0
        %1272 = vmatprep.mubr.bf16.mxu0 0
        %1273 = vmatmul.mubr.bf16.gmra.mrb[0].mxu0 %v912
        %v1274 = vpop.f32.mrb[0].mxu0
        %v1275 = vadd.f32 %v391, %v1274
        %v1276 = vpop.f32.mrb[0].mxu0
        %v1277 = vpop.f32.mrb[0].mxu0
        %v1278 = vadd.f32 %v391, %v1277
        %v1279 = vpop.f32.mrb[0].mxu0
        %1280 = vmatprep.mubr.bf16.mxu0 0
        %1281 = vmatmul.mubr.bf16.gmra.mrb[0].mxu0 %v915
        %v1282 = vpop.f32.mrb[0].mxu0
        %v1283 = vadd.f32 %v391, %v1282
        %v1284 = vpop.f32.mrb[0].mxu0
        %v1285 = vpop.f32.mrb[0].mxu0
        %v1286 = vadd.f32 %v391, %v1285
        %v1287 = vpop.f32.mrb[0].mxu0
        %1288 = vmatprep.mubr.bf16.mxu0 0
        %1289 = vmatmul.mubr.bf16.gmra.mrb[0].mxu0 %v918
        %v1290 = vpop.f32.mrb[0].mxu0
        %v1291 = vadd.f32 %v391, %v1290
        %v1292 = vpop.f32.mrb[0].mxu0
        %v1293 = vpop.f32.mrb[0].mxu0
        %v1294 = vadd.f32 %v391, %v1293
        %v1295 = vpop.f32.mrb[0].mxu0
        %1296 = vmatprep.mubr.bf16.mxu0 0
        %1297 = vmatmul.mubr.bf16.gmra.mrb[0].mxu0 %v921
        %v1298 = vpop.f32.mrb[0].mxu0
        %v1299 = vadd.f32 %v391, %v1298
        %v1300 = vpop.f32.mrb[0].mxu0
        %v1301 = vpop.f32.mrb[0].mxu0
        %v1302 = vadd.f32 %v391, %v1301
        %v1303 = vpop.f32.mrb[0].mxu0
        %1304 = vmatprep.mubr.bf16.mxu0 0
        %1305 = vmatmul.mubr.bf16.gmra.mrb[0].mxu0 %v924
        %v1306 = vpop.f32.mrb[0].mxu0
        %v1307 = vadd.f32 %v391, %v1306
        %v1308 = vpop.f32.mrb[0].mxu0
        %v1309 = vpop.f32.mrb[0].mxu0
        %v1310 = vadd.f32 %v391, %v1309
        %v1311 = vpop.f32.mrb[0].mxu0
        %1312 = vmatprep.mubr.bf16.mxu0 0
        %1313 = vmatmul.mubr.bf16.gmra.mrb[0].mxu0 %v927
        %v1314 = vpop.f32.mrb[0].mxu0
        %v1315 = vadd.f32 %v391, %v1314
        %v1316 = vpop.f32.mrb[0].mxu0
        %v1317 = vpop.f32.mrb[0].mxu0
        %v1318 = vadd.f32 %v391, %v1317
        %v1319 = vpop.f32.mrb[0].mxu0
        %1320 = vmatprep.mubr.bf16.mxu0 0
        %1321 = vmatmul.mubr.bf16.gmra.mrb[0].mxu0 %v930
        %v1322 = vpop.f32.mrb[0].mxu0
        %v1323 = vadd.f32 %v391, %v1322
        %v1324 = vpop.f32.mrb[0].mxu0
        %v1325 = vpop.f32.mrb[0].mxu0
        %v1326 = vadd.f32 %v391, %v1325
        %v1327 = vpop.f32.mrb[0].mxu0
        %1328 = vmatprep.mubr.bf16.mxu0 0
        %1329 = vmatmul.mubr.bf16.gmra.mrb[0].mxu0 %v933
        %v1330 = vpop.f32.mrb[0].mxu0
        %v1331 = vadd.f32 %v391, %v1330
        %v1332 = vpop.f32.mrb[0].mxu0
        %v1333 = vpop.f32.mrb[0].mxu0
        %v1334 = vadd.f32 %v391, %v1333
        %v1335 = vpop.f32.mrb[0].mxu0
        %1336 = vmatprep.mubr.bf16.mxu0 0
        %1337 = vmatmul.mubr.bf16.gmra.mrb[0].mxu0 %v936
        %v1338 = vpop.f32.mrb[0].mxu0
        %v1339 = vadd.f32 %v391, %v1338
        %v1340 = vpop.f32.mrb[0].mxu0
        %v1341 = vpop.f32.mrb[0].mxu0
        %v1342 = vadd.f32 %v391, %v1341
        %v1343 = vpop.f32.mrb[0].mxu0
        %1344 = vmatprep.mubr.bf16.mxu0 0
        %1345 = vmatmul.mubr.bf16.gmra.mrb[0].mxu0 %v939
        %v1346 = vpop.f32.mrb[0].mxu0
        %v1347 = vadd.f32 %v391, %v1346
        %v1348 = vpop.f32.mrb[0].mxu0
        %v1349 = vpop.f32.mrb[0].mxu0
        %v1350 = vadd.f32 %v391, %v1349
        %v1351 = vpop.f32.mrb[0].mxu0
        %1352 = vmatprep.mubr.bf16.mxu0 0
        %1353 = vmatmul.mubr.bf16.gmra.mrb[0].mxu0 %v942
        %v1354 = vpop.f32.mrb[0].mxu0
        %v1355 = vadd.f32 %v391, %v1354
        %v1356 = vpop.f32.mrb[0].mxu0
        %v1357 = vpop.f32.mrb[0].mxu0
        %v1358 = vadd.f32 %v391, %v1357
        %v1359 = vpop.f32.mrb[0].mxu0
        %1360 = vmatprep.mubr.bf16.mxu0 0
        %1361 = vmatmul.mubr.bf16.gmra.mrb[0].mxu0 %v945
        %v1362 = vpop.f32.mrb[0].mxu0
        %v1363 = vadd.f32 %v391, %v1362
        %v1364 = vpop.f32.mrb[0].mxu0
        %v1365 = vpop.f32.mrb[0].mxu0
        %v1366 = vadd.f32 %v391, %v1365
        %v1367 = vpop.f32.mrb[0].mxu0
        %1368 = vmatprep.mubr.bf16.mxu0 0
        %1369 = vmatmul.mubr.bf16.gmra.mrb[0].mxu0 %v948
        %v1370 = vpop.f32.mrb[0].mxu0
        %v1371 = vadd.f32 %v391, %v1370
        %v1372 = vpop.f32.mrb[0].mxu0
        %v1373 = vpop.f32.mrb[0].mxu0
        %v1374 = vadd.f32 %v391, %v1373
        %v1375 = vpop.f32.mrb[0].mxu0
        %1376 = vmatprep.mubr.bf16.mxu0 0
        %1377 = vmatmul.mubr.bf16.gmra.mrb[0].mxu0 %v951
        %v1378 = vpop.f32.mrb[0].mxu0
        %v1379 = vadd.f32 %v391, %v1378
        %v1380 = vpop.f32.mrb[0].mxu0
        %v1381 = vpop.f32.mrb[0].mxu0
        %v1382 = vadd.f32 %v391, %v1381
        %v1383 = vpop.f32.mrb[0].mxu0
        %1384 = vmatprep.mubr.bf16.mxu0 0
        %1385 = vmatmul.mubr.bf16.gmra.mrb[0].mxu0 %v954
        %v1386 = vpop.f32.mrb[0].mxu0
        %v1387 = vadd.f32 %v391, %v1386
        %v1388 = vpop.f32.mrb[0].mxu0
        %v1389 = vpop.f32.mrb[0].mxu0
        %v1390 = vadd.f32 %v391, %v1389
        %v1391 = vpop.f32.mrb[0].mxu0
        %1392 = vmatprep.mubr.bf16.mxu0 0
        %1393 = vmatmul.mubr.bf16.gmra.mrb[0].mxu0 %v957
        %v1394 = vpop.f32.mrb[0].mxu0
        %v1395 = vadd.f32 %v391, %v1394
        %v1396 = vpop.f32.mrb[0].mxu0
        %v1397 = vpop.f32.mrb[0].mxu0
        %v1398 = vadd.f32 %v391, %v1397
        %v1399 = vpop.f32.mrb[0].mxu0
        %1400 = vmatprep.mubr.bf16.mxu0 0
        %1401 = vmatmul.mubr.bf16.gmra.mrb[0].mxu0 %v960
        %v1402 = vpop.f32.mrb[0].mxu0
        %v1403 = vadd.f32 %v391, %v1402
        %v1404 = vpop.f32.mrb[0].mxu0
        %v1405 = vpop.f32.mrb[0].mxu0
        %v1406 = vadd.f32 %v391, %v1405
        %v1407 = vpop.f32.mrb[0].mxu0
        %1408 = vmatprep.mubr.bf16.mxu0 0
        %1409 = vmatmul.mubr.bf16.gmra.mrb[0].mxu0 %v963
        %v1410 = vpop.f32.mrb[0].mxu0
        %v1411 = vadd.f32 %v391, %v1410
        %v1412 = vpop.f32.mrb[0].mxu0
        %v1413 = vpop.f32.mrb[0].mxu0
        %v1414 = vadd.f32 %v391, %v1413
        %v1415 = vpop.f32.mrb[0].mxu0
        %1416 = vmatprep.mubr.bf16.mxu0 0
        %1417 = vmatmul.mubr.bf16.gmra.mrb[0].mxu0 %v966
        %v1418 = vpop.f32.mrb[0].mxu0
        %v1419 = vadd.f32 %v391, %v1418
        %v1420 = vpop.f32.mrb[0].mxu0
        %v1421 = vpop.f32.mrb[0].mxu0
        %v1422 = vadd.f32 %v391, %v1421
        %v1423 = vpop.f32.mrb[0].mxu0
        %1424 = vmatprep.mubr.bf16.mxu0 0
        %1425 = vmatmul.mubr.bf16.gmra.mrb[0].mxu0 %v969
        %v1426 = vpop.f32.mrb[0].mxu0
        %v1427 = vadd.f32 %v391, %v1426
        %v1428 = vpop.f32.mrb[0].mxu0
        %v1429 = vpop.f32.mrb[0].mxu0
        %v1430 = vadd.f32 %v391, %v1429
        %v1431 = vpop.f32.mrb[0].mxu0
        %1432 = vmatprep.mubr.bf16.mxu0 0
        %1433 = vmatmul.mubr.bf16.gmra.mrb[0].mxu0 %v972
        %v1434 = vpop.f32.mrb[0].mxu0
        %v1435 = vadd.f32 %v391, %v1434
        %v1436 = vpop.f32.mrb[0].mxu0
        %v1437 = vpop.f32.mrb[0].mxu0
        %v1438 = vadd.f32 %v391, %v1437
        %v1439 = vpop.f32.mrb[0].mxu0
        %1440 = vmatprep.mubr.bf16.mxu0 0
        %1441 = vmatmul.mubr.bf16.gmra.mrb[0].mxu0 %v975
        %v1442 = vpop.f32.mrb[0].mxu0
        %v1443 = vadd.f32 %v391, %v1442
        %v1444 = vpop.f32.mrb[0].mxu0
        %v1445 = vpop.f32.mrb[0].mxu0
        %v1446 = vadd.f32 %v391, %v1445
        %v1447 = vpop.f32.mrb[0].mxu0
        %1448 = vmatprep.mubr.bf16.mxu0 0
        %1449 = vmatmul.mubr.bf16.gmra.mrb[0].mxu0 %v978
        %v1450 = vpop.f32.mrb[0].mxu0
        %v1451 = vadd.f32 %v391, %v1450
        %v1452 = vpop.f32.mrb[0].mxu0
        %v1453 = vpop.f32.mrb[0].mxu0
        %v1454 = vadd.f32 %v391, %v1453
        %v1455 = vpop.f32.mrb[0].mxu0
        %1456 = vmatprep.mubr.bf16.mxu0 0
        %1457 = vmatmul.mubr.bf16.gmra.mrb[0].mxu0 %v981
        %v1458 = vpop.f32.mrb[0].mxu0
        %v1459 = vadd.f32 %v391, %v1458
        %v1460 = vpop.f32.mrb[0].mxu0
        %v1461 = vpop.f32.mrb[0].mxu0
        %v1462 = vadd.f32 %v391, %v1461
        %v1463 = vpop.f32.mrb[0].mxu0
        %1464 = vmatprep.mubr.bf16.mxu0 0
        %1465 = vmatmul.mubr.bf16.gmra.mrb[0].mxu0 %v984
        %v1466 = vpop.f32.mrb[0].mxu0
        %v1467 = vadd.f32 %v391, %v1466
        %v1468 = vpop.f32.mrb[0].mxu0
        %v1469 = vpop.f32.mrb[0].mxu0
        %v1470 = vadd.f32 %v391, %v1469
        %v1471 = vpop.f32.mrb[0].mxu0
        %1472 = vmatprep.mubr.bf16.mxu0 0
        %1473 = vmatmul.mubr.bf16.gmra.mrb[0].mxu0 %v987
        %v1474 = vpop.f32.mrb[0].mxu0
        %v1475 = vadd.f32 %v391, %v1474
        %v1476 = vpop.f32.mrb[0].mxu0
        %v1477 = vpop.f32.mrb[0].mxu0
        %v1478 = vadd.f32 %v391, %v1477
        %v1479 = vpop.f32.mrb[0].mxu0
        %1480 = vmatprep.mubr.bf16.mxu0 0
        %1481 = vmatmul.mubr.bf16.gmra.mrb[0].mxu0 %v990
        %v1482 = vpop.f32.mrb[0].mxu0
        %v1483 = vadd.f32 %v391, %v1482
        %v1484 = vpop.f32.mrb[0].mxu0
        %v1485 = vpop.f32.mrb[0].mxu0
        %v1486 = vadd.f32 %v391, %v1485
        %v1487 = vpop.f32.mrb[0].mxu0
        %1488 = vmatprep.mubr.bf16.mxu0 0
        %1489 = vmatmul.mubr.bf16.gmra.mrb[0].mxu0 %v993
        %v1490 = vpop.f32.mrb[0].mxu0
        %v1491 = vadd.f32 %v391, %v1490
        %v1492 = vpop.f32.mrb[0].mxu0
        %v1493 = vpop.f32.mrb[0].mxu0
        %v1494 = vadd.f32 %v391, %v1493
        %v1495 = vpop.f32.mrb[0].mxu0
        %1496 = vmatprep.mubr.bf16.mxu0 0
        %1497 = vmatmul.mubr.bf16.gmra.mrb[0].mxu0 %v996
        %v1498 = vpop.f32.mrb[0].mxu0
        %v1499 = vadd.f32 %v391, %v1498
        %v1500 = vpop.f32.mrb[0].mxu0
        %v1501 = vpop.f32.mrb[0].mxu0
        %v1502 = vadd.f32 %v391, %v1501
        %v1503 = vpop.f32.mrb[0].mxu0
        %1504 = vmatprep.mubr.bf16.mxu0 0
        %1505 = vmatmul.mubr.bf16.gmra.mrb[0].mxu0 %v999
        %v1506 = vpop.f32.mrb[0].mxu0
        %v1507 = vadd.f32 %v391, %v1506
        %v1508 = vpop.f32.mrb[0].mxu0
        %v1509 = vpop.f32.mrb[0].mxu0
        %v1510 = vadd.f32 %v391, %v1509
        %v1511 = vpop.f32.mrb[0].mxu0
        %1512 = vmatprep.mubr.bf16.mxu0 0
        %1513 = vmatmul.mubr.bf16.gmra.mrb[0].mxu0 %v1002
        %v1514 = vpop.f32.mrb[0].mxu0
        %v1515 = vadd.f32 %v391, %v1514
        %v1516 = vpop.f32.mrb[0].mxu0
        %v1517 = vpop.f32.mrb[0].mxu0
        %v1518 = vadd.f32 %v391, %v1517
        %v1519 = vpop.f32.mrb[0].mxu0
        %1520 = vmatprep.mubr.bf16.mxu0 0
        %1521 = vmatmul.mubr.bf16.gmra.mrb[0].mxu0 %v1005
        %v1522 = vpop.f32.mrb[0].mxu0
        %v1523 = vadd.f32 %v391, %v1522
        %v1524 = vpop.f32.mrb[0].mxu0
        %v1525 = vpop.f32.mrb[0].mxu0
        %v1526 = vadd.f32 %v391, %v1525
        %v1527 = vpop.f32.mrb[0].mxu0
        %1528 = vmatprep.mubr.bf16.mxu0 0
        %1529 = vmatmul.mubr.bf16.gmra.mrb[0].mxu0 %v1008
        %v1530 = vpop.f32.mrb[0].mxu0
        %v1531 = vadd.f32 %v391, %v1530
        %v1532 = vpop.f32.mrb[0].mxu0
        %v1533 = vpop.f32.mrb[0].mxu0
        %v1534 = vadd.f32 %v391, %v1533
        %v1535 = vpop.f32.mrb[0].mxu0
        %1536 = vmatprep.mubr.bf16.mxu0 0
        %1537 = vmatmul.mubr.bf16.gmra.mrb[0].mxu0 %v1011
        %v1538 = vpop.f32.mrb[0].mxu0
        %v1539 = vadd.f32 %v391, %v1538
        %v1540 = vpop.f32.mrb[0].mxu0
        %v1541 = vpop.f32.mrb[0].mxu0
        %v1542 = vadd.f32 %v391, %v1541
        %v1543 = vpop.f32.mrb[0].mxu0
        %1544 = vmatprep.mubr.bf16.mxu0 0
        %1545 = vmatmul.mubr.bf16.gmra.mrb[0].mxu0 %v1014
        %v1546 = vpop.f32.mrb[0].mxu0
        %v1547 = vadd.f32 %v391, %v1546
        %v1548 = vpop.f32.mrb[0].mxu0
        %v1549 = vpop.f32.mrb[0].mxu0
        %v1550 = vadd.f32 %v391, %v1549
        %v1551 = vpop.f32.mrb[0].mxu0
        %1552 = vmatprep.mubr.bf16.mxu0 0
        %1553 = vmatmul.mubr.bf16.gmra.mrb[0].mxu0 %v1017
        %v1554 = vpop.f32.mrb[0].mxu0
        %v1555 = vadd.f32 %v391, %v1554
        %v1556 = vpop.f32.mrb[0].mxu0
        %v1557 = vpop.f32.mrb[0].mxu0
        %v1558 = vadd.f32 %v391, %v1557
        %v1559 = vpop.f32.mrb[0].mxu0
        %1560 = vmatprep.mubr.bf16.mxu0 0
        %1561 = vmatmul.mubr.bf16.gmra.mrb[0].mxu0 %v1020
        %v1562 = vpop.f32.mrb[0].mxu0
        %v1563 = vadd.f32 %v391, %v1562
        %v1564 = vpop.f32.mrb[0].mxu0
        %v1565 = vpop.f32.mrb[0].mxu0
        %v1566 = vadd.f32 %v391, %v1565
        %v1567 = vpop.f32.mrb[0].mxu0
        %1568 = vmatprep.mubr.bf16.mxu0 0
        %1569 = vmatmul.mubr.bf16.gmra.mrb[0].mxu0 %v1023
        %v1570 = vpop.f32.mrb[0].mxu0
        %v1571 = vadd.f32 %v391, %v1570
        %v1572 = vpop.f32.mrb[0].mxu0
        %v1573 = vpop.f32.mrb[0].mxu0
        %v1574 = vadd.f32 %v391, %v1573
        %v1575 = vpop.f32.mrb[0].mxu0
        %1576 = vmatprep.mubr.bf16.mxu0 0
        %1577 = vmatmul.mubr.bf16.gmra.mrb[0].mxu0 %v1026
        %v1578 = vpop.f32.mrb[0].mxu0
        %v1579 = vadd.f32 %v391, %v1578
        %v1580 = vpop.f32.mrb[0].mxu0
        %v1581 = vpop.f32.mrb[0].mxu0
        %v1582 = vadd.f32 %v391, %v1581
        %v1583 = vpop.f32.mrb[0].mxu0
        %1584 = vmatprep.mubr.bf16.mxu0 0
        %1585 = vmatmul.mubr.bf16.gmra.mrb[0].mxu0 %v1029
        %v1586 = vpop.f32.mrb[0].mxu0
        %v1587 = vadd.f32 %v391, %v1586
        %v1588 = vpop.f32.mrb[0].mxu0
        %v1589 = vpop.f32.mrb[0].mxu0
        %v1590 = vadd.f32 %v391, %v1589
        %v1591 = vpop.f32.mrb[0].mxu0
        %1592 = vmatprep.mubr.bf16.mxu0 0
        %1593 = vmatmul.mubr.bf16.gmra.mrb[0].mxu0 %v1032
        %v1594 = vpop.f32.mrb[0].mxu0
        %v1595 = vadd.f32 %v391, %v1594
        %v1596 = vpop.f32.mrb[0].mxu0
        %v1597 = vpop.f32.mrb[0].mxu0
        %v1598 = vadd.f32 %v391, %v1597
        %v1599 = vpop.f32.mrb[0].mxu0
        %1600 = vmatprep.mubr.bf16.mxu0 0
        %1601 = vmatmul.mubr.bf16.gmra.mrb[0].mxu0 %v1035
        %v1602 = vpop.f32.mrb[0].mxu0
        %v1603 = vadd.f32 %v391, %v1602
        %v1604 = vpop.f32.mrb[0].mxu0
        %v1605 = vpop.f32.mrb[0].mxu0
        %v1606 = vadd.f32 %v391, %v1605
        %v1607 = vpop.f32.mrb[0].mxu0
        %1608 = vmatprep.mubr.bf16.mxu0 0
        %1609 = vmatmul.mubr.bf16.gmra.mrb[0].mxu0 %v1038
        %v1610 = vpop.f32.mrb[0].mxu0
        %v1611 = vadd.f32 %v391, %v1610
        %v1612 = vpop.f32.mrb[0].mxu0
        %v1613 = vpop.f32.mrb[0].mxu0
        %v1614 = vadd.f32 %v391, %v1613
        %v1615 = vpop.f32.mrb[0].mxu0
        %1616 = vmatprep.mubr.bf16.mxu0 0
        %1617 = vmatmul.mubr.bf16.gmra.mrb[0].mxu0 %v1041
        %v1618 = vpop.f32.mrb[0].mxu0
        %v1619 = vadd.f32 %v391, %v1618
        %v1620 = vpop.f32.mrb[0].mxu0
        %v1621 = vpop.f32.mrb[0].mxu0
        %v1622 = vadd.f32 %v391, %v1621
        %v1623 = vpop.f32.mrb[0].mxu0
        %1624 = vmatprep.mubr.bf16.mxu0 0
        %1625 = vmatmul.mubr.bf16.gmra.mrb[0].mxu0 %v1044
        %v1626 = vpop.f32.mrb[0].mxu0
        %v1627 = vadd.f32 %v391, %v1626
        %v1628 = vpop.f32.mrb[0].mxu0
        %v1629 = vpop.f32.mrb[0].mxu0
        %v1630 = vadd.f32 %v391, %v1629
        %v1631 = vpop.f32.mrb[0].mxu0
        %1632 = vmatprep.mubr.bf16.mxu0 0
        %1633 = vmatmul.mubr.bf16.gmra.mrb[0].mxu0 %v1047
        %v1634 = vpop.f32.mrb[0].mxu0
        %v1635 = vadd.f32 %v391, %v1634
        %v1636 = vpop.f32.mrb[0].mxu0
        %v1637 = vpop.f32.mrb[0].mxu0
        %v1638 = vadd.f32 %v391, %v1637
        %v1639 = vpop.f32.mrb[0].mxu0
        %1640 = vmatprep.mubr.bf16.mxu0 0
        %1641 = vmatmul.mubr.bf16.gmra.mrb[0].mxu0 %v1050
        %v1642 = vpop.f32.mrb[0].mxu0
        %v1643 = vadd.f32 %v391, %v1642
        %v1644 = vpop.f32.mrb[0].mxu0
        %v1645 = vpop.f32.mrb[0].mxu0
        %v1646 = vadd.f32 %v391, %v1645
        %v1647 = vpop.f32.mrb[0].mxu0
        %1648 = vmatprep.mubr.bf16.mxu0 0
        %1649 = vmatmul.mubr.bf16.gmra.mrb[0].mxu0 %v1053
        %v1650 = vpop.f32.mrb[0].mxu0
        %v1651 = vadd.f32 %v391, %v1650
        %v1652 = vpop.f32.mrb[0].mxu0
        %v1653 = vpop.f32.mrb[0].mxu0
        %v1654 = vadd.f32 %v391, %v1653
        %v1655 = vpop.f32.mrb[0].mxu0
        %1656 = vmatprep.mubr.bf16.mxu0 0
        %1657 = vmatmul.mubr.bf16.gmra.mrb[0].mxu0 %v1056
        %v1658 = vpop.f32.mrb[0].mxu0
        %v1659 = vadd.f32 %v391, %v1658
        %v1660 = vpop.f32.mrb[0].mxu0
        %v1661 = vpop.f32.mrb[0].mxu0
        %v1662 = vadd.f32 %v391, %v1661
        %v1663 = vpop.f32.mrb[0].mxu0
        %1664 = vmatprep.mubr.bf16.mxu0 0
        %1665 = vmatmul.mubr.bf16.gmra.mrb[0].mxu0 %v1059
        %v1666 = vpop.f32.mrb[0].mxu0
        %v1667 = vadd.f32 %v391, %v1666
        %v1668 = vpop.f32.mrb[0].mxu0
        %v1669 = vpop.f32.mrb[0].mxu0
        %v1670 = vadd.f32 %v391, %v1669
        %v1671 = vpop.f32.mrb[0].mxu0
        %1672 = vmatprep.mubr.bf16.mxu0 0
        %1673 = vmatmul.mubr.bf16.gmra.mrb[0].mxu0 %v1062
        %v1674 = vpop.f32.mrb[0].mxu0
        %v1675 = vadd.f32 %v391, %v1674
        %v1676 = vpop.f32.mrb[0].mxu0
        %v1677 = vpop.f32.mrb[0].mxu0
        %v1678 = vadd.f32 %v391, %v1677
        %v1679 = vpop.f32.mrb[0].mxu0
        %1680 = vmatprep.mubr.bf16.mxu0 0
        %1681 = vmatmul.mubr.bf16.gmra.mrb[0].mxu0 %v1065
        %v1682 = vpop.f32.mrb[0].mxu0
        %v1683 = vadd.f32 %v391, %v1682
        %v1684 = vpop.f32.mrb[0].mxu0
        %v1685 = vpop.f32.mrb[0].mxu0
        %v1686 = vadd.f32 %v391, %v1685
        %v1687 = vpop.f32.mrb[0].mxu0
        %1688 = vmatprep.mubr.bf16.mxu0 0
        %1689 = vmatmul.mubr.bf16.gmra.mrb[0].mxu0 %v1068
        %v1690 = vpop.f32.mrb[0].mxu0
        %v1691 = vadd.f32 %v391, %v1690
        %v1692 = vpop.f32.mrb[0].mxu0
        %v1693 = vpop.f32.mrb[0].mxu0
        %v1694 = vadd.f32 %v391, %v1693
        %v1695 = vpop.f32.mrb[0].mxu0
        %1696 = vmatprep.mubr.bf16.mxu0 0
        %1697 = vmatmul.mubr.bf16.gmra.mrb[0].mxu0 %v1071
        %v1698 = vpop.f32.mrb[0].mxu0
        %v1699 = vadd.f32 %v391, %v1698
        %v1700 = vpop.f32.mrb[0].mxu0
        %v1701 = vpop.f32.mrb[0].mxu0
        %v1702 = vadd.f32 %v391, %v1701
        %v1703 = vpop.f32.mrb[0].mxu0
        %1704 = vmatprep.mubr.bf16.mxu0 0
        %1705 = vmatmul.mubr.bf16.gmra.mrb[0].mxu0 %v1074
        %v1706 = vpop.f32.mrb[0].mxu0
        %v1707 = vadd.f32 %v391, %v1706
        %v1708 = vpop.f32.mrb[0].mxu0
        %v1709 = vpop.f32.mrb[0].mxu0
        %v1710 = vadd.f32 %v391, %v1709
        %v1711 = vpop.f32.mrb[0].mxu0
        %1712 = vmatprep.mubr.bf16.mxu0 0
        %1713 = vmatmul.mubr.bf16.gmra.mrb[0].mxu0 %v1077
        %v1714 = vpop.f32.mrb[0].mxu0
        %v1715 = vadd.f32 %v391, %v1714
        %v1716 = vpop.f32.mrb[0].mxu0
        %v1717 = vpop.f32.mrb[0].mxu0
        %v1718 = vadd.f32 %v391, %v1717
        %v1719 = vpop.f32.mrb[0].mxu0
        %1720 = vmatprep.mubr.bf16.mxu0 0
        %1721 = vmatmul.mubr.bf16.gmra.mrb[0].mxu0 %v1080
        %v1722 = vpop.f32.mrb[0].mxu0
        %v1723 = vadd.f32 %v391, %v1722
        %v1724 = vpop.f32.mrb[0].mxu0
        %v1725 = vpop.f32.mrb[0].mxu0
        %v1726 = vadd.f32 %v391, %v1725
        %v1727 = vpop.f32.mrb[0].mxu0
        %1728 = vmatprep.mubr.bf16.mxu0 0
        %1729 = vmatmul.mubr.bf16.gmra.mrb[0].mxu0 %v1083
        %v1730 = vpop.f32.mrb[0].mxu0
        %v1731 = vadd.f32 %v391, %v1730
        %v1732 = vpop.f32.mrb[0].mxu0
        %v1733 = vpop.f32.mrb[0].mxu0
        %v1734 = vadd.f32 %v391, %v1733
        %v1735 = vpop.f32.mrb[0].mxu0
        %1736 = vmatprep.mubr.bf16.mxu0 0
        %1737 = vmatmul.mubr.bf16.gmra.mrb[0].mxu0 %v1086
        %v1738 = vpop.f32.mrb[0].mxu0
        %v1739 = vadd.f32 %v391, %v1738
        %v1740 = vpop.f32.mrb[0].mxu0
        %v1741 = vpop.f32.mrb[0].mxu0
        %v1742 = vadd.f32 %v391, %v1741
        %v1743 = vpop.f32.mrb[0].mxu0
        %1744 = vmatprep.mubr.bf16.mxu0 0
        %1745 = vmatmul.mubr.bf16.gmra.mrb[0].mxu0 %v1089
        %v1746 = vpop.f32.mrb[0].mxu0
        %v1747 = vadd.f32 %v391, %v1746
        %v1748 = vpop.f32.mrb[0].mxu0
        %v1749 = vpop.f32.mrb[0].mxu0
        %v1750 = vadd.f32 %v391, %v1749
        %v1751 = vpop.f32.mrb[0].mxu0
        %1752 = vmatprep.mubr.bf16.mxu0 0
        %1753 = vmatmul.mubr.bf16.gmra.mrb[0].mxu0 %v1092
        %v1754 = vpop.f32.mrb[0].mxu0
        %v1755 = vadd.f32 %v391, %v1754
        %v1756 = vpop.f32.mrb[0].mxu0
        %v1757 = vpop.f32.mrb[0].mxu0
        %v1758 = vadd.f32 %v391, %v1757
        %v1759 = vpop.f32.mrb[0].mxu0
        %1760 = vmatprep.mubr.bf16.mxu0 0
        %1761 = vmatmul.mubr.bf16.gmra.mrb[0].mxu0 %v1095
        %v1762 = vpop.f32.mrb[0].mxu0
        %v1763 = vadd.f32 %v391, %v1762
        %v1764 = vpop.f32.mrb[0].mxu0
        %v1765 = vpop.f32.mrb[0].mxu0
        %v1766 = vadd.f32 %v391, %v1765
        %v1767 = vpop.f32.mrb[0].mxu0
        %1768 = vmatprep.mubr.bf16.mxu0 0
        %1769 = vmatmul.mubr.bf16.gmra.mrb[0].mxu0 %v1098
        %v1770 = vpop.f32.mrb[0].mxu0
        %v1771 = vadd.f32 %v391, %v1770
        %v1772 = vpop.f32.mrb[0].mxu0
        %v1773 = vpop.f32.mrb[0].mxu0
        %v1774 = vadd.f32 %v391, %v1773
        %v1775 = vpop.f32.mrb[0].mxu0
        %1776 = vmatprep.mubr.bf16.mxu0 0
        %1777 = vmatmul.mubr.bf16.gmra.mrb[0].mxu0 %v1101
        %v1778 = vpop.f32.mrb[0].mxu0
        %v1779 = vadd.f32 %v391, %v1778
        %v1780 = vpop.f32.mrb[0].mxu0
        %v1781 = vpop.f32.mrb[0].mxu0
        %v1782 = vadd.f32 %v391, %v1781
        %v1783 = vpop.f32.mrb[0].mxu0
        %1784 = vmatprep.mubr.bf16.mxu0 0
        %1785 = vmatmul.mubr.bf16.gmra.mrb[0].mxu0 %v1104
        %v1786 = vpop.f32.mrb[0].mxu0
        %v1787 = vadd.f32 %v391, %v1786
        %v1788 = vpop.f32.mrb[0].mxu0
        %v1789 = vpop.f32.mrb[0].mxu0
        %v1790 = vadd.f32 %v391, %v1789
        %v1791 = vpop.f32.mrb[0].mxu0
        %1792 = vmatprep.mubr.bf16.mxu0 0
        %1793 = vmatmul.mubr.bf16.gmra.mrb[0].mxu0 %v1107
        %v1794 = vpop.f32.mrb[0].mxu0
        %v1795 = vadd.f32 %v391, %v1794
        %v1796 = vpop.f32.mrb[0].mxu0
        %v1797 = vpop.f32.mrb[0].mxu0
        %v1798 = vadd.f32 %v391, %v1797
        %v1799 = vpop.f32.mrb[0].mxu0
        %1800 = vmatprep.mubr.bf16.mxu0 0
        %1801 = vmatmul.mubr.bf16.gmra.mrb[0].mxu0 %v1110
        %v1802 = vpop.f32.mrb[0].mxu0
        %v1803 = vadd.f32 %v391, %v1802
        %v1804 = vpop.f32.mrb[0].mxu0
        %v1805 = vpop.f32.mrb[0].mxu0
        %v1806 = vadd.f32 %v391, %v1805
        %v1807 = vpop.f32.mrb[0].mxu0
        %1808 = vmatprep.mubr.bf16.mxu0 0
        %1809 = vmatmul.mubr.bf16.gmra.mrb[0].mxu0 %v1113
        %v1810 = vpop.f32.mrb[0].mxu0
        %v1811 = vadd.f32 %v391, %v1810
        %v1812 = vpop.f32.mrb[0].mxu0
        %v1813 = vpop.f32.mrb[0].mxu0
        %v1814 = vadd.f32 %v391, %v1813
        %v1815 = vpop.f32.mrb[0].mxu0
        %1816 = vmatprep.mubr.bf16.mxu0 0
        %1817 = vmatmul.mubr.bf16.gmra.mrb[0].mxu0 %v1116
        %v1818 = vpop.f32.mrb[0].mxu0
        %v1819 = vadd.f32 %v391, %v1818
        %v1820 = vpop.f32.mrb[0].mxu0
        %v1821 = vpop.f32.mrb[0].mxu0
        %v1822 = vadd.f32 %v391, %v1821
        %v1823 = vpop.f32.mrb[0].mxu0
        %1824 = vmatprep.mubr.bf16.mxu0 0
        %1825 = vmatmul.mubr.bf16.gmra.mrb[0].mxu0 %v1119
        %v1826 = vpop.f32.mrb[0].mxu0
        %v1827 = vadd.f32 %v391, %v1826
        %v1828 = vpop.f32.mrb[0].mxu0
        %v1829 = vpop.f32.mrb[0].mxu0
        %v1830 = vadd.f32 %v391, %v1829
        %v1831 = vpop.f32.mrb[0].mxu0
        %1832 = vmatprep.mubr.bf16.mxu0 0
        %1833 = vmatmul.mubr.bf16.gmra.mrb[0].mxu0 %v1122
        %v1834 = vpop.f32.mrb[0].mxu0
        %v1835 = vadd.f32 %v391, %v1834
        %v1836 = vpop.f32.mrb[0].mxu0
        %v1837 = vpop.f32.mrb[0].mxu0
        %v1838 = vadd.f32 %v391, %v1837
        %v1839 = vpop.f32.mrb[0].mxu0
        %1840 = vmatprep.mubr.bf16.mxu0 0
        %1841 = vmatmul.mubr.bf16.gmra.mrb[0].mxu0 %v1125
        %v1842 = vpop.f32.mrb[0].mxu0
        %v1843 = vadd.f32 %v391, %v1842
        %v1844 = vpop.f32.mrb[0].mxu0
        %v1845 = vpop.f32.mrb[0].mxu0
        %v1846 = vadd.f32 %v391, %v1845
        %v1847 = vpop.f32.mrb[0].mxu0
        %1848 = vmatprep.mubr.bf16.mxu0 0
        %1849 = vmatmul.mubr.bf16.gmra.mrb[0].mxu0 %v1128
        %v1850 = vpop.f32.mrb[0].mxu0
        %v1851 = vadd.f32 %v391, %v1850
        %v1852 = vpop.f32.mrb[0].mxu0
        %v1853 = vpop.f32.mrb[0].mxu0
        %v1854 = vadd.f32 %v391, %v1853
        %v1855 = vpop.f32.mrb[0].mxu0
        %1856 = vmatprep.mubr.bf16.mxu0 0
        %1857 = vmatmul.mubr.bf16.gmra.mrb[0].mxu0 %v1131
        %v1858 = vpop.f32.mrb[0].mxu0
        %v1859 = vadd.f32 %v391, %v1858
        %v1860 = vpop.f32.mrb[0].mxu0
        %v1861 = vpop.f32.mrb[0].mxu0
        %v1862 = vadd.f32 %v391, %v1861
        %v1863 = vpop.f32.mrb[0].mxu0
        %1864 = vmatprep.mubr.bf16.mxu0 0
        %1865 = vmatmul.mubr.bf16.gmra.mrb[0].mxu0 %v1134
        %v1866 = vpop.f32.mrb[0].mxu0
        %v1867 = vadd.f32 %v391, %v1866
        %v1868 = vpop.f32.mrb[0].mxu0
        %v1869 = vpop.f32.mrb[0].mxu0
        %v1870 = vadd.f32 %v391, %v1869
        %v1871 = vpop.f32.mrb[0].mxu0
        %1872 = vmatprep.mubr.bf16.mxu0 0
        %1873 = vmatmul.mubr.bf16.gmra.mrb[0].mxu0 %v1137
        %v1874 = vpop.f32.mrb[0].mxu0
        %v1875 = vadd.f32 %v391, %v1874
        %v1876 = vpop.f32.mrb[0].mxu0
        %v1877 = vpop.f32.mrb[0].mxu0
        %v1878 = vadd.f32 %v391, %v1877
        %v1879 = vpop.f32.mrb[0].mxu0
        %1880 = vmatprep.mubr.bf16.mxu0 0
        %1881 = vmatmul.mubr.bf16.gmra.mrb[0].mxu0 %v1140
        %v1882 = vpop.f32.mrb[0].mxu0
        %v1883 = vadd.f32 %v391, %v1882
        %v1884 = vpop.f32.mrb[0].mxu0
        %v1885 = vpop.f32.mrb[0].mxu0
        %v1886 = vadd.f32 %v391, %v1885
        %v1887 = vpop.f32.mrb[0].mxu0
        %1888 = vmatprep.mubr.bf16.mxu0 0
        %1889 = vmatmul.mubr.bf16.gmra.mrb[0].mxu0 %v1143
        %v1890 = vpop.f32.mrb[0].mxu0
        %v1891 = vadd.f32 %v391, %v1890
        %v1892 = vpop.f32.mrb[0].mxu0
        %v1893 = vpop.f32.mrb[0].mxu0
        %v1894 = vadd.f32 %v391, %v1893
        %v1895 = vpop.f32.mrb[0].mxu0
        %1896 = vmatprep.mubr.bf16.mxu0 0
        %1897 = vmatmul.mubr.bf16.gmra.mrb[0].mxu0 %v1146
        %v1898 = vpop.f32.mrb[0].mxu0
        %v1899 = vadd.f32 %v391, %v1898
        %v1900 = vpop.f32.mrb[0].mxu0
        %v1901 = vpop.f32.mrb[0].mxu0
        %v1902 = vadd.f32 %v391, %v1901
        %v1903 = vpop.f32.mrb[0].mxu0
        %1904 = vmatprep.mubr.bf16.mxu0 0
        %1905 = vmatmul.mubr.bf16.gmra.mrb[0].mxu0 %v1149
        %v1906 = vpop.f32.mrb[0].mxu0
        %v1907 = vadd.f32 %v391, %v1906
        %v1908 = vpop.f32.mrb[0].mxu0
        %v1909 = vpop.f32.mrb[0].mxu0
        %v1910 = vadd.f32 %v391, %v1909
        %v1911 = vpop.f32.mrb[0].mxu0
        %1912 = vmatprep.mubr.bf16.mxu0 0
        %1913 = vmatmul.mubr.bf16.gmra.mrb[0].mxu0 %v1152
        %v1914 = vpop.f32.mrb[0].mxu0
        %v1915 = vadd.f32 %v391, %v1914
        %v1916 = vpop.f32.mrb[0].mxu0
        %v1917 = vpop.f32.mrb[0].mxu0
        %v1918 = vadd.f32 %v391, %v1917
        %v1919 = vpop.f32.mrb[0].mxu0
        %1920 = vmatprep.mubr.bf16.mxu0 0
        %1921 = vmatmul.mubr.bf16.gmra.mrb[0].mxu0 %v1155
        %v1922 = vpop.f32.mrb[0].mxu0
        %v1923 = vadd.f32 %v391, %v1922
        %v1924 = vpop.f32.mrb[0].mxu0
        %v1925 = vpop.f32.mrb[0].mxu0
        %v1926 = vadd.f32 %v391, %v1925
        %v1927 = vpop.f32.mrb[0].mxu0
        %1928 = vmatprep.mubr.bf16.mxu0 0
        %1929 = vmatmul.mubr.bf16.gmra.mrb[0].mxu0 %v1158
        %v1930 = vpop.f32.mrb[0].mxu0
        %v1931 = vadd.f32 %v391, %v1930
        %v1932 = vpop.f32.mrb[0].mxu0
        %v1933 = vpop.f32.mrb[0].mxu0
        %v1934 = vpop.f32.mrb[0].mxu0
        %1935 = vdwg.mxu0
        %v1936 = vmax.f32 %v1195, 0.0
        %v1937 = vmax.f32 %v1198, 0.0
        %v1938 = vmax.f32 %v1203, 0.0
        %v1939 = vmax.f32 %v1206, 0.0
        %v1940 = vmax.f32 %v1211, 0.0
        %v1941 = vmax.f32 %v1214, 0.0
        %v1942 = vmax.f32 %v1219, 0.0
        %v1943 = vmax.f32 %v1222, 0.0
        %v1944 = vmax.f32 %v1227, 0.0
        %v1945 = vmax.f32 %v1230, 0.0
        %v1946 = vmax.f32 %v1235, 0.0
        %v1947 = vmax.f32 %v1238, 0.0
        %v1948 = vmax.f32 %v1243, 0.0
        %v1949 = vmax.f32 %v1246, 0.0
        %v1950 = vmax.f32 %v1251, 0.0
        %v1951 = vmax.f32 %v1254, 0.0
        %v1952 = vmax.f32 %v1259, 0.0
        %v1953 = vmax.f32 %v1262, 0.0
        %v1954 = vmax.f32 %v1267, 0.0
        %v1955 = vmax.f32 %v1270, 0.0
        %v1956 = vmax.f32 %v1275, 0.0
        %v1957 = vmax.f32 %v1278, 0.0
        %v1958 = vmax.f32 %v1283, 0.0
        %v1959 = vmax.f32 %v1286, 0.0
        %v1960 = vmax.f32 %v1291, 0.0
        %v1961 = vmax.f32 %v1294, 0.0
        %v1962 = vmax.f32 %v1299, 0.0
        %v1963 = vmax.f32 %v1302, 0.0
        %v1964 = vmax.f32 %v1307, 0.0
        %v1965 = vmax.f32 %v1310, 0.0
        %v1966 = vmax.f32 %v1315, 0.0
        %v1967 = vmax.f32 %v1318, 0.0
        %v1968 = vmax.f32 %v1323, 0.0
        %v1969 = vmax.f32 %v1326, 0.0
        %v1970 = vmax.f32 %v1331, 0.0
        %v1971 = vmax.f32 %v1334, 0.0
        %v1972 = vmax.f32 %v1339, 0.0
        %v1973 = vmax.f32 %v1342, 0.0
        %v1974 = vmax.f32 %v1347, 0.0
        %v1975 = vmax.f32 %v1350, 0.0
        %v1976 = vmax.f32 %v1355, 0.0
        %v1977 = vmax.f32 %v1358, 0.0
        %v1978 = vmax.f32 %v1363, 0.0
        %v1979 = vmax.f32 %v1366, 0.0
        %v1980 = vmax.f32 %v1371, 0.0
        %v1981 = vmax.f32 %v1374, 0.0
        %v1982 = vmax.f32 %v1379, 0.0
        %v1983 = vmax.f32 %v1382, 0.0
        %v1984 = vmax.f32 %v1387, 0.0
        %v1985 = vmax.f32 %v1390, 0.0
        %v1986 = vmax.f32 %v1395, 0.0
        %v1987 = vmax.f32 %v1398, 0.0
        %v1988 = vmax.f32 %v1403, 0.0
        %v1989 = vmax.f32 %v1406, 0.0
        %v1990 = vmax.f32 %v1411, 0.0
        %v1991 = vmax.f32 %v1414, 0.0
        %v1992 = vmax.f32 %v1419, 0.0
        %v1993 = vmax.f32 %v1422, 0.0
        %v1994 = vmax.f32 %v1427, 0.0
        %v1995 = vmax.f32 %v1430, 0.0
        %v1996 = vmax.f32 %v1435, 0.0
        %v1997 = vmax.f32 %v1438, 0.0
        %v1998 = vmax.f32 %v1443, 0.0
        %v1999 = vmax.f32 %v1446, 0.0
        %v2000 = vmax.f32 %v1451, 0.0
        %v2001 = vmax.f32 %v1454, 0.0
        %v2002 = vmax.f32 %v1459, 0.0
        %v2003 = vmax.f32 %v1462, 0.0
        %v2004 = vmax.f32 %v1467, 0.0
        %v2005 = vmax.f32 %v1470, 0.0
        %v2006 = vmax.f32 %v1475, 0.0
        %v2007 = vmax.f32 %v1478, 0.0
        %v2008 = vmax.f32 %v1483, 0.0
        %v2009 = vmax.f32 %v1486, 0.0
        %v2010 = vmax.f32 %v1491, 0.0
        %v2011 = vmax.f32 %v1494, 0.0
        %v2012 = vmax.f32 %v1499, 0.0
        %v2013 = vmax.f32 %v1502, 0.0
        %v2014 = vmax.f32 %v1507, 0.0
        %v2015 = vmax.f32 %v1510, 0.0
        %v2016 = vmax.f32 %v1515, 0.0
        %v2017 = vmax.f32 %v1518, 0.0
        %v2018 = vmax.f32 %v1523, 0.0
        %v2019 = vmax.f32 %v1526, 0.0
        %v2020 = vmax.f32 %v1531, 0.0
        %v2021 = vmax.f32 %v1534, 0.0
        %v2022 = vmax.f32 %v1539, 0.0
        %v2023 = vmax.f32 %v1542, 0.0
        %v2024 = vmax.f32 %v1547, 0.0
        %v2025 = vmax.f32 %v1550, 0.0
        %v2026 = vmax.f32 %v1555, 0.0
        %v2027 = vmax.f32 %v1558, 0.0
        %v2028 = vmax.f32 %v1563, 0.0
        %v2029 = vmax.f32 %v1566, 0.0
        %v2030 = vmax.f32 %v1571, 0.0
        %v2031 = vmax.f32 %v1574, 0.0
        %v2032 = vmax.f32 %v1579, 0.0
        %v2033 = vmax.f32 %v1582, 0.0
        %v2034 = vmax.f32 %v1587, 0.0
        %v2035 = vmax.f32 %v1590, 0.0
        %v2036 = vmax.f32 %v1595, 0.0
        %v2037 = vmax.f32 %v1598, 0.0
        %v2038 = vmax.f32 %v1603, 0.0
        %v2039 = vmax.f32 %v1606, 0.0
        %v2040 = vmax.f32 %v1611, 0.0
        %v2041 = vmax.f32 %v1614, 0.0
        %v2042 = vmax.f32 %v1619, 0.0
        %v2043 = vmax.f32 %v1622, 0.0
        %v2044 = vmax.f32 %v1627, 0.0
        %v2045 = vmax.f32 %v1630, 0.0
        %v2046 = vmax.f32 %v1635, 0.0
        %v2047 = vmax.f32 %v1638, 0.0
        %v2048 = vmax.f32 %v1643, 0.0
        %v2049 = vmax.f32 %v1646, 0.0
        %v2050 = vmax.f32 %v1651, 0.0
        %v2051 = vmax.f32 %v1654, 0.0
        %v2052 = vmax.f32 %v1659, 0.0
        %v2053 = vmax.f32 %v1662, 0.0
        %v2054 = vmax.f32 %v1667, 0.0
        %v2055 = vmax.f32 %v1670, 0.0
        %v2056 = vmax.f32 %v1675, 0.0
        %v2057 = vmax.f32 %v1678, 0.0
        %v2058 = vmax.f32 %v1683, 0.0
        %v2059 = vmax.f32 %v1686, 0.0
        %v2060 = vmax.f32 %v1691, 0.0
        %v2061 = vmax.f32 %v1694, 0.0
        %v2062 = vmax.f32 %v1699, 0.0
        %v2063 = vmax.f32 %v1702, 0.0
        %v2064 = vmax.f32 %v1707, 0.0
        %v2065 = vmax.f32 %v1710, 0.0
        %v2066 = vmax.f32 %v1715, 0.0
        %v2067 = vmax.f32 %v1718, 0.0
        %v2068 = vmax.f32 %v1723, 0.0
        %v2069 = vmax.f32 %v1726, 0.0
        %v2070 = vmax.f32 %v1731, 0.0
        %v2071 = vmax.f32 %v1734, 0.0
        %v2072 = vmax.f32 %v1739, 0.0
        %v2073 = vmax.f32 %v1742, 0.0
        %v2074 = vmax.f32 %v1747, 0.0
        %v2075 = vmax.f32 %v1750, 0.0
        %v2076 = vmax.f32 %v1755, 0.0
        %v2077 = vmax.f32 %v1758, 0.0
        %v2078 = vmax.f32 %v1763, 0.0
        %v2079 = vmax.f32 %v1766, 0.0
        %v2080 = vmax.f32 %v1771, 0.0
        %v2081 = vmax.f32 %v1774, 0.0
        %v2082 = vmax.f32 %v1779, 0.0
        %v2083 = vmax.f32 %v1782, 0.0
        %v2084 = vmax.f32 %v1787, 0.0
        %v2085 = vmax.f32 %v1790, 0.0
        %v2086 = vmax.f32 %v1795, 0.0
        %v2087 = vmax.f32 %v1798, 0.0
        %v2088 = vmax.f32 %v1803, 0.0
        %v2089 = vmax.f32 %v1806, 0.0
        %v2090 = vmax.f32 %v1811, 0.0
        %v2091 = vmax.f32 %v1814, 0.0
        %v2092 = vmax.f32 %v1819, 0.0
        %v2093 = vmax.f32 %v1822, 0.0
        %v2094 = vmax.f32 %v1827, 0.0
        %v2095 = vmax.f32 %v1830, 0.0
        %v2096 = vmax.f32 %v1835, 0.0
        %v2097 = vmax.f32 %v1838, 0.0
        %v2098 = vmax.f32 %v1843, 0.0
        %v2099 = vmax.f32 %v1846, 0.0
        %v2100 = vmax.f32 %v1851, 0.0
        %v2101 = vmax.f32 %v1854, 0.0
        %v2102 = vmax.f32 %v1859, 0.0
        %v2103 = vmax.f32 %v1862, 0.0
        %v2104 = vmax.f32 %v1867, 0.0
        %v2105 = vmax.f32 %v1870, 0.0
        %v2106 = vmax.f32 %v1875, 0.0
        %v2107 = vmax.f32 %v1878, 0.0
        %v2108 = vmax.f32 %v1883, 0.0
        %v2109 = vmax.f32 %v1886, 0.0
        %v2110 = vmax.f32 %v1891, 0.0
        %v2111 = vmax.f32 %v1894, 0.0
        %v2112 = vmax.f32 %v1899, 0.0
        %v2113 = vmax.f32 %v1902, 0.0
        %v2114 = vmax.f32 %v1907, 0.0
        %v2115 = vmax.f32 %v1910, 0.0
        %v2116 = vmax.f32 %v1915, 0.0
        %v2117 = vmax.f32 %v1918, 0.0
        %v2118 = vmax.f32 %v1923, 0.0
        %v2119 = vmax.f32 %v1926, 0.0
        %v2120 = vmax.f32 %v1931, 0.0
        %v2121 = vpack.c.bf16 %v1937, %v1936
        %v2122 = vpack.c.bf16 %v1939, %v1938
        %v2123 = vpack.c.bf16 %v1941, %v1940
        %v2124 = vpack.c.bf16 %v1943, %v1942
        %v2125 = vpack.c.bf16 %v1945, %v1944
        %v2126 = vpack.c.bf16 %v1947, %v1946
        %v2127 = vpack.c.bf16 %v1949, %v1948
        %v2128 = vpack.c.bf16 %v1951, %v1950
        %v2129 = vpack.c.bf16 %v1953, %v1952
        %v2130 = vpack.c.bf16 %v1955, %v1954
        %v2131 = vpack.c.bf16 %v1957, %v1956
        %v2132 = vpack.c.bf16 %v1959, %v1958
        %v2133 = vpack.c.bf16 %v1961, %v1960
        %v2134 = vpack.c.bf16 %v1963, %v1962
        %v2135 = vpack.c.bf16 %v1965, %v1964
        %v2136 = vpack.c.bf16 %v1967, %v1966
        %v2137 = vpack.c.bf16 %v1969, %v1968
        %v2138 = vpack.c.bf16 %v1971, %v1970
        %v2139 = vpack.c.bf16 %v1973, %v1972
        %v2140 = vpack.c.bf16 %v1975, %v1974
        %v2141 = vpack.c.bf16 %v1977, %v1976
        %v2142 = vpack.c.bf16 %v1979, %v1978
        %v2143 = vpack.c.bf16 %v1981, %v1980
        %v2144 = vpack.c.bf16 %v1983, %v1982
        %v2145 = vpack.c.bf16 %v1985, %v1984
        %v2146 = vpack.c.bf16 %v1987, %v1986
        %v2147 = vpack.c.bf16 %v1989, %v1988
        %v2148 = vpack.c.bf16 %v1991, %v1990
        %v2149 = vpack.c.bf16 %v1993, %v1992
        %v2150 = vpack.c.bf16 %v1995, %v1994
        %v2151 = vpack.c.bf16 %v1997, %v1996
        %v2152 = vpack.c.bf16 %v1999, %v1998
        %v2153 = vpack.c.bf16 %v2001, %v2000
        %v2154 = vpack.c.bf16 %v2003, %v2002
        %v2155 = vpack.c.bf16 %v2005, %v2004
        %v2156 = vpack.c.bf16 %v2007, %v2006
        %v2157 = vpack.c.bf16 %v2009, %v2008
        %v2158 = vpack.c.bf16 %v2011, %v2010
        %v2159 = vpack.c.bf16 %v2013, %v2012
        %v2160 = vpack.c.bf16 %v2015, %v2014
        %v2161 = vpack.c.bf16 %v2017, %v2016
        %v2162 = vpack.c.bf16 %v2019, %v2018
        %v2163 = vpack.c.bf16 %v2021, %v2020
        %v2164 = vpack.c.bf16 %v2023, %v2022
        %v2165 = vpack.c.bf16 %v2025, %v2024
        %v2166 = vpack.c.bf16 %v2027, %v2026
        %v2167 = vpack.c.bf16 %v2029, %v2028
        %v2168 = vpack.c.bf16 %v2031, %v2030
        %v2169 = vpack.c.bf16 %v2033, %v2032
        %v2170 = vpack.c.bf16 %v2035, %v2034
        %v2171 = vpack.c.bf16 %v2037, %v2036
        %v2172 = vpack.c.bf16 %v2039, %v2038
        %v2173 = vpack.c.bf16 %v2041, %v2040
        %v2174 = vpack.c.bf16 %v2043, %v2042
        %v2175 = vpack.c.bf16 %v2045, %v2044
        %v2176 = vpack.c.bf16 %v2047, %v2046
        %v2177 = vpack.c.bf16 %v2049, %v2048
        %v2178 = vpack.c.bf16 %v2051, %v2050
        %v2179 = vpack.c.bf16 %v2053, %v2052
        %v2180 = vpack.c.bf16 %v2055, %v2054
        %v2181 = vpack.c.bf16 %v2057, %v2056
        %v2182 = vpack.c.bf16 %v2059, %v2058
        %v2183 = vpack.c.bf16 %v2061, %v2060
        %v2184 = vpack.c.bf16 %v2063, %v2062
        %v2185 = vpack.c.bf16 %v2065, %v2064
        %v2186 = vpack.c.bf16 %v2067, %v2066
        %v2187 = vpack.c.bf16 %v2069, %v2068
        %v2188 = vpack.c.bf16 %v2071, %v2070
        %v2189 = vpack.c.bf16 %v2073, %v2072
        %v2190 = vpack.c.bf16 %v2075, %v2074
        %v2191 = vpack.c.bf16 %v2077, %v2076
        %v2192 = vpack.c.bf16 %v2079, %v2078
        %v2193 = vpack.c.bf16 %v2081, %v2080
        %v2194 = vpack.c.bf16 %v2083, %v2082
        %v2195 = vpack.c.bf16 %v2085, %v2084
        %v2196 = vpack.c.bf16 %v2087, %v2086
        %v2197 = vpack.c.bf16 %v2089, %v2088
        %v2198 = vpack.c.bf16 %v2091, %v2090
        %v2199 = vpack.c.bf16 %v2093, %v2092
        %v2200 = vpack.c.bf16 %v2095, %v2094
        %v2201 = vpack.c.bf16 %v2097, %v2096
        %v2202 = vpack.c.bf16 %v2099, %v2098
        %v2203 = vpack.c.bf16 %v2101, %v2100
        %v2204 = vpack.c.bf16 %v2103, %v2102
        %v2205 = vpack.c.bf16 %v2105, %v2104
        %v2206 = vpack.c.bf16 %v2107, %v2106
        %v2207 = vpack.c.bf16 %v2109, %v2108
        %v2208 = vpack.c.bf16 %v2111, %v2110
        %v2209 = vpack.c.bf16 %v2113, %v2112
        %v2210 = vpack.c.bf16 %v2115, %v2114
        %v2211 = vpack.c.bf16 %v2117, %v2116
        %v2212 = vpack.c.bf16 %v2119, %v2118
        %v2213 = vpack.c.bf16 %v2120, %v2120
        %v2307 = vunpack.c.l.b16 %v2121
        %v2308 = vunpack.c.h.b16 %v2121
        %v2309 = vunpack.c.l.b16 %v2122
        %v2310 = vunpack.c.h.b16 %v2122
        %v2311 = vunpack.c.l.b16 %v2123
        %v2312 = vunpack.c.h.b16 %v2123
        %v2313 = vunpack.c.l.b16 %v2124
        %v2314 = vunpack.c.h.b16 %v2124
        %v2315 = vunpack.c.l.b16 %v2125
        %v2316 = vunpack.c.h.b16 %v2125
        %v2317 = vunpack.c.l.b16 %v2126
        %v2318 = vunpack.c.h.b16 %v2126
        %v2319 = vunpack.c.l.b16 %v2127
        %v2320 = vunpack.c.h.b16 %v2127
        %v2321 = vunpack.c.l.b16 %v2128
        %v2322 = vunpack.c.h.b16 %v2128
        %v2323 = vunpack.c.l.b16 %v2129
        %v2324 = vunpack.c.h.b16 %v2129
        %v2325 = vunpack.c.l.b16 %v2130
        %v2326 = vunpack.c.h.b16 %v2130
        %v2327 = vunpack.c.l.b16 %v2131
        %v2328 = vunpack.c.h.b16 %v2131
        %v2329 = vunpack.c.l.b16 %v2132
        %v2330 = vunpack.c.h.b16 %v2132
        %v2331 = vunpack.c.l.b16 %v2133
        %v2332 = vunpack.c.h.b16 %v2133
        %v2333 = vunpack.c.l.b16 %v2134
        %v2334 = vunpack.c.h.b16 %v2134
        %v2335 = vunpack.c.l.b16 %v2135
        %v2336 = vunpack.c.h.b16 %v2135
        %v2337 = vunpack.c.l.b16 %v2136
        %v2338 = vunpack.c.h.b16 %v2136
        %v2339 = vunpack.c.l.b16 %v2137
        %v2340 = vunpack.c.h.b16 %v2137
        %v2341 = vunpack.c.l.b16 %v2138
        %v2342 = vunpack.c.h.b16 %v2138
        %v2343 = vunpack.c.l.b16 %v2139
        %v2344 = vunpack.c.h.b16 %v2139
        %v2345 = vunpack.c.l.b16 %v2140
        %v2346 = vunpack.c.h.b16 %v2140
        %v2347 = vunpack.c.l.b16 %v2141
        %v2348 = vunpack.c.h.b16 %v2141
        %v2349 = vunpack.c.l.b16 %v2142
        %v2350 = vunpack.c.h.b16 %v2142
        %v2351 = vunpack.c.l.b16 %v2143
        %v2352 = vunpack.c.h.b16 %v2143
        %v2353 = vunpack.c.l.b16 %v2144
        %v2354 = vunpack.c.h.b16 %v2144
        %v2355 = vunpack.c.l.b16 %v2145
        %v2356 = vunpack.c.h.b16 %v2145
        %v2357 = vunpack.c.l.b16 %v2146
        %v2358 = vunpack.c.h.b16 %v2146
        %v2359 = vunpack.c.l.b16 %v2147
        %v2360 = vunpack.c.h.b16 %v2147
        %v2361 = vunpack.c.l.b16 %v2148
        %v2362 = vunpack.c.h.b16 %v2148
        %v2363 = vunpack.c.l.b16 %v2149
        %v2364 = vunpack.c.h.b16 %v2149
        %v2365 = vunpack.c.l.b16 %v2150
        %v2366 = vunpack.c.h.b16 %v2150
        %v2367 = vunpack.c.l.b16 %v2151
        %v2368 = vunpack.c.h.b16 %v2151
        %v2369 = vunpack.c.l.b16 %v2152
        %v2370 = vunpack.c.h.b16 %v2152
        %v2371 = vunpack.c.l.b16 %v2153
        %v2372 = vunpack.c.h.b16 %v2153
        %v2373 = vunpack.c.l.b16 %v2154
        %v2374 = vunpack.c.h.b16 %v2154
        %v2375 = vunpack.c.l.b16 %v2155
        %v2376 = vunpack.c.h.b16 %v2155
        %v2377 = vunpack.c.l.b16 %v2156
        %v2378 = vunpack.c.h.b16 %v2156
        %v2379 = vunpack.c.l.b16 %v2157
        %v2380 = vunpack.c.h.b16 %v2157
        %v2381 = vunpack.c.l.b16 %v2158
        %v2382 = vunpack.c.h.b16 %v2158
        %v2383 = vunpack.c.l.b16 %v2159
        %v2384 = vunpack.c.h.b16 %v2159
        %v2385 = vunpack.c.l.b16 %v2160
        %v2386 = vunpack.c.h.b16 %v2160
        %v2387 = vunpack.c.l.b16 %v2161
        %v2388 = vunpack.c.h.b16 %v2161
        %v2389 = vunpack.c.l.b16 %v2162
        %v2390 = vunpack.c.h.b16 %v2162
        %v2391 = vunpack.c.l.b16 %v2163
        %v2392 = vunpack.c.h.b16 %v2163
        %v2393 = vunpack.c.l.b16 %v2164
        %v2394 = vunpack.c.h.b16 %v2164
        %v2395 = vunpack.c.l.b16 %v2165
        %v2396 = vunpack.c.h.b16 %v2165
        %v2397 = vunpack.c.l.b16 %v2166
        %v2398 = vunpack.c.h.b16 %v2166
        %v2399 = vunpack.c.l.b16 %v2167
        %v2400 = vunpack.c.h.b16 %v2167
        %v2401 = vunpack.c.l.b16 %v2168
        %v2402 = vunpack.c.h.b16 %v2168
        %v2403 = vunpack.c.l.b16 %v2169
        %v2404 = vunpack.c.h.b16 %v2169
        %v2405 = vunpack.c.l.b16 %v2170
        %v2406 = vunpack.c.h.b16 %v2170
        %v2407 = vunpack.c.l.b16 %v2171
        %v2408 = vunpack.c.h.b16 %v2171
        %v2409 = vunpack.c.l.b16 %v2172
        %v2410 = vunpack.c.h.b16 %v2172
        %v2411 = vunpack.c.l.b16 %v2173
        %v2412 = vunpack.c.h.b16 %v2173
        %v2413 = vunpack.c.l.b16 %v2174
        %v2414 = vunpack.c.h.b16 %v2174
        %v2415 = vunpack.c.l.b16 %v2175
        %v2416 = vunpack.c.h.b16 %v2175
        %v2417 = vunpack.c.l.b16 %v2176
        %v2418 = vunpack.c.h.b16 %v2176
        %v2419 = vunpack.c.l.b16 %v2177
        %v2420 = vunpack.c.h.b16 %v2177
        %v2421 = vunpack.c.l.b16 %v2178
        %v2422 = vunpack.c.h.b16 %v2178
        %v2423 = vunpack.c.l.b16 %v2179
        %v2424 = vunpack.c.h.b16 %v2179
        %v2425 = vunpack.c.l.b16 %v2180
        %v2426 = vunpack.c.h.b16 %v2180
        %v2427 = vunpack.c.l.b16 %v2181
        %v2428 = vunpack.c.h.b16 %v2181
        %v2429 = vunpack.c.l.b16 %v2182
        %v2430 = vunpack.c.h.b16 %v2182
        %v2431 = vunpack.c.l.b16 %v2183
        %v2432 = vunpack.c.h.b16 %v2183
        %v2433 = vunpack.c.l.b16 %v2184
        %v2434 = vunpack.c.h.b16 %v2184
        %v2435 = vunpack.c.l.b16 %v2185
        %v2436 = vunpack.c.h.b16 %v2185
        %v2437 = vunpack.c.l.b16 %v2186
        %v2438 = vunpack.c.h.b16 %v2186
        %v2439 = vunpack.c.l.b16 %v2187
        %v2440 = vunpack.c.h.b16 %v2187
        %v2441 = vunpack.c.l.b16 %v2188
        %v2442 = vunpack.c.h.b16 %v2188
        %v2443 = vunpack.c.l.b16 %v2189
        %v2444 = vunpack.c.h.b16 %v2189
        %v2445 = vunpack.c.l.b16 %v2190
        %v2446 = vunpack.c.h.b16 %v2190
        %v2447 = vunpack.c.l.b16 %v2191
        %v2448 = vunpack.c.h.b16 %v2191
        %v2449 = vunpack.c.l.b16 %v2192
        %v2450 = vunpack.c.h.b16 %v2192
        %v2451 = vunpack.c.l.b16 %v2193
        %v2452 = vunpack.c.h.b16 %v2193
        %v2453 = vunpack.c.l.b16 %v2194
        %v2454 = vunpack.c.h.b16 %v2194
        %v2455 = vunpack.c.l.b16 %v2195
        %v2456 = vunpack.c.h.b16 %v2195
        %v2457 = vunpack.c.l.b16 %v2196
        %v2458 = vunpack.c.h.b16 %v2196
        %v2459 = vunpack.c.l.b16 %v2197
        %v2460 = vunpack.c.h.b16 %v2197
        %v2461 = vunpack.c.l.b16 %v2198
        %v2462 = vunpack.c.h.b16 %v2198
        %v2463 = vunpack.c.l.b16 %v2199
        %v2464 = vunpack.c.h.b16 %v2199
        %v2465 = vunpack.c.l.b16 %v2200
        %v2466 = vunpack.c.h.b16 %v2200
        %v2467 = vunpack.c.l.b16 %v2201
        %v2468 = vunpack.c.h.b16 %v2201
        %v2469 = vunpack.c.l.b16 %v2202
        %v2470 = vunpack.c.h.b16 %v2202
        %v2471 = vunpack.c.l.b16 %v2203
        %v2472 = vunpack.c.h.b16 %v2203
        %v2473 = vunpack.c.l.b16 %v2204
        %v2474 = vunpack.c.h.b16 %v2204
        %v2475 = vunpack.c.l.b16 %v2205
        %v2476 = vunpack.c.h.b16 %v2205
        %v2477 = vunpack.c.l.b16 %v2206
        %v2478 = vunpack.c.h.b16 %v2206
        %v2479 = vunpack.c.l.b16 %v2207
        %v2480 = vunpack.c.h.b16 %v2207
        %v2481 = vunpack.c.l.b16 %v2208
        %v2482 = vunpack.c.h.b16 %v2208
        %v2483 = vunpack.c.l.b16 %v2209
        %v2484 = vunpack.c.h.b16 %v2209
        %v2485 = vunpack.c.l.b16 %v2210
        %v2486 = vunpack.c.h.b16 %v2210
        %v2487 = vunpack.c.l.b16 %v2211
        %v2488 = vunpack.c.h.b16 %v2211
        %v2489 = vunpack.c.l.b16 %v2212
        %v2490 = vunpack.c.h.b16 %v2212
        %v2491 = vunpack.c.l.b16 %v2213
        %v2492 = vpack.c.b16 %v2307, %v2307
        %v2493 = vpack.c.b16 %v2308, %v2308
        %v2494 = vpack.c.b16 %v2309, %v2309
        %v2495 = vpack.c.b16 %v2310, %v2310
        %v2496 = vpack.c.b16 %v2311, %v2311
        %v2497 = vpack.c.b16 %v2312, %v2312
        %v2498 = vpack.c.b16 %v2313, %v2313
        %v2499 = vpack.c.b16 %v2314, %v2314
        %v2500 = vpack.c.b16 %v2315, %v2315
        %v2501 = vpack.c.b16 %v2316, %v2316
        %v2502 = vpack.c.b16 %v2317, %v2317
        %v2503 = vpack.c.b16 %v2318, %v2318
        %v2504 = vpack.c.b16 %v2319, %v2319
        %v2505 = vpack.c.b16 %v2320, %v2320
        %v2506 = vpack.c.b16 %v2321, %v2321
        %v2507 = vpack.c.b16 %v2322, %v2322
        %v2508 = vpack.c.b16 %v2323, %v2323
        %v2509 = vpack.c.b16 %v2324, %v2324
        %v2510 = vpack.c.b16 %v2325, %v2325
        %v2511 = vpack.c.b16 %v2326, %v2326
        %v2512 = vpack.c.b16 %v2327, %v2327
        %v2513 = vpack.c.b16 %v2328, %v2328
        %v2514 = vpack.c.b16 %v2329, %v2329
        %v2515 = vpack.c.b16 %v2330, %v2330
        %v2516 = vpack.c.b16 %v2331, %v2331
        %v2517 = vpack.c.b16 %v2332, %v2332
        %v2518 = vpack.c.b16 %v2333, %v2333
        %v2519 = vpack.c.b16 %v2334, %v2334
        %v2520 = vpack.c.b16 %v2335, %v2335
        %v2521 = vpack.c.b16 %v2336, %v2336
        %v2522 = vpack.c.b16 %v2337, %v2337
        %v2523 = vpack.c.b16 %v2338, %v2338
        %v2524 = vpack.c.b16 %v2339, %v2339
        %v2525 = vpack.c.b16 %v2340, %v2340
        %v2526 = vpack.c.b16 %v2341, %v2341
        %v2527 = vpack.c.b16 %v2342, %v2342
        %v2528 = vpack.c.b16 %v2343, %v2343
        %v2529 = vpack.c.b16 %v2344, %v2344
        %v2530 = vpack.c.b16 %v2345, %v2345
        %v2531 = vpack.c.b16 %v2346, %v2346
        %v2532 = vpack.c.b16 %v2347, %v2347
        %v2533 = vpack.c.b16 %v2348, %v2348
        %v2534 = vpack.c.b16 %v2349, %v2349
        %v2535 = vpack.c.b16 %v2350, %v2350
        %v2536 = vpack.c.b16 %v2351, %v2351
        %v2537 = vpack.c.b16 %v2352, %v2352
        %v2538 = vpack.c.b16 %v2353, %v2353
        %v2539 = vpack.c.b16 %v2354, %v2354
        %v2540 = vpack.c.b16 %v2355, %v2355
        %v2541 = vpack.c.b16 %v2356, %v2356
        %v2542 = vpack.c.b16 %v2357, %v2357
        %v2543 = vpack.c.b16 %v2358, %v2358
        %v2544 = vpack.c.b16 %v2359, %v2359
        %v2545 = vpack.c.b16 %v2360, %v2360
        %v2546 = vpack.c.b16 %v2361, %v2361
        %v2547 = vpack.c.b16 %v2362, %v2362
        %v2548 = vpack.c.b16 %v2363, %v2363
        %v2549 = vpack.c.b16 %v2364, %v2364
        %v2550 = vpack.c.b16 %v2365, %v2365
        %v2551 = vpack.c.b16 %v2366, %v2366
        %v2552 = vpack.c.b16 %v2367, %v2367
        %v2553 = vpack.c.b16 %v2368, %v2368
        %v2554 = vpack.c.b16 %v2369, %v2369
        %v2555 = vpack.c.b16 %v2370, %v2370
        %v2556 = vpack.c.b16 %v2371, %v2371
        %v2557 = vpack.c.b16 %v2372, %v2372
        %v2558 = vpack.c.b16 %v2373, %v2373
        %v2559 = vpack.c.b16 %v2374, %v2374
        %v2560 = vpack.c.b16 %v2375, %v2375
        %v2561 = vpack.c.b16 %v2376, %v2376
        %v2562 = vpack.c.b16 %v2377, %v2377
        %v2563 = vpack.c.b16 %v2378, %v2378
        %v2564 = vpack.c.b16 %v2379, %v2379
        %v2565 = vpack.c.b16 %v2380, %v2380
        %v2566 = vpack.c.b16 %v2381, %v2381
        %v2567 = vpack.c.b16 %v2382, %v2382
        %v2568 = vpack.c.b16 %v2383, %v2383
        %v2569 = vpack.c.b16 %v2384, %v2384
        %v2570 = vpack.c.b16 %v2385, %v2385
        %v2571 = vpack.c.b16 %v2386, %v2386
        %v2572 = vpack.c.b16 %v2387, %v2387
        %v2573 = vpack.c.b16 %v2388, %v2388
        %v2574 = vpack.c.b16 %v2389, %v2389
        %v2575 = vpack.c.b16 %v2390, %v2390
        %v2576 = vpack.c.b16 %v2391, %v2391
        %v2577 = vpack.c.b16 %v2392, %v2392
        %v2578 = vpack.c.b16 %v2393, %v2393
        %v2579 = vpack.c.b16 %v2394, %v2394
        %v2580 = vpack.c.b16 %v2395, %v2395
        %v2581 = vpack.c.b16 %v2396, %v2396
        %v2582 = vpack.c.b16 %v2397, %v2397
        %v2583 = vpack.c.b16 %v2398, %v2398
        %v2584 = vpack.c.b16 %v2399, %v2399
        %v2585 = vpack.c.b16 %v2400, %v2400
        %v2586 = vpack.c.b16 %v2401, %v2401
        %v2587 = vpack.c.b16 %v2402, %v2402
        %v2588 = vpack.c.b16 %v2403, %v2403
        %v2589 = vpack.c.b16 %v2404, %v2404
        %v2590 = vpack.c.b16 %v2405, %v2405
        %v2591 = vpack.c.b16 %v2406, %v2406
        %v2592 = vpack.c.b16 %v2407, %v2407
        %v2593 = vpack.c.b16 %v2408, %v2408
        %v2594 = vpack.c.b16 %v2409, %v2409
        %v2595 = vpack.c.b16 %v2410, %v2410
        %v2596 = vpack.c.b16 %v2411, %v2411
        %v2597 = vpack.c.b16 %v2412, %v2412
        %v2598 = vpack.c.b16 %v2413, %v2413
        %v2599 = vpack.c.b16 %v2414, %v2414
        %v2600 = vpack.c.b16 %v2415, %v2415
        %v2601 = vpack.c.b16 %v2416, %v2416
        %v2602 = vpack.c.b16 %v2417, %v2417
        %v2603 = vpack.c.b16 %v2418, %v2418
        %v2604 = vpack.c.b16 %v2419, %v2419
        %v2605 = vpack.c.b16 %v2420, %v2420
        %v2606 = vpack.c.b16 %v2421, %v2421
        %v2607 = vpack.c.b16 %v2422, %v2422
        %v2608 = vpack.c.b16 %v2423, %v2423
        %v2609 = vpack.c.b16 %v2424, %v2424
        %v2610 = vpack.c.b16 %v2425, %v2425
        %v2611 = vpack.c.b16 %v2426, %v2426
        %v2612 = vpack.c.b16 %v2427, %v2427
        %v2613 = vpack.c.b16 %v2428, %v2428
        %v2614 = vpack.c.b16 %v2429, %v2429
        %v2615 = vpack.c.b16 %v2430, %v2430
        %v2616 = vpack.c.b16 %v2431, %v2431
        %v2617 = vpack.c.b16 %v2432, %v2432
        %v2618 = vpack.c.b16 %v2433, %v2433
        %v2619 = vpack.c.b16 %v2434, %v2434
        %v2620 = vpack.c.b16 %v2435, %v2435
        %v2621 = vpack.c.b16 %v2436, %v2436
        %v2622 = vpack.c.b16 %v2437, %v2437
        %v2623 = vpack.c.b16 %v2438, %v2438
        %v2624 = vpack.c.b16 %v2439, %v2439
        %v2625 = vpack.c.b16 %v2440, %v2440
        %v2626 = vpack.c.b16 %v2441, %v2441
        %v2627 = vpack.c.b16 %v2442, %v2442
        %v2628 = vpack.c.b16 %v2443, %v2443
        %v2629 = vpack.c.b16 %v2444, %v2444
        %v2630 = vpack.c.b16 %v2445, %v2445
        %v2631 = vpack.c.b16 %v2446, %v2446
        %v2632 = vpack.c.b16 %v2447, %v2447
        %v2633 = vpack.c.b16 %v2448, %v2448
        %v2634 = vpack.c.b16 %v2449, %v2449
        %v2635 = vpack.c.b16 %v2450, %v2450
        %v2636 = vpack.c.b16 %v2451, %v2451
        %v2637 = vpack.c.b16 %v2452, %v2452
        %v2638 = vpack.c.b16 %v2453, %v2453
        %v2639 = vpack.c.b16 %v2454, %v2454
        %v2640 = vpack.c.b16 %v2455, %v2455
        %v2641 = vpack.c.b16 %v2456, %v2456
        %v2642 = vpack.c.b16 %v2457, %v2457
        %v2643 = vpack.c.b16 %v2458, %v2458
        %v2644 = vpack.c.b16 %v2459, %v2459
        %v2645 = vpack.c.b16 %v2460, %v2460
        %v2646 = vpack.c.b16 %v2461, %v2461
        %v2647 = vpack.c.b16 %v2462, %v2462
        %v2648 = vpack.c.b16 %v2463, %v2463
        %v2649 = vpack.c.b16 %v2464, %v2464
        %v2650 = vpack.c.b16 %v2465, %v2465
        %v2651 = vpack.c.b16 %v2466, %v2466
        %v2652 = vpack.c.b16 %v2467, %v2467
        %v2653 = vpack.c.b16 %v2468, %v2468
        %v2654 = vpack.c.b16 %v2469, %v2469
        %v2655 = vpack.c.b16 %v2470, %v2470
        %v2656 = vpack.c.b16 %v2471, %v2471
        %v2657 = vpack.c.b16 %v2472, %v2472
        %v2658 = vpack.c.b16 %v2473, %v2473
        %v2659 = vpack.c.b16 %v2474, %v2474
        %v2660 = vpack.c.b16 %v2475, %v2475
        %v2661 = vpack.c.b16 %v2476, %v2476
        %v2662 = vpack.c.b16 %v2477, %v2477
        %v2663 = vpack.c.b16 %v2478, %v2478
        %v2664 = vpack.c.b16 %v2479, %v2479
        %v2665 = vpack.c.b16 %v2480, %v2480
        %v2666 = vpack.c.b16 %v2481, %v2481
        %v2667 = vpack.c.b16 %v2482, %v2482
        %v2668 = vpack.c.b16 %v2483, %v2483
        %v2669 = vpack.c.b16 %v2484, %v2484
        %v2670 = vpack.c.b16 %v2485, %v2485
        %v2671 = vpack.c.b16 %v2486, %v2486
        %v2672 = vpack.c.b16 %v2487, %v2487
        %v2673 = vpack.c.b16 %v2488, %v2488
        %v2674 = vpack.c.b16 %v2489, %v2489
        %v2675 = vpack.c.b16 %v2490, %v2490
        %v2676 = vpack.c.b16 %v2491, %v2491
        %2862 = vst [vmem:[%s172] sm:$0xf] %v2492
        %2863 = vst [vmem:[%s172 + $0x4] sm:$0xf] %v2493
        %2864 = vst [vmem:[%s172 + $0x8] sm:$0xf] %v2494
        %2865 = vst [vmem:[%s172 + $0xc] sm:$0xf] %v2495
        %2866 = vst [vmem:[%s172 + $0x10] sm:$0xf] %v2496
        %2867 = vst [vmem:[%s172 + $0x14] sm:$0xf] %v2497
        %2868 = vst [vmem:[%s172 + $0x18] sm:$0xf] %v2498
        %2869 = vst [vmem:[%s172 + $0x1c] sm:$0xf] %v2499
        %2870 = vst [vmem:[%s172 + $0x20] sm:$0xf] %v2500
        %2871 = vst [vmem:[%s172 + $0x24] sm:$0xf] %v2501
        %2872 = vst [vmem:[%s172 + $0x28] sm:$0xf] %v2502
        %2873 = vst [vmem:[%s172 + $0x2c] sm:$0xf] %v2503
        %2874 = vst [vmem:[%s172 + $0x30] sm:$0xf] %v2504
        %2875 = vst [vmem:[%s172 + $0x34] sm:$0xf] %v2505
        %2876 = vst [vmem:[%s172 + $0x38] sm:$0xf] %v2506
        %2877 = vst [vmem:[%s172 + $0x3c] sm:$0xf] %v2507
        %2878 = vst [vmem:[%s172 + $0x40] sm:$0xf] %v2508
        %2879 = vst [vmem:[%s172 + $0x44] sm:$0xf] %v2509
        %2880 = vst [vmem:[%s172 + $0x48] sm:$0xf] %v2510
        %2881 = vst [vmem:[%s172 + $0x4c] sm:$0xf] %v2511
        %2882 = vst [vmem:[%s172 + $0x50] sm:$0xf] %v2512
        %2883 = vst [vmem:[%s172 + $0x54] sm:$0xf] %v2513
        %2884 = vst [vmem:[%s172 + $0x58] sm:$0xf] %v2514
        %2885 = vst [vmem:[%s172 + $0x5c] sm:$0xf] %v2515
        %2886 = vst [vmem:[%s172 + $0x60] sm:$0xf] %v2516
        %2887 = vst [vmem:[%s172 + $0x64] sm:$0xf] %v2517
        %2888 = vst [vmem:[%s172 + $0x68] sm:$0xf] %v2518
        %2889 = vst [vmem:[%s172 + $0x6c] sm:$0xf] %v2519
        %2890 = vst [vmem:[%s172 + $0x70] sm:$0xf] %v2520
        %2891 = vst [vmem:[%s172 + $0x74] sm:$0xf] %v2521
        %2892 = vst [vmem:[%s172 + $0x78] sm:$0xf] %v2522
        %2893 = vst [vmem:[%s172 + $0x7c] sm:$0xf] %v2523
        %2894 = vst [vmem:[%s172 + $0x80] sm:$0xf] %v2524
        %2895 = vst [vmem:[%s172 + $0x84] sm:$0xf] %v2525
        %2896 = vst [vmem:[%s172 + $0x88] sm:$0xf] %v2526
        %2897 = vst [vmem:[%s172 + $0x8c] sm:$0xf] %v2527
        %2898 = vst [vmem:[%s172 + $0x90] sm:$0xf] %v2528
        %2899 = vst [vmem:[%s172 + $0x94] sm:$0xf] %v2529
        %2900 = vst [vmem:[%s172 + $0x98] sm:$0xf] %v2530
        %2901 = vst [vmem:[%s172 + $0x9c] sm:$0xf] %v2531
        %2902 = vst [vmem:[%s172 + $0xa0] sm:$0xf] %v2532
        %2903 = vst [vmem:[%s172 + $0xa4] sm:$0xf] %v2533
        %2904 = vst [vmem:[%s172 + $0xa8] sm:$0xf] %v2534
        %2905 = vst [vmem:[%s172 + $0xac] sm:$0xf] %v2535
        %2906 = vst [vmem:[%s172 + $0xb0] sm:$0xf] %v2536
        %2907 = vst [vmem:[%s172 + $0xb4] sm:$0xf] %v2537
        %2908 = vst [vmem:[%s172 + $0xb8] sm:$0xf] %v2538
        %2909 = vst [vmem:[%s172 + $0xbc] sm:$0xf] %v2539
        %2910 = vst [vmem:[%s172 + $0xc0] sm:$0xf] %v2540
        %2911 = vst [vmem:[%s172 + $0xc4] sm:$0xf] %v2541
        %2912 = vst [vmem:[%s172 + $0xc8] sm:$0xf] %v2542
        %2913 = vst [vmem:[%s172 + $0xcc] sm:$0xf] %v2543
        %2914 = vst [vmem:[%s172 + $0xd0] sm:$0xf] %v2544
        %2915 = vst [vmem:[%s172 + $0xd4] sm:$0xf] %v2545
        %2916 = vst [vmem:[%s172 + $0xd8] sm:$0xf] %v2546
        %2917 = vst [vmem:[%s172 + $0xdc] sm:$0xf] %v2547
        %2918 = vst [vmem:[%s172 + $0xe0] sm:$0xf] %v2548
        %2919 = vst [vmem:[%s172 + $0xe4] sm:$0xf] %v2549
        %2920 = vst [vmem:[%s172 + $0xe8] sm:$0xf] %v2550
        %2921 = vst [vmem:[%s172 + $0xec] sm:$0xf] %v2551
        %2922 = vst [vmem:[%s172 + $0xf0] sm:$0xf] %v2552
        %2923 = vst [vmem:[%s172 + $0xf4] sm:$0xf] %v2553
        %2924 = vst [vmem:[%s172 + $0xf8] sm:$0xf] %v2554
        %2925 = vst [vmem:[%s172 + $0xfc] sm:$0xf] %v2555
        %2926 = vst [vmem:[%s172 + $0x100] sm:$0xf] %v2556
        %2927 = vst [vmem:[%s172 + $0x104] sm:$0xf] %v2557
        %2928 = vst [vmem:[%s172 + $0x108] sm:$0xf] %v2558
        %2929 = vst [vmem:[%s172 + $0x10c] sm:$0xf] %v2559
        %2930 = vst [vmem:[%s172 + $0x110] sm:$0xf] %v2560
        %2931 = vst [vmem:[%s172 + $0x114] sm:$0xf] %v2561
        %2932 = vst [vmem:[%s172 + $0x118] sm:$0xf] %v2562
        %2933 = vst [vmem:[%s172 + $0x11c] sm:$0xf] %v2563
        %2934 = vst [vmem:[%s172 + $0x120] sm:$0xf] %v2564
        %2935 = vst [vmem:[%s172 + $0x124] sm:$0xf] %v2565
        %2936 = vst [vmem:[%s172 + $0x128] sm:$0xf] %v2566
        %2937 = vst [vmem:[%s172 + $0x12c] sm:$0xf] %v2567
        %2938 = vst [vmem:[%s172 + $0x130] sm:$0xf] %v2568
        %2939 = vst [vmem:[%s172 + $0x134] sm:$0xf] %v2569
        %2940 = vst [vmem:[%s172 + $0x138] sm:$0xf] %v2570
        %2941 = vst [vmem:[%s172 + $0x13c] sm:$0xf] %v2571
        %2942 = vst [vmem:[%s172 + $0x140] sm:$0xf] %v2572
        %2943 = vst [vmem:[%s172 + $0x144] sm:$0xf] %v2573
        %2944 = vst [vmem:[%s172 + $0x148] sm:$0xf] %v2574
        %2945 = vst [vmem:[%s172 + $0x14c] sm:$0xf] %v2575
        %2946 = vst [vmem:[%s172 + $0x150] sm:$0xf] %v2576
        %2947 = vst [vmem:[%s172 + $0x154] sm:$0xf] %v2577
        %2948 = vst [vmem:[%s172 + $0x158] sm:$0xf] %v2578
        %2949 = vst [vmem:[%s172 + $0x15c] sm:$0xf] %v2579
        %2950 = vst [vmem:[%s172 + $0x160] sm:$0xf] %v2580
        %2951 = vst [vmem:[%s172 + $0x164] sm:$0xf] %v2581
        %2952 = vst [vmem:[%s172 + $0x168] sm:$0xf] %v2582
        %2953 = vst [vmem:[%s172 + $0x16c] sm:$0xf] %v2583
        %2954 = vst [vmem:[%s172 + $0x170] sm:$0xf] %v2584
        %2955 = vst [vmem:[%s172 + $0x174] sm:$0xf] %v2585
        %2956 = vst [vmem:[%s172 + $0x178] sm:$0xf] %v2586
        %2957 = vst [vmem:[%s172 + $0x17c] sm:$0xf] %v2587
        %2958 = vst [vmem:[%s172 + $0x180] sm:$0xf] %v2588
        %2959 = vst [vmem:[%s172 + $0x184] sm:$0xf] %v2589
        %2960 = vst [vmem:[%s172 + $0x188] sm:$0xf] %v2590
        %2961 = vst [vmem:[%s172 + $0x18c] sm:$0xf] %v2591
        %2962 = vst [vmem:[%s172 + $0x190] sm:$0xf] %v2592
        %2963 = vst [vmem:[%s172 + $0x194] sm:$0xf] %v2593
        %2964 = vst [vmem:[%s172 + $0x198] sm:$0xf] %v2594
        %2965 = vst [vmem:[%s172 + $0x19c] sm:$0xf] %v2595
        %2966 = vst [vmem:[%s172 + $0x1a0] sm:$0xf] %v2596
        %2967 = vst [vmem:[%s172 + $0x1a4] sm:$0xf] %v2597
        %2968 = vst [vmem:[%s172 + $0x1a8] sm:$0xf] %v2598
        %2969 = vst [vmem:[%s172 + $0x1ac] sm:$0xf] %v2599
        %2970 = vst [vmem:[%s172 + $0x1b0] sm:$0xf] %v2600
        %2971 = vst [vmem:[%s172 + $0x1b4] sm:$0xf] %v2601
        %2972 = vst [vmem:[%s172 + $0x1b8] sm:$0xf] %v2602
        %2973 = vst [vmem:[%s172 + $0x1bc] sm:$0xf] %v2603
        %2974 = vst [vmem:[%s172 + $0x1c0] sm:$0xf] %v2604
        %2975 = vst [vmem:[%s172 + $0x1c4] sm:$0xf] %v2605
        %2976 = vst [vmem:[%s172 + $0x1c8] sm:$0xf] %v2606
        %2977 = vst [vmem:[%s172 + $0x1cc] sm:$0xf] %v2607
        %2978 = vst [vmem:[%s172 + $0x1d0] sm:$0xf] %v2608
        %2979 = vst [vmem:[%s172 + $0x1d4] sm:$0xf] %v2609
        %2980 = vst [vmem:[%s172 + $0x1d8] sm:$0xf] %v2610
        %2981 = vst [vmem:[%s172 + $0x1dc] sm:$0xf] %v2611
        %2982 = vst [vmem:[%s172 + $0x1e0] sm:$0xf] %v2612
        %2983 = vst [vmem:[%s172 + $0x1e4] sm:$0xf] %v2613
        %2984 = vst [vmem:[%s172 + $0x1e8] sm:$0xf] %v2614
        %2985 = vst [vmem:[%s172 + $0x1ec] sm:$0xf] %v2615
        %2986 = vst [vmem:[%s172 + $0x1f0] sm:$0xf] %v2616
        %2987 = vst [vmem:[%s172 + $0x1f4] sm:$0xf] %v2617
        %2988 = vst [vmem:[%s172 + $0x1f8] sm:$0xf] %v2618
        %2989 = vst [vmem:[%s172 + $0x1fc] sm:$0xf] %v2619
        %2990 = vst [vmem:[%s172 + $0x200] sm:$0xf] %v2620
        %2991 = vst [vmem:[%s172 + $0x204] sm:$0xf] %v2621
        %2992 = vst [vmem:[%s172 + $0x208] sm:$0xf] %v2622
        %2993 = vst [vmem:[%s172 + $0x20c] sm:$0xf] %v2623
        %2994 = vst [vmem:[%s172 + $0x210] sm:$0xf] %v2624
        %2995 = vst [vmem:[%s172 + $0x214] sm:$0xf] %v2625
        %2996 = vst [vmem:[%s172 + $0x218] sm:$0xf] %v2626
        %2997 = vst [vmem:[%s172 + $0x21c] sm:$0xf] %v2627
        %2998 = vst [vmem:[%s172 + $0x220] sm:$0xf] %v2628
        %2999 = vst [vmem:[%s172 + $0x224] sm:$0xf] %v2629
        %3000 = vst [vmem:[%s172 + $0x228] sm:$0xf] %v2630
        %3001 = vst [vmem:[%s172 + $0x22c] sm:$0xf] %v2631
        %3002 = vst [vmem:[%s172 + $0x230] sm:$0xf] %v2632
        %3003 = vst [vmem:[%s172 + $0x234] sm:$0xf] %v2633
        %3004 = vst [vmem:[%s172 + $0x238] sm:$0xf] %v2634
        %3005 = vst [vmem:[%s172 + $0x23c] sm:$0xf] %v2635
        %3006 = vst [vmem:[%s172 + $0x240] sm:$0xf] %v2636
        %3007 = vst [vmem:[%s172 + $0x244] sm:$0xf] %v2637
        %3008 = vst [vmem:[%s172 + $0x248] sm:$0xf] %v2638
        %3009 = vst [vmem:[%s172 + $0x24c] sm:$0xf] %v2639
        %3010 = vst [vmem:[%s172 + $0x250] sm:$0xf] %v2640
        %3011 = vst [vmem:[%s172 + $0x254] sm:$0xf] %v2641
        %3012 = vst [vmem:[%s172 + $0x258] sm:$0xf] %v2642
        %3013 = vst [vmem:[%s172 + $0x25c] sm:$0xf] %v2643
        %3014 = vst [vmem:[%s172 + $0x260] sm:$0xf] %v2644
        %3015 = vst [vmem:[%s172 + $0x264] sm:$0xf] %v2645
        %3016 = vst [vmem:[%s172 + $0x268] sm:$0xf] %v2646
        %3017 = vst [vmem:[%s172 + $0x26c] sm:$0xf] %v2647
        %3018 = vst [vmem:[%s172 + $0x270] sm:$0xf] %v2648
        %3019 = vst [vmem:[%s172 + $0x274] sm:$0xf] %v2649
        %3020 = vst [vmem:[%s172 + $0x278] sm:$0xf] %v2650
        %3021 = vst [vmem:[%s172 + $0x27c] sm:$0xf] %v2651
        %3022 = vst [vmem:[%s172 + $0x280] sm:$0xf] %v2652
        %3023 = vst [vmem:[%s172 + $0x284] sm:$0xf] %v2653
        %3024 = vst [vmem:[%s172 + $0x288] sm:$0xf] %v2654
        %3025 = vst [vmem:[%s172 + $0x28c] sm:$0xf] %v2655
        %3026 = vst [vmem:[%s172 + $0x290] sm:$0xf] %v2656
        %3027 = vst [vmem:[%s172 + $0x294] sm:$0xf] %v2657
        %3028 = vst [vmem:[%s172 + $0x298] sm:$0xf] %v2658
        %3029 = vst [vmem:[%s172 + $0x29c] sm:$0xf] %v2659
        %3030 = vst [vmem:[%s172 + $0x2a0] sm:$0xf] %v2660
        %3031 = vst [vmem:[%s172 + $0x2a4] sm:$0xf] %v2661
        %3032 = vst [vmem:[%s172 + $0x2a8] sm:$0xf] %v2662
        %3033 = vst [vmem:[%s172 + $0x2ac] sm:$0xf] %v2663
        %3034 = vst [vmem:[%s172 + $0x2b0] sm:$0xf] %v2664
        %3035 = vst [vmem:[%s172 + $0x2b4] sm:$0xf] %v2665
        %3036 = vst [vmem:[%s172 + $0x2b8] sm:$0xf] %v2666
        %3037 = vst [vmem:[%s172 + $0x2bc] sm:$0xf] %v2667
        %3038 = vst [vmem:[%s172 + $0x2c0] sm:$0xf] %v2668
        %3039 = vst [vmem:[%s172 + $0x2c4] sm:$0xf] %v2669
        %3040 = vst [vmem:[%s172 + $0x2c8] sm:$0xf] %v2670
        %3041 = vst [vmem:[%s172 + $0x2cc] sm:$0xf] %v2671
        %3042 = vst [vmem:[%s172 + $0x2d0] sm:$0xf] %v2672
        %3043 = vst [vmem:[%s172 + $0x2d4] sm:$0xf] %v2673
        %3044 = vst [vmem:[%s172 + $0x2d8] sm:$0xf] %v2674
        %3045 = vst [vmem:[%s172 + $0x2dc] sm:$0xf] %v2675
        %3046 = vst [vmem:[%s172 + $0x2e0] sm:$0xf] %v2676
        %s3047 = sand.u32 %s90, 1
        %s3048 = sand.u32 %s90, 1
        %s3049 = smul.addr %s3048, 740
        %s3050 = scalar_lea.vmem [#allocation2], %s3049
        // Predicated region
        $region33: #{ppo_forward.5} parent=31 // pred_check
          %p3051 = pneg %p100
        $region34: #{ppo_forward.5} parent=31 // pred_check_branch
          %3053 = sbr.rel (%p3051) target = $region36
        $region35: #{ppo_forward.5} parent=31 // pred_region
          %s3054 = smul.u32 185, %s14
          %s3055 = ssub.s32 553, %s3054
          %p3056 = scmp.lt.s32.totalorder %s3055, 185
          %s3057 = scalar_select %p3056, %s3055, 185
          %s3058 = smul.u32 64, %s3057
          %p3059 = scmp.ne.s32.totalorder 0, %s3058
          %s3060 = smul.addr %s3054, 4
          %s3061 = scalar_lea.vmem %s3, %s3060
          // Predicated region
          $region37: #{ppo_forward.5} parent=35 // pred_check
            %p3062 = pneg %p3059
          $region38: #{ppo_forward.5} parent=35 // pred_check_branch
            %3064 = sbr.rel (%p3062) target = $region40
          $region39: #{ppo_forward.5} parent=35 // pred_region
            // Predicated region
            $region41: #{ppo_forward.5} parent=39 // pred_check
              _
            $region42: #{ppo_forward.5} parent=39 // pred_check_branch
              %3066 = sbr.rel target = $region44
            $region43: #{ppo_forward.5} parent=39 // pred_region
              // Predicated region
              $region63: #{ppo_forward.5} parent=43 // pred_check
                _
              $region64: #{ppo_forward.5} parent=43 // pred_check_branch
                %3241 = sbr.rel (0) target = $region66
              $region65: #{ppo_forward.5} parent=43 // pred_region
                %s3243 = sshrl.u32 %s3057, 6
                // While loop
                $region67: #{ppo_forward.5} parent=65 // loop_pre_header
                  _
                $region68: #{ppo_forward.5} parent=65 // loop_header
                  %s3245 = sphi 0, %s3247
                  %p3246 = scmp.ge.s32.totalorder %s3245, %s3243
                  %s3250 = sphi 0, %s3383
                  %s3251 = sphi %s3050, %s3386
                  %s3252 = sphi %s3061, %s3387
                $region69: #{ppo_forward.5} parent=65 // loop_header_branch
                  %3249 = sbr.rel (%p3246) target = $region73
                $region70: #{ppo_forward.5} parent=65 // loop_body
                  %v3253 = vld [vmem:[%s3251] sm:$0xf]
                  %3254 = vst [vmem:[%s3252] sm:$0xf] %v3253
                  %v3255 = vld [vmem:[%s3251 + $0x4] sm:$0xf]
                  %3256 = vst [vmem:[%s3252 + $0x4] sm:$0xf] %v3255
                  %v3257 = vld [vmem:[%s3251 + $0x8] sm:$0xf]
                  %3258 = vst [vmem:[%s3252 + $0x8] sm:$0xf] %v3257
                  %v3259 = vld [vmem:[%s3251 + $0xc] sm:$0xf]
                  %3260 = vst [vmem:[%s3252 + $0xc] sm:$0xf] %v3259
                  %v3261 = vld [vmem:[%s3251 + $0x10] sm:$0xf]
                  %3262 = vst [vmem:[%s3252 + $0x10] sm:$0xf] %v3261
                  %v3263 = vld [vmem:[%s3251 + $0x14] sm:$0xf]
                  %3264 = vst [vmem:[%s3252 + $0x14] sm:$0xf] %v3263
                  %v3265 = vld [vmem:[%s3251 + $0x18] sm:$0xf]
                  %3266 = vst [vmem:[%s3252 + $0x18] sm:$0xf] %v3265
                  %v3267 = vld [vmem:[%s3251 + $0x1c] sm:$0xf]
                  %3268 = vst [vmem:[%s3252 + $0x1c] sm:$0xf] %v3267
                  %v3269 = vld [vmem:[%s3251 + $0x20] sm:$0xf]
                  %3270 = vst [vmem:[%s3252 + $0x20] sm:$0xf] %v3269
                  %v3271 = vld [vmem:[%s3251 + $0x24] sm:$0xf]
                  %3272 = vst [vmem:[%s3252 + $0x24] sm:$0xf] %v3271
                  %v3273 = vld [vmem:[%s3251 + $0x28] sm:$0xf]
                  %3274 = vst [vmem:[%s3252 + $0x28] sm:$0xf] %v3273
                  %v3275 = vld [vmem:[%s3251 + $0x2c] sm:$0xf]
                  %3276 = vst [vmem:[%s3252 + $0x2c] sm:$0xf] %v3275
                  %v3277 = vld [vmem:[%s3251 + $0x30] sm:$0xf]
                  %3278 = vst [vmem:[%s3252 + $0x30] sm:$0xf] %v3277
                  %v3279 = vld [vmem:[%s3251 + $0x34] sm:$0xf]
                  %3280 = vst [vmem:[%s3252 + $0x34] sm:$0xf] %v3279
                  %v3281 = vld [vmem:[%s3251 + $0x38] sm:$0xf]
                  %3282 = vst [vmem:[%s3252 + $0x38] sm:$0xf] %v3281
                  %v3283 = vld [vmem:[%s3251 + $0x3c] sm:$0xf]
                  %3284 = vst [vmem:[%s3252 + $0x3c] sm:$0xf] %v3283
                  %v3285 = vld [vmem:[%s3251 + $0x40] sm:$0xf]
                  %3286 = vst [vmem:[%s3252 + $0x40] sm:$0xf] %v3285
                  %v3287 = vld [vmem:[%s3251 + $0x44] sm:$0xf]
                  %3288 = vst [vmem:[%s3252 + $0x44] sm:$0xf] %v3287
                  %v3289 = vld [vmem:[%s3251 + $0x48] sm:$0xf]
                  %3290 = vst [vmem:[%s3252 + $0x48] sm:$0xf] %v3289
                  %v3291 = vld [vmem:[%s3251 + $0x4c] sm:$0xf]
                  %3292 = vst [vmem:[%s3252 + $0x4c] sm:$0xf] %v3291
                  %v3293 = vld [vmem:[%s3251 + $0x50] sm:$0xf]
                  %3294 = vst [vmem:[%s3252 + $0x50] sm:$0xf] %v3293
                  %v3295 = vld [vmem:[%s3251 + $0x54] sm:$0xf]
                  %3296 = vst [vmem:[%s3252 + $0x54] sm:$0xf] %v3295
                  %v3297 = vld [vmem:[%s3251 + $0x58] sm:$0xf]
                  %3298 = vst [vmem:[%s3252 + $0x58] sm:$0xf] %v3297
                  %v3299 = vld [vmem:[%s3251 + $0x5c] sm:$0xf]
                  %3300 = vst [vmem:[%s3252 + $0x5c] sm:$0xf] %v3299
                  %v3301 = vld [vmem:[%s3251 + $0x60] sm:$0xf]
                  %3302 = vst [vmem:[%s3252 + $0x60] sm:$0xf] %v3301
                  %v3303 = vld [vmem:[%s3251 + $0x64] sm:$0xf]
                  %3304 = vst [vmem:[%s3252 + $0x64] sm:$0xf] %v3303
                  %v3305 = vld [vmem:[%s3251 + $0x68] sm:$0xf]
                  %3306 = vst [vmem:[%s3252 + $0x68] sm:$0xf] %v3305
                  %v3307 = vld [vmem:[%s3251 + $0x6c] sm:$0xf]
                  %3308 = vst [vmem:[%s3252 + $0x6c] sm:$0xf] %v3307
                  %v3309 = vld [vmem:[%s3251 + $0x70] sm:$0xf]
                  %3310 = vst [vmem:[%s3252 + $0x70] sm:$0xf] %v3309
                  %v3311 = vld [vmem:[%s3251 + $0x74] sm:$0xf]
                  %3312 = vst [vmem:[%s3252 + $0x74] sm:$0xf] %v3311
                  %v3313 = vld [vmem:[%s3251 + $0x78] sm:$0xf]
                  %3314 = vst [vmem:[%s3252 + $0x78] sm:$0xf] %v3313
                  %v3315 = vld [vmem:[%s3251 + $0x7c] sm:$0xf]
                  %3316 = vst [vmem:[%s3252 + $0x7c] sm:$0xf] %v3315
                  %v3317 = vld [vmem:[%s3251 + $0x80] sm:$0xf]
                  %3318 = vst [vmem:[%s3252 + $0x80] sm:$0xf] %v3317
                  %v3319 = vld [vmem:[%s3251 + $0x84] sm:$0xf]
                  %3320 = vst [vmem:[%s3252 + $0x84] sm:$0xf] %v3319
                  %v3321 = vld [vmem:[%s3251 + $0x88] sm:$0xf]
                  %3322 = vst [vmem:[%s3252 + $0x88] sm:$0xf] %v3321
                  %v3323 = vld [vmem:[%s3251 + $0x8c] sm:$0xf]
                  %3324 = vst [vmem:[%s3252 + $0x8c] sm:$0xf] %v3323
                  %v3325 = vld [vmem:[%s3251 + $0x90] sm:$0xf]
                  %3326 = vst [vmem:[%s3252 + $0x90] sm:$0xf] %v3325
                  %v3327 = vld [vmem:[%s3251 + $0x94] sm:$0xf]
                  %3328 = vst [vmem:[%s3252 + $0x94] sm:$0xf] %v3327
                  %v3329 = vld [vmem:[%s3251 + $0x98] sm:$0xf]
                  %3330 = vst [vmem:[%s3252 + $0x98] sm:$0xf] %v3329
                  %v3331 = vld [vmem:[%s3251 + $0x9c] sm:$0xf]
                  %3332 = vst [vmem:[%s3252 + $0x9c] sm:$0xf] %v3331
                  %v3333 = vld [vmem:[%s3251 + $0xa0] sm:$0xf]
                  %3334 = vst [vmem:[%s3252 + $0xa0] sm:$0xf] %v3333
                  %v3335 = vld [vmem:[%s3251 + $0xa4] sm:$0xf]
                  %3336 = vst [vmem:[%s3252 + $0xa4] sm:$0xf] %v3335
                  %v3337 = vld [vmem:[%s3251 + $0xa8] sm:$0xf]
                  %3338 = vst [vmem:[%s3252 + $0xa8] sm:$0xf] %v3337
                  %v3339 = vld [vmem:[%s3251 + $0xac] sm:$0xf]
                  %3340 = vst [vmem:[%s3252 + $0xac] sm:$0xf] %v3339
                  %v3341 = vld [vmem:[%s3251 + $0xb0] sm:$0xf]
                  %3342 = vst [vmem:[%s3252 + $0xb0] sm:$0xf] %v3341
                  %v3343 = vld [vmem:[%s3251 + $0xb4] sm:$0xf]
                  %3344 = vst [vmem:[%s3252 + $0xb4] sm:$0xf] %v3343
                  %v3345 = vld [vmem:[%s3251 + $0xb8] sm:$0xf]
                  %3346 = vst [vmem:[%s3252 + $0xb8] sm:$0xf] %v3345
                  %v3347 = vld [vmem:[%s3251 + $0xbc] sm:$0xf]
                  %3348 = vst [vmem:[%s3252 + $0xbc] sm:$0xf] %v3347
                  %v3349 = vld [vmem:[%s3251 + $0xc0] sm:$0xf]
                  %3350 = vst [vmem:[%s3252 + $0xc0] sm:$0xf] %v3349
                  %v3351 = vld [vmem:[%s3251 + $0xc4] sm:$0xf]
                  %3352 = vst [vmem:[%s3252 + $0xc4] sm:$0xf] %v3351
                  %v3353 = vld [vmem:[%s3251 + $0xc8] sm:$0xf]
                  %3354 = vst [vmem:[%s3252 + $0xc8] sm:$0xf] %v3353
                  %v3355 = vld [vmem:[%s3251 + $0xcc] sm:$0xf]
                  %3356 = vst [vmem:[%s3252 + $0xcc] sm:$0xf] %v3355
                  %v3357 = vld [vmem:[%s3251 + $0xd0] sm:$0xf]
                  %3358 = vst [vmem:[%s3252 + $0xd0] sm:$0xf] %v3357
                  %v3359 = vld [vmem:[%s3251 + $0xd4] sm:$0xf]
                  %3360 = vst [vmem:[%s3252 + $0xd4] sm:$0xf] %v3359
                  %v3361 = vld [vmem:[%s3251 + $0xd8] sm:$0xf]
                  %3362 = vst [vmem:[%s3252 + $0xd8] sm:$0xf] %v3361
                  %v3363 = vld [vmem:[%s3251 + $0xdc] sm:$0xf]
                  %3364 = vst [vmem:[%s3252 + $0xdc] sm:$0xf] %v3363
                  %v3365 = vld [vmem:[%s3251 + $0xe0] sm:$0xf]
                  %3366 = vst [vmem:[%s3252 + $0xe0] sm:$0xf] %v3365
                  %v3367 = vld [vmem:[%s3251 + $0xe4] sm:$0xf]
                  %3368 = vst [vmem:[%s3252 + $0xe4] sm:$0xf] %v3367
                  %v3369 = vld [vmem:[%s3251 + $0xe8] sm:$0xf]
                  %3370 = vst [vmem:[%s3252 + $0xe8] sm:$0xf] %v3369
                  %v3371 = vld [vmem:[%s3251 + $0xec] sm:$0xf]
                  %3372 = vst [vmem:[%s3252 + $0xec] sm:$0xf] %v3371
                  %v3373 = vld [vmem:[%s3251 + $0xf0] sm:$0xf]
                  %3374 = vst [vmem:[%s3252 + $0xf0] sm:$0xf] %v3373
                  %v3375 = vld [vmem:[%s3251 + $0xf4] sm:$0xf]
                  %3376 = vst [vmem:[%s3252 + $0xf4] sm:$0xf] %v3375
                  %v3377 = vld [vmem:[%s3251 + $0xf8] sm:$0xf]
                  %3378 = vst [vmem:[%s3252 + $0xf8] sm:$0xf] %v3377
                  %v3379 = vld [vmem:[%s3251 + $0xfc] sm:$0xf]
                  %3380 = vst [vmem:[%s3252 + $0xfc] sm:$0xf] %v3379
                  %s3381 = sadd.s32 1, %s3250
                  %p3382 = scmp.ge.s32.totalorder %s3381, %s3243
                  %s3383 = scalar_select %p3382, 0, %s3381
                  %s3384 = smul.u32 %s3383, 256
                  %s3385 = smul.u32 %s3383, 256
                  %s3386 = scalar_lea.vmem %s3050, %s3384 [#allocation2]
                  %s3387 = scalar_lea.vmem %s3061, %s3385
                $region71: #{ppo_forward.5} parent=65 // loop_footer
                  %s3247 = sadd.s32 %s3245, 1
                $region72: #{ppo_forward.5} parent=65 // loop_footer_branch
                  %3244 = sbr.rel target = $region68
                $region73: #{ppo_forward.5} parent=65 // loop_exit
                  _
                %s3388 = sshrl.u32 %s3057, 6
                %s3389 = sand.u32 %s3057, 63
                %s3390 = smul.u32 %s3388, 64
                %s3391 = smul.u32 4, %s3390
                %s3392 = scalar_lea.vmem %s3050, %s3391 [#allocation2]
                %s3393 = smul.u32 4, %s3390
                %s3394 = scalar_lea.vmem %s3061, %s3393
                // While loop
                $region74: #{ppo_forward.5} parent=65 // loop_pre_header
                  _
                $region75: #{ppo_forward.5} parent=65 // loop_header
                  %s3396 = sphi 0, %s3398
                  %p3397 = scmp.ge.s32.totalorder %s3396, %s3389
                  %s3401 = sphi 0, %s3408
                  %s3402 = sphi %s3392, %s3411
                  %s3403 = sphi %s3394, %s3412
                $region76: #{ppo_forward.5} parent=65 // loop_header_branch
                  %3400 = sbr.rel (%p3397) target = $region80
                $region77: #{ppo_forward.5} parent=65 // loop_body
                  %v3404 = vld [vmem:[%s3402] sm:$0xf]
                  %3405 = vst [vmem:[%s3403] sm:$0xf] %v3404
                  %s3406 = sadd.s32 1, %s3401
                  %p3407 = scmp.ge.s32.totalorder %s3406, %s3389
                  %s3408 = scalar_select %p3407, 0, %s3406
                  %s3409 = smul.u32 %s3408, 4
                  %s3410 = smul.u32 %s3408, 4
                  %s3411 = scalar_lea.vmem %s3392, %s3409 [#allocation2]
                  %s3412 = scalar_lea.vmem %s3394, %s3410
                $region78: #{ppo_forward.5} parent=65 // loop_footer
                  %s3398 = sadd.s32 %s3396, 1
                $region79: #{ppo_forward.5} parent=65 // loop_footer_branch
                  %3395 = sbr.rel target = $region75
                $region80: #{ppo_forward.5} parent=65 // loop_exit
                  _
              $region66: #{ppo_forward.5} parent=43 // pred_fallthru
                _
            $region44: #{ppo_forward.5} parent=39 // pred_fallthru
              _
            // Predicated region
            $region45: #{ppo_forward.5} parent=39 // pred_check
              _
            $region46: #{ppo_forward.5} parent=39 // pred_check_branch
              %3068 = sbr.rel (0) target = $region48
            $region47: #{ppo_forward.5} parent=39 // pred_region
              %s3070 = sshrl.u32 %s3057, 6
              // While loop
              $region49: #{ppo_forward.5} parent=47 // loop_pre_header
                _
              $region50: #{ppo_forward.5} parent=47 // loop_header
                %s3072 = sphi 0, %s3074
                %p3073 = scmp.ge.s32.totalorder %s3072, %s3070
                %s3077 = sphi 0, %s3210
                %s3078 = sphi %s3050, %s3213
                %s3079 = sphi %s3061, %s3214
              $region51: #{ppo_forward.5} parent=47 // loop_header_branch
                %3076 = sbr.rel (%p3073) target = $region55
              $region52: #{ppo_forward.5} parent=47 // loop_body
                %v3080 = vld [vmem:[%s3078] sm:$0xf]
                %3081 = vst [vmem:[%s3079] sm:$0xf] %v3080
                %v3082 = vld [vmem:[%s3078 + $0x4] sm:$0xf]
                %3083 = vst [vmem:[%s3079 + $0x4] sm:$0xf] %v3082
                %v3084 = vld [vmem:[%s3078 + $0x8] sm:$0xf]
                %3085 = vst [vmem:[%s3079 + $0x8] sm:$0xf] %v3084
                %v3086 = vld [vmem:[%s3078 + $0xc] sm:$0xf]
                %3087 = vst [vmem:[%s3079 + $0xc] sm:$0xf] %v3086
                %v3088 = vld [vmem:[%s3078 + $0x10] sm:$0xf]
                %3089 = vst [vmem:[%s3079 + $0x10] sm:$0xf] %v3088
                %v3090 = vld [vmem:[%s3078 + $0x14] sm:$0xf]
                %3091 = vst [vmem:[%s3079 + $0x14] sm:$0xf] %v3090
                %v3092 = vld [vmem:[%s3078 + $0x18] sm:$0xf]
                %3093 = vst [vmem:[%s3079 + $0x18] sm:$0xf] %v3092
                %v3094 = vld [vmem:[%s3078 + $0x1c] sm:$0xf]
                %3095 = vst [vmem:[%s3079 + $0x1c] sm:$0xf] %v3094
                %v3096 = vld [vmem:[%s3078 + $0x20] sm:$0xf]
                %3097 = vst [vmem:[%s3079 + $0x20] sm:$0xf] %v3096
                %v3098 = vld [vmem:[%s3078 + $0x24] sm:$0xf]
                %3099 = vst [vmem:[%s3079 + $0x24] sm:$0xf] %v3098
                %v3100 = vld [vmem:[%s3078 + $0x28] sm:$0xf]
                %3101 = vst [vmem:[%s3079 + $0x28] sm:$0xf] %v3100
                %v3102 = vld [vmem:[%s3078 + $0x2c] sm:$0xf]
                %3103 = vst [vmem:[%s3079 + $0x2c] sm:$0xf] %v3102
                %v3104 = vld [vmem:[%s3078 + $0x30] sm:$0xf]
                %3105 = vst [vmem:[%s3079 + $0x30] sm:$0xf] %v3104
                %v3106 = vld [vmem:[%s3078 + $0x34] sm:$0xf]
                %3107 = vst [vmem:[%s3079 + $0x34] sm:$0xf] %v3106
                %v3108 = vld [vmem:[%s3078 + $0x38] sm:$0xf]
                %3109 = vst [vmem:[%s3079 + $0x38] sm:$0xf] %v3108
                %v3110 = vld [vmem:[%s3078 + $0x3c] sm:$0xf]
                %3111 = vst [vmem:[%s3079 + $0x3c] sm:$0xf] %v3110
                %v3112 = vld [vmem:[%s3078 + $0x40] sm:$0xf]
                %3113 = vst [vmem:[%s3079 + $0x40] sm:$0xf] %v3112
                %v3114 = vld [vmem:[%s3078 + $0x44] sm:$0xf]
                %3115 = vst [vmem:[%s3079 + $0x44] sm:$0xf] %v3114
                %v3116 = vld [vmem:[%s3078 + $0x48] sm:$0xf]
                %3117 = vst [vmem:[%s3079 + $0x48] sm:$0xf] %v3116
                %v3118 = vld [vmem:[%s3078 + $0x4c] sm:$0xf]
                %3119 = vst [vmem:[%s3079 + $0x4c] sm:$0xf] %v3118
                %v3120 = vld [vmem:[%s3078 + $0x50] sm:$0xf]
                %3121 = vst [vmem:[%s3079 + $0x50] sm:$0xf] %v3120
                %v3122 = vld [vmem:[%s3078 + $0x54] sm:$0xf]
                %3123 = vst [vmem:[%s3079 + $0x54] sm:$0xf] %v3122
                %v3124 = vld [vmem:[%s3078 + $0x58] sm:$0xf]
                %3125 = vst [vmem:[%s3079 + $0x58] sm:$0xf] %v3124
                %v3126 = vld [vmem:[%s3078 + $0x5c] sm:$0xf]
                %3127 = vst [vmem:[%s3079 + $0x5c] sm:$0xf] %v3126
                %v3128 = vld [vmem:[%s3078 + $0x60] sm:$0xf]
                %3129 = vst [vmem:[%s3079 + $0x60] sm:$0xf] %v3128
                %v3130 = vld [vmem:[%s3078 + $0x64] sm:$0xf]
                %3131 = vst [vmem:[%s3079 + $0x64] sm:$0xf] %v3130
                %v3132 = vld [vmem:[%s3078 + $0x68] sm:$0xf]
                %3133 = vst [vmem:[%s3079 + $0x68] sm:$0xf] %v3132
                %v3134 = vld [vmem:[%s3078 + $0x6c] sm:$0xf]
                %3135 = vst [vmem:[%s3079 + $0x6c] sm:$0xf] %v3134
                %v3136 = vld [vmem:[%s3078 + $0x70] sm:$0xf]
                %3137 = vst [vmem:[%s3079 + $0x70] sm:$0xf] %v3136
                %v3138 = vld [vmem:[%s3078 + $0x74] sm:$0xf]
                %3139 = vst [vmem:[%s3079 + $0x74] sm:$0xf] %v3138
                %v3140 = vld [vmem:[%s3078 + $0x78] sm:$0xf]
                %3141 = vst [vmem:[%s3079 + $0x78] sm:$0xf] %v3140
                %v3142 = vld [vmem:[%s3078 + $0x7c] sm:$0xf]
                %3143 = vst [vmem:[%s3079 + $0x7c] sm:$0xf] %v3142
                %v3144 = vld [vmem:[%s3078 + $0x80] sm:$0xf]
                %3145 = vst [vmem:[%s3079 + $0x80] sm:$0xf] %v3144
                %v3146 = vld [vmem:[%s3078 + $0x84] sm:$0xf]
                %3147 = vst [vmem:[%s3079 + $0x84] sm:$0xf] %v3146
                %v3148 = vld [vmem:[%s3078 + $0x88] sm:$0xf]
                %3149 = vst [vmem:[%s3079 + $0x88] sm:$0xf] %v3148
                %v3150 = vld [vmem:[%s3078 + $0x8c] sm:$0xf]
                %3151 = vst [vmem:[%s3079 + $0x8c] sm:$0xf] %v3150
                %v3152 = vld [vmem:[%s3078 + $0x90] sm:$0xf]
                %3153 = vst [vmem:[%s3079 + $0x90] sm:$0xf] %v3152
                %v3154 = vld [vmem:[%s3078 + $0x94] sm:$0xf]
                %3155 = vst [vmem:[%s3079 + $0x94] sm:$0xf] %v3154
                %v3156 = vld [vmem:[%s3078 + $0x98] sm:$0xf]
                %3157 = vst [vmem:[%s3079 + $0x98] sm:$0xf] %v3156
                %v3158 = vld [vmem:[%s3078 + $0x9c] sm:$0xf]
                %3159 = vst [vmem:[%s3079 + $0x9c] sm:$0xf] %v3158
                %v3160 = vld [vmem:[%s3078 + $0xa0] sm:$0xf]
                %3161 = vst [vmem:[%s3079 + $0xa0] sm:$0xf] %v3160
                %v3162 = vld [vmem:[%s3078 + $0xa4] sm:$0xf]
                %3163 = vst [vmem:[%s3079 + $0xa4] sm:$0xf] %v3162
                %v3164 = vld [vmem:[%s3078 + $0xa8] sm:$0xf]
                %3165 = vst [vmem:[%s3079 + $0xa8] sm:$0xf] %v3164
                %v3166 = vld [vmem:[%s3078 + $0xac] sm:$0xf]
                %3167 = vst [vmem:[%s3079 + $0xac] sm:$0xf] %v3166
                %v3168 = vld [vmem:[%s3078 + $0xb0] sm:$0xf]
                %3169 = vst [vmem:[%s3079 + $0xb0] sm:$0xf] %v3168
                %v3170 = vld [vmem:[%s3078 + $0xb4] sm:$0xf]
                %3171 = vst [vmem:[%s3079 + $0xb4] sm:$0xf] %v3170
                %v3172 = vld [vmem:[%s3078 + $0xb8] sm:$0xf]
                %3173 = vst [vmem:[%s3079 + $0xb8] sm:$0xf] %v3172
                %v3174 = vld [vmem:[%s3078 + $0xbc] sm:$0xf]
                %3175 = vst [vmem:[%s3079 + $0xbc] sm:$0xf] %v3174
                %v3176 = vld [vmem:[%s3078 + $0xc0] sm:$0xf]
                %3177 = vst [vmem:[%s3079 + $0xc0] sm:$0xf] %v3176
                %v3178 = vld [vmem:[%s3078 + $0xc4] sm:$0xf]
                %3179 = vst [vmem:[%s3079 + $0xc4] sm:$0xf] %v3178
                %v3180 = vld [vmem:[%s3078 + $0xc8] sm:$0xf]
                %3181 = vst [vmem:[%s3079 + $0xc8] sm:$0xf] %v3180
                %v3182 = vld [vmem:[%s3078 + $0xcc] sm:$0xf]
                %3183 = vst [vmem:[%s3079 + $0xcc] sm:$0xf] %v3182
                %v3184 = vld [vmem:[%s3078 + $0xd0] sm:$0xf]
                %3185 = vst [vmem:[%s3079 + $0xd0] sm:$0xf] %v3184
                %v3186 = vld [vmem:[%s3078 + $0xd4] sm:$0xf]
                %3187 = vst [vmem:[%s3079 + $0xd4] sm:$0xf] %v3186
                %v3188 = vld [vmem:[%s3078 + $0xd8] sm:$0xf]
                %3189 = vst [vmem:[%s3079 + $0xd8] sm:$0xf] %v3188
                %v3190 = vld [vmem:[%s3078 + $0xdc] sm:$0xf]
                %3191 = vst [vmem:[%s3079 + $0xdc] sm:$0xf] %v3190
                %v3192 = vld [vmem:[%s3078 + $0xe0] sm:$0xf]
                %3193 = vst [vmem:[%s3079 + $0xe0] sm:$0xf] %v3192
                %v3194 = vld [vmem:[%s3078 + $0xe4] sm:$0xf]
                %3195 = vst [vmem:[%s3079 + $0xe4] sm:$0xf] %v3194
                %v3196 = vld [vmem:[%s3078 + $0xe8] sm:$0xf]
                %3197 = vst [vmem:[%s3079 + $0xe8] sm:$0xf] %v3196
                %v3198 = vld [vmem:[%s3078 + $0xec] sm:$0xf]
                %3199 = vst [vmem:[%s3079 + $0xec] sm:$0xf] %v3198
                %v3200 = vld [vmem:[%s3078 + $0xf0] sm:$0xf]
                %3201 = vst [vmem:[%s3079 + $0xf0] sm:$0xf] %v3200
                %v3202 = vld [vmem:[%s3078 + $0xf4] sm:$0xf]
                %3203 = vst [vmem:[%s3079 + $0xf4] sm:$0xf] %v3202
                %v3204 = vld [vmem:[%s3078 + $0xf8] sm:$0xf]
                %3205 = vst [vmem:[%s3079 + $0xf8] sm:$0xf] %v3204
                %v3206 = vld [vmem:[%s3078 + $0xfc] sm:$0xf]
                %3207 = vst [vmem:[%s3079 + $0xfc] sm:$0xf] %v3206
                %s3208 = sadd.s32 1, %s3077
                %p3209 = scmp.ge.s32.totalorder %s3208, %s3070
                %s3210 = scalar_select %p3209, 0, %s3208
                %s3211 = smul.u32 %s3210, 256
                %s3212 = smul.u32 %s3210, 256
                %s3213 = scalar_lea.vmem %s3050, %s3211 [#allocation2]
                %s3214 = scalar_lea.vmem %s3061, %s3212
              $region53: #{ppo_forward.5} parent=47 // loop_footer
                %s3074 = sadd.s32 %s3072, 1
              $region54: #{ppo_forward.5} parent=47 // loop_footer_branch
                %3071 = sbr.rel target = $region50
              $region55: #{ppo_forward.5} parent=47 // loop_exit
                _
              %s3215 = sshrl.u32 %s3057, 6
              %s3216 = sand.u32 %s3057, 63
              %s3217 = smul.u32 %s3215, 64
              %s3218 = smul.u32 4, %s3217
              %s3219 = scalar_lea.vmem %s3050, %s3218 [#allocation2]
              %s3220 = smul.u32 4, %s3217
              %s3221 = scalar_lea.vmem %s3061, %s3220
              // While loop
              $region56: #{ppo_forward.5} parent=47 // loop_pre_header
                _
              $region57: #{ppo_forward.5} parent=47 // loop_header
                %s3223 = sphi 0, %s3225
                %p3224 = scmp.ge.s32.totalorder %s3223, %s3216
                %s3228 = sphi 0, %s3235
                %s3229 = sphi %s3219, %s3238
                %s3230 = sphi %s3221, %s3239
              $region58: #{ppo_forward.5} parent=47 // loop_header_branch
                %3227 = sbr.rel (%p3224) target = $region62
              $region59: #{ppo_forward.5} parent=47 // loop_body
                %v3231 = vld [vmem:[%s3229] sm:$0xf]
                %3232 = vst [vmem:[%s3230] sm:$0xf] %v3231
                %s3233 = sadd.s32 1, %s3228
                %p3234 = scmp.ge.s32.totalorder %s3233, %s3216
                %s3235 = scalar_select %p3234, 0, %s3233
                %s3236 = smul.u32 %s3235, 4
                %s3237 = smul.u32 %s3235, 4
                %s3238 = scalar_lea.vmem %s3219, %s3236 [#allocation2]
                %s3239 = scalar_lea.vmem %s3221, %s3237
              $region60: #{ppo_forward.5} parent=47 // loop_footer
                %s3225 = sadd.s32 %s3223, 1
              $region61: #{ppo_forward.5} parent=47 // loop_footer_branch
                %3222 = sbr.rel target = $region57
              $region62: #{ppo_forward.5} parent=47 // loop_exit
                _
            $region48: #{ppo_forward.5} parent=39 // pred_fallthru
              _
          $region40: #{ppo_forward.5} parent=35 // pred_fallthru
            _
          %3413 = vnop
        $region36: #{ppo_forward.5} parent=31 // pred_fallthru
          _
      $region32: #{ppo_forward.5} parent=5 // pred_fallthru
        _
      %p3414 = scmp.le.s32.totalorder 2, %s9
      // Predicated region
      $region81: #{ppo_forward.5} parent=5 // pred_check
        %p3415 = pneg %p3414
      $region82: #{ppo_forward.5} parent=5 // pred_check_branch
        %3417 = sbr.rel (%p3415) target = $region84
      $region83: #{ppo_forward.5} parent=5 // pred_region
        %s3418 = ssub.s32 %s9, 2
        // Predicated region
        $region85: #{ppo_forward.5} parent=83 // pred_check
          %p3419 = pneg %p106
        $region86: #{ppo_forward.5} parent=83 // pred_check_branch
          %3421 = sbr.rel (%p3419) target = $region88
        $region87: #{ppo_forward.5} parent=83 // pred_region
          %s3422 = sand.u32 %s91, 1
          %s3423 = sand.u32 %s91, 1
          %s3424 = smul.addr %s3423, 740
          %s3425 = scalar_lea.vmem [#allocation2], %s3424
        $region88: #{ppo_forward.5} parent=83 // pred_fallthru
          _
      $region84: #{ppo_forward.5} parent=5 // pred_fallthru
        _
    $region6: #{ppo_forward.5} parent=1 // loop_footer
      %s13 = sadd.s32 1, %s9
    $region7: #{ppo_forward.5} parent=1 // loop_footer_branch
      %8 = sbr.rel target = $region3
    $region8: #{ppo_forward.5} parent=1 // loop_exit
      _

// kernel: ppo_forward.6
$region0: #{ppo_forward.6}
  #allocation0 [shape = 'u32[]', space=smem, size = 0x4, offset = 0x4, fixed_abs, tag = 'smem constant byte address 0x4 - core index']
  #allocation1 [shape = 'u32[144,128]{1,0:T(1,128)}', space=vmem, size = 0x12000, scoped, tag = 'internal scratch']
  %s0 = inlined_call_operand.vmem [shape: bf16[1058,72], index: 0, kind: input, shape index: {}]
  %s1 = inlined_call_operand.vmem [shape: bf16[72,128], index: 1, kind: input, shape index: {}]
  %s2 = inlined_call_operand.vmem [shape: f32[1,128], index: 2, kind: input, shape index: {}]
  %s3 = inlined_call_operand.vmem [shape: bf16[1058,128], index: 3, kind: output, shape index: {}]
  %s4 = sld [smem:[#allocation0]]
  $region89: #{ppo_forward.6} parent=0
    _
  %s6 = ssub.s32 1, %s4
  %s7 = scalar_select 0, %s6, %s4
  $region1: #{ppo_forward.6} parent=0
    #allocation2 [shape = 'u8[274432]{0}', space=vmem, size = 0x43000, scoped, tag = 'output window, operand 0']
    loop: start=0, step=1, limit=4
    $region2: #{ppo_forward.6} parent=1 // loop_pre_header
      _
    $region3: #{ppo_forward.6} parent=1 // loop_header
      %s9 = sphi 0, %s13
      %p10 = scmp.ge.s32.totalorder %s9, 4
      %s19 = sphi 0, %s21
      %s22 = sphi 0, %s19
      %s23 = sphi 0, %s22
      %s39 = sphi 0, %s23
      %s43 = sphi 0, %s43
      %s45 = sphi 0, %s43
      %s46 = sphi 0, %s45
      %s60 = sphi 0, %s46
      %s64 = sphi 0, %s64
      %s66 = sphi 0, %s64
      %s67 = sphi 0, %s66
      %s81 = sphi 0, %s67
      %s87 = sphi 0, %s89
      %s90 = sphi 0, %s87
      %s91 = sphi 0, %s90
      %s107 = sphi 0, %s91
    $region4: #{ppo_forward.6} parent=1 // loop_header_branch
      %12 = sbr.rel (%p10) target = $region8
    $region5: #{ppo_forward.6} parent=1 // loop_body
      %s14 = ssub.s32 %s9, 1
      %s15 = ssub.s32 %s9, 2
      %s16 = sadd.s32 %s9, 1
      %s17 = ssub.s32 %s9, %s16
      %p18 = scmp.eq.s32.totalorder %s17, 0
      %s20 = sadd.s32 %s19, 1
      %s21 = scalar_select %p18, %s19, %s20
      %p24 = pneg %p18
      %p25 = scmp.eq.s32.totalorder %s9, 1
      %p26 = por %p24, %p25
      %p27 = scmp.ne.s32.totalorder %s19, %s22
      %p28 = scmp.eq.s32.totalorder %s9, 0
      %p29 = por %p27, %p28
      %p30 = scmp.ne.s32.totalorder %s19, %s22
      %p31 = scmp.eq.s32.totalorder %s14, 1
      %p32 = por %p30, %p31
      %p33 = scmp.ne.s32.totalorder %s22, %s23
      %p34 = scmp.eq.s32.totalorder %s14, 0
      %p35 = por %p33, %p34
      %p36 = scmp.ne.s32.totalorder %s22, %s23
      %p37 = scmp.eq.s32.totalorder %s15, 1
      %p38 = por %p36, %p37
      %p40 = scmp.ne.s32.totalorder %s23, %s39
      %p41 = scmp.eq.s32.totalorder %s15, 0
      %p42 = por %p40, %p41
      %s44 = sadd.s32 %s43, 1
      %p47 = scmp.eq.s32.totalorder %s9, 1
      %p48 = scmp.ne.s32.totalorder %s43, %s45
      %p49 = scmp.eq.s32.totalorder %s9, 0
      %p50 = por %p48, %p49
      %p51 = scmp.ne.s32.totalorder %s43, %s45
      %p52 = scmp.eq.s32.totalorder %s14, 1
      %p53 = por %p51, %p52
      %p54 = scmp.ne.s32.totalorder %s45, %s46
      %p55 = scmp.eq.s32.totalorder %s14, 0
      %p56 = por %p54, %p55
      %p57 = scmp.ne.s32.totalorder %s45, %s46
      %p58 = scmp.eq.s32.totalorder %s15, 1
      %p59 = por %p57, %p58
      %p61 = scmp.ne.s32.totalorder %s46, %s60
      %p62 = scmp.eq.s32.totalorder %s15, 0
      %p63 = por %p61, %p62
      %s65 = sadd.s32 %s64, 1
      %p68 = scmp.eq.s32.totalorder %s9, 1
      %p69 = scmp.ne.s32.totalorder %s64, %s66
      %p70 = scmp.eq.s32.totalorder %s9, 0
      %p71 = por %p69, %p70
      %p72 = scmp.ne.s32.totalorder %s64, %s66
      %p73 = scmp.eq.s32.totalorder %s14, 1
      %p74 = por %p72, %p73
      %p75 = scmp.ne.s32.totalorder %s66, %s67
      %p76 = scmp.eq.s32.totalorder %s14, 0
      %p77 = por %p75, %p76
      %p78 = scmp.ne.s32.totalorder %s66, %s67
      %p79 = scmp.eq.s32.totalorder %s15, 1
      %p80 = por %p78, %p79
      %p82 = scmp.ne.s32.totalorder %s67, %s81
      %p83 = scmp.eq.s32.totalorder %s15, 0
      %p84 = por %p82, %p83
      %s85 = ssub.s32 %s9, %s16
      %p86 = scmp.eq.s32.totalorder %s85, 0
      %s88 = sadd.s32 %s87, 1
      %s89 = scalar_select %p86, %s87, %s88
      %p92 = pneg %p86
      %p93 = scmp.eq.s32.totalorder %s9, 1
      %p94 = por %p92, %p93
      %p95 = scmp.ne.s32.totalorder %s87, %s90
      %p96 = scmp.eq.s32.totalorder %s9, 0
      %p97 = por %p95, %p96
      %p98 = scmp.ne.s32.totalorder %s87, %s90
      %p99 = scmp.eq.s32.totalorder %s14, 1
      %p100 = por %p98, %p99
      %p101 = scmp.ne.s32.totalorder %s90, %s91
      %p102 = scmp.eq.s32.totalorder %s14, 0
      %p103 = por %p101, %p102
      %p104 = scmp.ne.s32.totalorder %s90, %s91
      %p105 = scmp.eq.s32.totalorder %s15, 1
      %p106 = por %p104, %p105
      %p108 = scmp.ne.s32.totalorder %s91, %s107
      %p109 = scmp.eq.s32.totalorder %s15, 0
      %p110 = por %p108, %p109
      %p111 = scmp.le.s32.totalorder 1, %s9
      %p112 = scmp.lt.s32.totalorder %s9, 3
      %p113 = pnand %p111, %p112
      %p114 = pneg %p113
      // Predicated region
      $region9: #{ppo_forward.6} parent=5 // pred_check
        _
      $region10: #{ppo_forward.6} parent=5 // pred_check_branch
        %116 = sbr.rel (%p113) target = $region12
      $region11: #{ppo_forward.6} parent=5 // pred_region
        %s117 = ssub.s32 %s9, 1
        // Predicated region
        $region13: #{ppo_forward.6} parent=11 // pred_check
          %p118 = pneg %p56
        $region14: #{ppo_forward.6} parent=11 // pred_check_branch
          %120 = sbr.rel (%p118) target = $region16
        $region15: #{ppo_forward.6} parent=11 // pred_region
          _
        $region16: #{ppo_forward.6} parent=11 // pred_fallthru
          _
        // Predicated region
        $region17: #{ppo_forward.6} parent=11 // pred_check
          %p121 = pneg %p77
        $region18: #{ppo_forward.6} parent=11 // pred_check_branch
          %123 = sbr.rel (%p121) target = $region20
        $region19: #{ppo_forward.6} parent=11 // pred_region
          _
        $region20: #{ppo_forward.6} parent=11 // pred_fallthru
          _
      $region12: #{ppo_forward.6} parent=5 // pred_fallthru
        _
      %p124 = scmp.lt.s32.totalorder %s9, 2
      // Predicated region
      $region21: #{ppo_forward.6} parent=5 // pred_check
        %p125 = pneg %p124
      $region22: #{ppo_forward.6} parent=5 // pred_check_branch
        %127 = sbr.rel (%p125) target = $region24
      $region23: #{ppo_forward.6} parent=5 // pred_region
        // Predicated region
        $region25: #{ppo_forward.6} parent=23 // pred_check
          %p128 = pneg %p29
        $region26: #{ppo_forward.6} parent=23 // pred_check_branch
          %130 = sbr.rel (%p128) target = $region28
        $region27: #{ppo_forward.6} parent=23 // pred_region
          %s131 = smul.u32 67, %s9
          %s132 = ssub.s32 133, %s131
          %p133 = scmp.lt.s32.totalorder %s132, 67
          %s134 = scalar_select %p133, %s132, 67
          %s135 = smul.u32 64, %s134
          %p136 = scmp.lt.s32.totalorder %s131, 132
          %s137 = scalar_select %p136, %s131, 132
          %s138 = smul.addr %s137, 4
          %s139 = scalar_lea.vmem %s0, %s138
          %s140 = smul.u32 67, %s9
          %s141 = ssub.s32 133, %s140
          %p142 = scmp.lt.s32.totalorder %s141, 67
          %s143 = scalar_select %p142, %s141, 67
          %s144 = smul.u32 64, %s143
        $region28: #{ppo_forward.6} parent=23 // pred_fallthru
          _
      $region24: #{ppo_forward.6} parent=5 // pred_fallthru
        _
      %p145 = scmp.le.s32.totalorder 1, %s9
      %p146 = scmp.lt.s32.totalorder %s9, 3
      %p147 = pnand %p145, %p146
      %p148 = pneg %p147
      // Predicated region
      $region29: #{ppo_forward.6} parent=5 // pred_check
        _
      $region30: #{ppo_forward.6} parent=5 // pred_check_branch
        %150 = sbr.rel (%p147) target = $region32
      $region31: #{ppo_forward.6} parent=5 // pred_region
        %s151 = ssub.s32 %s9, 1
        %s152 = smul.u32 67, %s14
        %s153 = ssub.s32 133, %s152
        %p154 = scmp.lt.s32.totalorder %s153, 67
        %s155 = scalar_select %p154, %s153, 67
        %s156 = smul.u32 64, %s155
        %p157 = scmp.lt.s32.totalorder %s152, 132
        %s158 = scalar_select %p157, %s152, 132
        %s159 = smul.addr %s158, 4
        %s160 = scalar_lea.vmem %s0, %s159
        %p161 = pneg %p35
        %p162 = pneg %p32
        %p163 = pneg %p56
        %p164 = pneg %p53
        %p165 = pneg %p77
        %p166 = pneg %p74
        %p167 = pneg %p103
        %p168 = pneg %p100
        %s169 = sand.u32 %s90, 1
        %s170 = sand.u32 %s90, 1
        %s171 = smul.addr %s170, 268
        %s172 = scalar_lea.vmem [#allocation2], %s171
        %s173 = smul.u32 67, %s14
        %s174 = ssub.s32 133, %s173
        %p175 = scmp.lt.s32.totalorder %s174, 67
        %s176 = scalar_select %p175, %s174, 67
        %s177 = smul.u32 64, %s176
        %p178 = scmp.lt.s32.totalorder %s173, 132
        %s179 = scalar_select %p178, %s173, 132
        %s180 = smul.addr %s179, 4
        %s181 = scalar_lea.vmem %s0, %s180
        %s182 = smul.u32 67, %s14
        %s183 = ssub.s32 133, %s182
        %p184 = scmp.lt.s32.totalorder %s183, 67
        %s185 = scalar_select %p184, %s183, 67
        %s186 = smul.u32 64, %s185
        %s187 = smul.u32 67, %s14
        %s188 = ssub.s32 133, %s187
        %p189 = scmp.lt.s32.totalorder %s188, 67
        %s190 = scalar_select %p189, %s188, 67
        %s191 = smul.u32 64, %s190
        %v193 = vld [vmem:[%s181] sm:$0xf]
        %v194 = vld [vmem:[%s181 + $0x4] sm:$0xf]
        %v195 = vld [vmem:[%s181 + $0x8] sm:$0xf]
        %v196 = vld [vmem:[%s181 + $0xc] sm:$0xf]
        %v197 = vld [vmem:[%s181 + $0x10] sm:$0xf]
        %v198 = vld [vmem:[%s181 + $0x14] sm:$0xf]
        %v199 = vld [vmem:[%s181 + $0x18] sm:$0xf]
        %v200 = vld [vmem:[%s181 + $0x1c] sm:$0xf]
        %v201 = vld [vmem:[%s181 + $0x20] sm:$0xf]
        %v202 = vld [vmem:[%s181 + $0x24] sm:$0xf]
        %v203 = vld [vmem:[%s181 + $0x28] sm:$0xf]
        %v204 = vld [vmem:[%s181 + $0x2c] sm:$0xf]
        %v205 = vld [vmem:[%s181 + $0x30] sm:$0xf]
        %v206 = vld [vmem:[%s181 + $0x34] sm:$0xf]
        %v207 = vld [vmem:[%s181 + $0x38] sm:$0xf]
        %v208 = vld [vmem:[%s181 + $0x3c] sm:$0xf]
        %v209 = vld [vmem:[%s181 + $0x40] sm:$0xf]
        %v210 = vld [vmem:[%s181 + $0x44] sm:$0xf]
        %v211 = vld [vmem:[%s181 + $0x48] sm:$0xf]
        %v212 = vld [vmem:[%s181 + $0x4c] sm:$0xf]
        %v213 = vld [vmem:[%s181 + $0x50] sm:$0xf]
        %v214 = vld [vmem:[%s181 + $0x54] sm:$0xf]
        %v215 = vld [vmem:[%s181 + $0x58] sm:$0xf]
        %v216 = vld [vmem:[%s181 + $0x5c] sm:$0xf]
        %v217 = vld [vmem:[%s181 + $0x60] sm:$0xf]
        %v218 = vld [vmem:[%s181 + $0x64] sm:$0xf]
        %v219 = vld [vmem:[%s181 + $0x68] sm:$0xf]
        %v220 = vld [vmem:[%s181 + $0x6c] sm:$0xf]
        %v221 = vld [vmem:[%s181 + $0x70] sm:$0xf]
        %v222 = vld [vmem:[%s181 + $0x74] sm:$0xf]
        %v223 = vld [vmem:[%s181 + $0x78] sm:$0xf]
        %v224 = vld [vmem:[%s181 + $0x7c] sm:$0xf]
        %v225 = vld [vmem:[%s181 + $0x80] sm:$0xf]
        %v226 = vld [vmem:[%s181 + $0x84] sm:$0xf]
        %v227 = vld [vmem:[%s181 + $0x88] sm:$0xf]
        %v228 = vld [vmem:[%s181 + $0x8c] sm:$0xf]
        %v229 = vld [vmem:[%s181 + $0x90] sm:$0xf]
        %v230 = vld [vmem:[%s181 + $0x94] sm:$0xf]
        %v231 = vld [vmem:[%s181 + $0x98] sm:$0xf]
        %v232 = vld [vmem:[%s181 + $0x9c] sm:$0xf]
        %v233 = vld [vmem:[%s181 + $0xa0] sm:$0xf]
        %v234 = vld [vmem:[%s181 + $0xa4] sm:$0xf]
        %v235 = vld [vmem:[%s181 + $0xa8] sm:$0xf]
        %v236 = vld [vmem:[%s181 + $0xac] sm:$0xf]
        %v237 = vld [vmem:[%s181 + $0xb0] sm:$0xf]
        %v238 = vld [vmem:[%s181 + $0xb4] sm:$0xf]
        %v239 = vld [vmem:[%s181 + $0xb8] sm:$0xf]
        %v240 = vld [vmem:[%s181 + $0xbc] sm:$0xf]
        %v241 = vld [vmem:[%s181 + $0xc0] sm:$0xf]
        %v242 = vld [vmem:[%s181 + $0xc4] sm:$0xf]
        %v243 = vld [vmem:[%s181 + $0xc8] sm:$0xf]
        %v244 = vld [vmem:[%s181 + $0xcc] sm:$0xf]
        %v245 = vld [vmem:[%s181 + $0xd0] sm:$0xf]
        %v246 = vld [vmem:[%s181 + $0xd4] sm:$0xf]
        %v247 = vld [vmem:[%s181 + $0xd8] sm:$0xf]
        %v248 = vld [vmem:[%s181 + $0xdc] sm:$0xf]
        %v249 = vld [vmem:[%s181 + $0xe0] sm:$0xf]
        %v250 = vld [vmem:[%s181 + $0xe4] sm:$0xf]
        %v251 = vld [vmem:[%s181 + $0xe8] sm:$0xf]
        %v252 = vld [vmem:[%s181 + $0xec] sm:$0xf]
        %v253 = vld [vmem:[%s181 + $0xf0] sm:$0xf]
        %v254 = vld [vmem:[%s181 + $0xf4] sm:$0xf]
        %v255 = vld [vmem:[%s181 + $0xf8] sm:$0xf]
        %v256 = vld [vmem:[%s181 + $0xfc] sm:$0xf]
        %v257 = vld [vmem:[%s181 + $0x100] sm:$0xf]
        %v258 = vld [vmem:[%s181 + $0x104] sm:$0xf]
        %v259 = vld [vmem:[%s181 + $0x108] sm:$0xf]
        %v260 = vld [vmem:[%s1] sm:$0xf]
        %v261 = vld [vmem:[%s1 + $0x4] sm:$0xf]
        %v262 = vld [vmem:[%s1 + $0x8] sm:$0xf]
        %v263 = vld [vmem:[%s1 + $0xc] sm:$0xf]
        %v264 = vld [vmem:[%s1 + $0x10] sm:$0xf]
        %v265 = vld [vmem:[%s1 + $0x14] sm:$0xf]
        %v266 = vld [vmem:[%s1 + $0x18] sm:$0xf]
        %v267 = vld [vmem:[%s1 + $0x1c] sm:$0xf]
        %v268 = vld [vmem:[%s1 + $0x20] sm:$0xf]
        %v269 = vld [vmem:[%s2] sm:$0x1]
        %v271 = vlaneseq
        %v272 = vshrl.u32 %v271, 7
        %v273 = vsub.s32 0, %v272
        %v274 = vrot.slane %v269, %v273
        %v343 = vunpack.c.l.b16 %v193
        %v344 = vunpack.c.l.b16 %v194
        %v345 = vunpack.c.l.b16 %v195
        %v346 = vunpack.c.l.b16 %v196
        %v347 = vunpack.c.l.b16 %v197
        %v348 = vunpack.c.l.b16 %v198
        %v349 = vunpack.c.l.b16 %v199
        %v350 = vunpack.c.l.b16 %v200
        %v351 = vunpack.c.l.b16 %v201
        %v352 = vunpack.c.l.b16 %v202
        %v353 = vunpack.c.l.b16 %v203
        %v354 = vunpack.c.l.b16 %v204
        %v355 = vunpack.c.l.b16 %v205
        %v356 = vunpack.c.l.b16 %v206
        %v357 = vunpack.c.l.b16 %v207
        %v358 = vunpack.c.l.b16 %v208
        %v359 = vunpack.c.l.b16 %v209
        %v360 = vunpack.c.l.b16 %v210
        %v361 = vunpack.c.l.b16 %v211
        %v362 = vunpack.c.l.b16 %v212
        %v363 = vunpack.c.l.b16 %v213
        %v364 = vunpack.c.l.b16 %v214
        %v365 = vunpack.c.l.b16 %v215
        %v366 = vunpack.c.l.b16 %v216
        %v367 = vunpack.c.l.b16 %v217
        %v368 = vunpack.c.l.b16 %v218
        %v369 = vunpack.c.l.b16 %v219
        %v370 = vunpack.c.l.b16 %v220
        %v371 = vunpack.c.l.b16 %v221
        %v372 = vunpack.c.l.b16 %v222
        %v373 = vunpack.c.l.b16 %v223
        %v374 = vunpack.c.l.b16 %v224
        %v375 = vunpack.c.l.b16 %v225
        %v376 = vunpack.c.l.b16 %v226
        %v377 = vunpack.c.l.b16 %v227
        %v378 = vunpack.c.l.b16 %v228
        %v379 = vunpack.c.l.b16 %v229
        %v380 = vunpack.c.l.b16 %v230
        %v381 = vunpack.c.l.b16 %v231
        %v382 = vunpack.c.l.b16 %v232
        %v383 = vunpack.c.l.b16 %v233
        %v384 = vunpack.c.l.b16 %v234
        %v385 = vunpack.c.l.b16 %v235
        %v386 = vunpack.c.l.b16 %v236
        %v387 = vunpack.c.l.b16 %v237
        %v388 = vunpack.c.l.b16 %v238
        %v389 = vunpack.c.l.b16 %v239
        %v390 = vunpack.c.l.b16 %v240
        %v391 = vunpack.c.l.b16 %v241
        %v392 = vunpack.c.l.b16 %v242
        %v393 = vunpack.c.l.b16 %v243
        %v394 = vunpack.c.l.b16 %v244
        %v395 = vunpack.c.l.b16 %v245
        %v396 = vunpack.c.l.b16 %v246
        %v397 = vunpack.c.l.b16 %v247
        %v398 = vunpack.c.l.b16 %v248
        %v399 = vunpack.c.l.b16 %v249
        %v400 = vunpack.c.l.b16 %v250
        %v401 = vunpack.c.l.b16 %v251
        %v402 = vunpack.c.l.b16 %v252
        %v403 = vunpack.c.l.b16 %v253
        %v404 = vunpack.c.l.b16 %v254
        %v405 = vunpack.c.l.b16 %v255
        %v406 = vunpack.c.l.b16 %v256
        %v407 = vunpack.c.l.b16 %v257
        %v408 = vunpack.c.l.b16 %v258
        %v409 = vunpack.c.l.b16 %v259
        %v410 = vpack.c.b16 %v344, %v343
        %v411 = vpack.c.b16 %v346, %v345
        %v412 = vpack.c.b16 %v348, %v347
        %v413 = vpack.c.b16 %v350, %v349
        %v414 = vpack.c.b16 %v352, %v351
        %v415 = vpack.c.b16 %v354, %v353
        %v416 = vpack.c.b16 %v356, %v355
        %v417 = vpack.c.b16 %v358, %v357
        %v418 = vpack.c.b16 %v360, %v359
        %v419 = vpack.c.b16 %v362, %v361
        %v420 = vpack.c.b16 %v364, %v363
        %v421 = vpack.c.b16 %v366, %v365
        %v422 = vpack.c.b16 %v368, %v367
        %v423 = vpack.c.b16 %v370, %v369
        %v424 = vpack.c.b16 %v372, %v371
        %v425 = vpack.c.b16 %v374, %v373
        %v426 = vpack.c.b16 %v376, %v375
        %v427 = vpack.c.b16 %v378, %v377
        %v428 = vpack.c.b16 %v380, %v379
        %v429 = vpack.c.b16 %v382, %v381
        %v430 = vpack.c.b16 %v384, %v383
        %v431 = vpack.c.b16 %v386, %v385
        %v432 = vpack.c.b16 %v388, %v387
        %v433 = vpack.c.b16 %v390, %v389
        %v434 = vpack.c.b16 %v392, %v391
        %v435 = vpack.c.b16 %v394, %v393
        %v436 = vpack.c.b16 %v396, %v395
        %v437 = vpack.c.b16 %v398, %v397
        %v438 = vpack.c.b16 %v400, %v399
        %v439 = vpack.c.b16 %v402, %v401
        %v440 = vpack.c.b16 %v404, %v403
        %v441 = vpack.c.b16 %v406, %v405
        %v442 = vpack.c.b16 %v408, %v407
        %v443 = vpack.c.b16 %v409, %v409
        %v453 = vunpack.c.l.b16 %v260
        %v454 = vunpack.c.l.b16 %v261
        %v455 = vunpack.c.l.b16 %v262
        %v456 = vunpack.c.l.b16 %v263
        %v457 = vunpack.c.l.b16 %v264
        %v458 = vunpack.c.l.b16 %v265
        %v459 = vunpack.c.l.b16 %v266
        %v460 = vunpack.c.l.b16 %v267
        %v461 = vunpack.c.l.b16 %v268
        %v462 = vpack.c.b16 %v454, %v453
        %v463 = vpack.c.b16 %v456, %v455
        %v464 = vpack.c.b16 %v458, %v457
        %v465 = vpack.c.b16 %v460, %v459
        %v466 = vpack.c.b16 %v461, %v461
        %vm471 = vcmask 588800
        %v473 = vsel %vm471, %v410, 0
        %v476 = vsel %vm471, %v411, 0
        %v479 = vsel %vm471, %v412, 0
        %v482 = vsel %vm471, %v413, 0
        %v485 = vsel %vm471, %v414, 0
        %v488 = vsel %vm471, %v415, 0
        %v491 = vsel %vm471, %v416, 0
        %v494 = vsel %vm471, %v417, 0
        %v497 = vsel %vm471, %v418, 0
        %v500 = vsel %vm471, %v419, 0
        %v503 = vsel %vm471, %v420, 0
        %v506 = vsel %vm471, %v421, 0
        %v509 = vsel %vm471, %v422, 0
        %v512 = vsel %vm471, %v423, 0
        %v515 = vsel %vm471, %v424, 0
        %v518 = vsel %vm471, %v425, 0
        %v521 = vsel %vm471, %v426, 0
        %v524 = vsel %vm471, %v427, 0
        %v527 = vsel %vm471, %v428, 0
        %v530 = vsel %vm471, %v429, 0
        %v533 = vsel %vm471, %v430, 0
        %v536 = vsel %vm471, %v431, 0
        %v539 = vsel %vm471, %v432, 0
        %v542 = vsel %vm471, %v433, 0
        %v545 = vsel %vm471, %v434, 0
        %v548 = vsel %vm471, %v435, 0
        %v551 = vsel %vm471, %v436, 0
        %v554 = vsel %vm471, %v437, 0
        %v557 = vsel %vm471, %v438, 0
        %v560 = vsel %vm471, %v439, 0
        %v563 = vsel %vm471, %v440, 0
        %v566 = vsel %vm471, %v441, 0
        %v569 = vsel %vm471, %v442, 0
        %v572 = vsel %vm471, %v443, 0
        %vm574 = vcmask 1043456
        %v576 = vsel %vm574, %v466, 0
        %578 = vmatprep.subr.bf16.mxu0 0
        %579 = vmatpush1.bf16.msra.mxu0 %v462
        %580 = vmatprep.subr.bf16.mxu0 0
        %581 = vmatpush1.bf16.msra.mxu0 %v463
        %582 = vmatprep.subr.bf16.mxu0 0
        %583 = vmatpush1.bf16.msra.mxu0 %v464
        %584 = vmatprep.subr.bf16.mxu0 0
        %585 = vmatpush1.bf16.msra.mxu0 %v465
        %586 = vmatprep.subr.bf16.mxu0 0
        %587 = vmatpush1.bf16.msra.mxu0 %v576
        %588 = vmatprep.subr.bf16.mxu0 0
        %589 = vmatpush1.bf16.msra.mxu0 0
        %590 = vmatprep.subr.bf16.mxu0 0
        %591 = vmatpush1.bf16.msra.mxu0 0
        %592 = vmatprep.subr.bf16.mxu0 0
        %593 = vmatpush1.bf16.msra.mxu0 0
        %594 = vmatprep.subr.bf16.mxu0 0
        %595 = vmatpush1.bf16.msra.mxu0 0
        %596 = vmatprep.subr.bf16.mxu0 0
        %597 = vmatpush1.bf16.msra.mxu0 0
        %598 = vmatprep.subr.bf16.mxu0 0
        %599 = vmatpush1.bf16.msra.mxu0 0
        %600 = vmatprep.subr.bf16.mxu0 0
        %601 = vmatpush1.bf16.msra.mxu0 0
        %602 = vmatprep.subr.bf16.mxu0 0
        %603 = vmatpush1.bf16.msra.mxu0 0
        %604 = vmatprep.subr.bf16.mxu0 0
        %605 = vmatpush1.bf16.msra.mxu0 0
        %606 = vmatprep.subr.bf16.mxu0 0
        %607 = vmatpush1.bf16.msra.mxu0 0
        %608 = vmatprep.subr.bf16.mxu0 0
        %609 = vmatpush1.bf16.msra.mxu0 0
        %610 = vmatprep.mubr.bf16.mxu0 0
        %611 = vmatmul.mubr.bf16.gmra.mrb[0].mxu0 %v473
        %v612 = vpop.f32.mrb[0].mxu0
        %v613 = vadd.f32 %v274, %v612
        %v614 = vpop.f32.mrb[0].mxu0
        %v615 = vpop.f32.mrb[0].mxu0
        %v616 = vadd.f32 %v274, %v615
        %v617 = vpop.f32.mrb[0].mxu0
        %618 = vmatprep.mubr.bf16.mxu0 0
        %619 = vmatmul.mubr.bf16.gmra.mrb[0].mxu0 %v476
        %v620 = vpop.f32.mrb[0].mxu0
        %v621 = vadd.f32 %v274, %v620
        %v622 = vpop.f32.mrb[0].mxu0
        %v623 = vpop.f32.mrb[0].mxu0
        %v624 = vadd.f32 %v274, %v623
        %v625 = vpop.f32.mrb[0].mxu0
        %626 = vmatprep.mubr.bf16.mxu0 0
        %627 = vmatmul.mubr.bf16.gmra.mrb[0].mxu0 %v479
        %v628 = vpop.f32.mrb[0].mxu0
        %v629 = vadd.f32 %v274, %v628
        %v630 = vpop.f32.mrb[0].mxu0
        %v631 = vpop.f32.mrb[0].mxu0
        %v632 = vadd.f32 %v274, %v631
        %v633 = vpop.f32.mrb[0].mxu0
        %634 = vmatprep.mubr.bf16.mxu0 0
        %635 = vmatmul.mubr.bf16.gmra.mrb[0].mxu0 %v482
        %v636 = vpop.f32.mrb[0].mxu0
        %v637 = vadd.f32 %v274, %v636
        %v638 = vpop.f32.mrb[0].mxu0
        %v639 = vpop.f32.mrb[0].mxu0
        %v640 = vadd.f32 %v274, %v639
        %v641 = vpop.f32.mrb[0].mxu0
        %642 = vmatprep.mubr.bf16.mxu0 0
        %643 = vmatmul.mubr.bf16.gmra.mrb[0].mxu0 %v485
        %v644 = vpop.f32.mrb[0].mxu0
        %v645 = vadd.f32 %v274, %v644
        %v646 = vpop.f32.mrb[0].mxu0
        %v647 = vpop.f32.mrb[0].mxu0
        %v648 = vadd.f32 %v274, %v647
        %v649 = vpop.f32.mrb[0].mxu0
        %650 = vmatprep.mubr.bf16.mxu0 0
        %651 = vmatmul.mubr.bf16.gmra.mrb[0].mxu0 %v488
        %v652 = vpop.f32.mrb[0].mxu0
        %v653 = vadd.f32 %v274, %v652
        %v654 = vpop.f32.mrb[0].mxu0
        %v655 = vpop.f32.mrb[0].mxu0
        %v656 = vadd.f32 %v274, %v655
        %v657 = vpop.f32.mrb[0].mxu0
        %658 = vmatprep.mubr.bf16.mxu0 0
        %659 = vmatmul.mubr.bf16.gmra.mrb[0].mxu0 %v491
        %v660 = vpop.f32.mrb[0].mxu0
        %v661 = vadd.f32 %v274, %v660
        %v662 = vpop.f32.mrb[0].mxu0
        %v663 = vpop.f32.mrb[0].mxu0
        %v664 = vadd.f32 %v274, %v663
        %v665 = vpop.f32.mrb[0].mxu0
        %666 = vmatprep.mubr.bf16.mxu0 0
        %667 = vmatmul.mubr.bf16.gmra.mrb[0].mxu0 %v494
        %v668 = vpop.f32.mrb[0].mxu0
        %v669 = vadd.f32 %v274, %v668
        %v670 = vpop.f32.mrb[0].mxu0
        %v671 = vpop.f32.mrb[0].mxu0
        %v672 = vadd.f32 %v274, %v671
        %v673 = vpop.f32.mrb[0].mxu0
        %674 = vmatprep.mubr.bf16.mxu0 0
        %675 = vmatmul.mubr.bf16.gmra.mrb[0].mxu0 %v497
        %v676 = vpop.f32.mrb[0].mxu0
        %v677 = vadd.f32 %v274, %v676
        %v678 = vpop.f32.mrb[0].mxu0
        %v679 = vpop.f32.mrb[0].mxu0
        %v680 = vadd.f32 %v274, %v679
        %v681 = vpop.f32.mrb[0].mxu0
        %682 = vmatprep.mubr.bf16.mxu0 0
        %683 = vmatmul.mubr.bf16.gmra.mrb[0].mxu0 %v500
        %v684 = vpop.f32.mrb[0].mxu0
        %v685 = vadd.f32 %v274, %v684
        %v686 = vpop.f32.mrb[0].mxu0
        %v687 = vpop.f32.mrb[0].mxu0
        %v688 = vadd.f32 %v274, %v687
        %v689 = vpop.f32.mrb[0].mxu0
        %690 = vmatprep.mubr.bf16.mxu0 0
        %691 = vmatmul.mubr.bf16.gmra.mrb[0].mxu0 %v503
        %v692 = vpop.f32.mrb[0].mxu0
        %v693 = vadd.f32 %v274, %v692
        %v694 = vpop.f32.mrb[0].mxu0
        %v695 = vpop.f32.mrb[0].mxu0
        %v696 = vadd.f32 %v274, %v695
        %v697 = vpop.f32.mrb[0].mxu0
        %698 = vmatprep.mubr.bf16.mxu0 0
        %699 = vmatmul.mubr.bf16.gmra.mrb[0].mxu0 %v506
        %v700 = vpop.f32.mrb[0].mxu0
        %v701 = vadd.f32 %v274, %v700
        %v702 = vpop.f32.mrb[0].mxu0
        %v703 = vpop.f32.mrb[0].mxu0
        %v704 = vadd.f32 %v274, %v703
        %v705 = vpop.f32.mrb[0].mxu0
        %706 = vmatprep.mubr.bf16.mxu0 0
        %707 = vmatmul.mubr.bf16.gmra.mrb[0].mxu0 %v509
        %v708 = vpop.f32.mrb[0].mxu0
        %v709 = vadd.f32 %v274, %v708
        %v710 = vpop.f32.mrb[0].mxu0
        %v711 = vpop.f32.mrb[0].mxu0
        %v712 = vadd.f32 %v274, %v711
        %v713 = vpop.f32.mrb[0].mxu0
        %714 = vmatprep.mubr.bf16.mxu0 0
        %715 = vmatmul.mubr.bf16.gmra.mrb[0].mxu0 %v512
        %v716 = vpop.f32.mrb[0].mxu0
        %v717 = vadd.f32 %v274, %v716
        %v718 = vpop.f32.mrb[0].mxu0
        %v719 = vpop.f32.mrb[0].mxu0
        %v720 = vadd.f32 %v274, %v719
        %v721 = vpop.f32.mrb[0].mxu0
        %722 = vmatprep.mubr.bf16.mxu0 0
        %723 = vmatmul.mubr.bf16.gmra.mrb[0].mxu0 %v515
        %v724 = vpop.f32.mrb[0].mxu0
        %v725 = vadd.f32 %v274, %v724
        %v726 = vpop.f32.mrb[0].mxu0
        %v727 = vpop.f32.mrb[0].mxu0
        %v728 = vadd.f32 %v274, %v727
        %v729 = vpop.f32.mrb[0].mxu0
        %730 = vmatprep.mubr.bf16.mxu0 0
        %731 = vmatmul.mubr.bf16.gmra.mrb[0].mxu0 %v518
        %v732 = vpop.f32.mrb[0].mxu0
        %v733 = vadd.f32 %v274, %v732
        %v734 = vpop.f32.mrb[0].mxu0
        %v735 = vpop.f32.mrb[0].mxu0
        %v736 = vadd.f32 %v274, %v735
        %v737 = vpop.f32.mrb[0].mxu0
        %738 = vmatprep.mubr.bf16.mxu0 0
        %739 = vmatmul.mubr.bf16.gmra.mrb[0].mxu0 %v521
        %v740 = vpop.f32.mrb[0].mxu0
        %v741 = vadd.f32 %v274, %v740
        %v742 = vpop.f32.mrb[0].mxu0
        %v743 = vpop.f32.mrb[0].mxu0
        %v744 = vadd.f32 %v274, %v743
        %v745 = vpop.f32.mrb[0].mxu0
        %746 = vmatprep.mubr.bf16.mxu0 0
        %747 = vmatmul.mubr.bf16.gmra.mrb[0].mxu0 %v524
        %v748 = vpop.f32.mrb[0].mxu0
        %v749 = vadd.f32 %v274, %v748
        %v750 = vpop.f32.mrb[0].mxu0
        %v751 = vpop.f32.mrb[0].mxu0
        %v752 = vadd.f32 %v274, %v751
        %v753 = vpop.f32.mrb[0].mxu0
        %754 = vmatprep.mubr.bf16.mxu0 0
        %755 = vmatmul.mubr.bf16.gmra.mrb[0].mxu0 %v527
        %v756 = vpop.f32.mrb[0].mxu0
        %v757 = vadd.f32 %v274, %v756
        %v758 = vpop.f32.mrb[0].mxu0
        %v759 = vpop.f32.mrb[0].mxu0
        %v760 = vadd.f32 %v274, %v759
        %v761 = vpop.f32.mrb[0].mxu0
        %762 = vmatprep.mubr.bf16.mxu0 0
        %763 = vmatmul.mubr.bf16.gmra.mrb[0].mxu0 %v530
        %v764 = vpop.f32.mrb[0].mxu0
        %v765 = vadd.f32 %v274, %v764
        %v766 = vpop.f32.mrb[0].mxu0
        %v767 = vpop.f32.mrb[0].mxu0
        %v768 = vadd.f32 %v274, %v767
        %v769 = vpop.f32.mrb[0].mxu0
        %770 = vmatprep.mubr.bf16.mxu0 0
        %771 = vmatmul.mubr.bf16.gmra.mrb[0].mxu0 %v533
        %v772 = vpop.f32.mrb[0].mxu0
        %v773 = vadd.f32 %v274, %v772
        %v774 = vpop.f32.mrb[0].mxu0
        %v775 = vpop.f32.mrb[0].mxu0
        %v776 = vadd.f32 %v274, %v775
        %v777 = vpop.f32.mrb[0].mxu0
        %778 = vmatprep.mubr.bf16.mxu0 0
        %779 = vmatmul.mubr.bf16.gmra.mrb[0].mxu0 %v536
        %v780 = vpop.f32.mrb[0].mxu0
        %v781 = vadd.f32 %v274, %v780
        %v782 = vpop.f32.mrb[0].mxu0
        %v783 = vpop.f32.mrb[0].mxu0
        %v784 = vadd.f32 %v274, %v783
        %v785 = vpop.f32.mrb[0].mxu0
        %786 = vmatprep.mubr.bf16.mxu0 0
        %787 = vmatmul.mubr.bf16.gmra.mrb[0].mxu0 %v539
        %v788 = vpop.f32.mrb[0].mxu0
        %v789 = vadd.f32 %v274, %v788
        %v790 = vpop.f32.mrb[0].mxu0
        %v791 = vpop.f32.mrb[0].mxu0
        %v792 = vadd.f32 %v274, %v791
        %v793 = vpop.f32.mrb[0].mxu0
        %794 = vmatprep.mubr.bf16.mxu0 0
        %795 = vmatmul.mubr.bf16.gmra.mrb[0].mxu0 %v542
        %v796 = vpop.f32.mrb[0].mxu0
        %v797 = vadd.f32 %v274, %v796
        %v798 = vpop.f32.mrb[0].mxu0
        %v799 = vpop.f32.mrb[0].mxu0
        %v800 = vadd.f32 %v274, %v799
        %v801 = vpop.f32.mrb[0].mxu0
        %802 = vmatprep.mubr.bf16.mxu0 0
        %803 = vmatmul.mubr.bf16.gmra.mrb[0].mxu0 %v545
        %v804 = vpop.f32.mrb[0].mxu0
        %v805 = vadd.f32 %v274, %v804
        %v806 = vpop.f32.mrb[0].mxu0
        %v807 = vpop.f32.mrb[0].mxu0
        %v808 = vadd.f32 %v274, %v807
        %v809 = vpop.f32.mrb[0].mxu0
        %810 = vmatprep.mubr.bf16.mxu0 0
        %811 = vmatmul.mubr.bf16.gmra.mrb[0].mxu0 %v548
        %v812 = vpop.f32.mrb[0].mxu0
        %v813 = vadd.f32 %v274, %v812
        %v814 = vpop.f32.mrb[0].mxu0
        %v815 = vpop.f32.mrb[0].mxu0
        %v816 = vadd.f32 %v274, %v815
        %v817 = vpop.f32.mrb[0].mxu0
        %818 = vmatprep.mubr.bf16.mxu0 0
        %819 = vmatmul.mubr.bf16.gmra.mrb[0].mxu0 %v551
        %v820 = vpop.f32.mrb[0].mxu0
        %v821 = vadd.f32 %v274, %v820
        %v822 = vpop.f32.mrb[0].mxu0
        %v823 = vpop.f32.mrb[0].mxu0
        %v824 = vadd.f32 %v274, %v823
        %v825 = vpop.f32.mrb[0].mxu0
        %826 = vmatprep.mubr.bf16.mxu0 0
        %827 = vmatmul.mubr.bf16.gmra.mrb[0].mxu0 %v554
        %v828 = vpop.f32.mrb[0].mxu0
        %v829 = vadd.f32 %v274, %v828
        %v830 = vpop.f32.mrb[0].mxu0
        %v831 = vpop.f32.mrb[0].mxu0
        %v832 = vadd.f32 %v274, %v831
        %v833 = vpop.f32.mrb[0].mxu0
        %834 = vmatprep.mubr.bf16.mxu0 0
        %835 = vmatmul.mubr.bf16.gmra.mrb[0].mxu0 %v557
        %v836 = vpop.f32.mrb[0].mxu0
        %v837 = vadd.f32 %v274, %v836
        %v838 = vpop.f32.mrb[0].mxu0
        %v839 = vpop.f32.mrb[0].mxu0
        %v840 = vadd.f32 %v274, %v839
        %v841 = vpop.f32.mrb[0].mxu0
        %842 = vmatprep.mubr.bf16.mxu0 0
        %843 = vmatmul.mubr.bf16.gmra.mrb[0].mxu0 %v560
        %v844 = vpop.f32.mrb[0].mxu0
        %v845 = vadd.f32 %v274, %v844
        %v846 = vpop.f32.mrb[0].mxu0
        %v847 = vpop.f32.mrb[0].mxu0
        %v848 = vadd.f32 %v274, %v847
        %v849 = vpop.f32.mrb[0].mxu0
        %850 = vmatprep.mubr.bf16.mxu0 0
        %851 = vmatmul.mubr.bf16.gmra.mrb[0].mxu0 %v563
        %v852 = vpop.f32.mrb[0].mxu0
        %v853 = vadd.f32 %v274, %v852
        %v854 = vpop.f32.mrb[0].mxu0
        %v855 = vpop.f32.mrb[0].mxu0
        %v856 = vadd.f32 %v274, %v855
        %v857 = vpop.f32.mrb[0].mxu0
        %858 = vmatprep.mubr.bf16.mxu0 0
        %859 = vmatmul.mubr.bf16.gmra.mrb[0].mxu0 %v566
        %v860 = vpop.f32.mrb[0].mxu0
        %v861 = vadd.f32 %v274, %v860
        %v862 = vpop.f32.mrb[0].mxu0
        %v863 = vpop.f32.mrb[0].mxu0
        %v864 = vadd.f32 %v274, %v863
        %v865 = vpop.f32.mrb[0].mxu0
        %866 = vmatprep.mubr.bf16.mxu0 0
        %867 = vmatmul.mubr.bf16.gmra.mrb[0].mxu0 %v569
        %v868 = vpop.f32.mrb[0].mxu0
        %v869 = vadd.f32 %v274, %v868
        %v870 = vpop.f32.mrb[0].mxu0
        %v871 = vpop.f32.mrb[0].mxu0
        %v872 = vadd.f32 %v274, %v871
        %v873 = vpop.f32.mrb[0].mxu0
        %874 = vmatprep.mubr.bf16.mxu0 0
        %875 = vmatmul.mubr.bf16.gmra.mrb[0].mxu0 %v572
        %v876 = vpop.f32.mrb[0].mxu0
        %v877 = vadd.f32 %v274, %v876
        %v878 = vpop.f32.mrb[0].mxu0
        %v879 = vpop.f32.mrb[0].mxu0
        %v880 = vpop.f32.mrb[0].mxu0
        %881 = vdwg.mxu0
        %v882 = vmax.f32 %v613, 0.0
        %v883 = vmax.f32 %v616, 0.0
        %v884 = vmax.f32 %v621, 0.0
        %v885 = vmax.f32 %v624, 0.0
        %v886 = vmax.f32 %v629, 0.0
        %v887 = vmax.f32 %v632, 0.0
        %v888 = vmax.f32 %v637, 0.0
        %v889 = vmax.f32 %v640, 0.0
        %v890 = vmax.f32 %v645, 0.0
        %v891 = vmax.f32 %v648, 0.0
        %v892 = vmax.f32 %v653, 0.0
        %v893 = vmax.f32 %v656, 0.0
        %v894 = vmax.f32 %v661, 0.0
        %v895 = vmax.f32 %v664, 0.0
        %v896 = vmax.f32 %v669, 0.0
        %v897 = vmax.f32 %v672, 0.0
        %v898 = vmax.f32 %v677, 0.0
        %v899 = vmax.f32 %v680, 0.0
        %v900 = vmax.f32 %v685, 0.0
        %v901 = vmax.f32 %v688, 0.0
        %v902 = vmax.f32 %v693, 0.0
        %v903 = vmax.f32 %v696, 0.0
        %v904 = vmax.f32 %v701, 0.0
        %v905 = vmax.f32 %v704, 0.0
        %v906 = vmax.f32 %v709, 0.0
        %v907 = vmax.f32 %v712, 0.0
        %v908 = vmax.f32 %v717, 0.0
        %v909 = vmax.f32 %v720, 0.0
        %v910 = vmax.f32 %v725, 0.0
        %v911 = vmax.f32 %v728, 0.0
        %v912 = vmax.f32 %v733, 0.0
        %v913 = vmax.f32 %v736, 0.0
        %v914 = vmax.f32 %v741, 0.0
        %v915 = vmax.f32 %v744, 0.0
        %v916 = vmax.f32 %v749, 0.0
        %v917 = vmax.f32 %v752, 0.0
        %v918 = vmax.f32 %v757, 0.0
        %v919 = vmax.f32 %v760, 0.0
        %v920 = vmax.f32 %v765, 0.0
        %v921 = vmax.f32 %v768, 0.0
        %v922 = vmax.f32 %v773, 0.0
        %v923 = vmax.f32 %v776, 0.0
        %v924 = vmax.f32 %v781, 0.0
        %v925 = vmax.f32 %v784, 0.0
        %v926 = vmax.f32 %v789, 0.0
        %v927 = vmax.f32 %v792, 0.0
        %v928 = vmax.f32 %v797, 0.0
        %v929 = vmax.f32 %v800, 0.0
        %v930 = vmax.f32 %v805, 0.0
        %v931 = vmax.f32 %v808, 0.0
        %v932 = vmax.f32 %v813, 0.0
        %v933 = vmax.f32 %v816, 0.0
        %v934 = vmax.f32 %v821, 0.0
        %v935 = vmax.f32 %v824, 0.0
        %v936 = vmax.f32 %v829, 0.0
        %v937 = vmax.f32 %v832, 0.0
        %v938 = vmax.f32 %v837, 0.0
        %v939 = vmax.f32 %v840, 0.0
        %v940 = vmax.f32 %v845, 0.0
        %v941 = vmax.f32 %v848, 0.0
        %v942 = vmax.f32 %v853, 0.0
        %v943 = vmax.f32 %v856, 0.0
        %v944 = vmax.f32 %v861, 0.0
        %v945 = vmax.f32 %v864, 0.0
        %v946 = vmax.f32 %v869, 0.0
        %v947 = vmax.f32 %v872, 0.0
        %v948 = vmax.f32 %v877, 0.0
        %v949 = vpack.c.bf16 %v883, %v882
        %v950 = vpack.c.bf16 %v885, %v884
        %v951 = vpack.c.bf16 %v887, %v886
        %v952 = vpack.c.bf16 %v889, %v888
        %v953 = vpack.c.bf16 %v891, %v890
        %v954 = vpack.c.bf16 %v893, %v892
        %v955 = vpack.c.bf16 %v895, %v894
        %v956 = vpack.c.bf16 %v897, %v896
        %v957 = vpack.c.bf16 %v899, %v898
        %v958 = vpack.c.bf16 %v901, %v900
        %v959 = vpack.c.bf16 %v903, %v902
        %v960 = vpack.c.bf16 %v905, %v904
        %v961 = vpack.c.bf16 %v907, %v906
        %v962 = vpack.c.bf16 %v909, %v908
        %v963 = vpack.c.bf16 %v911, %v910
        %v964 = vpack.c.bf16 %v913, %v912
        %v965 = vpack.c.bf16 %v915, %v914
        %v966 = vpack.c.bf16 %v917, %v916
        %v967 = vpack.c.bf16 %v919, %v918
        %v968 = vpack.c.bf16 %v921, %v920
        %v969 = vpack.c.bf16 %v923, %v922
        %v970 = vpack.c.bf16 %v925, %v924
        %v971 = vpack.c.bf16 %v927, %v926
        %v972 = vpack.c.bf16 %v929, %v928
        %v973 = vpack.c.bf16 %v931, %v930
        %v974 = vpack.c.bf16 %v933, %v932
        %v975 = vpack.c.bf16 %v935, %v934
        %v976 = vpack.c.bf16 %v937, %v936
        %v977 = vpack.c.bf16 %v939, %v938
        %v978 = vpack.c.bf16 %v941, %v940
        %v979 = vpack.c.bf16 %v943, %v942
        %v980 = vpack.c.bf16 %v945, %v944
        %v981 = vpack.c.bf16 %v947, %v946
        %v982 = vpack.c.bf16 %v948, %v948
        %v1017 = vunpack.c.l.b16 %v949
        %v1018 = vunpack.c.h.b16 %v949
        %v1019 = vunpack.c.l.b16 %v950
        %v1020 = vunpack.c.h.b16 %v950
        %v1021 = vunpack.c.l.b16 %v951
        %v1022 = vunpack.c.h.b16 %v951
        %v1023 = vunpack.c.l.b16 %v952
        %v1024 = vunpack.c.h.b16 %v952
        %v1025 = vunpack.c.l.b16 %v953
        %v1026 = vunpack.c.h.b16 %v953
        %v1027 = vunpack.c.l.b16 %v954
        %v1028 = vunpack.c.h.b16 %v954
        %v1029 = vunpack.c.l.b16 %v955
        %v1030 = vunpack.c.h.b16 %v955
        %v1031 = vunpack.c.l.b16 %v956
        %v1032 = vunpack.c.h.b16 %v956
        %v1033 = vunpack.c.l.b16 %v957
        %v1034 = vunpack.c.h.b16 %v957
        %v1035 = vunpack.c.l.b16 %v958
        %v1036 = vunpack.c.h.b16 %v958
        %v1037 = vunpack.c.l.b16 %v959
        %v1038 = vunpack.c.h.b16 %v959
        %v1039 = vunpack.c.l.b16 %v960
        %v1040 = vunpack.c.h.b16 %v960
        %v1041 = vunpack.c.l.b16 %v961
        %v1042 = vunpack.c.h.b16 %v961
        %v1043 = vunpack.c.l.b16 %v962
        %v1044 = vunpack.c.h.b16 %v962
        %v1045 = vunpack.c.l.b16 %v963
        %v1046 = vunpack.c.h.b16 %v963
        %v1047 = vunpack.c.l.b16 %v964
        %v1048 = vunpack.c.h.b16 %v964
        %v1049 = vunpack.c.l.b16 %v965
        %v1050 = vunpack.c.h.b16 %v965
        %v1051 = vunpack.c.l.b16 %v966
        %v1052 = vunpack.c.h.b16 %v966
        %v1053 = vunpack.c.l.b16 %v967
        %v1054 = vunpack.c.h.b16 %v967
        %v1055 = vunpack.c.l.b16 %v968
        %v1056 = vunpack.c.h.b16 %v968
        %v1057 = vunpack.c.l.b16 %v969
        %v1058 = vunpack.c.h.b16 %v969
        %v1059 = vunpack.c.l.b16 %v970
        %v1060 = vunpack.c.h.b16 %v970
        %v1061 = vunpack.c.l.b16 %v971
        %v1062 = vunpack.c.h.b16 %v971
        %v1063 = vunpack.c.l.b16 %v972
        %v1064 = vunpack.c.h.b16 %v972
        %v1065 = vunpack.c.l.b16 %v973
        %v1066 = vunpack.c.h.b16 %v973
        %v1067 = vunpack.c.l.b16 %v974
        %v1068 = vunpack.c.h.b16 %v974
        %v1069 = vunpack.c.l.b16 %v975
        %v1070 = vunpack.c.h.b16 %v975
        %v1071 = vunpack.c.l.b16 %v976
        %v1072 = vunpack.c.h.b16 %v976
        %v1073 = vunpack.c.l.b16 %v977
        %v1074 = vunpack.c.h.b16 %v977
        %v1075 = vunpack.c.l.b16 %v978
        %v1076 = vunpack.c.h.b16 %v978
        %v1077 = vunpack.c.l.b16 %v979
        %v1078 = vunpack.c.h.b16 %v979
        %v1079 = vunpack.c.l.b16 %v980
        %v1080 = vunpack.c.h.b16 %v980
        %v1081 = vunpack.c.l.b16 %v981
        %v1082 = vunpack.c.h.b16 %v981
        %v1083 = vunpack.c.l.b16 %v982
        %v1084 = vpack.c.b16 %v1017, %v1017
        %v1085 = vpack.c.b16 %v1018, %v1018
        %v1086 = vpack.c.b16 %v1019, %v1019
        %v1087 = vpack.c.b16 %v1020, %v1020
        %v1088 = vpack.c.b16 %v1021, %v1021
        %v1089 = vpack.c.b16 %v1022, %v1022
        %v1090 = vpack.c.b16 %v1023, %v1023
        %v1091 = vpack.c.b16 %v1024, %v1024
        %v1092 = vpack.c.b16 %v1025, %v1025
        %v1093 = vpack.c.b16 %v1026, %v1026
        %v1094 = vpack.c.b16 %v1027, %v1027
        %v1095 = vpack.c.b16 %v1028, %v1028
        %v1096 = vpack.c.b16 %v1029, %v1029
        %v1097 = vpack.c.b16 %v1030, %v1030
        %v1098 = vpack.c.b16 %v1031, %v1031
        %v1099 = vpack.c.b16 %v1032, %v1032
        %v1100 = vpack.c.b16 %v1033, %v1033
        %v1101 = vpack.c.b16 %v1034, %v1034
        %v1102 = vpack.c.b16 %v1035, %v1035
        %v1103 = vpack.c.b16 %v1036, %v1036
        %v1104 = vpack.c.b16 %v1037, %v1037
        %v1105 = vpack.c.b16 %v1038, %v1038
        %v1106 = vpack.c.b16 %v1039, %v1039
        %v1107 = vpack.c.b16 %v1040, %v1040
        %v1108 = vpack.c.b16 %v1041, %v1041
        %v1109 = vpack.c.b16 %v1042, %v1042
        %v1110 = vpack.c.b16 %v1043, %v1043
        %v1111 = vpack.c.b16 %v1044, %v1044
        %v1112 = vpack.c.b16 %v1045, %v1045
        %v1113 = vpack.c.b16 %v1046, %v1046
        %v1114 = vpack.c.b16 %v1047, %v1047
        %v1115 = vpack.c.b16 %v1048, %v1048
        %v1116 = vpack.c.b16 %v1049, %v1049
        %v1117 = vpack.c.b16 %v1050, %v1050
        %v1118 = vpack.c.b16 %v1051, %v1051
        %v1119 = vpack.c.b16 %v1052, %v1052
        %v1120 = vpack.c.b16 %v1053, %v1053
        %v1121 = vpack.c.b16 %v1054, %v1054
        %v1122 = vpack.c.b16 %v1055, %v1055
        %v1123 = vpack.c.b16 %v1056, %v1056
        %v1124 = vpack.c.b16 %v1057, %v1057
        %v1125 = vpack.c.b16 %v1058, %v1058
        %v1126 = vpack.c.b16 %v1059, %v1059
        %v1127 = vpack.c.b16 %v1060, %v1060
        %v1128 = vpack.c.b16 %v1061, %v1061
        %v1129 = vpack.c.b16 %v1062, %v1062
        %v1130 = vpack.c.b16 %v1063, %v1063
        %v1131 = vpack.c.b16 %v1064, %v1064
        %v1132 = vpack.c.b16 %v1065, %v1065
        %v1133 = vpack.c.b16 %v1066, %v1066
        %v1134 = vpack.c.b16 %v1067, %v1067
        %v1135 = vpack.c.b16 %v1068, %v1068
        %v1136 = vpack.c.b16 %v1069, %v1069
        %v1137 = vpack.c.b16 %v1070, %v1070
        %v1138 = vpack.c.b16 %v1071, %v1071
        %v1139 = vpack.c.b16 %v1072, %v1072
        %v1140 = vpack.c.b16 %v1073, %v1073
        %v1141 = vpack.c.b16 %v1074, %v1074
        %v1142 = vpack.c.b16 %v1075, %v1075
        %v1143 = vpack.c.b16 %v1076, %v1076
        %v1144 = vpack.c.b16 %v1077, %v1077
        %v1145 = vpack.c.b16 %v1078, %v1078
        %v1146 = vpack.c.b16 %v1079, %v1079
        %v1147 = vpack.c.b16 %v1080, %v1080
        %v1148 = vpack.c.b16 %v1081, %v1081
        %v1149 = vpack.c.b16 %v1082, %v1082
        %v1150 = vpack.c.b16 %v1083, %v1083
        %1218 = vst [vmem:[%s172] sm:$0xf] %v1084
        %1219 = vst [vmem:[%s172 + $0x4] sm:$0xf] %v1085
        %1220 = vst [vmem:[%s172 + $0x8] sm:$0xf] %v1086
        %1221 = vst [vmem:[%s172 + $0xc] sm:$0xf] %v1087
        %1222 = vst [vmem:[%s172 + $0x10] sm:$0xf] %v1088
        %1223 = vst [vmem:[%s172 + $0x14] sm:$0xf] %v1089
        %1224 = vst [vmem:[%s172 + $0x18] sm:$0xf] %v1090
        %1225 = vst [vmem:[%s172 + $0x1c] sm:$0xf] %v1091
        %1226 = vst [vmem:[%s172 + $0x20] sm:$0xf] %v1092
        %1227 = vst [vmem:[%s172 + $0x24] sm:$0xf] %v1093
        %1228 = vst [vmem:[%s172 + $0x28] sm:$0xf] %v1094
        %1229 = vst [vmem:[%s172 + $0x2c] sm:$0xf] %v1095
        %1230 = vst [vmem:[%s172 + $0x30] sm:$0xf] %v1096
        %1231 = vst [vmem:[%s172 + $0x34] sm:$0xf] %v1097
        %1232 = vst [vmem:[%s172 + $0x38] sm:$0xf] %v1098
        %1233 = vst [vmem:[%s172 + $0x3c] sm:$0xf] %v1099
        %1234 = vst [vmem:[%s172 + $0x40] sm:$0xf] %v1100
        %1235 = vst [vmem:[%s172 + $0x44] sm:$0xf] %v1101
        %1236 = vst [vmem:[%s172 + $0x48] sm:$0xf] %v1102
        %1237 = vst [vmem:[%s172 + $0x4c] sm:$0xf] %v1103
        %1238 = vst [vmem:[%s172 + $0x50] sm:$0xf] %v1104
        %1239 = vst [vmem:[%s172 + $0x54] sm:$0xf] %v1105
        %1240 = vst [vmem:[%s172 + $0x58] sm:$0xf] %v1106
        %1241 = vst [vmem:[%s172 + $0x5c] sm:$0xf] %v1107
        %1242 = vst [vmem:[%s172 + $0x60] sm:$0xf] %v1108
        %1243 = vst [vmem:[%s172 + $0x64] sm:$0xf] %v1109
        %1244 = vst [vmem:[%s172 + $0x68] sm:$0xf] %v1110
        %1245 = vst [vmem:[%s172 + $0x6c] sm:$0xf] %v1111
        %1246 = vst [vmem:[%s172 + $0x70] sm:$0xf] %v1112
        %1247 = vst [vmem:[%s172 + $0x74] sm:$0xf] %v1113
        %1248 = vst [vmem:[%s172 + $0x78] sm:$0xf] %v1114
        %1249 = vst [vmem:[%s172 + $0x7c] sm:$0xf] %v1115
        %1250 = vst [vmem:[%s172 + $0x80] sm:$0xf] %v1116
        %1251 = vst [vmem:[%s172 + $0x84] sm:$0xf] %v1117
        %1252 = vst [vmem:[%s172 + $0x88] sm:$0xf] %v1118
        %1253 = vst [vmem:[%s172 + $0x8c] sm:$0xf] %v1119
        %1254 = vst [vmem:[%s172 + $0x90] sm:$0xf] %v1120
        %1255 = vst [vmem:[%s172 + $0x94] sm:$0xf] %v1121
        %1256 = vst [vmem:[%s172 + $0x98] sm:$0xf] %v1122
        %1257 = vst [vmem:[%s172 + $0x9c] sm:$0xf] %v1123
        %1258 = vst [vmem:[%s172 + $0xa0] sm:$0xf] %v1124
        %1259 = vst [vmem:[%s172 + $0xa4] sm:$0xf] %v1125
        %1260 = vst [vmem:[%s172 + $0xa8] sm:$0xf] %v1126
        %1261 = vst [vmem:[%s172 + $0xac] sm:$0xf] %v1127
        %1262 = vst [vmem:[%s172 + $0xb0] sm:$0xf] %v1128
        %1263 = vst [vmem:[%s172 + $0xb4] sm:$0xf] %v1129
        %1264 = vst [vmem:[%s172 + $0xb8] sm:$0xf] %v1130
        %1265 = vst [vmem:[%s172 + $0xbc] sm:$0xf] %v1131
        %1266 = vst [vmem:[%s172 + $0xc0] sm:$0xf] %v1132
        %1267 = vst [vmem:[%s172 + $0xc4] sm:$0xf] %v1133
        %1268 = vst [vmem:[%s172 + $0xc8] sm:$0xf] %v1134
        %1269 = vst [vmem:[%s172 + $0xcc] sm:$0xf] %v1135
        %1270 = vst [vmem:[%s172 + $0xd0] sm:$0xf] %v1136
        %1271 = vst [vmem:[%s172 + $0xd4] sm:$0xf] %v1137
        %1272 = vst [vmem:[%s172 + $0xd8] sm:$0xf] %v1138
        %1273 = vst [vmem:[%s172 + $0xdc] sm:$0xf] %v1139
        %1274 = vst [vmem:[%s172 + $0xe0] sm:$0xf] %v1140
        %1275 = vst [vmem:[%s172 + $0xe4] sm:$0xf] %v1141
        %1276 = vst [vmem:[%s172 + $0xe8] sm:$0xf] %v1142
        %1277 = vst [vmem:[%s172 + $0xec] sm:$0xf] %v1143
        %1278 = vst [vmem:[%s172 + $0xf0] sm:$0xf] %v1144
        %1279 = vst [vmem:[%s172 + $0xf4] sm:$0xf] %v1145
        %1280 = vst [vmem:[%s172 + $0xf8] sm:$0xf] %v1146
        %1281 = vst [vmem:[%s172 + $0xfc] sm:$0xf] %v1147
        %1282 = vst [vmem:[%s172 + $0x100] sm:$0xf] %v1148
        %1283 = vst [vmem:[%s172 + $0x104] sm:$0xf] %v1149
        %1284 = vst [vmem:[%s172 + $0x108] sm:$0xf] %v1150
        %s1285 = sand.u32 %s90, 1
        %s1286 = sand.u32 %s90, 1
        %s1287 = smul.addr %s1286, 268
        %s1288 = scalar_lea.vmem [#allocation2], %s1287
        // Predicated region
        $region33: #{ppo_forward.6} parent=31 // pred_check
          %p1289 = pneg %p100
        $region34: #{ppo_forward.6} parent=31 // pred_check_branch
          %1291 = sbr.rel (%p1289) target = $region36
        $region35: #{ppo_forward.6} parent=31 // pred_region
          %s1292 = smul.u32 67, %s14
          %s1293 = ssub.s32 133, %s1292
          %p1294 = scmp.lt.s32.totalorder %s1293, 67
          %s1295 = scalar_select %p1294, %s1293, 67
          %s1296 = smul.u32 64, %s1295
          %p1297 = scmp.ne.s32.totalorder 0, %s1296
          %s1298 = smul.addr %s1292, 4
          %s1299 = scalar_lea.vmem %s3, %s1298
          // Predicated region
          $region37: #{ppo_forward.6} parent=35 // pred_check
            %p1300 = pneg %p1297
          $region38: #{ppo_forward.6} parent=35 // pred_check_branch
            %1302 = sbr.rel (%p1300) target = $region40
          $region39: #{ppo_forward.6} parent=35 // pred_region
            // Predicated region
            $region41: #{ppo_forward.6} parent=39 // pred_check
              _
            $region42: #{ppo_forward.6} parent=39 // pred_check_branch
              %1304 = sbr.rel target = $region44
            $region43: #{ppo_forward.6} parent=39 // pred_region
              // Predicated region
              $region63: #{ppo_forward.6} parent=43 // pred_check
                _
              $region64: #{ppo_forward.6} parent=43 // pred_check_branch
                %1479 = sbr.rel (0) target = $region66
              $region65: #{ppo_forward.6} parent=43 // pred_region
                %s1481 = sshrl.u32 %s1295, 6
                // While loop
                $region67: #{ppo_forward.6} parent=65 // loop_pre_header
                  _
                $region68: #{ppo_forward.6} parent=65 // loop_header
                  %s1483 = sphi 0, %s1485
                  %p1484 = scmp.ge.s32.totalorder %s1483, %s1481
                  %s1488 = sphi 0, %s1621
                  %s1489 = sphi %s1288, %s1624
                  %s1490 = sphi %s1299, %s1625
                $region69: #{ppo_forward.6} parent=65 // loop_header_branch
                  %1487 = sbr.rel (%p1484) target = $region73
                $region70: #{ppo_forward.6} parent=65 // loop_body
                  %v1491 = vld [vmem:[%s1489] sm:$0xf]
                  %1492 = vst [vmem:[%s1490] sm:$0xf] %v1491
                  %v1493 = vld [vmem:[%s1489 + $0x4] sm:$0xf]
                  %1494 = vst [vmem:[%s1490 + $0x4] sm:$0xf] %v1493
                  %v1495 = vld [vmem:[%s1489 + $0x8] sm:$0xf]
                  %1496 = vst [vmem:[%s1490 + $0x8] sm:$0xf] %v1495
                  %v1497 = vld [vmem:[%s1489 + $0xc] sm:$0xf]
                  %1498 = vst [vmem:[%s1490 + $0xc] sm:$0xf] %v1497
                  %v1499 = vld [vmem:[%s1489 + $0x10] sm:$0xf]
                  %1500 = vst [vmem:[%s1490 + $0x10] sm:$0xf] %v1499
                  %v1501 = vld [vmem:[%s1489 + $0x14] sm:$0xf]
                  %1502 = vst [vmem:[%s1490 + $0x14] sm:$0xf] %v1501
                  %v1503 = vld [vmem:[%s1489 + $0x18] sm:$0xf]
                  %1504 = vst [vmem:[%s1490 + $0x18] sm:$0xf] %v1503
                  %v1505 = vld [vmem:[%s1489 + $0x1c] sm:$0xf]
                  %1506 = vst [vmem:[%s1490 + $0x1c] sm:$0xf] %v1505
                  %v1507 = vld [vmem:[%s1489 + $0x20] sm:$0xf]
                  %1508 = vst [vmem:[%s1490 + $0x20] sm:$0xf] %v1507
                  %v1509 = vld [vmem:[%s1489 + $0x24] sm:$0xf]
                  %1510 = vst [vmem:[%s1490 + $0x24] sm:$0xf] %v1509
                  %v1511 = vld [vmem:[%s1489 + $0x28] sm:$0xf]
                  %1512 = vst [vmem:[%s1490 + $0x28] sm:$0xf] %v1511
                  %v1513 = vld [vmem:[%s1489 + $0x2c] sm:$0xf]
                  %1514 = vst [vmem:[%s1490 + $0x2c] sm:$0xf] %v1513
                  %v1515 = vld [vmem:[%s1489 + $0x30] sm:$0xf]
                  %1516 = vst [vmem:[%s1490 + $0x30] sm:$0xf] %v1515
                  %v1517 = vld [vmem:[%s1489 + $0x34] sm:$0xf]
                  %1518 = vst [vmem:[%s1490 + $0x34] sm:$0xf] %v1517
                  %v1519 = vld [vmem:[%s1489 + $0x38] sm:$0xf]
                  %1520 = vst [vmem:[%s1490 + $0x38] sm:$0xf] %v1519
                  %v1521 = vld [vmem:[%s1489 + $0x3c] sm:$0xf]
                  %1522 = vst [vmem:[%s1490 + $0x3c] sm:$0xf] %v1521
                  %v1523 = vld [vmem:[%s1489 + $0x40] sm:$0xf]
                  %1524 = vst [vmem:[%s1490 + $0x40] sm:$0xf] %v1523
                  %v1525 = vld [vmem:[%s1489 + $0x44] sm:$0xf]
                  %1526 = vst [vmem:[%s1490 + $0x44] sm:$0xf] %v1525
                  %v1527 = vld [vmem:[%s1489 + $0x48] sm:$0xf]
                  %1528 = vst [vmem:[%s1490 + $0x48] sm:$0xf] %v1527
                  %v1529 = vld [vmem:[%s1489 + $0x4c] sm:$0xf]
                  %1530 = vst [vmem:[%s1490 + $0x4c] sm:$0xf] %v1529
                  %v1531 = vld [vmem:[%s1489 + $0x50] sm:$0xf]
                  %1532 = vst [vmem:[%s1490 + $0x50] sm:$0xf] %v1531
                  %v1533 = vld [vmem:[%s1489 + $0x54] sm:$0xf]
                  %1534 = vst [vmem:[%s1490 + $0x54] sm:$0xf] %v1533
                  %v1535 = vld [vmem:[%s1489 + $0x58] sm:$0xf]
                  %1536 = vst [vmem:[%s1490 + $0x58] sm:$0xf] %v1535
                  %v1537 = vld [vmem:[%s1489 + $0x5c] sm:$0xf]
                  %1538 = vst [vmem:[%s1490 + $0x5c] sm:$0xf] %v1537
                  %v1539 = vld [vmem:[%s1489 + $0x60] sm:$0xf]
                  %1540 = vst [vmem:[%s1490 + $0x60] sm:$0xf] %v1539
                  %v1541 = vld [vmem:[%s1489 + $0x64] sm:$0xf]
                  %1542 = vst [vmem:[%s1490 + $0x64] sm:$0xf] %v1541
                  %v1543 = vld [vmem:[%s1489 + $0x68] sm:$0xf]
                  %1544 = vst [vmem:[%s1490 + $0x68] sm:$0xf] %v1543
                  %v1545 = vld [vmem:[%s1489 + $0x6c] sm:$0xf]
                  %1546 = vst [vmem:[%s1490 + $0x6c] sm:$0xf] %v1545
                  %v1547 = vld [vmem:[%s1489 + $0x70] sm:$0xf]
                  %1548 = vst [vmem:[%s1490 + $0x70] sm:$0xf] %v1547
                  %v1549 = vld [vmem:[%s1489 + $0x74] sm:$0xf]
                  %1550 = vst [vmem:[%s1490 + $0x74] sm:$0xf] %v1549
                  %v1551 = vld [vmem:[%s1489 + $0x78] sm:$0xf]
                  %1552 = vst [vmem:[%s1490 + $0x78] sm:$0xf] %v1551
                  %v1553 = vld [vmem:[%s1489 + $0x7c] sm:$0xf]
                  %1554 = vst [vmem:[%s1490 + $0x7c] sm:$0xf] %v1553
                  %v1555 = vld [vmem:[%s1489 + $0x80] sm:$0xf]
                  %1556 = vst [vmem:[%s1490 + $0x80] sm:$0xf] %v1555
                  %v1557 = vld [vmem:[%s1489 + $0x84] sm:$0xf]
                  %1558 = vst [vmem:[%s1490 + $0x84] sm:$0xf] %v1557
                  %v1559 = vld [vmem:[%s1489 + $0x88] sm:$0xf]
                  %1560 = vst [vmem:[%s1490 + $0x88] sm:$0xf] %v1559
                  %v1561 = vld [vmem:[%s1489 + $0x8c] sm:$0xf]
                  %1562 = vst [vmem:[%s1490 + $0x8c] sm:$0xf] %v1561
                  %v1563 = vld [vmem:[%s1489 + $0x90] sm:$0xf]
                  %1564 = vst [vmem:[%s1490 + $0x90] sm:$0xf] %v1563
                  %v1565 = vld [vmem:[%s1489 + $0x94] sm:$0xf]
                  %1566 = vst [vmem:[%s1490 + $0x94] sm:$0xf] %v1565
                  %v1567 = vld [vmem:[%s1489 + $0x98] sm:$0xf]
                  %1568 = vst [vmem:[%s1490 + $0x98] sm:$0xf] %v1567
                  %v1569 = vld [vmem:[%s1489 + $0x9c] sm:$0xf]
                  %1570 = vst [vmem:[%s1490 + $0x9c] sm:$0xf] %v1569
                  %v1571 = vld [vmem:[%s1489 + $0xa0] sm:$0xf]
                  %1572 = vst [vmem:[%s1490 + $0xa0] sm:$0xf] %v1571
                  %v1573 = vld [vmem:[%s1489 + $0xa4] sm:$0xf]
                  %1574 = vst [vmem:[%s1490 + $0xa4] sm:$0xf] %v1573
                  %v1575 = vld [vmem:[%s1489 + $0xa8] sm:$0xf]
                  %1576 = vst [vmem:[%s1490 + $0xa8] sm:$0xf] %v1575
                  %v1577 = vld [vmem:[%s1489 + $0xac] sm:$0xf]
                  %1578 = vst [vmem:[%s1490 + $0xac] sm:$0xf] %v1577
                  %v1579 = vld [vmem:[%s1489 + $0xb0] sm:$0xf]
                  %1580 = vst [vmem:[%s1490 + $0xb0] sm:$0xf] %v1579
                  %v1581 = vld [vmem:[%s1489 + $0xb4] sm:$0xf]
                  %1582 = vst [vmem:[%s1490 + $0xb4] sm:$0xf] %v1581
                  %v1583 = vld [vmem:[%s1489 + $0xb8] sm:$0xf]
                  %1584 = vst [vmem:[%s1490 + $0xb8] sm:$0xf] %v1583
                  %v1585 = vld [vmem:[%s1489 + $0xbc] sm:$0xf]
                  %1586 = vst [vmem:[%s1490 + $0xbc] sm:$0xf] %v1585
                  %v1587 = vld [vmem:[%s1489 + $0xc0] sm:$0xf]
                  %1588 = vst [vmem:[%s1490 + $0xc0] sm:$0xf] %v1587
                  %v1589 = vld [vmem:[%s1489 + $0xc4] sm:$0xf]
                  %1590 = vst [vmem:[%s1490 + $0xc4] sm:$0xf] %v1589
                  %v1591 = vld [vmem:[%s1489 + $0xc8] sm:$0xf]
                  %1592 = vst [vmem:[%s1490 + $0xc8] sm:$0xf] %v1591
                  %v1593 = vld [vmem:[%s1489 + $0xcc] sm:$0xf]
                  %1594 = vst [vmem:[%s1490 + $0xcc] sm:$0xf] %v1593
                  %v1595 = vld [vmem:[%s1489 + $0xd0] sm:$0xf]
                  %1596 = vst [vmem:[%s1490 + $0xd0] sm:$0xf] %v1595
                  %v1597 = vld [vmem:[%s1489 + $0xd4] sm:$0xf]
                  %1598 = vst [vmem:[%s1490 + $0xd4] sm:$0xf] %v1597
                  %v1599 = vld [vmem:[%s1489 + $0xd8] sm:$0xf]
                  %1600 = vst [vmem:[%s1490 + $0xd8] sm:$0xf] %v1599
                  %v1601 = vld [vmem:[%s1489 + $0xdc] sm:$0xf]
                  %1602 = vst [vmem:[%s1490 + $0xdc] sm:$0xf] %v1601
                  %v1603 = vld [vmem:[%s1489 + $0xe0] sm:$0xf]
                  %1604 = vst [vmem:[%s1490 + $0xe0] sm:$0xf] %v1603
                  %v1605 = vld [vmem:[%s1489 + $0xe4] sm:$0xf]
                  %1606 = vst [vmem:[%s1490 + $0xe4] sm:$0xf] %v1605
                  %v1607 = vld [vmem:[%s1489 + $0xe8] sm:$0xf]
                  %1608 = vst [vmem:[%s1490 + $0xe8] sm:$0xf] %v1607
                  %v1609 = vld [vmem:[%s1489 + $0xec] sm:$0xf]
                  %1610 = vst [vmem:[%s1490 + $0xec] sm:$0xf] %v1609
                  %v1611 = vld [vmem:[%s1489 + $0xf0] sm:$0xf]
                  %1612 = vst [vmem:[%s1490 + $0xf0] sm:$0xf] %v1611
                  %v1613 = vld [vmem:[%s1489 + $0xf4] sm:$0xf]
                  %1614 = vst [vmem:[%s1490 + $0xf4] sm:$0xf] %v1613
                  %v1615 = vld [vmem:[%s1489 + $0xf8] sm:$0xf]
                  %1616 = vst [vmem:[%s1490 + $0xf8] sm:$0xf] %v1615
                  %v1617 = vld [vmem:[%s1489 + $0xfc] sm:$0xf]
                  %1618 = vst [vmem:[%s1490 + $0xfc] sm:$0xf] %v1617
                  %s1619 = sadd.s32 1, %s1488
                  %p1620 = scmp.ge.s32.totalorder %s1619, %s1481
                  %s1621 = scalar_select %p1620, 0, %s1619
                  %s1622 = smul.u32 %s1621, 256
                  %s1623 = smul.u32 %s1621, 256
                  %s1624 = scalar_lea.vmem %s1288, %s1622 [#allocation2]
                  %s1625 = scalar_lea.vmem %s1299, %s1623
                $region71: #{ppo_forward.6} parent=65 // loop_footer
                  %s1485 = sadd.s32 %s1483, 1
                $region72: #{ppo_forward.6} parent=65 // loop_footer_branch
                  %1482 = sbr.rel target = $region68
                $region73: #{ppo_forward.6} parent=65 // loop_exit
                  _
                %s1626 = sshrl.u32 %s1295, 6
                %s1627 = sand.u32 %s1295, 63
                %s1628 = smul.u32 %s1626, 64
                %s1629 = smul.u32 4, %s1628
                %s1630 = scalar_lea.vmem %s1288, %s1629 [#allocation2]
                %s1631 = smul.u32 4, %s1628
                %s1632 = scalar_lea.vmem %s1299, %s1631
                // While loop
                $region74: #{ppo_forward.6} parent=65 // loop_pre_header
                  _
                $region75: #{ppo_forward.6} parent=65 // loop_header
                  %s1634 = sphi 0, %s1636
                  %p1635 = scmp.ge.s32.totalorder %s1634, %s1627
                  %s1639 = sphi 0, %s1646
                  %s1640 = sphi %s1630, %s1649
                  %s1641 = sphi %s1632, %s1650
                $region76: #{ppo_forward.6} parent=65 // loop_header_branch
                  %1638 = sbr.rel (%p1635) target = $region80
                $region77: #{ppo_forward.6} parent=65 // loop_body
                  %v1642 = vld [vmem:[%s1640] sm:$0xf]
                  %1643 = vst [vmem:[%s1641] sm:$0xf] %v1642
                  %s1644 = sadd.s32 1, %s1639
                  %p1645 = scmp.ge.s32.totalorder %s1644, %s1627
                  %s1646 = scalar_select %p1645, 0, %s1644
                  %s1647 = smul.u32 %s1646, 4
                  %s1648 = smul.u32 %s1646, 4
                  %s1649 = scalar_lea.vmem %s1630, %s1647 [#allocation2]
                  %s1650 = scalar_lea.vmem %s1632, %s1648
                $region78: #{ppo_forward.6} parent=65 // loop_footer
                  %s1636 = sadd.s32 %s1634, 1
                $region79: #{ppo_forward.6} parent=65 // loop_footer_branch
                  %1633 = sbr.rel target = $region75
                $region80: #{ppo_forward.6} parent=65 // loop_exit
                  _
              $region66: #{ppo_forward.6} parent=43 // pred_fallthru
                _
            $region44: #{ppo_forward.6} parent=39 // pred_fallthru
              _
            // Predicated region
            $region45: #{ppo_forward.6} parent=39 // pred_check
              _
            $region46: #{ppo_forward.6} parent=39 // pred_check_branch
              %1306 = sbr.rel (0) target = $region48
            $region47: #{ppo_forward.6} parent=39 // pred_region
              %s1308 = sshrl.u32 %s1295, 6
              // While loop
              $region49: #{ppo_forward.6} parent=47 // loop_pre_header
                _
              $region50: #{ppo_forward.6} parent=47 // loop_header
                %s1310 = sphi 0, %s1312
                %p1311 = scmp.ge.s32.totalorder %s1310, %s1308
                %s1315 = sphi 0, %s1448
                %s1316 = sphi %s1288, %s1451
                %s1317 = sphi %s1299, %s1452
              $region51: #{ppo_forward.6} parent=47 // loop_header_branch
                %1314 = sbr.rel (%p1311) target = $region55
              $region52: #{ppo_forward.6} parent=47 // loop_body
                %v1318 = vld [vmem:[%s1316] sm:$0xf]
                %1319 = vst [vmem:[%s1317] sm:$0xf] %v1318
                %v1320 = vld [vmem:[%s1316 + $0x4] sm:$0xf]
                %1321 = vst [vmem:[%s1317 + $0x4] sm:$0xf] %v1320
                %v1322 = vld [vmem:[%s1316 + $0x8] sm:$0xf]
                %1323 = vst [vmem:[%s1317 + $0x8] sm:$0xf] %v1322
                %v1324 = vld [vmem:[%s1316 + $0xc] sm:$0xf]
                %1325 = vst [vmem:[%s1317 + $0xc] sm:$0xf] %v1324
                %v1326 = vld [vmem:[%s1316 + $0x10] sm:$0xf]
                %1327 = vst [vmem:[%s1317 + $0x10] sm:$0xf] %v1326
                %v1328 = vld [vmem:[%s1316 + $0x14] sm:$0xf]
                %1329 = vst [vmem:[%s1317 + $0x14] sm:$0xf] %v1328
                %v1330 = vld [vmem:[%s1316 + $0x18] sm:$0xf]
                %1331 = vst [vmem:[%s1317 + $0x18] sm:$0xf] %v1330
                %v1332 = vld [vmem:[%s1316 + $0x1c] sm:$0xf]
                %1333 = vst [vmem:[%s1317 + $0x1c] sm:$0xf] %v1332
                %v1334 = vld [vmem:[%s1316 + $0x20] sm:$0xf]
                %1335 = vst [vmem:[%s1317 + $0x20] sm:$0xf] %v1334
                %v1336 = vld [vmem:[%s1316 + $0x24] sm:$0xf]
                %1337 = vst [vmem:[%s1317 + $0x24] sm:$0xf] %v1336
                %v1338 = vld [vmem:[%s1316 + $0x28] sm:$0xf]
                %1339 = vst [vmem:[%s1317 + $0x28] sm:$0xf] %v1338
                %v1340 = vld [vmem:[%s1316 + $0x2c] sm:$0xf]
                %1341 = vst [vmem:[%s1317 + $0x2c] sm:$0xf] %v1340
                %v1342 = vld [vmem:[%s1316 + $0x30] sm:$0xf]
                %1343 = vst [vmem:[%s1317 + $0x30] sm:$0xf] %v1342
                %v1344 = vld [vmem:[%s1316 + $0x34] sm:$0xf]
                %1345 = vst [vmem:[%s1317 + $0x34] sm:$0xf] %v1344
                %v1346 = vld [vmem:[%s1316 + $0x38] sm:$0xf]
                %1347 = vst [vmem:[%s1317 + $0x38] sm:$0xf] %v1346
                %v1348 = vld [vmem:[%s1316 + $0x3c] sm:$0xf]
                %1349 = vst [vmem:[%s1317 + $0x3c] sm:$0xf] %v1348
                %v1350 = vld [vmem:[%s1316 + $0x40] sm:$0xf]
                %1351 = vst [vmem:[%s1317 + $0x40] sm:$0xf] %v1350
                %v1352 = vld [vmem:[%s1316 + $0x44] sm:$0xf]
                %1353 = vst [vmem:[%s1317 + $0x44] sm:$0xf] %v1352
                %v1354 = vld [vmem:[%s1316 + $0x48] sm:$0xf]
                %1355 = vst [vmem:[%s1317 + $0x48] sm:$0xf] %v1354
                %v1356 = vld [vmem:[%s1316 + $0x4c] sm:$0xf]
                %1357 = vst [vmem:[%s1317 + $0x4c] sm:$0xf] %v1356
                %v1358 = vld [vmem:[%s1316 + $0x50] sm:$0xf]
                %1359 = vst [vmem:[%s1317 + $0x50] sm:$0xf] %v1358
                %v1360 = vld [vmem:[%s1316 + $0x54] sm:$0xf]
                %1361 = vst [vmem:[%s1317 + $0x54] sm:$0xf] %v1360
                %v1362 = vld [vmem:[%s1316 + $0x58] sm:$0xf]
                %1363 = vst [vmem:[%s1317 + $0x58] sm:$0xf] %v1362
                %v1364 = vld [vmem:[%s1316 + $0x5c] sm:$0xf]
                %1365 = vst [vmem:[%s1317 + $0x5c] sm:$0xf] %v1364
                %v1366 = vld [vmem:[%s1316 + $0x60] sm:$0xf]
                %1367 = vst [vmem:[%s1317 + $0x60] sm:$0xf] %v1366
                %v1368 = vld [vmem:[%s1316 + $0x64] sm:$0xf]
                %1369 = vst [vmem:[%s1317 + $0x64] sm:$0xf] %v1368
                %v1370 = vld [vmem:[%s1316 + $0x68] sm:$0xf]
                %1371 = vst [vmem:[%s1317 + $0x68] sm:$0xf] %v1370
                %v1372 = vld [vmem:[%s1316 + $0x6c] sm:$0xf]
                %1373 = vst [vmem:[%s1317 + $0x6c] sm:$0xf] %v1372
                %v1374 = vld [vmem:[%s1316 + $0x70] sm:$0xf]
                %1375 = vst [vmem:[%s1317 + $0x70] sm:$0xf] %v1374
                %v1376 = vld [vmem:[%s1316 + $0x74] sm:$0xf]
                %1377 = vst [vmem:[%s1317 + $0x74] sm:$0xf] %v1376
                %v1378 = vld [vmem:[%s1316 + $0x78] sm:$0xf]
                %1379 = vst [vmem:[%s1317 + $0x78] sm:$0xf] %v1378
                %v1380 = vld [vmem:[%s1316 + $0x7c] sm:$0xf]
                %1381 = vst [vmem:[%s1317 + $0x7c] sm:$0xf] %v1380
                %v1382 = vld [vmem:[%s1316 + $0x80] sm:$0xf]
                %1383 = vst [vmem:[%s1317 + $0x80] sm:$0xf] %v1382
                %v1384 = vld [vmem:[%s1316 + $0x84] sm:$0xf]
                %1385 = vst [vmem:[%s1317 + $0x84] sm:$0xf] %v1384
                %v1386 = vld [vmem:[%s1316 + $0x88] sm:$0xf]
                %1387 = vst [vmem:[%s1317 + $0x88] sm:$0xf] %v1386
                %v1388 = vld [vmem:[%s1316 + $0x8c] sm:$0xf]
                %1389 = vst [vmem:[%s1317 + $0x8c] sm:$0xf] %v1388
                %v1390 = vld [vmem:[%s1316 + $0x90] sm:$0xf]
                %1391 = vst [vmem:[%s1317 + $0x90] sm:$0xf] %v1390
                %v1392 = vld [vmem:[%s1316 + $0x94] sm:$0xf]
                %1393 = vst [vmem:[%s1317 + $0x94] sm:$0xf] %v1392
                %v1394 = vld [vmem:[%s1316 + $0x98] sm:$0xf]
                %1395 = vst [vmem:[%s1317 + $0x98] sm:$0xf] %v1394
                %v1396 = vld [vmem:[%s1316 + $0x9c] sm:$0xf]
                %1397 = vst [vmem:[%s1317 + $0x9c] sm:$0xf] %v1396
                %v1398 = vld [vmem:[%s1316 + $0xa0] sm:$0xf]
                %1399 = vst [vmem:[%s1317 + $0xa0] sm:$0xf] %v1398
                %v1400 = vld [vmem:[%s1316 + $0xa4] sm:$0xf]
                %1401 = vst [vmem:[%s1317 + $0xa4] sm:$0xf] %v1400
                %v1402 = vld [vmem:[%s1316 + $0xa8] sm:$0xf]
                %1403 = vst [vmem:[%s1317 + $0xa8] sm:$0xf] %v1402
                %v1404 = vld [vmem:[%s1316 + $0xac] sm:$0xf]
                %1405 = vst [vmem:[%s1317 + $0xac] sm:$0xf] %v1404
                %v1406 = vld [vmem:[%s1316 + $0xb0] sm:$0xf]
                %1407 = vst [vmem:[%s1317 + $0xb0] sm:$0xf] %v1406
                %v1408 = vld [vmem:[%s1316 + $0xb4] sm:$0xf]
                %1409 = vst [vmem:[%s1317 + $0xb4] sm:$0xf] %v1408
                %v1410 = vld [vmem:[%s1316 + $0xb8] sm:$0xf]
                %1411 = vst [vmem:[%s1317 + $0xb8] sm:$0xf] %v1410
                %v1412 = vld [vmem:[%s1316 + $0xbc] sm:$0xf]
                %1413 = vst [vmem:[%s1317 + $0xbc] sm:$0xf] %v1412
                %v1414 = vld [vmem:[%s1316 + $0xc0] sm:$0xf]
                %1415 = vst [vmem:[%s1317 + $0xc0] sm:$0xf] %v1414
                %v1416 = vld [vmem:[%s1316 + $0xc4] sm:$0xf]
                %1417 = vst [vmem:[%s1317 + $0xc4] sm:$0xf] %v1416
                %v1418 = vld [vmem:[%s1316 + $0xc8] sm:$0xf]
                %1419 = vst [vmem:[%s1317 + $0xc8] sm:$0xf] %v1418
                %v1420 = vld [vmem:[%s1316 + $0xcc] sm:$0xf]
                %1421 = vst [vmem:[%s1317 + $0xcc] sm:$0xf] %v1420
                %v1422 = vld [vmem:[%s1316 + $0xd0] sm:$0xf]
                %1423 = vst [vmem:[%s1317 + $0xd0] sm:$0xf] %v1422
                %v1424 = vld [vmem:[%s1316 + $0xd4] sm:$0xf]
                %1425 = vst [vmem:[%s1317 + $0xd4] sm:$0xf] %v1424
                %v1426 = vld [vmem:[%s1316 + $0xd8] sm:$0xf]
                %1427 = vst [vmem:[%s1317 + $0xd8] sm:$0xf] %v1426
                %v1428 = vld [vmem:[%s1316 + $0xdc] sm:$0xf]
                %1429 = vst [vmem:[%s1317 + $0xdc] sm:$0xf] %v1428
                %v1430 = vld [vmem:[%s1316 + $0xe0] sm:$0xf]
                %1431 = vst [vmem:[%s1317 + $0xe0] sm:$0xf] %v1430
                %v1432 = vld [vmem:[%s1316 + $0xe4] sm:$0xf]
                %1433 = vst [vmem:[%s1317 + $0xe4] sm:$0xf] %v1432
                %v1434 = vld [vmem:[%s1316 + $0xe8] sm:$0xf]
                %1435 = vst [vmem:[%s1317 + $0xe8] sm:$0xf] %v1434
                %v1436 = vld [vmem:[%s1316 + $0xec] sm:$0xf]
                %1437 = vst [vmem:[%s1317 + $0xec] sm:$0xf] %v1436
                %v1438 = vld [vmem:[%s1316 + $0xf0] sm:$0xf]
                %1439 = vst [vmem:[%s1317 + $0xf0] sm:$0xf] %v1438
                %v1440 = vld [vmem:[%s1316 + $0xf4] sm:$0xf]
                %1441 = vst [vmem:[%s1317 + $0xf4] sm:$0xf] %v1440
                %v1442 = vld [vmem:[%s1316 + $0xf8] sm:$0xf]
                %1443 = vst [vmem:[%s1317 + $0xf8] sm:$0xf] %v1442
                %v1444 = vld [vmem:[%s1316 + $0xfc] sm:$0xf]
                %1445 = vst [vmem:[%s1317 + $0xfc] sm:$0xf] %v1444
                %s1446 = sadd.s32 1, %s1315
                %p1447 = scmp.ge.s32.totalorder %s1446, %s1308
                %s1448 = scalar_select %p1447, 0, %s1446
                %s1449 = smul.u32 %s1448, 256
                %s1450 = smul.u32 %s1448, 256
                %s1451 = scalar_lea.vmem %s1288, %s1449 [#allocation2]
                %s1452 = scalar_lea.vmem %s1299, %s1450
              $region53: #{ppo_forward.6} parent=47 // loop_footer
                %s1312 = sadd.s32 %s1310, 1
              $region54: #{ppo_forward.6} parent=47 // loop_footer_branch
                %1309 = sbr.rel target = $region50
              $region55: #{ppo_forward.6} parent=47 // loop_exit
                _
              %s1453 = sshrl.u32 %s1295, 6
              %s1454 = sand.u32 %s1295, 63
              %s1455 = smul.u32 %s1453, 64
              %s1456 = smul.u32 4, %s1455
              %s1457 = scalar_lea.vmem %s1288, %s1456 [#allocation2]
              %s1458 = smul.u32 4, %s1455
              %s1459 = scalar_lea.vmem %s1299, %s1458
              // While loop
              $region56: #{ppo_forward.6} parent=47 // loop_pre_header
                _
              $region57: #{ppo_forward.6} parent=47 // loop_header
                %s1461 = sphi 0, %s1463
                %p1462 = scmp.ge.s32.totalorder %s1461, %s1454
                %s1466 = sphi 0, %s1473
                %s1467 = sphi %s1457, %s1476
                %s1468 = sphi %s1459, %s1477
              $region58: #{ppo_forward.6} parent=47 // loop_header_branch
                %1465 = sbr.rel (%p1462) target = $region62
              $region59: #{ppo_forward.6} parent=47 // loop_body
                %v1469 = vld [vmem:[%s1467] sm:$0xf]
                %1470 = vst [vmem:[%s1468] sm:$0xf] %v1469
                %s1471 = sadd.s32 1, %s1466
                %p1472 = scmp.ge.s32.totalorder %s1471, %s1454
                %s1473 = scalar_select %p1472, 0, %s1471
                %s1474 = smul.u32 %s1473, 4
                %s1475 = smul.u32 %s1473, 4
                %s1476 = scalar_lea.vmem %s1457, %s1474 [#allocation2]
                %s1477 = scalar_lea.vmem %s1459, %s1475
              $region60: #{ppo_forward.6} parent=47 // loop_footer
                %s1463 = sadd.s32 %s1461, 1
              $region61: #{ppo_forward.6} parent=47 // loop_footer_branch
                %1460 = sbr.rel target = $region57
              $region62: #{ppo_forward.6} parent=47 // loop_exit
                _
            $region48: #{ppo_forward.6} parent=39 // pred_fallthru
              _
          $region40: #{ppo_forward.6} parent=35 // pred_fallthru
            _
          %1651 = vnop
        $region36: #{ppo_forward.6} parent=31 // pred_fallthru
          _
      $region32: #{ppo_forward.6} parent=5 // pred_fallthru
        _
      %p1652 = scmp.le.s32.totalorder 2, %s9
      // Predicated region
      $region81: #{ppo_forward.6} parent=5 // pred_check
        %p1653 = pneg %p1652
      $region82: #{ppo_forward.6} parent=5 // pred_check_branch
        %1655 = sbr.rel (%p1653) target = $region84
      $region83: #{ppo_forward.6} parent=5 // pred_region
        %s1656 = ssub.s32 %s9, 2
        // Predicated region
        $region85: #{ppo_forward.6} parent=83 // pred_check
          %p1657 = pneg %p106
        $region86: #{ppo_forward.6} parent=83 // pred_check_branch
          %1659 = sbr.rel (%p1657) target = $region88
        $region87: #{ppo_forward.6} parent=83 // pred_region
          %s1660 = sand.u32 %s91, 1
          %s1661 = sand.u32 %s91, 1
          %s1662 = smul.addr %s1661, 268
          %s1663 = scalar_lea.vmem [#allocation2], %s1662
        $region88: #{ppo_forward.6} parent=83 // pred_fallthru
          _
      $region84: #{ppo_forward.6} parent=5 // pred_fallthru
        _
    $region6: #{ppo_forward.6} parent=1 // loop_footer
      %s13 = sadd.s32 1, %s9
    $region7: #{ppo_forward.6} parent=1 // loop_footer_branch
      %8 = sbr.rel target = $region3
    $region8: #{ppo_forward.6} parent=1 // loop_exit
      _

// kernel: ppo_forward.7
$region0: #{ppo_forward.7}
  #allocation0 [shape = 'u32[]', space=smem, size = 0x4, offset = 0x4, fixed_abs, tag = 'smem constant byte address 0x4 - core index']
  #allocation1 [shape = 'u32[144,128]{1,0:T(1,128)}', space=vmem, size = 0x12000, scoped, tag = 'internal scratch']
  %s0 = inlined_call_operand.vmem [shape: bf16[242,144], index: 0, kind: input, shape index: {}]
  %s1 = inlined_call_operand.vmem [shape: bf16[144,128], index: 1, kind: input, shape index: {}]
  %s2 = inlined_call_operand.vmem [shape: f32[1,128], index: 2, kind: input, shape index: {}]
  %s3 = inlined_call_operand.vmem [shape: bf16[242,128], index: 3, kind: output, shape index: {}]
  %s4 = sld [smem:[#allocation0]]
  $region22: #{ppo_forward.7} parent=0
    _
  %s6 = ssub.s32 1, %s4
  %s7 = scalar_select 0, %s6, %s4
  // Predicated region
  $region2: #{ppo_forward.7} parent=0 // pred_check
    _
  $region3: #{ppo_forward.7} parent=0 // pred_check_branch
    %9 = sbr.rel (0) target = $region5
  $region4: #{ppo_forward.7} parent=0 // pred_region
    _
  $region5: #{ppo_forward.7} parent=0 // pred_fallthru
    _
  // Predicated region
  $region6: #{ppo_forward.7} parent=0 // pred_check
    _
  $region7: #{ppo_forward.7} parent=0 // pred_check_branch
    %11 = sbr.rel (0) target = $region9
  $region8: #{ppo_forward.7} parent=0 // pred_region
    _
  $region9: #{ppo_forward.7} parent=0 // pred_fallthru
    _
  // Predicated region
  $region10: #{ppo_forward.7} parent=0 // pred_check
    _
  $region11: #{ppo_forward.7} parent=0 // pred_check_branch
    %13 = sbr.rel (0) target = $region13
  $region12: #{ppo_forward.7} parent=0 // pred_region
    _
  $region13: #{ppo_forward.7} parent=0 // pred_fallthru
    _
  %v15 = vld [vmem:[%s0] sm:$0xff]
  %v16 = vld [vmem:[%s0 + $0x8] sm:$0xff]
  %v17 = vld [vmem:[%s0 + $0x10] sm:$0xff]
  %v18 = vld [vmem:[%s0 + $0x18] sm:$0xff]
  %v19 = vld [vmem:[%s0 + $0x20] sm:$0xff]
  %v20 = vld [vmem:[%s0 + $0x28] sm:$0xff]
  %v21 = vld [vmem:[%s0 + $0x30] sm:$0xff]
  %v22 = vld [vmem:[%s0 + $0x38] sm:$0xff]
  %v23 = vld [vmem:[%s0 + $0x40] sm:$0xff]
  %v24 = vld [vmem:[%s0 + $0x48] sm:$0xff]
  %v25 = vld [vmem:[%s0 + $0x50] sm:$0xff]
  %v26 = vld [vmem:[%s0 + $0x58] sm:$0xff]
  %v27 = vld [vmem:[%s0 + $0x60] sm:$0xff]
  %v28 = vld [vmem:[%s0 + $0x68] sm:$0xff]
  %v29 = vld [vmem:[%s0 + $0x70] sm:$0xff]
  %v30 = vld [vmem:[%s0 + $0x78] sm:$0xff]
  %v31 = vld [vmem:[%s0 + $0x80] sm:$0xff]
  %v32 = vld [vmem:[%s0 + $0x88] sm:$0xff]
  %v33 = vld [vmem:[%s0 + $0x90] sm:$0xff]
  %v34 = vld [vmem:[%s0 + $0x98] sm:$0xff]
  %v35 = vld [vmem:[%s0 + $0xa0] sm:$0xff]
  %v36 = vld [vmem:[%s0 + $0xa8] sm:$0xff]
  %v37 = vld [vmem:[%s0 + $0xb0] sm:$0xff]
  %v38 = vld [vmem:[%s0 + $0xb8] sm:$0xff]
  %v39 = vld [vmem:[%s0 + $0xc0] sm:$0xff]
  %v40 = vld [vmem:[%s0 + $0xc8] sm:$0xff]
  %v41 = vld [vmem:[%s0 + $0xd0] sm:$0xff]
  %v42 = vld [vmem:[%s0 + $0xd8] sm:$0xff]
  %v43 = vld [vmem:[%s0 + $0xe0] sm:$0xff]
  %v44 = vld [vmem:[%s0 + $0xe8] sm:$0xff]
  %v45 = vld [vmem:[%s0 + $0xf0] sm:$0x11]
  %v46 = vld [vmem:[%s1] sm:$0xf]
  %v47 = vld [vmem:[%s1 + $0x4] sm:$0xf]
  %v48 = vld [vmem:[%s1 + $0x8] sm:$0xf]
  %v49 = vld [vmem:[%s1 + $0xc] sm:$0xf]
  %v50 = vld [vmem:[%s1 + $0x10] sm:$0xf]
  %v51 = vld [vmem:[%s1 + $0x14] sm:$0xf]
  %v52 = vld [vmem:[%s1 + $0x18] sm:$0xf]
  %v53 = vld [vmem:[%s1 + $0x1c] sm:$0xf]
  %v54 = vld [vmem:[%s1 + $0x20] sm:$0xf]
  %v55 = vld [vmem:[%s1 + $0x24] sm:$0xf]
  %v56 = vld [vmem:[%s1 + $0x28] sm:$0xf]
  %v57 = vld [vmem:[%s1 + $0x2c] sm:$0xf]
  %v58 = vld [vmem:[%s1 + $0x30] sm:$0xf]
  %v59 = vld [vmem:[%s1 + $0x34] sm:$0xf]
  %v60 = vld [vmem:[%s1 + $0x38] sm:$0xf]
  %v61 = vld [vmem:[%s1 + $0x3c] sm:$0xf]
  %v62 = vld [vmem:[%s1 + $0x40] sm:$0xf]
  %v63 = vld [vmem:[%s1 + $0x44] sm:$0xf]
  %v64 = vld [vmem:[%s2] sm:$0x1]
  %v66 = vlaneseq
  %v67 = vshrl.u32 %v66, 7
  %v68 = vsub.s32 0, %v67
  %v69 = vrot.slane %v64, %v68
  %v102 = vunpack.c.l.b16 %v15
  %v103 = vunpack.c.h.b16 %v15
  %v104 = vunpack.c.l.b16 %v16
  %v105 = vunpack.c.h.b16 %v16
  %v106 = vunpack.c.l.b16 %v17
  %v107 = vunpack.c.h.b16 %v17
  %v108 = vunpack.c.l.b16 %v18
  %v109 = vunpack.c.h.b16 %v18
  %v110 = vunpack.c.l.b16 %v19
  %v111 = vunpack.c.h.b16 %v19
  %v112 = vunpack.c.l.b16 %v20
  %v113 = vunpack.c.h.b16 %v20
  %v114 = vunpack.c.l.b16 %v21
  %v115 = vunpack.c.h.b16 %v21
  %v116 = vunpack.c.l.b16 %v22
  %v117 = vunpack.c.h.b16 %v22
  %v118 = vunpack.c.l.b16 %v23
  %v119 = vunpack.c.h.b16 %v23
  %v120 = vunpack.c.l.b16 %v24
  %v121 = vunpack.c.h.b16 %v24
  %v122 = vunpack.c.l.b16 %v25
  %v123 = vunpack.c.h.b16 %v25
  %v124 = vunpack.c.l.b16 %v26
  %v125 = vunpack.c.h.b16 %v26
  %v126 = vunpack.c.l.b16 %v27
  %v127 = vunpack.c.h.b16 %v27
  %v128 = vunpack.c.l.b16 %v28
  %v129 = vunpack.c.h.b16 %v28
  %v130 = vunpack.c.l.b16 %v29
  %v131 = vunpack.c.h.b16 %v29
  %v132 = vunpack.c.l.b16 %v30
  %v133 = vunpack.c.h.b16 %v30
  %v134 = vunpack.c.l.b16 %v31
  %v135 = vunpack.c.h.b16 %v31
  %v136 = vunpack.c.l.b16 %v32
  %v137 = vunpack.c.h.b16 %v32
  %v138 = vunpack.c.l.b16 %v33
  %v139 = vunpack.c.h.b16 %v33
  %v140 = vunpack.c.l.b16 %v34
  %v141 = vunpack.c.h.b16 %v34
  %v142 = vunpack.c.l.b16 %v35
  %v143 = vunpack.c.h.b16 %v35
  %v144 = vunpack.c.l.b16 %v36
  %v145 = vunpack.c.h.b16 %v36
  %v146 = vunpack.c.l.b16 %v37
  %v147 = vunpack.c.h.b16 %v37
  %v148 = vunpack.c.l.b16 %v38
  %v149 = vunpack.c.h.b16 %v38
  %v150 = vunpack.c.l.b16 %v39
  %v151 = vunpack.c.h.b16 %v39
  %v152 = vunpack.c.l.b16 %v40
  %v153 = vunpack.c.h.b16 %v40
  %v154 = vunpack.c.l.b16 %v41
  %v155 = vunpack.c.h.b16 %v41
  %v156 = vunpack.c.l.b16 %v42
  %v157 = vunpack.c.h.b16 %v42
  %v158 = vunpack.c.l.b16 %v43
  %v159 = vunpack.c.h.b16 %v43
  %v160 = vunpack.c.l.b16 %v44
  %v161 = vunpack.c.h.b16 %v44
  %v162 = vunpack.c.l.b16 %v45
  %v163 = vunpack.c.h.b16 %v45
  %v164 = vpack.c.b16 %v104, %v102
  %v165 = vpack.c.b16 %v105, %v103
  %v166 = vpack.c.b16 %v108, %v106
  %v167 = vpack.c.b16 %v109, %v107
  %v168 = vpack.c.b16 %v112, %v110
  %v169 = vpack.c.b16 %v113, %v111
  %v170 = vpack.c.b16 %v116, %v114
  %v171 = vpack.c.b16 %v117, %v115
  %v172 = vpack.c.b16 %v120, %v118
  %v173 = vpack.c.b16 %v121, %v119
  %v174 = vpack.c.b16 %v124, %v122
  %v175 = vpack.c.b16 %v125, %v123
  %v176 = vpack.c.b16 %v128, %v126
  %v177 = vpack.c.b16 %v129, %v127
  %v178 = vpack.c.b16 %v132, %v130
  %v179 = vpack.c.b16 %v133, %v131
  %v180 = vpack.c.b16 %v136, %v134
  %v181 = vpack.c.b16 %v137, %v135
  %v182 = vpack.c.b16 %v140, %v138
  %v183 = vpack.c.b16 %v141, %v139
  %v184 = vpack.c.b16 %v144, %v142
  %v185 = vpack.c.b16 %v145, %v143
  %v186 = vpack.c.b16 %v148, %v146
  %v187 = vpack.c.b16 %v149, %v147
  %v188 = vpack.c.b16 %v152, %v150
  %v189 = vpack.c.b16 %v153, %v151
  %v190 = vpack.c.b16 %v156, %v154
  %v191 = vpack.c.b16 %v157, %v155
  %v192 = vpack.c.b16 %v160, %v158
  %v193 = vpack.c.b16 %v161, %v159
  %v194 = vpack.c.b16 %v162, %v162
  %v195 = vpack.c.b16 %v163, %v163
  %v230 = vunpack.c.l.b16 %v46
  %v231 = vunpack.c.l.b16 %v47
  %v232 = vunpack.c.l.b16 %v48
  %v233 = vunpack.c.l.b16 %v49
  %v234 = vunpack.c.l.b16 %v50
  %v235 = vunpack.c.l.b16 %v51
  %v236 = vunpack.c.l.b16 %v52
  %v237 = vunpack.c.l.b16 %v53
  %v238 = vunpack.c.l.b16 %v54
  %v239 = vunpack.c.l.b16 %v55
  %v240 = vunpack.c.l.b16 %v56
  %v241 = vunpack.c.l.b16 %v57
  %v242 = vunpack.c.l.b16 %v58
  %v243 = vunpack.c.l.b16 %v59
  %v244 = vunpack.c.l.b16 %v60
  %v245 = vunpack.c.l.b16 %v61
  %v246 = vunpack.c.l.b16 %v62
  %v247 = vunpack.c.l.b16 %v63
  %v248 = vpack.c.b16 %v231, %v230
  %v249 = vpack.c.b16 %v233, %v232
  %v250 = vpack.c.b16 %v235, %v234
  %v251 = vpack.c.b16 %v237, %v236
  %v252 = vpack.c.b16 %v239, %v238
  %v253 = vpack.c.b16 %v241, %v240
  %v254 = vpack.c.b16 %v243, %v242
  %v255 = vpack.c.b16 %v245, %v244
  %v256 = vpack.c.b16 %v247, %v246
  %vm266 = vcmask 130048
  %v268 = vsel %vm266, %v165, 0
  %v271 = vsel %vm266, %v167, 0
  %v274 = vsel %vm266, %v169, 0
  %v277 = vsel %vm266, %v171, 0
  %v280 = vsel %vm266, %v173, 0
  %v283 = vsel %vm266, %v175, 0
  %v286 = vsel %vm266, %v177, 0
  %v289 = vsel %vm266, %v179, 0
  %v292 = vsel %vm266, %v181, 0
  %v295 = vsel %vm266, %v183, 0
  %v298 = vsel %vm266, %v185, 0
  %v301 = vsel %vm266, %v187, 0
  %v304 = vsel %vm266, %v189, 0
  %v307 = vsel %vm266, %v191, 0
  %v310 = vsel %vm266, %v193, 0
  %v313 = vsel %vm266, %v195, 0
  %315 = vmatprep.subr.bf16.mxu0 0
  %316 = vmatpush1.bf16.msra.mxu0 %v248
  %317 = vmatprep.subr.bf16.mxu0 0
  %318 = vmatpush1.bf16.msra.mxu0 %v249
  %319 = vmatprep.subr.bf16.mxu0 0
  %320 = vmatpush1.bf16.msra.mxu0 %v250
  %321 = vmatprep.subr.bf16.mxu0 0
  %322 = vmatpush1.bf16.msra.mxu0 %v251
  %323 = vmatprep.subr.bf16.mxu0 0
  %324 = vmatpush1.bf16.msra.mxu0 %v252
  %325 = vmatprep.subr.bf16.mxu0 0
  %326 = vmatpush1.bf16.msra.mxu0 %v253
  %327 = vmatprep.subr.bf16.mxu0 0
  %328 = vmatpush1.bf16.msra.mxu0 %v254
  %329 = vmatprep.subr.bf16.mxu0 0
  %330 = vmatpush1.bf16.msra.mxu0 %v255
  %331 = vmatprep.subr.bf16.mxu0 0
  %332 = vmatpush1.bf16.msra.mxu0 %v256
  %333 = vmatprep.subr.bf16.mxu0 0
  %334 = vmatpush1.bf16.msra.mxu0 0
  %335 = vmatprep.subr.bf16.mxu0 0
  %336 = vmatpush1.bf16.msra.mxu0 0
  %337 = vmatprep.subr.bf16.mxu0 0
  %338 = vmatpush1.bf16.msra.mxu0 0
  %339 = vmatprep.subr.bf16.mxu0 0
  %340 = vmatpush1.bf16.msra.mxu0 0
  %341 = vmatprep.subr.bf16.mxu0 0
  %342 = vmatpush1.bf16.msra.mxu0 0
  %343 = vmatprep.subr.bf16.mxu0 0
  %344 = vmatpush1.bf16.msra.mxu0 0
  %345 = vmatprep.subr.bf16.mxu0 0
  %346 = vmatpush1.bf16.msra.mxu0 0
  %347 = vmatprep.mubr.bf16.mxu0 %v268
  %348 = vmatmul.mubr.bf16.gmra.mrb[0].mxu0 %v164
  %v349 = vpop.f32.mrb[0].mxu0
  %v350 = vadd.f32 %v69, %v349
  %v351 = vpop.f32.mrb[0].mxu0
  %v352 = vpop.f32.mrb[0].mxu0
  %v353 = vadd.f32 %v69, %v352
  %v354 = vpop.f32.mrb[0].mxu0
  %355 = vmatprep.mubr.bf16.mxu0 %v271
  %356 = vmatmul.mubr.bf16.gmra.mrb[0].mxu0 %v166
  %v357 = vpop.f32.mrb[0].mxu0
  %v358 = vadd.f32 %v69, %v357
  %v359 = vpop.f32.mrb[0].mxu0
  %v360 = vpop.f32.mrb[0].mxu0
  %v361 = vadd.f32 %v69, %v360
  %v362 = vpop.f32.mrb[0].mxu0
  %363 = vmatprep.mubr.bf16.mxu0 %v274
  %364 = vmatmul.mubr.bf16.gmra.mrb[0].mxu0 %v168
  %v365 = vpop.f32.mrb[0].mxu0
  %v366 = vadd.f32 %v69, %v365
  %v367 = vpop.f32.mrb[0].mxu0
  %v368 = vpop.f32.mrb[0].mxu0
  %v369 = vadd.f32 %v69, %v368
  %v370 = vpop.f32.mrb[0].mxu0
  %371 = vmatprep.mubr.bf16.mxu0 %v277
  %372 = vmatmul.mubr.bf16.gmra.mrb[0].mxu0 %v170
  %v373 = vpop.f32.mrb[0].mxu0
  %v374 = vadd.f32 %v69, %v373
  %v375 = vpop.f32.mrb[0].mxu0
  %v376 = vpop.f32.mrb[0].mxu0
  %v377 = vadd.f32 %v69, %v376
  %v378 = vpop.f32.mrb[0].mxu0
  %379 = vmatprep.mubr.bf16.mxu0 %v280
  %380 = vmatmul.mubr.bf16.gmra.mrb[0].mxu0 %v172
  %v381 = vpop.f32.mrb[0].mxu0
  %v382 = vadd.f32 %v69, %v381
  %v383 = vpop.f32.mrb[0].mxu0
  %v384 = vpop.f32.mrb[0].mxu0
  %v385 = vadd.f32 %v69, %v384
  %v386 = vpop.f32.mrb[0].mxu0
  %387 = vmatprep.mubr.bf16.mxu0 %v283
  %388 = vmatmul.mubr.bf16.gmra.mrb[0].mxu0 %v174
  %v389 = vpop.f32.mrb[0].mxu0
  %v390 = vadd.f32 %v69, %v389
  %v391 = vpop.f32.mrb[0].mxu0
  %v392 = vpop.f32.mrb[0].mxu0
  %v393 = vadd.f32 %v69, %v392
  %v394 = vpop.f32.mrb[0].mxu0
  %395 = vmatprep.mubr.bf16.mxu0 %v286
  %396 = vmatmul.mubr.bf16.gmra.mrb[0].mxu0 %v176
  %v397 = vpop.f32.mrb[0].mxu0
  %v398 = vadd.f32 %v69, %v397
  %v399 = vpop.f32.mrb[0].mxu0
  %v400 = vpop.f32.mrb[0].mxu0
  %v401 = vadd.f32 %v69, %v400
  %v402 = vpop.f32.mrb[0].mxu0
  %403 = vmatprep.mubr.bf16.mxu0 %v289
  %404 = vmatmul.mubr.bf16.gmra.mrb[0].mxu0 %v178
  %v405 = vpop.f32.mrb[0].mxu0
  %v406 = vadd.f32 %v69, %v405
  %v407 = vpop.f32.mrb[0].mxu0
  %v408 = vpop.f32.mrb[0].mxu0
  %v409 = vadd.f32 %v69, %v408
  %v410 = vpop.f32.mrb[0].mxu0
  %411 = vmatprep.mubr.bf16.mxu0 %v292
  %412 = vmatmul.mubr.bf16.gmra.mrb[0].mxu0 %v180
  %v413 = vpop.f32.mrb[0].mxu0
  %v414 = vadd.f32 %v69, %v413
  %v415 = vpop.f32.mrb[0].mxu0
  %v416 = vpop.f32.mrb[0].mxu0
  %v417 = vadd.f32 %v69, %v416
  %v418 = vpop.f32.mrb[0].mxu0
  %419 = vmatprep.mubr.bf16.mxu0 %v295
  %420 = vmatmul.mubr.bf16.gmra.mrb[0].mxu0 %v182
  %v421 = vpop.f32.mrb[0].mxu0
  %v422 = vadd.f32 %v69, %v421
  %v423 = vpop.f32.mrb[0].mxu0
  %v424 = vpop.f32.mrb[0].mxu0
  %v425 = vadd.f32 %v69, %v424
  %v426 = vpop.f32.mrb[0].mxu0
  %427 = vmatprep.mubr.bf16.mxu0 %v298
  %428 = vmatmul.mubr.bf16.gmra.mrb[0].mxu0 %v184
  %v429 = vpop.f32.mrb[0].mxu0
  %v430 = vadd.f32 %v69, %v429
  %v431 = vpop.f32.mrb[0].mxu0
  %v432 = vpop.f32.mrb[0].mxu0
  %v433 = vadd.f32 %v69, %v432
  %v434 = vpop.f32.mrb[0].mxu0
  %435 = vmatprep.mubr.bf16.mxu0 %v301
  %436 = vmatmul.mubr.bf16.gmra.mrb[0].mxu0 %v186
  %v437 = vpop.f32.mrb[0].mxu0
  %v438 = vadd.f32 %v69, %v437
  %v439 = vpop.f32.mrb[0].mxu0
  %v440 = vpop.f32.mrb[0].mxu0
  %v441 = vadd.f32 %v69, %v440
  %v442 = vpop.f32.mrb[0].mxu0
  %443 = vmatprep.mubr.bf16.mxu0 %v304
  %444 = vmatmul.mubr.bf16.gmra.mrb[0].mxu0 %v188
  %v445 = vpop.f32.mrb[0].mxu0
  %v446 = vadd.f32 %v69, %v445
  %v447 = vpop.f32.mrb[0].mxu0
  %v448 = vpop.f32.mrb[0].mxu0
  %v449 = vadd.f32 %v69, %v448
  %v450 = vpop.f32.mrb[0].mxu0
  %451 = vmatprep.mubr.bf16.mxu0 %v307
  %452 = vmatmul.mubr.bf16.gmra.mrb[0].mxu0 %v190
  %v453 = vpop.f32.mrb[0].mxu0
  %v454 = vadd.f32 %v69, %v453
  %v455 = vpop.f32.mrb[0].mxu0
  %v456 = vpop.f32.mrb[0].mxu0
  %v457 = vadd.f32 %v69, %v456
  %v458 = vpop.f32.mrb[0].mxu0
  %459 = vmatprep.mubr.bf16.mxu0 %v310
  %460 = vmatmul.mubr.bf16.gmra.mrb[0].mxu0 %v192
  %v461 = vpop.f32.mrb[0].mxu0
  %v462 = vadd.f32 %v69, %v461
  %v463 = vpop.f32.mrb[0].mxu0
  %v464 = vpop.f32.mrb[0].mxu0
  %v465 = vadd.f32 %v69, %v464
  %v466 = vpop.f32.mrb[0].mxu0
  %467 = vmatprep.mubr.bf16.mxu0 %v313
  %468 = vmatmul.mubr.bf16.gmra.mrb[0].mxu0 %v194
  %v469 = vpop.f32.mrb[0].mxu0
  %v470 = vadd.f32 %v69, %v469
  %v471 = vpop.f32.mrb[0].mxu0
  %v472 = vpop.f32.mrb[0].mxu0
  %v473 = vpop.f32.mrb[0].mxu0
  %474 = vdwg.mxu0
  %v475 = vmax.f32 %v350, 0.0
  %v476 = vmax.f32 %v353, 0.0
  %v477 = vmax.f32 %v358, 0.0
  %v478 = vmax.f32 %v361, 0.0
  %v479 = vmax.f32 %v366, 0.0
  %v480 = vmax.f32 %v369, 0.0
  %v481 = vmax.f32 %v374, 0.0
  %v482 = vmax.f32 %v377, 0.0
  %v483 = vmax.f32 %v382, 0.0
  %v484 = vmax.f32 %v385, 0.0
  %v485 = vmax.f32 %v390, 0.0
  %v486 = vmax.f32 %v393, 0.0
  %v487 = vmax.f32 %v398, 0.0
  %v488 = vmax.f32 %v401, 0.0
  %v489 = vmax.f32 %v406, 0.0
  %v490 = vmax.f32 %v409, 0.0
  %v491 = vmax.f32 %v414, 0.0
  %v492 = vmax.f32 %v417, 0.0
  %v493 = vmax.f32 %v422, 0.0
  %v494 = vmax.f32 %v425, 0.0
  %v495 = vmax.f32 %v430, 0.0
  %v496 = vmax.f32 %v433, 0.0
  %v497 = vmax.f32 %v438, 0.0
  %v498 = vmax.f32 %v441, 0.0
  %v499 = vmax.f32 %v446, 0.0
  %v500 = vmax.f32 %v449, 0.0
  %v501 = vmax.f32 %v454, 0.0
  %v502 = vmax.f32 %v457, 0.0
  %v503 = vmax.f32 %v462, 0.0
  %v504 = vmax.f32 %v465, 0.0
  %v505 = vmax.f32 %v470, 0.0
  %v506 = vpack.c.bf16 %v476, %v475
  %v507 = vpack.c.bf16 %v478, %v477
  %v508 = vpack.c.bf16 %v480, %v479
  %v509 = vpack.c.bf16 %v482, %v481
  %v510 = vpack.c.bf16 %v484, %v483
  %v511 = vpack.c.bf16 %v486, %v485
  %v512 = vpack.c.bf16 %v488, %v487
  %v513 = vpack.c.bf16 %v490, %v489
  %v514 = vpack.c.bf16 %v492, %v491
  %v515 = vpack.c.bf16 %v494, %v493
  %v516 = vpack.c.bf16 %v496, %v495
  %v517 = vpack.c.bf16 %v498, %v497
  %v518 = vpack.c.bf16 %v500, %v499
  %v519 = vpack.c.bf16 %v502, %v501
  %v520 = vpack.c.bf16 %v504, %v503
  %v521 = vpack.c.bf16 %v505, %v505
  %v538 = vunpack.c.l.b16 %v506
  %v539 = vunpack.c.h.b16 %v506
  %v540 = vunpack.c.l.b16 %v507
  %v541 = vunpack.c.h.b16 %v507
  %v542 = vunpack.c.l.b16 %v508
  %v543 = vunpack.c.h.b16 %v508
  %v544 = vunpack.c.l.b16 %v509
  %v545 = vunpack.c.h.b16 %v509
  %v546 = vunpack.c.l.b16 %v510
  %v547 = vunpack.c.h.b16 %v510
  %v548 = vunpack.c.l.b16 %v511
  %v549 = vunpack.c.h.b16 %v511
  %v550 = vunpack.c.l.b16 %v512
  %v551 = vunpack.c.h.b16 %v512
  %v552 = vunpack.c.l.b16 %v513
  %v553 = vunpack.c.h.b16 %v513
  %v554 = vunpack.c.l.b16 %v514
  %v555 = vunpack.c.h.b16 %v514
  %v556 = vunpack.c.l.b16 %v515
  %v557 = vunpack.c.h.b16 %v515
  %v558 = vunpack.c.l.b16 %v516
  %v559 = vunpack.c.h.b16 %v516
  %v560 = vunpack.c.l.b16 %v517
  %v561 = vunpack.c.h.b16 %v517
  %v562 = vunpack.c.l.b16 %v518
  %v563 = vunpack.c.h.b16 %v518
  %v564 = vunpack.c.l.b16 %v519
  %v565 = vunpack.c.h.b16 %v519
  %v566 = vunpack.c.l.b16 %v520
  %v567 = vunpack.c.h.b16 %v520
  %v568 = vunpack.c.l.b16 %v521
  %v569 = vpack.c.b16 %v538, %v538
  %v570 = vpack.c.b16 %v539, %v539
  %v571 = vpack.c.b16 %v540, %v540
  %v572 = vpack.c.b16 %v541, %v541
  %v573 = vpack.c.b16 %v542, %v542
  %v574 = vpack.c.b16 %v543, %v543
  %v575 = vpack.c.b16 %v544, %v544
  %v576 = vpack.c.b16 %v545, %v545
  %v577 = vpack.c.b16 %v546, %v546
  %v578 = vpack.c.b16 %v547, %v547
  %v579 = vpack.c.b16 %v548, %v548
  %v580 = vpack.c.b16 %v549, %v549
  %v581 = vpack.c.b16 %v550, %v550
  %v582 = vpack.c.b16 %v551, %v551
  %v583 = vpack.c.b16 %v552, %v552
  %v584 = vpack.c.b16 %v553, %v553
  %v585 = vpack.c.b16 %v554, %v554
  %v586 = vpack.c.b16 %v555, %v555
  %v587 = vpack.c.b16 %v556, %v556
  %v588 = vpack.c.b16 %v557, %v557
  %v589 = vpack.c.b16 %v558, %v558
  %v590 = vpack.c.b16 %v559, %v559
  %v591 = vpack.c.b16 %v560, %v560
  %v592 = vpack.c.b16 %v561, %v561
  %v593 = vpack.c.b16 %v562, %v562
  %v594 = vpack.c.b16 %v563, %v563
  %v595 = vpack.c.b16 %v564, %v564
  %v596 = vpack.c.b16 %v565, %v565
  %v597 = vpack.c.b16 %v566, %v566
  %v598 = vpack.c.b16 %v567, %v567
  %v599 = vpack.c.b16 %v568, %v568
  %631 = vst [vmem:[%s3] sm:$0xf] %v569
  %632 = vst [vmem:[%s3 + $0x4] sm:$0xf] %v570
  %633 = vst [vmem:[%s3 + $0x8] sm:$0xf] %v571
  %634 = vst [vmem:[%s3 + $0xc] sm:$0xf] %v572
  %635 = vst [vmem:[%s3 + $0x10] sm:$0xf] %v573
  %636 = vst [vmem:[%s3 + $0x14] sm:$0xf] %v574
  %637 = vst [vmem:[%s3 + $0x18] sm:$0xf] %v575
  %638 = vst [vmem:[%s3 + $0x1c] sm:$0xf] %v576
  %639 = vst [vmem:[%s3 + $0x20] sm:$0xf] %v577
  %640 = vst [vmem:[%s3 + $0x24] sm:$0xf] %v578
  %641 = vst [vmem:[%s3 + $0x28] sm:$0xf] %v579
  %642 = vst [vmem:[%s3 + $0x2c] sm:$0xf] %v580
  %643 = vst [vmem:[%s3 + $0x30] sm:$0xf] %v581
  %644 = vst [vmem:[%s3 + $0x34] sm:$0xf] %v582
  %645 = vst [vmem:[%s3 + $0x38] sm:$0xf] %v583
  %646 = vst [vmem:[%s3 + $0x3c] sm:$0xf] %v584
  %647 = vst [vmem:[%s3 + $0x40] sm:$0xf] %v585
  %648 = vst [vmem:[%s3 + $0x44] sm:$0xf] %v586
  %649 = vst [vmem:[%s3 + $0x48] sm:$0xf] %v587
  %650 = vst [vmem:[%s3 + $0x4c] sm:$0xf] %v588
  %651 = vst [vmem:[%s3 + $0x50] sm:$0xf] %v589
  %652 = vst [vmem:[%s3 + $0x54] sm:$0xf] %v590
  %653 = vst [vmem:[%s3 + $0x58] sm:$0xf] %v591
  %654 = vst [vmem:[%s3 + $0x5c] sm:$0xf] %v592
  %655 = vst [vmem:[%s3 + $0x60] sm:$0xf] %v593
  %656 = vst [vmem:[%s3 + $0x64] sm:$0xf] %v594
  %657 = vst [vmem:[%s3 + $0x68] sm:$0xf] %v595
  %658 = vst [vmem:[%s3 + $0x6c] sm:$0xf] %v596
  %659 = vst [vmem:[%s3 + $0x70] sm:$0xf] %v597
  %660 = vst [vmem:[%s3 + $0x74] sm:$0xf] %v598
  %661 = vst [vmem:[%s3 + $0x78] sm:$0x1] %v599
  // Predicated region
  $region14: #{ppo_forward.7} parent=0 // pred_check
    _
  $region15: #{ppo_forward.7} parent=0 // pred_check_branch
    %663 = sbr.rel (0) target = $region17
  $region16: #{ppo_forward.7} parent=0 // pred_region
    _
  $region17: #{ppo_forward.7} parent=0 // pred_fallthru
    _
  // Predicated region
  $region18: #{ppo_forward.7} parent=0 // pred_check
    _
  $region19: #{ppo_forward.7} parent=0 // pred_check_branch
    %665 = sbr.rel (0) target = $region21
  $region20: #{ppo_forward.7} parent=0 // pred_region
    _
  $region21: #{ppo_forward.7} parent=0 // pred_fallthru
    _

// kernel: ppo_forward.8
$region0: #{ppo_forward.8}
  #allocation0 [shape = 'u32[]', space=smem, size = 0x4, offset = 0x4, fixed_abs, tag = 'smem constant byte address 0x4 - core index']
  #allocation1 [shape = 'u32[144,128]{1,0:T(1,128)}', space=vmem, size = 0x12000, scoped, tag = 'internal scratch']
  %s0 = inlined_call_operand.vmem [shape: bf16[50,288], index: 0, kind: input, shape index: {}]
  %s1 = inlined_call_operand.vmem [shape: bf16[288,128], index: 1, kind: input, shape index: {}]
  %s2 = inlined_call_operand.vmem [shape: f32[1,128], index: 2, kind: input, shape index: {}]
  %s3 = inlined_call_operand.vmem [shape: bf16[50,128], index: 3, kind: output, shape index: {}]
  %s4 = sld [smem:[#allocation0]]
  $region22: #{ppo_forward.8} parent=0
    _
  %s6 = ssub.s32 1, %s4
  %s7 = scalar_select 0, %s6, %s4
  // Predicated region
  $region2: #{ppo_forward.8} parent=0 // pred_check
    _
  $region3: #{ppo_forward.8} parent=0 // pred_check_branch
    %9 = sbr.rel (0) target = $region5
  $region4: #{ppo_forward.8} parent=0 // pred_region
    _
  $region5: #{ppo_forward.8} parent=0 // pred_fallthru
    _
  // Predicated region
  $region6: #{ppo_forward.8} parent=0 // pred_check
    _
  $region7: #{ppo_forward.8} parent=0 // pred_check_branch
    %11 = sbr.rel (0) target = $region9
  $region8: #{ppo_forward.8} parent=0 // pred_region
    _
  $region9: #{ppo_forward.8} parent=0 // pred_fallthru
    _
  // Predicated region
  $region10: #{ppo_forward.8} parent=0 // pred_check
    _
  $region11: #{ppo_forward.8} parent=0 // pred_check_branch
    %13 = sbr.rel (0) target = $region13
  $region12: #{ppo_forward.8} parent=0 // pred_region
    _
  $region13: #{ppo_forward.8} parent=0 // pred_fallthru
    _
  %v15 = vld [vmem:[%s0] sm:$0xff]
  %v16 = vld [vmem:[%s0 + $0x8] sm:$0xf]
  %v17 = vld [vmem:[%s0 + $0xc] sm:$0xff]
  %v18 = vld [vmem:[%s0 + $0x14] sm:$0xf]
  %v19 = vld [vmem:[%s0 + $0x18] sm:$0xff]
  %v20 = vld [vmem:[%s0 + $0x20] sm:$0xf]
  %v21 = vld [vmem:[%s0 + $0x24] sm:$0xff]
  %v22 = vld [vmem:[%s0 + $0x2c] sm:$0xf]
  %v23 = vld [vmem:[%s0 + $0x30] sm:$0xff]
  %v24 = vld [vmem:[%s0 + $0x38] sm:$0xf]
  %v25 = vld [vmem:[%s0 + $0x3c] sm:$0xff]
  %v26 = vld [vmem:[%s0 + $0x44] sm:$0xf]
  %v27 = vld [vmem:[%s0 + $0x48] sm:$0x11]
  %v28 = vld [vmem:[%s0 + $0x50] sm:$0x1]
  %v29 = vld [vmem:[%s1] sm:$0xf]
  %v30 = vld [vmem:[%s1 + $0x4] sm:$0xf]
  %v31 = vld [vmem:[%s1 + $0x8] sm:$0xf]
  %v32 = vld [vmem:[%s1 + $0xc] sm:$0xf]
  %v33 = vld [vmem:[%s1 + $0x10] sm:$0xf]
  %v34 = vld [vmem:[%s1 + $0x14] sm:$0xf]
  %v35 = vld [vmem:[%s1 + $0x18] sm:$0xf]
  %v36 = vld [vmem:[%s1 + $0x1c] sm:$0xf]
  %v37 = vld [vmem:[%s1 + $0x20] sm:$0xf]
  %v38 = vld [vmem:[%s1 + $0x24] sm:$0xf]
  %v39 = vld [vmem:[%s1 + $0x28] sm:$0xf]
  %v40 = vld [vmem:[%s1 + $0x2c] sm:$0xf]
  %v41 = vld [vmem:[%s1 + $0x30] sm:$0xf]
  %v42 = vld [vmem:[%s1 + $0x34] sm:$0xf]
  %v43 = vld [vmem:[%s1 + $0x38] sm:$0xf]
  %v44 = vld [vmem:[%s1 + $0x3c] sm:$0xf]
  %v45 = vld [vmem:[%s1 + $0x40] sm:$0xf]
  %v46 = vld [vmem:[%s1 + $0x44] sm:$0xf]
  %v47 = vld [vmem:[%s1 + $0x48] sm:$0xf]
  %v48 = vld [vmem:[%s1 + $0x4c] sm:$0xf]
  %v49 = vld [vmem:[%s1 + $0x50] sm:$0xf]
  %v50 = vld [vmem:[%s1 + $0x54] sm:$0xf]
  %v51 = vld [vmem:[%s1 + $0x58] sm:$0xf]
  %v52 = vld [vmem:[%s1 + $0x5c] sm:$0xf]
  %v53 = vld [vmem:[%s1 + $0x60] sm:$0xf]
  %v54 = vld [vmem:[%s1 + $0x64] sm:$0xf]
  %v55 = vld [vmem:[%s1 + $0x68] sm:$0xf]
  %v56 = vld [vmem:[%s1 + $0x6c] sm:$0xf]
  %v57 = vld [vmem:[%s1 + $0x70] sm:$0xf]
  %v58 = vld [vmem:[%s1 + $0x74] sm:$0xf]
  %v59 = vld [vmem:[%s1 + $0x78] sm:$0xf]
  %v60 = vld [vmem:[%s1 + $0x7c] sm:$0xf]
  %v61 = vld [vmem:[%s1 + $0x80] sm:$0xf]
  %v62 = vld [vmem:[%s1 + $0x84] sm:$0xf]
  %v63 = vld [vmem:[%s1 + $0x88] sm:$0xf]
  %v64 = vld [vmem:[%s1 + $0x8c] sm:$0xf]
  %v65 = vld [vmem:[%s2] sm:$0x1]
  %v67 = vlaneseq
  %v68 = vshrl.u32 %v67, 7
  %v69 = vsub.s32 0, %v68
  %v70 = vrot.slane %v65, %v69
  %v86 = vunpack.c.l.b16 %v15
  %v87 = vunpack.c.h.b16 %v15
  %v88 = vunpack.c.l.b16 %v16
  %v89 = vunpack.c.l.b16 %v17
  %v90 = vunpack.c.h.b16 %v17
  %v91 = vunpack.c.l.b16 %v18
  %v92 = vunpack.c.l.b16 %v19
  %v93 = vunpack.c.h.b16 %v19
  %v94 = vunpack.c.l.b16 %v20
  %v95 = vunpack.c.l.b16 %v21
  %v96 = vunpack.c.h.b16 %v21
  %v97 = vunpack.c.l.b16 %v22
  %v98 = vunpack.c.l.b16 %v23
  %v99 = vunpack.c.h.b16 %v23
  %v100 = vunpack.c.l.b16 %v24
  %v101 = vunpack.c.l.b16 %v25
  %v102 = vunpack.c.h.b16 %v25
  %v103 = vunpack.c.l.b16 %v26
  %v104 = vunpack.c.l.b16 %v27
  %v105 = vunpack.c.h.b16 %v27
  %v106 = vunpack.c.l.b16 %v28
  %v107 = vpack.c.b16 %v89, %v86
  %v108 = vpack.c.b16 %v90, %v87
  %v109 = vpack.c.b16 %v91, %v88
  %v110 = vpack.c.b16 %v95, %v92
  %v111 = vpack.c.b16 %v96, %v93
  %v112 = vpack.c.b16 %v97, %v94
  %v113 = vpack.c.b16 %v101, %v98
  %v114 = vpack.c.b16 %v102, %v99
  %v115 = vpack.c.b16 %v103, %v100
  %v116 = vpack.c.b16 %v104, %v104
  %v117 = vpack.c.b16 %v105, %v105
  %v118 = vpack.c.b16 %v106, %v106
  %v163 = vunpack.c.l.b16 %v29
  %v164 = vunpack.c.l.b16 %v30
  %v165 = vunpack.c.l.b16 %v31
  %v166 = vunpack.c.l.b16 %v32
  %v167 = vunpack.c.l.b16 %v33
  %v168 = vunpack.c.l.b16 %v34
  %v169 = vunpack.c.l.b16 %v35
  %v170 = vunpack.c.l.b16 %v36
  %v171 = vunpack.c.l.b16 %v37
  %v172 = vunpack.c.l.b16 %v38
  %v173 = vunpack.c.l.b16 %v39
  %v174 = vunpack.c.l.b16 %v40
  %v175 = vunpack.c.l.b16 %v41
  %v176 = vunpack.c.l.b16 %v42
  %v177 = vunpack.c.l.b16 %v43
  %v178 = vunpack.c.l.b16 %v44
  %v179 = vunpack.c.l.b16 %v45
  %v180 = vunpack.c.l.b16 %v46
  %v181 = vunpack.c.l.b16 %v47
  %v182 = vunpack.c.l.b16 %v48
  %v183 = vunpack.c.l.b16 %v49
  %v184 = vunpack.c.l.b16 %v50
  %v185 = vunpack.c.l.b16 %v51
  %v186 = vunpack.c.l.b16 %v52
  %v187 = vunpack.c.l.b16 %v53
  %v188 = vunpack.c.l.b16 %v54
  %v189 = vunpack.c.l.b16 %v55
  %v190 = vunpack.c.l.b16 %v56
  %v191 = vunpack.c.l.b16 %v57
  %v192 = vunpack.c.l.b16 %v58
  %v193 = vunpack.c.l.b16 %v59
  %v194 = vunpack.c.l.b16 %v60
  %v195 = vunpack.c.l.b16 %v61
  %v196 = vunpack.c.l.b16 %v62
  %v197 = vunpack.c.l.b16 %v63
  %v198 = vunpack.c.l.b16 %v64
  %v199 = vpack.c.b16 %v164, %v163
  %v200 = vpack.c.b16 %v166, %v165
  %v201 = vpack.c.b16 %v168, %v167
  %v202 = vpack.c.b16 %v170, %v169
  %v203 = vpack.c.b16 %v172, %v171
  %v204 = vpack.c.b16 %v174, %v173
  %v205 = vpack.c.b16 %v176, %v175
  %v206 = vpack.c.b16 %v178, %v177
  %v207 = vpack.c.b16 %v180, %v179
  %v208 = vpack.c.b16 %v182, %v181
  %v209 = vpack.c.b16 %v184, %v183
  %v210 = vpack.c.b16 %v186, %v185
  %v211 = vpack.c.b16 %v188, %v187
  %v212 = vpack.c.b16 %v190, %v189
  %v213 = vpack.c.b16 %v192, %v191
  %v214 = vpack.c.b16 %v194, %v193
  %v215 = vpack.c.b16 %v196, %v195
  %v216 = vpack.c.b16 %v198, %v197
  %vm235 = vcmask 261120
  %v237 = vsel %vm235, %v109, 0
  %v240 = vsel %vm235, %v112, 0
  %v243 = vsel %vm235, %v115, 0
  %v246 = vsel %vm235, %v118, 0
  %248 = vmatprep.subr.bf16.mxu0 0
  %249 = vmatpush1.bf16.msra.mxu0 %v199
  %250 = vmatprep.subr.bf16.mxu0 0
  %251 = vmatpush1.bf16.msra.mxu0 %v200
  %252 = vmatprep.subr.bf16.mxu0 0
  %253 = vmatpush1.bf16.msra.mxu0 %v201
  %254 = vmatprep.subr.bf16.mxu0 0
  %255 = vmatpush1.bf16.msra.mxu0 %v202
  %256 = vmatprep.subr.bf16.mxu0 0
  %257 = vmatpush1.bf16.msra.mxu0 %v203
  %258 = vmatprep.subr.bf16.mxu0 0
  %259 = vmatpush1.bf16.msra.mxu0 %v204
  %260 = vmatprep.subr.bf16.mxu0 0
  %261 = vmatpush1.bf16.msra.mxu0 %v205
  %262 = vmatprep.subr.bf16.mxu0 0
  %263 = vmatpush1.bf16.msra.mxu0 %v206
  %264 = vmatprep.subr.bf16.mxu0 0
  %265 = vmatpush1.bf16.msra.mxu0 %v207
  %266 = vmatprep.subr.bf16.mxu0 0
  %267 = vmatpush1.bf16.msra.mxu0 %v208
  %268 = vmatprep.subr.bf16.mxu0 0
  %269 = vmatpush1.bf16.msra.mxu0 %v209
  %270 = vmatprep.subr.bf16.mxu0 0
  %271 = vmatpush1.bf16.msra.mxu0 %v210
  %272 = vmatprep.subr.bf16.mxu0 0
  %273 = vmatpush1.bf16.msra.mxu0 %v211
  %274 = vmatprep.subr.bf16.mxu0 0
  %275 = vmatpush1.bf16.msra.mxu0 %v212
  %276 = vmatprep.subr.bf16.mxu0 0
  %277 = vmatpush1.bf16.msra.mxu0 %v213
  %278 = vmatprep.subr.bf16.mxu0 0
  %279 = vmatpush1.bf16.msra.mxu0 %v214
  %280 = vmatprep.mubr.bf16.mxu0 %v108
  %281 = vmatmul.mubr.bf16.gmra.mrb[0].mxu0 %v107
  %v282 = vpop.f32.mrb[0].mxu0
  %v283 = vadd.f32 %v70, %v282
  %v284 = vpop.f32.mrb[0].mxu0
  %v285 = vpop.f32.mrb[0].mxu0
  %v286 = vadd.f32 %v70, %v285
  %v287 = vpop.f32.mrb[0].mxu0
  %288 = vmatprep.mubr.bf16.mxu0 %v111
  %289 = vmatmul.mubr.bf16.gmra.mrb[0].mxu0 %v110
  %v290 = vpop.f32.mrb[0].mxu0
  %v291 = vadd.f32 %v70, %v290
  %v292 = vpop.f32.mrb[0].mxu0
  %v293 = vpop.f32.mrb[0].mxu0
  %v294 = vadd.f32 %v70, %v293
  %v295 = vpop.f32.mrb[0].mxu0
  %296 = vmatprep.mubr.bf16.mxu0 %v114
  %297 = vmatmul.mubr.bf16.gmra.mrb[0].mxu0 %v113
  %v298 = vpop.f32.mrb[0].mxu0
  %v299 = vadd.f32 %v70, %v298
  %v300 = vpop.f32.mrb[0].mxu0
  %v301 = vpop.f32.mrb[0].mxu0
  %v302 = vadd.f32 %v70, %v301
  %v303 = vpop.f32.mrb[0].mxu0
  %304 = vmatprep.mubr.bf16.mxu0 %v117
  %305 = vmatmul.mubr.bf16.gmra.mrb[0].mxu0 %v116
  %v306 = vpop.f32.mrb[0].mxu0
  %v307 = vadd.f32 %v70, %v306
  %v308 = vpop.f32.mrb[0].mxu0
  %v309 = vpop.f32.mrb[0].mxu0
  %v310 = vpop.f32.mrb[0].mxu0
  %311 = vdwg.mxu0
  %312 = vmatprep.subr.bf16.mxu0 0
  %313 = vmatpush1.bf16.msra.mxu0 %v215
  %314 = vmatprep.subr.bf16.mxu0 0
  %315 = vmatpush1.bf16.msra.mxu0 %v216
  %316 = vmatprep.subr.bf16.mxu0 0
  %317 = vmatpush1.bf16.msra.mxu0 0
  %318 = vmatprep.subr.bf16.mxu0 0
  %319 = vmatpush1.bf16.msra.mxu0 0
  %320 = vmatprep.subr.bf16.mxu0 0
  %321 = vmatpush1.bf16.msra.mxu0 0
  %322 = vmatprep.subr.bf16.mxu0 0
  %323 = vmatpush1.bf16.msra.mxu0 0
  %324 = vmatprep.subr.bf16.mxu0 0
  %325 = vmatpush1.bf16.msra.mxu0 0
  %326 = vmatprep.subr.bf16.mxu0 0
  %327 = vmatpush1.bf16.msra.mxu0 0
  %328 = vmatprep.subr.bf16.mxu0 0
  %329 = vmatpush1.bf16.msra.mxu0 0
  %330 = vmatprep.subr.bf16.mxu0 0
  %331 = vmatpush1.bf16.msra.mxu0 0
  %332 = vmatprep.subr.bf16.mxu0 0
  %333 = vmatpush1.bf16.msra.mxu0 0
  %334 = vmatprep.subr.bf16.mxu0 0
  %335 = vmatpush1.bf16.msra.mxu0 0
  %336 = vmatprep.subr.bf16.mxu0 0
  %337 = vmatpush1.bf16.msra.mxu0 0
  %338 = vmatprep.subr.bf16.mxu0 0
  %339 = vmatpush1.bf16.msra.mxu0 0
  %340 = vmatprep.subr.bf16.mxu0 0
  %341 = vmatpush1.bf16.msra.mxu0 0
  %342 = vmatprep.subr.bf16.mxu0 0
  %343 = vmatpush1.bf16.msra.mxu0 0
  %344 = vmatprep.mubr.bf16.mxu0 0
  %345 = vmatmul.mubr.bf16.gmra.mrb[0].mxu0 %v237
  %v346 = vpop.f32.mrb[0].mxu0
  %v347 = vadd.f32 %v283, %v346
  %v348 = vpop.f32.mrb[0].mxu0
  %v349 = vpop.f32.mrb[0].mxu0
  %v350 = vadd.f32 %v286, %v349
  %v351 = vpop.f32.mrb[0].mxu0
  %352 = vmatprep.mubr.bf16.mxu0 0
  %353 = vmatmul.mubr.bf16.gmra.mrb[0].mxu0 %v240
  %v354 = vpop.f32.mrb[0].mxu0
  %v355 = vadd.f32 %v291, %v354
  %v356 = vpop.f32.mrb[0].mxu0
  %v357 = vpop.f32.mrb[0].mxu0
  %v358 = vadd.f32 %v294, %v357
  %v359 = vpop.f32.mrb[0].mxu0
  %360 = vmatprep.mubr.bf16.mxu0 0
  %361 = vmatmul.mubr.bf16.gmra.mrb[0].mxu0 %v243
  %v362 = vpop.f32.mrb[0].mxu0
  %v363 = vadd.f32 %v299, %v362
  %v364 = vpop.f32.mrb[0].mxu0
  %v365 = vpop.f32.mrb[0].mxu0
  %v366 = vadd.f32 %v302, %v365
  %v367 = vpop.f32.mrb[0].mxu0
  %368 = vmatprep.mubr.bf16.mxu0 0
  %369 = vmatmul.mubr.bf16.gmra.mrb[0].mxu0 %v246
  %v370 = vpop.f32.mrb[0].mxu0
  %v371 = vadd.f32 %v307, %v370
  %v372 = vpop.f32.mrb[0].mxu0
  %v373 = vpop.f32.mrb[0].mxu0
  %v374 = vpop.f32.mrb[0].mxu0
  %375 = vdwg.mxu0
  %v376 = vmax.f32 %v347, 0.0
  %v377 = vmax.f32 %v350, 0.0
  %v378 = vmax.f32 %v355, 0.0
  %v379 = vmax.f32 %v358, 0.0
  %v380 = vmax.f32 %v363, 0.0
  %v381 = vmax.f32 %v366, 0.0
  %v382 = vmax.f32 %v371, 0.0
  %v383 = vpack.c.bf16 %v377, %v376
  %v384 = vpack.c.bf16 %v379, %v378
  %v385 = vpack.c.bf16 %v381, %v380
  %v386 = vpack.c.bf16 %v382, %v382
  %v391 = vunpack.c.l.b16 %v383
  %v392 = vunpack.c.h.b16 %v383
  %v393 = vunpack.c.l.b16 %v384
  %v394 = vunpack.c.h.b16 %v384
  %v395 = vunpack.c.l.b16 %v385
  %v396 = vunpack.c.h.b16 %v385
  %v397 = vunpack.c.l.b16 %v386
  %v398 = vpack.c.b16 %v391, %v391
  %v399 = vpack.c.b16 %v392, %v392
  %v400 = vpack.c.b16 %v393, %v393
  %v401 = vpack.c.b16 %v394, %v394
  %v402 = vpack.c.b16 %v395, %v395
  %v403 = vpack.c.b16 %v396, %v396
  %v404 = vpack.c.b16 %v397, %v397
  %412 = vst [vmem:[%s3] sm:$0xf] %v398
  %413 = vst [vmem:[%s3 + $0x4] sm:$0xf] %v399
  %414 = vst [vmem:[%s3 + $0x8] sm:$0xf] %v400
  %415 = vst [vmem:[%s3 + $0xc] sm:$0xf] %v401
  %416 = vst [vmem:[%s3 + $0x10] sm:$0xf] %v402
  %417 = vst [vmem:[%s3 + $0x14] sm:$0xf] %v403
  %418 = vst [vmem:[%s3 + $0x18] sm:$0x1] %v404
  // Predicated region
  $region14: #{ppo_forward.8} parent=0 // pred_check
    _
  $region15: #{ppo_forward.8} parent=0 // pred_check_branch
    %420 = sbr.rel (0) target = $region17
  $region16: #{ppo_forward.8} parent=0 // pred_region
    _
  $region17: #{ppo_forward.8} parent=0 // pred_fallthru
    _
  // Predicated region
  $region18: #{ppo_forward.8} parent=0 // pred_check
    _
  $region19: #{ppo_forward.8} parent=0 // pred_check_branch
    %422 = sbr.rel (0) target = $region21
  $region20: #{ppo_forward.8} parent=0 // pred_region
    _
  $region21: #{ppo_forward.8} parent=0 // pred_fallthru
    _

// kernel: ppo_forward.9
$region0: #{ppo_forward.9}
  #allocation0 [shape = 'u32[]', space=smem, size = 0x4, offset = 0x4, fixed_abs, tag = 'smem constant byte address 0x4 - core index']
  #allocation1 [shape = 'u32[144,128]{1,0:T(1,128)}', space=vmem, size = 0x12000, scoped, tag = 'internal scratch']
  #allocation2 [shape = 'f32[1,1]{1,0:T(1,128)S(1)}', space=vmem, size = 0x200, scoped, tag = 'scoped memory for ppo_forward.9']
  %s0 = inlined_call_operand.vmem [shape: bf16[9,2,576], index: 0, kind: input, shape index: {}]
  %s1 = inlined_call_operand.vmem [shape: bf16[576,128], index: 1, kind: input, shape index: {}]
  %s2 = inlined_call_operand.vmem [shape: f32[1,128], index: 2, kind: input, shape index: {}]
  %s3 = inlined_call_operand.vmem [shape: bf16[9,128,256], index: 3, kind: input, shape index: {}]
  %s4 = inlined_call_operand.vmem [shape: f32[1,256], index: 4, kind: input, shape index: {}]
  %s5 = inlined_call_operand.vmem [shape: bf16[256,100], index: 5, kind: input, shape index: {}]
  %s6 = inlined_call_operand.vmem [shape: f32[1,100], index: 6, kind: input, shape index: {}]
  %s7 = inlined_call_operand.vmem [shape: bf16[100,1], index: 7, kind: input, shape index: {}]
  %s8 = inlined_call_operand.<no memory space> [shape: f32[1,1], index: 8, kind: input, shape index: {}]
  %s9 = inlined_call_operand.vmem [shape: bf16[256,100], index: 9, kind: input, shape index: {}]
  %s10 = inlined_call_operand.vmem [shape: f32[1,100], index: 10, kind: input, shape index: {}]
  %s11 = inlined_call_operand.vmem [shape: bf16[100,3], index: 11, kind: input, shape index: {}]
  %s12 = inlined_call_operand.vmem [shape: f32[1,3], index: 12, kind: input, shape index: {}]
  %s13 = inlined_call_operand.vmem [shape: bf16[100,3], index: 13, kind: input, shape index: {}]
  %s14 = inlined_call_operand.vmem [shape: f32[1,3], index: 14, kind: input, shape index: {}]
  %s15 = inlined_call_operand.hbm [shape: f32[2,3], index: 15, kind: output, shape index: {0}]
  %s16 = inlined_call_operand.hbm [shape: f32[2,3], index: 16, kind: output, shape index: {1}]
  %s17 = inlined_call_operand.vmem [shape: f32[2,1], index: 17, kind: output, shape index: {2}]
  %18 = xla_tuple %s15, %s16, %s17
  %s19 = sld [smem:[#allocation0]]
  $region86: #{ppo_forward.9} parent=0
    _
  %s21 = ssub.s32 1, %s19
  %s22 = scalar_select 0, %s21, %s19
  %v23 = vstv %s8
  %24 = vst [vmem:[#allocation2] sm:$0x1] %v23
  $region1: #{ppo_forward.9} parent=0
    #allocation3 [shape = 'u8[1024]{0}', space=vmem, size = 0x400, scoped, tag = 'output window, operand 0, single buffered']
    #allocation4 [shape = 's32[1]{0}', space=sflag, size = 0x4, scoped, tag = 'scoped memory for ppo_forward.9']
    #allocation5 [shape = 'u8[1024]{0}', space=vmem, size = 0x400, scoped, tag = 'output window, operand 1, single buffered']
    #allocation6 [shape = 's32[1]{0}', space=sflag, size = 0x4, scoped, tag = 'scoped memory for ppo_forward.9']
    %25 = vsyncpa [#allocation4], 0
    %26 = vsyncpa [#allocation6], 0
    // Predicated region
    $region2: #{ppo_forward.9} parent=1 // pred_check
      _
    $region3: #{ppo_forward.9} parent=1 // pred_check_branch
      %28 = sbr.rel (0) target = $region5
    $region4: #{ppo_forward.9} parent=1 // pred_region
      _
    $region5: #{ppo_forward.9} parent=1 // pred_fallthru
      _
    // Predicated region
    $region6: #{ppo_forward.9} parent=1 // pred_check
      _
    $region7: #{ppo_forward.9} parent=1 // pred_check_branch
      %30 = sbr.rel (0) target = $region9
    $region8: #{ppo_forward.9} parent=1 // pred_region
      _
    $region9: #{ppo_forward.9} parent=1 // pred_fallthru
      _
    // Predicated region
    $region10: #{ppo_forward.9} parent=1 // pred_check
      _
    $region11: #{ppo_forward.9} parent=1 // pred_check_branch
      %32 = sbr.rel (0) target = $region13
    $region12: #{ppo_forward.9} parent=1 // pred_region
      _
    $region13: #{ppo_forward.9} parent=1 // pred_fallthru
      _
    // Predicated region
    $region14: #{ppo_forward.9} parent=1 // pred_check
      _
    $region15: #{ppo_forward.9} parent=1 // pred_check_branch
      %34 = sbr.rel (0) target = $region17
    $region16: #{ppo_forward.9} parent=1 // pred_region
      _
    $region17: #{ppo_forward.9} parent=1 // pred_fallthru
      _
    // Predicated region
    $region18: #{ppo_forward.9} parent=1 // pred_check
      _
    $region19: #{ppo_forward.9} parent=1 // pred_check_branch
      %36 = sbr.rel (0) target = $region21
    $region20: #{ppo_forward.9} parent=1 // pred_region
      _
    $region21: #{ppo_forward.9} parent=1 // pred_fallthru
      _
    // Predicated region
    $region22: #{ppo_forward.9} parent=1 // pred_check
      _
    $region23: #{ppo_forward.9} parent=1 // pred_check_branch
      %38 = sbr.rel (0) target = $region25
    $region24: #{ppo_forward.9} parent=1 // pred_region
      _
    $region25: #{ppo_forward.9} parent=1 // pred_fallthru
      _
    // Predicated region
    $region26: #{ppo_forward.9} parent=1 // pred_check
      _
    $region27: #{ppo_forward.9} parent=1 // pred_check_branch
      %40 = sbr.rel (0) target = $region29
    $region28: #{ppo_forward.9} parent=1 // pred_region
      _
    $region29: #{ppo_forward.9} parent=1 // pred_fallthru
      _
    // Predicated region
    $region30: #{ppo_forward.9} parent=1 // pred_check
      _
    $region31: #{ppo_forward.9} parent=1 // pred_check_branch
      %42 = sbr.rel (0) target = $region33
    $region32: #{ppo_forward.9} parent=1 // pred_region
      _
    $region33: #{ppo_forward.9} parent=1 // pred_fallthru
      _
    // Predicated region
    $region34: #{ppo_forward.9} parent=1 // pred_check
      _
    $region35: #{ppo_forward.9} parent=1 // pred_check_branch
      %44 = sbr.rel (0) target = $region37
    $region36: #{ppo_forward.9} parent=1 // pred_region
      _
    $region37: #{ppo_forward.9} parent=1 // pred_fallthru
      _
    // Predicated region
    $region38: #{ppo_forward.9} parent=1 // pred_check
      _
    $region39: #{ppo_forward.9} parent=1 // pred_check_branch
      %46 = sbr.rel (0) target = $region41
    $region40: #{ppo_forward.9} parent=1 // pred_region
      _
    $region41: #{ppo_forward.9} parent=1 // pred_fallthru
      _
    // Predicated region
    $region42: #{ppo_forward.9} parent=1 // pred_check
      _
    $region43: #{ppo_forward.9} parent=1 // pred_check_branch
      %48 = sbr.rel (0) target = $region45
    $region44: #{ppo_forward.9} parent=1 // pred_region
      _
    $region45: #{ppo_forward.9} parent=1 // pred_fallthru
      _
    // Predicated region
    $region46: #{ppo_forward.9} parent=1 // pred_check
      _
    $region47: #{ppo_forward.9} parent=1 // pred_check_branch
      %50 = sbr.rel (0) target = $region49
    $region48: #{ppo_forward.9} parent=1 // pred_region
      _
    $region49: #{ppo_forward.9} parent=1 // pred_fallthru
      _
    // Predicated region
    $region50: #{ppo_forward.9} parent=1 // pred_check
      _
    $region51: #{ppo_forward.9} parent=1 // pred_check_branch
      %52 = sbr.rel (0) target = $region53
    $region52: #{ppo_forward.9} parent=1 // pred_region
      _
    $region53: #{ppo_forward.9} parent=1 // pred_fallthru
      _
    // Predicated region
    $region54: #{ppo_forward.9} parent=1 // pred_check
      _
    $region55: #{ppo_forward.9} parent=1 // pred_check_branch
      %54 = sbr.rel (0) target = $region57
    $region56: #{ppo_forward.9} parent=1 // pred_region
      _
    $region57: #{ppo_forward.9} parent=1 // pred_fallthru
      _
    // Predicated region
    $region58: #{ppo_forward.9} parent=1 // pred_check
      _
    $region59: #{ppo_forward.9} parent=1 // pred_check_branch
      %56 = sbr.rel (0) target = $region61
    $region60: #{ppo_forward.9} parent=1 // pred_region
      _
    $region61: #{ppo_forward.9} parent=1 // pred_fallthru
      _
    %v58 = vld [vmem:[%s1] sm:$0xf]
    %v59 = vld [vmem:[%s1 + $0x4] sm:$0xf]
    %v60 = vld [vmem:[%s1 + $0x8] sm:$0xf]
    %v61 = vld [vmem:[%s1 + $0xc] sm:$0xf]
    %v62 = vld [vmem:[%s1 + $0x10] sm:$0xf]
    %v63 = vld [vmem:[%s1 + $0x14] sm:$0xf]
    %v64 = vld [vmem:[%s1 + $0x18] sm:$0xf]
    %v65 = vld [vmem:[%s1 + $0x1c] sm:$0xf]
    %v66 = vld [vmem:[%s1 + $0x20] sm:$0xf]
    %v67 = vld [vmem:[%s1 + $0x24] sm:$0xf]
    %v68 = vld [vmem:[%s1 + $0x28] sm:$0xf]
    %v69 = vld [vmem:[%s1 + $0x2c] sm:$0xf]
    %v70 = vld [vmem:[%s1 + $0x30] sm:$0xf]
    %v71 = vld [vmem:[%s1 + $0x34] sm:$0xf]
    %v72 = vld [vmem:[%s1 + $0x38] sm:$0xf]
    %v73 = vld [vmem:[%s1 + $0x3c] sm:$0xf]
    %v74 = vld [vmem:[%s1 + $0x40] sm:$0xf]
    %v75 = vld [vmem:[%s1 + $0x44] sm:$0xf]
    %v76 = vld [vmem:[%s1 + $0x48] sm:$0xf]
    %v77 = vld [vmem:[%s1 + $0x4c] sm:$0xf]
    %v78 = vld [vmem:[%s1 + $0x50] sm:$0xf]
    %v79 = vld [vmem:[%s1 + $0x54] sm:$0xf]
    %v80 = vld [vmem:[%s1 + $0x58] sm:$0xf]
    %v81 = vld [vmem:[%s1 + $0x5c] sm:$0xf]
    %v82 = vld [vmem:[%s1 + $0x60] sm:$0xf]
    %v83 = vld [vmem:[%s1 + $0x64] sm:$0xf]
    %v84 = vld [vmem:[%s1 + $0x68] sm:$0xf]
    %v85 = vld [vmem:[%s1 + $0x6c] sm:$0xf]
    %v86 = vld [vmem:[%s1 + $0x70] sm:$0xf]
    %v87 = vld [vmem:[%s1 + $0x74] sm:$0xf]
    %v88 = vld [vmem:[%s1 + $0x78] sm:$0xf]
    %v89 = vld [vmem:[%s1 + $0x7c] sm:$0xf]
    %v90 = vld [vmem:[%s1 + $0x80] sm:$0xf]
    %v91 = vld [vmem:[%s1 + $0x84] sm:$0xf]
    %v92 = vld [vmem:[%s1 + $0x88] sm:$0xf]
    %v93 = vld [vmem:[%s1 + $0x8c] sm:$0xf]
    %v94 = vld [vmem:[%s1 + $0x90] sm:$0xf]
    %v95 = vld [vmem:[%s1 + $0x94] sm:$0xf]
    %v96 = vld [vmem:[%s1 + $0x98] sm:$0xf]
    %v97 = vld [vmem:[%s1 + $0x9c] sm:$0xf]
    %v98 = vld [vmem:[%s1 + $0xa0] sm:$0xf]
    %v99 = vld [vmem:[%s1 + $0xa4] sm:$0xf]
    %v100 = vld [vmem:[%s1 + $0xa8] sm:$0xf]
    %v101 = vld [vmem:[%s1 + $0xac] sm:$0xf]
    %v102 = vld [vmem:[%s1 + $0xb0] sm:$0xf]
    %v103 = vld [vmem:[%s1 + $0xb4] sm:$0xf]
    %v104 = vld [vmem:[%s1 + $0xb8] sm:$0xf]
    %v105 = vld [vmem:[%s1 + $0xbc] sm:$0xf]
    %v106 = vld [vmem:[%s1 + $0xc0] sm:$0xf]
    %v107 = vld [vmem:[%s1 + $0xc4] sm:$0xf]
    %v108 = vld [vmem:[%s1 + $0xc8] sm:$0xf]
    %v109 = vld [vmem:[%s1 + $0xcc] sm:$0xf]
    %v110 = vld [vmem:[%s1 + $0xd0] sm:$0xf]
    %v111 = vld [vmem:[%s1 + $0xd4] sm:$0xf]
    %v112 = vld [vmem:[%s1 + $0xd8] sm:$0xf]
    %v113 = vld [vmem:[%s1 + $0xdc] sm:$0xf]
    %v114 = vld [vmem:[%s1 + $0xe0] sm:$0xf]
    %v115 = vld [vmem:[%s1 + $0xe4] sm:$0xf]
    %v116 = vld [vmem:[%s1 + $0xe8] sm:$0xf]
    %v117 = vld [vmem:[%s1 + $0xec] sm:$0xf]
    %v118 = vld [vmem:[%s1 + $0xf0] sm:$0xf]
    %v119 = vld [vmem:[%s1 + $0xf4] sm:$0xf]
    %v120 = vld [vmem:[%s1 + $0xf8] sm:$0xf]
    %v121 = vld [vmem:[%s1 + $0xfc] sm:$0xf]
    %v122 = vld [vmem:[%s1 + $0x100] sm:$0xf]
    %v123 = vld [vmem:[%s1 + $0x104] sm:$0xf]
    %v124 = vld [vmem:[%s1 + $0x108] sm:$0xf]
    %v125 = vld [vmem:[%s1 + $0x10c] sm:$0xf]
    %v126 = vld [vmem:[%s1 + $0x110] sm:$0xf]
    %v127 = vld [vmem:[%s1 + $0x114] sm:$0xf]
    %v128 = vld [vmem:[%s1 + $0x118] sm:$0xf]
    %v129 = vld [vmem:[%s1 + $0x11c] sm:$0xf]
    %v130 = vld [vmem:[%s2] sm:$0x1]
    %v131 = vld [vmem:[%s0] sm:$0x1f]
    %v133 = vlaneseq
    %v134 = vshrl.u32 %v133, 7
    %v135 = vsub.s32 0, %v134
    %v136 = vrot.slane %v130, %v135
    %v139 = vcombine.high %v131, %v131
    %v141 = vunpack.c.l.s4 1966171168
    %v142 = vunpack.c.0.s8 %v141
    %v143 = vlaneseq
    %v144 = vshrl.u32 %v143, 7
    %v145 = vsub.s32 %v142, %v144
    %v146 = vrot.slane %v131, %v145
    %v148 = vunpack.c.l.s4 1966171168
    %v149 = vunpack.c.0.s8 %v148
    %v150 = vlaneseq
    %v151 = vshrl.u32 %v150, 7
    %v152 = vsub.s32 %v149, %v151
    %v153 = vrot.slane %v139, %v152
    %v154 = vcombine.high %v146, %v146
    %v156 = vunpack.c.l.s4 1966171168
    %v157 = vunpack.c.0.s8 %v156
    %v158 = vlaneseq
    %v159 = vshrl.u32 %v158, 7
    %v160 = vsub.s32 %v157, %v159
    %v161 = vrot.slane %v146, %v160
    %v163 = vunpack.c.l.s4 1966171168
    %v164 = vunpack.c.0.s8 %v163
    %v165 = vlaneseq
    %v166 = vshrl.u32 %v165, 7
    %v167 = vsub.s32 %v164, %v166
    %v168 = vrot.slane %v153, %v167
    %v170 = vunpack.c.l.s4 1966171168
    %v171 = vunpack.c.0.s8 %v170
    %v172 = vlaneseq
    %v173 = vshrl.u32 %v172, 7
    %v174 = vsub.s32 %v171, %v173
    %v175 = vrot.slane %v154, %v174
    %v176 = vcombine.high %v161, %v161
    %v177 = vcombine.high %v175, %v175
    %v254 = vunpack.c.l.b16 %v58
    %v255 = vunpack.c.l.b16 %v59
    %v256 = vunpack.c.l.b16 %v60
    %v257 = vunpack.c.l.b16 %v61
    %v258 = vunpack.c.l.b16 %v62
    %v259 = vunpack.c.l.b16 %v63
    %v260 = vunpack.c.l.b16 %v64
    %v261 = vunpack.c.l.b16 %v65
    %v262 = vunpack.c.l.b16 %v66
    %v263 = vunpack.c.l.b16 %v67
    %v264 = vunpack.c.l.b16 %v68
    %v265 = vunpack.c.l.b16 %v69
    %v266 = vunpack.c.l.b16 %v70
    %v267 = vunpack.c.l.b16 %v71
    %v268 = vunpack.c.l.b16 %v72
    %v269 = vunpack.c.l.b16 %v73
    %v270 = vunpack.c.l.b16 %v74
    %v271 = vunpack.c.l.b16 %v75
    %v272 = vunpack.c.l.b16 %v76
    %v273 = vunpack.c.l.b16 %v77
    %v274 = vunpack.c.l.b16 %v78
    %v275 = vunpack.c.l.b16 %v79
    %v276 = vunpack.c.l.b16 %v80
    %v277 = vunpack.c.l.b16 %v81
    %v278 = vunpack.c.l.b16 %v82
    %v279 = vunpack.c.l.b16 %v83
    %v280 = vunpack.c.l.b16 %v84
    %v281 = vunpack.c.l.b16 %v85
    %v282 = vunpack.c.l.b16 %v86
    %v283 = vunpack.c.l.b16 %v87
    %v284 = vunpack.c.l.b16 %v88
    %v285 = vunpack.c.l.b16 %v89
    %v286 = vunpack.c.l.b16 %v90
    %v287 = vunpack.c.l.b16 %v91
    %v288 = vunpack.c.l.b16 %v92
    %v289 = vunpack.c.l.b16 %v93
    %v290 = vunpack.c.l.b16 %v94
    %v291 = vunpack.c.l.b16 %v95
    %v292 = vunpack.c.l.b16 %v96
    %v293 = vunpack.c.l.b16 %v97
    %v294 = vunpack.c.l.b16 %v98
    %v295 = vunpack.c.l.b16 %v99
    %v296 = vunpack.c.l.b16 %v100
    %v297 = vunpack.c.l.b16 %v101
    %v298 = vunpack.c.l.b16 %v102
    %v299 = vunpack.c.l.b16 %v103
    %v300 = vunpack.c.l.b16 %v104
    %v301 = vunpack.c.l.b16 %v105
    %v302 = vunpack.c.l.b16 %v106
    %v303 = vunpack.c.l.b16 %v107
    %v304 = vunpack.c.l.b16 %v108
    %v305 = vunpack.c.l.b16 %v109
    %v306 = vunpack.c.l.b16 %v110
    %v307 = vunpack.c.l.b16 %v111
    %v308 = vunpack.c.l.b16 %v112
    %v309 = vunpack.c.l.b16 %v113
    %v310 = vunpack.c.l.b16 %v114
    %v311 = vunpack.c.l.b16 %v115
    %v312 = vunpack.c.l.b16 %v116
    %v313 = vunpack.c.l.b16 %v117
    %v314 = vunpack.c.l.b16 %v118
    %v315 = vunpack.c.l.b16 %v119
    %v316 = vunpack.c.l.b16 %v120
    %v317 = vunpack.c.l.b16 %v121
    %v318 = vunpack.c.l.b16 %v122
    %v319 = vunpack.c.l.b16 %v123
    %v320 = vunpack.c.l.b16 %v124
    %v321 = vunpack.c.l.b16 %v125
    %v322 = vunpack.c.l.b16 %v126
    %v323 = vunpack.c.l.b16 %v127
    %v324 = vunpack.c.l.b16 %v128
    %v325 = vunpack.c.l.b16 %v129
    %v326 = vpack.c.b16 %v255, %v254
    %v327 = vpack.c.b16 %v257, %v256
    %v328 = vpack.c.b16 %v259, %v258
    %v329 = vpack.c.b16 %v261, %v260
    %v330 = vpack.c.b16 %v263, %v262
    %v331 = vpack.c.b16 %v265, %v264
    %v332 = vpack.c.b16 %v267, %v266
    %v333 = vpack.c.b16 %v269, %v268
    %v334 = vpack.c.b16 %v271, %v270
    %v335 = vpack.c.b16 %v273, %v272
    %v336 = vpack.c.b16 %v275, %v274
    %v337 = vpack.c.b16 %v277, %v276
    %v338 = vpack.c.b16 %v279, %v278
    %v339 = vpack.c.b16 %v281, %v280
    %v340 = vpack.c.b16 %v283, %v282
    %v341 = vpack.c.b16 %v285, %v284
    %v342 = vpack.c.b16 %v287, %v286
    %v343 = vpack.c.b16 %v289, %v288
    %v344 = vpack.c.b16 %v291, %v290
    %v345 = vpack.c.b16 %v293, %v292
    %v346 = vpack.c.b16 %v295, %v294
    %v347 = vpack.c.b16 %v297, %v296
    %v348 = vpack.c.b16 %v299, %v298
    %v349 = vpack.c.b16 %v301, %v300
    %v350 = vpack.c.b16 %v303, %v302
    %v351 = vpack.c.b16 %v305, %v304
    %v352 = vpack.c.b16 %v307, %v306
    %v353 = vpack.c.b16 %v309, %v308
    %v354 = vpack.c.b16 %v311, %v310
    %v355 = vpack.c.b16 %v313, %v312
    %v356 = vpack.c.b16 %v315, %v314
    %v357 = vpack.c.b16 %v317, %v316
    %v358 = vpack.c.b16 %v319, %v318
    %v359 = vpack.c.b16 %v321, %v320
    %v360 = vpack.c.b16 %v323, %v322
    %v361 = vpack.c.b16 %v325, %v324
    %vm398 = vcmask 523264
    %v400 = vsel %vm398, %v168, 0
    %402 = vmatprep.subr.bf16.mxu0 0
    %403 = vmatpush1.bf16.msra.mxu0 %v326
    %404 = vmatprep.subr.bf16.mxu0 0
    %405 = vmatpush1.bf16.msra.mxu0 %v327
    %406 = vmatprep.subr.bf16.mxu0 0
    %407 = vmatpush1.bf16.msra.mxu0 %v328
    %408 = vmatprep.subr.bf16.mxu0 0
    %409 = vmatpush1.bf16.msra.mxu0 %v329
    %410 = vmatprep.subr.bf16.mxu0 0
    %411 = vmatpush1.bf16.msra.mxu0 %v330
    %412 = vmatprep.subr.bf16.mxu0 0
    %413 = vmatpush1.bf16.msra.mxu0 %v331
    %414 = vmatprep.subr.bf16.mxu0 0
    %415 = vmatpush1.bf16.msra.mxu0 %v332
    %416 = vmatprep.subr.bf16.mxu0 0
    %417 = vmatpush1.bf16.msra.mxu0 %v333
    %418 = vmatprep.subr.bf16.mxu0 0
    %419 = vmatpush1.bf16.msra.mxu0 %v334
    %420 = vmatprep.subr.bf16.mxu0 0
    %421 = vmatpush1.bf16.msra.mxu0 %v335
    %422 = vmatprep.subr.bf16.mxu0 0
    %423 = vmatpush1.bf16.msra.mxu0 %v336
    %424 = vmatprep.subr.bf16.mxu0 0
    %425 = vmatpush1.bf16.msra.mxu0 %v337
    %426 = vmatprep.subr.bf16.mxu0 0
    %427 = vmatpush1.bf16.msra.mxu0 %v338
    %428 = vmatprep.subr.bf16.mxu0 0
    %429 = vmatpush1.bf16.msra.mxu0 %v339
    %430 = vmatprep.subr.bf16.mxu0 0
    %431 = vmatpush1.bf16.msra.mxu0 %v340
    %432 = vmatprep.subr.bf16.mxu0 0
    %433 = vmatpush1.bf16.msra.mxu0 %v341
    %434 = vmatprep.mubr.bf16.mxu0 %v175
    %435 = vmatmul.mubr.bf16.gmra.mrb[0].mxu0 %v161
    %v436 = vpop.f32.mrb[0].mxu0
    %v437 = vadd.f32 %v136, %v436
    %v438 = vpop.f32.mrb[0].mxu0
    %v439 = vpop.f32.mrb[0].mxu0
    %v440 = vpop.f32.mrb[0].mxu0
    %441 = vdwg.mxu0
    %442 = vmatprep.subr.bf16.mxu0 0
    %443 = vmatpush1.bf16.msra.mxu0 %v342
    %444 = vmatprep.subr.bf16.mxu0 0
    %445 = vmatpush1.bf16.msra.mxu0 %v343
    %446 = vmatprep.subr.bf16.mxu0 0
    %447 = vmatpush1.bf16.msra.mxu0 %v344
    %448 = vmatprep.subr.bf16.mxu0 0
    %449 = vmatpush1.bf16.msra.mxu0 %v345
    %450 = vmatprep.subr.bf16.mxu0 0
    %451 = vmatpush1.bf16.msra.mxu0 %v346
    %452 = vmatprep.subr.bf16.mxu0 0
    %453 = vmatpush1.bf16.msra.mxu0 %v347
    %454 = vmatprep.subr.bf16.mxu0 0
    %455 = vmatpush1.bf16.msra.mxu0 %v348
    %456 = vmatprep.subr.bf16.mxu0 0
    %457 = vmatpush1.bf16.msra.mxu0 %v349
    %458 = vmatprep.subr.bf16.mxu0 0
    %459 = vmatpush1.bf16.msra.mxu0 %v350
    %460 = vmatprep.subr.bf16.mxu0 0
    %461 = vmatpush1.bf16.msra.mxu0 %v351
    %462 = vmatprep.subr.bf16.mxu0 0
    %463 = vmatpush1.bf16.msra.mxu0 %v352
    %464 = vmatprep.subr.bf16.mxu0 0
    %465 = vmatpush1.bf16.msra.mxu0 %v353
    %466 = vmatprep.subr.bf16.mxu0 0
    %467 = vmatpush1.bf16.msra.mxu0 %v354
    %468 = vmatprep.subr.bf16.mxu0 0
    %469 = vmatpush1.bf16.msra.mxu0 %v355
    %470 = vmatprep.subr.bf16.mxu0 0
    %471 = vmatpush1.bf16.msra.mxu0 %v356
    %472 = vmatprep.subr.bf16.mxu0 0
    %473 = vmatpush1.bf16.msra.mxu0 %v357
    %474 = vmatprep.mubr.bf16.mxu0 %v177
    %475 = vmatmul.mubr.bf16.gmra.mrb[0].mxu0 %v176
    %v476 = vpop.f32.mrb[0].mxu0
    %v477 = vadd.f32 %v437, %v476
    %v478 = vpop.f32.mrb[0].mxu0
    %v479 = vpop.f32.mrb[0].mxu0
    %v480 = vpop.f32.mrb[0].mxu0
    %481 = vdwg.mxu0
    %482 = vmatprep.subr.bf16.mxu0 0
    %483 = vmatpush1.bf16.msra.mxu0 %v358
    %484 = vmatprep.subr.bf16.mxu0 0
    %485 = vmatpush1.bf16.msra.mxu0 %v359
    %486 = vmatprep.subr.bf16.mxu0 0
    %487 = vmatpush1.bf16.msra.mxu0 %v360
    %488 = vmatprep.subr.bf16.mxu0 0
    %489 = vmatpush1.bf16.msra.mxu0 %v361
    %490 = vmatprep.subr.bf16.mxu0 0
    %491 = vmatpush1.bf16.msra.mxu0 0
    %492 = vmatprep.subr.bf16.mxu0 0
    %493 = vmatpush1.bf16.msra.mxu0 0
    %494 = vmatprep.subr.bf16.mxu0 0
    %495 = vmatpush1.bf16.msra.mxu0 0
    %496 = vmatprep.subr.bf16.mxu0 0
    %497 = vmatpush1.bf16.msra.mxu0 0
    %498 = vmatprep.subr.bf16.mxu0 0
    %499 = vmatpush1.bf16.msra.mxu0 0
    %500 = vmatprep.subr.bf16.mxu0 0
    %501 = vmatpush1.bf16.msra.mxu0 0
    %502 = vmatprep.subr.bf16.mxu0 0
    %503 = vmatpush1.bf16.msra.mxu0 0
    %504 = vmatprep.subr.bf16.mxu0 0
    %505 = vmatpush1.bf16.msra.mxu0 0
    %506 = vmatprep.subr.bf16.mxu0 0
    %507 = vmatpush1.bf16.msra.mxu0 0
    %508 = vmatprep.subr.bf16.mxu0 0
    %509 = vmatpush1.bf16.msra.mxu0 0
    %510 = vmatprep.subr.bf16.mxu0 0
    %511 = vmatpush1.bf16.msra.mxu0 0
    %512 = vmatprep.subr.bf16.mxu0 0
    %513 = vmatpush1.bf16.msra.mxu0 0
    %514 = vmatprep.mubr.bf16.mxu0 0
    %515 = vmatmul.mubr.bf16.gmra.mrb[0].mxu0 %v400
    %v516 = vpop.f32.mrb[0].mxu0
    %v517 = vadd.f32 %v477, %v516
    %v518 = vpop.f32.mrb[0].mxu0
    %v519 = vpop.f32.mrb[0].mxu0
    %v520 = vpop.f32.mrb[0].mxu0
    %521 = vdwg.mxu0
    %v522 = vmax.f32 %v517, 0.0
    %v523 = vpack.c.bf16 %v522, %v522
    %v524 = vld [vmem:[%s3] sm:$0xff]
    %v525 = vld [vmem:[%s3 + $0x8] sm:$0xff]
    %v526 = vld [vmem:[%s3 + $0x10] sm:$0xff]
    %v527 = vld [vmem:[%s3 + $0x18] sm:$0xff]
    %v528 = vld [vmem:[%s3 + $0x20] sm:$0xff]
    %v529 = vld [vmem:[%s3 + $0x28] sm:$0xff]
    %v530 = vld [vmem:[%s3 + $0x30] sm:$0xff]
    %v531 = vld [vmem:[%s3 + $0x38] sm:$0xff]
    %v532 = vld [vmem:[%s3 + $0x40] sm:$0xff]
    %v533 = vld [vmem:[%s3 + $0x48] sm:$0xff]
    %v534 = vld [vmem:[%s3 + $0x50] sm:$0xff]
    %v535 = vld [vmem:[%s3 + $0x58] sm:$0xff]
    %v536 = vld [vmem:[%s3 + $0x60] sm:$0xff]
    %v537 = vld [vmem:[%s3 + $0x68] sm:$0xff]
    %v538 = vld [vmem:[%s3 + $0x70] sm:$0xff]
    %v539 = vld [vmem:[%s3 + $0x78] sm:$0xff]
    %s540 = scalar_lea.vmem %s0, 5
    %v541 = vld [vmem:[%s540] sm:$0x1f]
    %v543 = vcombine.high %v541, %v541
    %v545 = vunpack.c.l.s4 1966171168
    %v546 = vunpack.c.0.s8 %v545
    %v547 = vlaneseq
    %v548 = vshrl.u32 %v547, 7
    %v549 = vsub.s32 %v546, %v548
    %v550 = vrot.slane %v541, %v549
    %v552 = vunpack.c.l.s4 1966171168
    %v553 = vunpack.c.0.s8 %v552
    %v554 = vlaneseq
    %v555 = vshrl.u32 %v554, 7
    %v556 = vsub.s32 %v553, %v555
    %v557 = vrot.slane %v543, %v556
    %v558 = vcombine.high %v550, %v550
    %v560 = vunpack.c.l.s4 1966171168
    %v561 = vunpack.c.0.s8 %v560
    %v562 = vlaneseq
    %v563 = vshrl.u32 %v562, 7
    %v564 = vsub.s32 %v561, %v563
    %v565 = vrot.slane %v550, %v564
    %v567 = vunpack.c.l.s4 1966171168
    %v568 = vunpack.c.0.s8 %v567
    %v569 = vlaneseq
    %v570 = vshrl.u32 %v569, 7
    %v571 = vsub.s32 %v568, %v570
    %v572 = vrot.slane %v557, %v571
    %v574 = vunpack.c.l.s4 1966171168
    %v575 = vunpack.c.0.s8 %v574
    %v576 = vlaneseq
    %v577 = vshrl.u32 %v576, 7
    %v578 = vsub.s32 %v575, %v577
    %v579 = vrot.slane %v558, %v578
    %v580 = vcombine.high %v565, %v565
    %v581 = vcombine.high %v579, %v579
    %v587 = vsel %vm398, %v572, 0
    %589 = vmatprep.subr.bf16.mxu0 0
    %590 = vmatpush1.bf16.msra.mxu0 %v326
    %591 = vmatprep.subr.bf16.mxu0 0
    %592 = vmatpush1.bf16.msra.mxu0 %v327
    %593 = vmatprep.subr.bf16.mxu0 0
    %594 = vmatpush1.bf16.msra.mxu0 %v328
    %595 = vmatprep.subr.bf16.mxu0 0
    %596 = vmatpush1.bf16.msra.mxu0 %v329
    %597 = vmatprep.subr.bf16.mxu0 0
    %598 = vmatpush1.bf16.msra.mxu0 %v330
    %599 = vmatprep.subr.bf16.mxu0 0
    %600 = vmatpush1.bf16.msra.mxu0 %v331
    %601 = vmatprep.subr.bf16.mxu0 0
    %602 = vmatpush1.bf16.msra.mxu0 %v332
    %603 = vmatprep.subr.bf16.mxu0 0
    %604 = vmatpush1.bf16.msra.mxu0 %v333
    %605 = vmatprep.subr.bf16.mxu0 0
    %606 = vmatpush1.bf16.msra.mxu0 %v334
    %607 = vmatprep.subr.bf16.mxu0 0
    %608 = vmatpush1.bf16.msra.mxu0 %v335
    %609 = vmatprep.subr.bf16.mxu0 0
    %610 = vmatpush1.bf16.msra.mxu0 %v336
    %611 = vmatprep.subr.bf16.mxu0 0
    %612 = vmatpush1.bf16.msra.mxu0 %v337
    %613 = vmatprep.subr.bf16.mxu0 0
    %614 = vmatpush1.bf16.msra.mxu0 %v338
    %615 = vmatprep.subr.bf16.mxu0 0
    %616 = vmatpush1.bf16.msra.mxu0 %v339
    %617 = vmatprep.subr.bf16.mxu0 0
    %618 = vmatpush1.bf16.msra.mxu0 %v340
    %619 = vmatprep.subr.bf16.mxu0 0
    %620 = vmatpush1.bf16.msra.mxu0 %v341
    %621 = vmatprep.mubr.bf16.mxu0 %v579
    %622 = vmatmul.mubr.bf16.gmra.mrb[0].mxu0 %v565
    %v623 = vpop.f32.mrb[0].mxu0
    %v624 = vadd.f32 %v136, %v623
    %v625 = vpop.f32.mrb[0].mxu0
    %v626 = vpop.f32.mrb[0].mxu0
    %v627 = vpop.f32.mrb[0].mxu0
    %628 = vdwg.mxu0
    %629 = vmatprep.subr.bf16.mxu0 0
    %630 = vmatpush1.bf16.msra.mxu0 %v342
    %631 = vmatprep.subr.bf16.mxu0 0
    %632 = vmatpush1.bf16.msra.mxu0 %v343
    %633 = vmatprep.subr.bf16.mxu0 0
    %634 = vmatpush1.bf16.msra.mxu0 %v344
    %635 = vmatprep.subr.bf16.mxu0 0
    %636 = vmatpush1.bf16.msra.mxu0 %v345
    %637 = vmatprep.subr.bf16.mxu0 0
    %638 = vmatpush1.bf16.msra.mxu0 %v346
    %639 = vmatprep.subr.bf16.mxu0 0
    %640 = vmatpush1.bf16.msra.mxu0 %v347
    %641 = vmatprep.subr.bf16.mxu0 0
    %642 = vmatpush1.bf16.msra.mxu0 %v348
    %643 = vmatprep.subr.bf16.mxu0 0
    %644 = vmatpush1.bf16.msra.mxu0 %v349
    %645 = vmatprep.subr.bf16.mxu0 0
    %646 = vmatpush1.bf16.msra.mxu0 %v350
    %647 = vmatprep.subr.bf16.mxu0 0
    %648 = vmatpush1.bf16.msra.mxu0 %v351
    %649 = vmatprep.subr.bf16.mxu0 0
    %650 = vmatpush1.bf16.msra.mxu0 %v352
    %651 = vmatprep.subr.bf16.mxu0 0
    %652 = vmatpush1.bf16.msra.mxu0 %v353
    %653 = vmatprep.subr.bf16.mxu0 0
    %654 = vmatpush1.bf16.msra.mxu0 %v354
    %655 = vmatprep.subr.bf16.mxu0 0
    %656 = vmatpush1.bf16.msra.mxu0 %v355
    %657 = vmatprep.subr.bf16.mxu0 0
    %658 = vmatpush1.bf16.msra.mxu0 %v356
    %659 = vmatprep.subr.bf16.mxu0 0
    %660 = vmatpush1.bf16.msra.mxu0 %v357
    %661 = vmatprep.mubr.bf16.mxu0 %v581
    %662 = vmatmul.mubr.bf16.gmra.mrb[0].mxu0 %v580
    %v663 = vpop.f32.mrb[0].mxu0
    %v664 = vadd.f32 %v624, %v663
    %v665 = vpop.f32.mrb[0].mxu0
    %v666 = vpop.f32.mrb[0].mxu0
    %v667 = vpop.f32.mrb[0].mxu0
    %668 = vdwg.mxu0
    %669 = vmatprep.subr.bf16.mxu0 0
    %670 = vmatpush1.bf16.msra.mxu0 %v358
    %671 = vmatprep.subr.bf16.mxu0 0
    %672 = vmatpush1.bf16.msra.mxu0 %v359
    %673 = vmatprep.subr.bf16.mxu0 0
    %674 = vmatpush1.bf16.msra.mxu0 %v360
    %675 = vmatprep.subr.bf16.mxu0 0
    %676 = vmatpush1.bf16.msra.mxu0 %v361
    %677 = vmatprep.subr.bf16.mxu0 0
    %678 = vmatpush1.bf16.msra.mxu0 0
    %679 = vmatprep.subr.bf16.mxu0 0
    %680 = vmatpush1.bf16.msra.mxu0 0
    %681 = vmatprep.subr.bf16.mxu0 0
    %682 = vmatpush1.bf16.msra.mxu0 0
    %683 = vmatprep.subr.bf16.mxu0 0
    %684 = vmatpush1.bf16.msra.mxu0 0
    %685 = vmatprep.subr.bf16.mxu0 0
    %686 = vmatpush1.bf16.msra.mxu0 0
    %687 = vmatprep.subr.bf16.mxu0 0
    %688 = vmatpush1.bf16.msra.mxu0 0
    %689 = vmatprep.subr.bf16.mxu0 0
    %690 = vmatpush1.bf16.msra.mxu0 0
    %691 = vmatprep.subr.bf16.mxu0 0
    %692 = vmatpush1.bf16.msra.mxu0 0
    %693 = vmatprep.subr.bf16.mxu0 0
    %694 = vmatpush1.bf16.msra.mxu0 0
    %695 = vmatprep.subr.bf16.mxu0 0
    %696 = vmatpush1.bf16.msra.mxu0 0
    %697 = vmatprep.subr.bf16.mxu0 0
    %698 = vmatpush1.bf16.msra.mxu0 0
    %699 = vmatprep.subr.bf16.mxu0 0
    %700 = vmatpush1.bf16.msra.mxu0 0
    %701 = vmatprep.mubr.bf16.mxu0 0
    %702 = vmatmul.mubr.bf16.gmra.mrb[0].mxu0 %v587
    %v703 = vpop.f32.mrb[0].mxu0
    %v704 = vadd.f32 %v664, %v703
    %v705 = vpop.f32.mrb[0].mxu0
    %v706 = vpop.f32.mrb[0].mxu0
    %v707 = vpop.f32.mrb[0].mxu0
    %708 = vdwg.mxu0
    %v709 = vmax.f32 %v704, 0.0
    %v710 = vpack.c.bf16 %v709, %v709
    %s711 = scalar_lea.vmem %s3, 128
    %v712 = vld [vmem:[%s711] sm:$0xff]
    %v713 = vld [vmem:[%s711 + $0x8] sm:$0xff]
    %v714 = vld [vmem:[%s711 + $0x10] sm:$0xff]
    %v715 = vld [vmem:[%s711 + $0x18] sm:$0xff]
    %v716 = vld [vmem:[%s711 + $0x20] sm:$0xff]
    %v717 = vld [vmem:[%s711 + $0x28] sm:$0xff]
    %v718 = vld [vmem:[%s711 + $0x30] sm:$0xff]
    %v719 = vld [vmem:[%s711 + $0x38] sm:$0xff]
    %v720 = vld [vmem:[%s711 + $0x40] sm:$0xff]
    %v721 = vld [vmem:[%s711 + $0x48] sm:$0xff]
    %v722 = vld [vmem:[%s711 + $0x50] sm:$0xff]
    %v723 = vld [vmem:[%s711 + $0x58] sm:$0xff]
    %v724 = vld [vmem:[%s711 + $0x60] sm:$0xff]
    %v725 = vld [vmem:[%s711 + $0x68] sm:$0xff]
    %v726 = vld [vmem:[%s711 + $0x70] sm:$0xff]
    %v727 = vld [vmem:[%s711 + $0x78] sm:$0xff]
    %v744 = vunpack.c.l.b16 %v712
    %v745 = vunpack.c.h.b16 %v712
    %v746 = vunpack.c.l.b16 %v713
    %v747 = vunpack.c.h.b16 %v713
    %v748 = vunpack.c.l.b16 %v714
    %v749 = vunpack.c.h.b16 %v714
    %v750 = vunpack.c.l.b16 %v715
    %v751 = vunpack.c.h.b16 %v715
    %v752 = vunpack.c.l.b16 %v716
    %v753 = vunpack.c.h.b16 %v716
    %v754 = vunpack.c.l.b16 %v717
    %v755 = vunpack.c.h.b16 %v717
    %v756 = vunpack.c.l.b16 %v718
    %v757 = vunpack.c.h.b16 %v718
    %v758 = vunpack.c.l.b16 %v719
    %v759 = vunpack.c.h.b16 %v719
    %v760 = vunpack.c.l.b16 %v720
    %v761 = vunpack.c.h.b16 %v720
    %v762 = vunpack.c.l.b16 %v721
    %v763 = vunpack.c.h.b16 %v721
    %v764 = vunpack.c.l.b16 %v722
    %v765 = vunpack.c.h.b16 %v722
    %v766 = vunpack.c.l.b16 %v723
    %v767 = vunpack.c.h.b16 %v723
    %v768 = vunpack.c.l.b16 %v724
    %v769 = vunpack.c.h.b16 %v724
    %v770 = vunpack.c.l.b16 %v725
    %v771 = vunpack.c.h.b16 %v725
    %v772 = vunpack.c.l.b16 %v726
    %v773 = vunpack.c.h.b16 %v726
    %v774 = vunpack.c.l.b16 %v727
    %v775 = vunpack.c.h.b16 %v727
    %v776 = vpack.c.b16 %v746, %v744
    %v777 = vpack.c.b16 %v747, %v745
    %v778 = vpack.c.b16 %v750, %v748
    %v779 = vpack.c.b16 %v751, %v749
    %v780 = vpack.c.b16 %v754, %v752
    %v781 = vpack.c.b16 %v755, %v753
    %v782 = vpack.c.b16 %v758, %v756
    %v783 = vpack.c.b16 %v759, %v757
    %v784 = vpack.c.b16 %v762, %v760
    %v785 = vpack.c.b16 %v763, %v761
    %v786 = vpack.c.b16 %v766, %v764
    %v787 = vpack.c.b16 %v767, %v765
    %v788 = vpack.c.b16 %v770, %v768
    %v789 = vpack.c.b16 %v771, %v769
    %v790 = vpack.c.b16 %v774, %v772
    %v791 = vpack.c.b16 %v775, %v773
    %808 = vmatprep.subr.bf16.mxu0 %v777
    %809 = vmatpush1.bf16.msra.mxu0 %v776
    %810 = vmatprep.subr.bf16.mxu0 %v779
    %811 = vmatpush1.bf16.msra.mxu0 %v778
    %812 = vmatprep.subr.bf16.mxu0 %v781
    %813 = vmatpush1.bf16.msra.mxu0 %v780
    %814 = vmatprep.subr.bf16.mxu0 %v783
    %815 = vmatpush1.bf16.msra.mxu0 %v782
    %816 = vmatprep.subr.bf16.mxu0 %v785
    %817 = vmatpush1.bf16.msra.mxu0 %v784
    %818 = vmatprep.subr.bf16.mxu0 %v787
    %819 = vmatpush1.bf16.msra.mxu0 %v786
    %820 = vmatprep.subr.bf16.mxu0 %v789
    %821 = vmatpush1.bf16.msra.mxu0 %v788
    %822 = vmatprep.subr.bf16.mxu0 %v791
    %823 = vmatpush1.bf16.msra.mxu0 %v790
    %824 = vmatprep.subr.bf16.mxu0 0
    %825 = vmatpush1.bf16.msra.mxu0 0
    %826 = vmatprep.subr.bf16.mxu0 0
    %827 = vmatpush1.bf16.msra.mxu0 0
    %828 = vmatprep.subr.bf16.mxu0 0
    %829 = vmatpush1.bf16.msra.mxu0 0
    %830 = vmatprep.subr.bf16.mxu0 0
    %831 = vmatpush1.bf16.msra.mxu0 0
    %832 = vmatprep.subr.bf16.mxu0 0
    %833 = vmatpush1.bf16.msra.mxu0 0
    %834 = vmatprep.subr.bf16.mxu0 0
    %835 = vmatpush1.bf16.msra.mxu0 0
    %836 = vmatprep.subr.bf16.mxu0 0
    %837 = vmatpush1.bf16.msra.mxu0 0
    %838 = vmatprep.subr.bf16.mxu0 0
    %839 = vmatpush1.bf16.msra.mxu0 0
    %840 = vmatprep.mubr.bf16.mxu0 0
    %841 = vmatmul.mubr.bf16.gmra.mrb[0].mxu0 %v710
    %v842 = vpop.f32.mrb[0].mxu0
    %v843 = vadd.f32 0.0, %v842
    %v844 = vpop.f32.mrb[0].mxu0
    %v845 = vadd.f32 0.0, %v844
    %v846 = vpop.f32.mrb[0].mxu0
    %v847 = vpop.f32.mrb[0].mxu0
    %848 = vdwg.mxu0
    %v865 = vunpack.c.l.b16 %v524
    %v866 = vunpack.c.h.b16 %v524
    %v867 = vunpack.c.l.b16 %v525
    %v868 = vunpack.c.h.b16 %v525
    %v869 = vunpack.c.l.b16 %v526
    %v870 = vunpack.c.h.b16 %v526
    %v871 = vunpack.c.l.b16 %v527
    %v872 = vunpack.c.h.b16 %v527
    %v873 = vunpack.c.l.b16 %v528
    %v874 = vunpack.c.h.b16 %v528
    %v875 = vunpack.c.l.b16 %v529
    %v876 = vunpack.c.h.b16 %v529
    %v877 = vunpack.c.l.b16 %v530
    %v878 = vunpack.c.h.b16 %v530
    %v879 = vunpack.c.l.b16 %v531
    %v880 = vunpack.c.h.b16 %v531
    %v881 = vunpack.c.l.b16 %v532
    %v882 = vunpack.c.h.b16 %v532
    %v883 = vunpack.c.l.b16 %v533
    %v884 = vunpack.c.h.b16 %v533
    %v885 = vunpack.c.l.b16 %v534
    %v886 = vunpack.c.h.b16 %v534
    %v887 = vunpack.c.l.b16 %v535
    %v888 = vunpack.c.h.b16 %v535
    %v889 = vunpack.c.l.b16 %v536
    %v890 = vunpack.c.h.b16 %v536
    %v891 = vunpack.c.l.b16 %v537
    %v892 = vunpack.c.h.b16 %v537
    %v893 = vunpack.c.l.b16 %v538
    %v894 = vunpack.c.h.b16 %v538
    %v895 = vunpack.c.l.b16 %v539
    %v896 = vunpack.c.h.b16 %v539
    %v897 = vpack.c.b16 %v867, %v865
    %v898 = vpack.c.b16 %v868, %v866
    %v899 = vpack.c.b16 %v871, %v869
    %v900 = vpack.c.b16 %v872, %v870
    %v901 = vpack.c.b16 %v875, %v873
    %v902 = vpack.c.b16 %v876, %v874
    %v903 = vpack.c.b16 %v879, %v877
    %v904 = vpack.c.b16 %v880, %v878
    %v905 = vpack.c.b16 %v883, %v881
    %v906 = vpack.c.b16 %v884, %v882
    %v907 = vpack.c.b16 %v887, %v885
    %v908 = vpack.c.b16 %v888, %v886
    %v909 = vpack.c.b16 %v891, %v889
    %v910 = vpack.c.b16 %v892, %v890
    %v911 = vpack.c.b16 %v895, %v893
    %v912 = vpack.c.b16 %v896, %v894
    %929 = vmatprep.subr.bf16.mxu0 %v898
    %930 = vmatpush1.bf16.msra.mxu0 %v897
    %931 = vmatprep.subr.bf16.mxu0 %v900
    %932 = vmatpush1.bf16.msra.mxu0 %v899
    %933 = vmatprep.subr.bf16.mxu0 %v902
    %934 = vmatpush1.bf16.msra.mxu0 %v901
    %935 = vmatprep.subr.bf16.mxu0 %v904
    %936 = vmatpush1.bf16.msra.mxu0 %v903
    %937 = vmatprep.subr.bf16.mxu0 %v906
    %938 = vmatpush1.bf16.msra.mxu0 %v905
    %939 = vmatprep.subr.bf16.mxu0 %v908
    %940 = vmatpush1.bf16.msra.mxu0 %v907
    %941 = vmatprep.subr.bf16.mxu0 %v910
    %942 = vmatpush1.bf16.msra.mxu0 %v909
    %943 = vmatprep.subr.bf16.mxu0 %v912
    %944 = vmatpush1.bf16.msra.mxu0 %v911
    %945 = vmatprep.subr.bf16.mxu0 0
    %946 = vmatpush1.bf16.msra.mxu0 0
    %947 = vmatprep.subr.bf16.mxu0 0
    %948 = vmatpush1.bf16.msra.mxu0 0
    %949 = vmatprep.subr.bf16.mxu0 0
    %950 = vmatpush1.bf16.msra.mxu0 0
    %951 = vmatprep.subr.bf16.mxu0 0
    %952 = vmatpush1.bf16.msra.mxu0 0
    %953 = vmatprep.subr.bf16.mxu0 0
    %954 = vmatpush1.bf16.msra.mxu0 0
    %955 = vmatprep.subr.bf16.mxu0 0
    %956 = vmatpush1.bf16.msra.mxu0 0
    %957 = vmatprep.subr.bf16.mxu0 0
    %958 = vmatpush1.bf16.msra.mxu0 0
    %959 = vmatprep.subr.bf16.mxu0 0
    %960 = vmatpush1.bf16.msra.mxu0 0
    %961 = vmatprep.mubr.bf16.mxu0 0
    %962 = vmatmul.mubr.bf16.gmra.mrb[0].mxu0 %v523
    %v963 = vpop.f32.mrb[0].mxu0
    %v964 = vadd.f32 %v843, %v963
    %v965 = vpop.f32.mrb[0].mxu0
    %v966 = vadd.f32 %v845, %v965
    %v967 = vpop.f32.mrb[0].mxu0
    %v968 = vpop.f32.mrb[0].mxu0
    %969 = vdwg.mxu0
    %s970 = scalar_lea.vmem %s0, 10
    %v971 = vld [vmem:[%s970] sm:$0x1f]
    %v973 = vcombine.high %v971, %v971
    %v975 = vunpack.c.l.s4 1966171168
    %v976 = vunpack.c.0.s8 %v975
    %v977 = vlaneseq
    %v978 = vshrl.u32 %v977, 7
    %v979 = vsub.s32 %v976, %v978
    %v980 = vrot.slane %v971, %v979
    %v982 = vunpack.c.l.s4 1966171168
    %v983 = vunpack.c.0.s8 %v982
    %v984 = vlaneseq
    %v985 = vshrl.u32 %v984, 7
    %v986 = vsub.s32 %v983, %v985
    %v987 = vrot.slane %v973, %v986
    %v988 = vcombine.high %v980, %v980
    %v990 = vunpack.c.l.s4 1966171168
    %v991 = vunpack.c.0.s8 %v990
    %v992 = vlaneseq
    %v993 = vshrl.u32 %v992, 7
    %v994 = vsub.s32 %v991, %v993
    %v995 = vrot.slane %v980, %v994
    %v997 = vunpack.c.l.s4 1966171168
    %v998 = vunpack.c.0.s8 %v997
    %v999 = vlaneseq
    %v1000 = vshrl.u32 %v999, 7
    %v1001 = vsub.s32 %v998, %v1000
    %v1002 = vrot.slane %v987, %v1001
    %v1004 = vunpack.c.l.s4 1966171168
    %v1005 = vunpack.c.0.s8 %v1004
    %v1006 = vlaneseq
    %v1007 = vshrl.u32 %v1006, 7
    %v1008 = vsub.s32 %v1005, %v1007
    %v1009 = vrot.slane %v988, %v1008
    %v1010 = vcombine.high %v995, %v995
    %v1011 = vcombine.high %v1009, %v1009
    %v1017 = vsel %vm398, %v1002, 0
    %1019 = vmatprep.subr.bf16.mxu0 0
    %1020 = vmatpush1.bf16.msra.mxu0 %v326
    %1021 = vmatprep.subr.bf16.mxu0 0
    %1022 = vmatpush1.bf16.msra.mxu0 %v327
    %1023 = vmatprep.subr.bf16.mxu0 0
    %1024 = vmatpush1.bf16.msra.mxu0 %v328
    %1025 = vmatprep.subr.bf16.mxu0 0
    %1026 = vmatpush1.bf16.msra.mxu0 %v329
    %1027 = vmatprep.subr.bf16.mxu0 0
    %1028 = vmatpush1.bf16.msra.mxu0 %v330
    %1029 = vmatprep.subr.bf16.mxu0 0
    %1030 = vmatpush1.bf16.msra.mxu0 %v331
    %1031 = vmatprep.subr.bf16.mxu0 0
    %1032 = vmatpush1.bf16.msra.mxu0 %v332
    %1033 = vmatprep.subr.bf16.mxu0 0
    %1034 = vmatpush1.bf16.msra.mxu0 %v333
    %1035 = vmatprep.subr.bf16.mxu0 0
    %1036 = vmatpush1.bf16.msra.mxu0 %v334
    %1037 = vmatprep.subr.bf16.mxu0 0
    %1038 = vmatpush1.bf16.msra.mxu0 %v335
    %1039 = vmatprep.subr.bf16.mxu0 0
    %1040 = vmatpush1.bf16.msra.mxu0 %v336
    %1041 = vmatprep.subr.bf16.mxu0 0
    %1042 = vmatpush1.bf16.msra.mxu0 %v337
    %1043 = vmatprep.subr.bf16.mxu0 0
    %1044 = vmatpush1.bf16.msra.mxu0 %v338
    %1045 = vmatprep.subr.bf16.mxu0 0
    %1046 = vmatpush1.bf16.msra.mxu0 %v339
    %1047 = vmatprep.subr.bf16.mxu0 0
    %1048 = vmatpush1.bf16.msra.mxu0 %v340
    %1049 = vmatprep.subr.bf16.mxu0 0
    %1050 = vmatpush1.bf16.msra.mxu0 %v341
    %1051 = vmatprep.mubr.bf16.mxu0 %v1009
    %1052 = vmatmul.mubr.bf16.gmra.mrb[0].mxu0 %v995
    %v1053 = vpop.f32.mrb[0].mxu0
    %v1054 = vadd.f32 %v136, %v1053
    %v1055 = vpop.f32.mrb[0].mxu0
    %v1056 = vpop.f32.mrb[0].mxu0
    %v1057 = vpop.f32.mrb[0].mxu0
    %1058 = vdwg.mxu0
    %1059 = vmatprep.subr.bf16.mxu0 0
    %1060 = vmatpush1.bf16.msra.mxu0 %v342
    %1061 = vmatprep.subr.bf16.mxu0 0
    %1062 = vmatpush1.bf16.msra.mxu0 %v343
    %1063 = vmatprep.subr.bf16.mxu0 0
    %1064 = vmatpush1.bf16.msra.mxu0 %v344
    %1065 = vmatprep.subr.bf16.mxu0 0
    %1066 = vmatpush1.bf16.msra.mxu0 %v345
    %1067 = vmatprep.subr.bf16.mxu0 0
    %1068 = vmatpush1.bf16.msra.mxu0 %v346
    %1069 = vmatprep.subr.bf16.mxu0 0
    %1070 = vmatpush1.bf16.msra.mxu0 %v347
    %1071 = vmatprep.subr.bf16.mxu0 0
    %1072 = vmatpush1.bf16.msra.mxu0 %v348
    %1073 = vmatprep.subr.bf16.mxu0 0
    %1074 = vmatpush1.bf16.msra.mxu0 %v349
    %1075 = vmatprep.subr.bf16.mxu0 0
    %1076 = vmatpush1.bf16.msra.mxu0 %v350
    %1077 = vmatprep.subr.bf16.mxu0 0
    %1078 = vmatpush1.bf16.msra.mxu0 %v351
    %1079 = vmatprep.subr.bf16.mxu0 0
    %1080 = vmatpush1.bf16.msra.mxu0 %v352
    %1081 = vmatprep.subr.bf16.mxu0 0
    %1082 = vmatpush1.bf16.msra.mxu0 %v353
    %1083 = vmatprep.subr.bf16.mxu0 0
    %1084 = vmatpush1.bf16.msra.mxu0 %v354
    %1085 = vmatprep.subr.bf16.mxu0 0
    %1086 = vmatpush1.bf16.msra.mxu0 %v355
    %1087 = vmatprep.subr.bf16.mxu0 0
    %1088 = vmatpush1.bf16.msra.mxu0 %v356
    %1089 = vmatprep.subr.bf16.mxu0 0
    %1090 = vmatpush1.bf16.msra.mxu0 %v357
    %1091 = vmatprep.mubr.bf16.mxu0 %v1011
    %1092 = vmatmul.mubr.bf16.gmra.mrb[0].mxu0 %v1010
    %v1093 = vpop.f32.mrb[0].mxu0
    %v1094 = vadd.f32 %v1054, %v1093
    %v1095 = vpop.f32.mrb[0].mxu0
    %v1096 = vpop.f32.mrb[0].mxu0
    %v1097 = vpop.f32.mrb[0].mxu0
    %1098 = vdwg.mxu0
    %1099 = vmatprep.subr.bf16.mxu0 0
    %1100 = vmatpush1.bf16.msra.mxu0 %v358
    %1101 = vmatprep.subr.bf16.mxu0 0
    %1102 = vmatpush1.bf16.msra.mxu0 %v359
    %1103 = vmatprep.subr.bf16.mxu0 0
    %1104 = vmatpush1.bf16.msra.mxu0 %v360
    %1105 = vmatprep.subr.bf16.mxu0 0
    %1106 = vmatpush1.bf16.msra.mxu0 %v361
    %1107 = vmatprep.subr.bf16.mxu0 0
    %1108 = vmatpush1.bf16.msra.mxu0 0
    %1109 = vmatprep.subr.bf16.mxu0 0
    %1110 = vmatpush1.bf16.msra.mxu0 0
    %1111 = vmatprep.subr.bf16.mxu0 0
    %1112 = vmatpush1.bf16.msra.mxu0 0
    %1113 = vmatprep.subr.bf16.mxu0 0
    %1114 = vmatpush1.bf16.msra.mxu0 0
    %1115 = vmatprep.subr.bf16.mxu0 0
    %1116 = vmatpush1.bf16.msra.mxu0 0
    %1117 = vmatprep.subr.bf16.mxu0 0
    %1118 = vmatpush1.bf16.msra.mxu0 0
    %1119 = vmatprep.subr.bf16.mxu0 0
    %1120 = vmatpush1.bf16.msra.mxu0 0
    %1121 = vmatprep.subr.bf16.mxu0 0
    %1122 = vmatpush1.bf16.msra.mxu0 0
    %1123 = vmatprep.subr.bf16.mxu0 0
    %1124 = vmatpush1.bf16.msra.mxu0 0
    %1125 = vmatprep.subr.bf16.mxu0 0
    %1126 = vmatpush1.bf16.msra.mxu0 0
    %1127 = vmatprep.subr.bf16.mxu0 0
    %1128 = vmatpush1.bf16.msra.mxu0 0
    %1129 = vmatprep.subr.bf16.mxu0 0
    %1130 = vmatpush1.bf16.msra.mxu0 0
    %1131 = vmatprep.mubr.bf16.mxu0 0
    %1132 = vmatmul.mubr.bf16.gmra.mrb[0].mxu0 %v1017
    %v1133 = vpop.f32.mrb[0].mxu0
    %v1134 = vadd.f32 %v1094, %v1133
    %v1135 = vpop.f32.mrb[0].mxu0
    %v1136 = vpop.f32.mrb[0].mxu0
    %v1137 = vpop.f32.mrb[0].mxu0
    %1138 = vdwg.mxu0
    %v1139 = vmax.f32 %v1134, 0.0
    %v1140 = vpack.c.bf16 %v1139, %v1139
    %s1141 = scalar_lea.vmem %s3, 256
    %v1142 = vld [vmem:[%s1141] sm:$0xff]
    %v1143 = vld [vmem:[%s1141 + $0x8] sm:$0xff]
    %v1144 = vld [vmem:[%s1141 + $0x10] sm:$0xff]
    %v1145 = vld [vmem:[%s1141 + $0x18] sm:$0xff]
    %v1146 = vld [vmem:[%s1141 + $0x20] sm:$0xff]
    %v1147 = vld [vmem:[%s1141 + $0x28] sm:$0xff]
    %v1148 = vld [vmem:[%s1141 + $0x30] sm:$0xff]
    %v1149 = vld [vmem:[%s1141 + $0x38] sm:$0xff]
    %v1150 = vld [vmem:[%s1141 + $0x40] sm:$0xff]
    %v1151 = vld [vmem:[%s1141 + $0x48] sm:$0xff]
    %v1152 = vld [vmem:[%s1141 + $0x50] sm:$0xff]
    %v1153 = vld [vmem:[%s1141 + $0x58] sm:$0xff]
    %v1154 = vld [vmem:[%s1141 + $0x60] sm:$0xff]
    %v1155 = vld [vmem:[%s1141 + $0x68] sm:$0xff]
    %v1156 = vld [vmem:[%s1141 + $0x70] sm:$0xff]
    %v1157 = vld [vmem:[%s1141 + $0x78] sm:$0xff]
    %v1174 = vunpack.c.l.b16 %v1142
    %v1175 = vunpack.c.h.b16 %v1142
    %v1176 = vunpack.c.l.b16 %v1143
    %v1177 = vunpack.c.h.b16 %v1143
    %v1178 = vunpack.c.l.b16 %v1144
    %v1179 = vunpack.c.h.b16 %v1144
    %v1180 = vunpack.c.l.b16 %v1145
    %v1181 = vunpack.c.h.b16 %v1145
    %v1182 = vunpack.c.l.b16 %v1146
    %v1183 = vunpack.c.h.b16 %v1146
    %v1184 = vunpack.c.l.b16 %v1147
    %v1185 = vunpack.c.h.b16 %v1147
    %v1186 = vunpack.c.l.b16 %v1148
    %v1187 = vunpack.c.h.b16 %v1148
    %v1188 = vunpack.c.l.b16 %v1149
    %v1189 = vunpack.c.h.b16 %v1149
    %v1190 = vunpack.c.l.b16 %v1150
    %v1191 = vunpack.c.h.b16 %v1150
    %v1192 = vunpack.c.l.b16 %v1151
    %v1193 = vunpack.c.h.b16 %v1151
    %v1194 = vunpack.c.l.b16 %v1152
    %v1195 = vunpack.c.h.b16 %v1152
    %v1196 = vunpack.c.l.b16 %v1153
    %v1197 = vunpack.c.h.b16 %v1153
    %v1198 = vunpack.c.l.b16 %v1154
    %v1199 = vunpack.c.h.b16 %v1154
    %v1200 = vunpack.c.l.b16 %v1155
    %v1201 = vunpack.c.h.b16 %v1155
    %v1202 = vunpack.c.l.b16 %v1156
    %v1203 = vunpack.c.h.b16 %v1156
    %v1204 = vunpack.c.l.b16 %v1157
    %v1205 = vunpack.c.h.b16 %v1157
    %v1206 = vpack.c.b16 %v1176, %v1174
    %v1207 = vpack.c.b16 %v1177, %v1175
    %v1208 = vpack.c.b16 %v1180, %v1178
    %v1209 = vpack.c.b16 %v1181, %v1179
    %v1210 = vpack.c.b16 %v1184, %v1182
    %v1211 = vpack.c.b16 %v1185, %v1183
    %v1212 = vpack.c.b16 %v1188, %v1186
    %v1213 = vpack.c.b16 %v1189, %v1187
    %v1214 = vpack.c.b16 %v1192, %v1190
    %v1215 = vpack.c.b16 %v1193, %v1191
    %v1216 = vpack.c.b16 %v1196, %v1194
    %v1217 = vpack.c.b16 %v1197, %v1195
    %v1218 = vpack.c.b16 %v1200, %v1198
    %v1219 = vpack.c.b16 %v1201, %v1199
    %v1220 = vpack.c.b16 %v1204, %v1202
    %v1221 = vpack.c.b16 %v1205, %v1203
    %1238 = vmatprep.subr.bf16.mxu0 %v1207
    %1239 = vmatpush1.bf16.msra.mxu0 %v1206
    %1240 = vmatprep.subr.bf16.mxu0 %v1209
    %1241 = vmatpush1.bf16.msra.mxu0 %v1208
    %1242 = vmatprep.subr.bf16.mxu0 %v1211
    %1243 = vmatpush1.bf16.msra.mxu0 %v1210
    %1244 = vmatprep.subr.bf16.mxu0 %v1213
    %1245 = vmatpush1.bf16.msra.mxu0 %v1212
    %1246 = vmatprep.subr.bf16.mxu0 %v1215
    %1247 = vmatpush1.bf16.msra.mxu0 %v1214
    %1248 = vmatprep.subr.bf16.mxu0 %v1217
    %1249 = vmatpush1.bf16.msra.mxu0 %v1216
    %1250 = vmatprep.subr.bf16.mxu0 %v1219
    %1251 = vmatpush1.bf16.msra.mxu0 %v1218
    %1252 = vmatprep.subr.bf16.mxu0 %v1221
    %1253 = vmatpush1.bf16.msra.mxu0 %v1220
    %1254 = vmatprep.subr.bf16.mxu0 0
    %1255 = vmatpush1.bf16.msra.mxu0 0
    %1256 = vmatprep.subr.bf16.mxu0 0
    %1257 = vmatpush1.bf16.msra.mxu0 0
    %1258 = vmatprep.subr.bf16.mxu0 0
    %1259 = vmatpush1.bf16.msra.mxu0 0
    %1260 = vmatprep.subr.bf16.mxu0 0
    %1261 = vmatpush1.bf16.msra.mxu0 0
    %1262 = vmatprep.subr.bf16.mxu0 0
    %1263 = vmatpush1.bf16.msra.mxu0 0
    %1264 = vmatprep.subr.bf16.mxu0 0
    %1265 = vmatpush1.bf16.msra.mxu0 0
    %1266 = vmatprep.subr.bf16.mxu0 0
    %1267 = vmatpush1.bf16.msra.mxu0 0
    %1268 = vmatprep.subr.bf16.mxu0 0
    %1269 = vmatpush1.bf16.msra.mxu0 0
    %1270 = vmatprep.mubr.bf16.mxu0 0
    %1271 = vmatmul.mubr.bf16.gmra.mrb[0].mxu0 %v1140
    %v1272 = vpop.f32.mrb[0].mxu0
    %v1273 = vadd.f32 0.0, %v1272
    %v1274 = vpop.f32.mrb[0].mxu0
    %v1275 = vadd.f32 0.0, %v1274
    %v1276 = vpop.f32.mrb[0].mxu0
    %v1277 = vpop.f32.mrb[0].mxu0
    %1278 = vdwg.mxu0
    %v1279 = vadd.f32 %v964, %v1273
    %v1280 = vadd.f32 %v966, %v1275
    %s1281 = scalar_lea.vmem %s0, 15
    %v1282 = vld [vmem:[%s1281] sm:$0x1f]
    %v1284 = vcombine.high %v1282, %v1282
    %v1286 = vunpack.c.l.s4 1966171168
    %v1287 = vunpack.c.0.s8 %v1286
    %v1288 = vlaneseq
    %v1289 = vshrl.u32 %v1288, 7
    %v1290 = vsub.s32 %v1287, %v1289
    %v1291 = vrot.slane %v1282, %v1290
    %v1293 = vunpack.c.l.s4 1966171168
    %v1294 = vunpack.c.0.s8 %v1293
    %v1295 = vlaneseq
    %v1296 = vshrl.u32 %v1295, 7
    %v1297 = vsub.s32 %v1294, %v1296
    %v1298 = vrot.slane %v1284, %v1297
    %v1299 = vcombine.high %v1291, %v1291
    %v1301 = vunpack.c.l.s4 1966171168
    %v1302 = vunpack.c.0.s8 %v1301
    %v1303 = vlaneseq
    %v1304 = vshrl.u32 %v1303, 7
    %v1305 = vsub.s32 %v1302, %v1304
    %v1306 = vrot.slane %v1291, %v1305
    %v1308 = vunpack.c.l.s4 1966171168
    %v1309 = vunpack.c.0.s8 %v1308
    %v1310 = vlaneseq
    %v1311 = vshrl.u32 %v1310, 7
    %v1312 = vsub.s32 %v1309, %v1311
    %v1313 = vrot.slane %v1298, %v1312
    %v1315 = vunpack.c.l.s4 1966171168
    %v1316 = vunpack.c.0.s8 %v1315
    %v1317 = vlaneseq
    %v1318 = vshrl.u32 %v1317, 7
    %v1319 = vsub.s32 %v1316, %v1318
    %v1320 = vrot.slane %v1299, %v1319
    %v1321 = vcombine.high %v1306, %v1306
    %v1322 = vcombine.high %v1320, %v1320
    %v1328 = vsel %vm398, %v1313, 0
    %1330 = vmatprep.subr.bf16.mxu0 0
    %1331 = vmatpush1.bf16.msra.mxu0 %v326
    %1332 = vmatprep.subr.bf16.mxu0 0
    %1333 = vmatpush1.bf16.msra.mxu0 %v327
    %1334 = vmatprep.subr.bf16.mxu0 0
    %1335 = vmatpush1.bf16.msra.mxu0 %v328
    %1336 = vmatprep.subr.bf16.mxu0 0
    %1337 = vmatpush1.bf16.msra.mxu0 %v329
    %1338 = vmatprep.subr.bf16.mxu0 0
    %1339 = vmatpush1.bf16.msra.mxu0 %v330
    %1340 = vmatprep.subr.bf16.mxu0 0
    %1341 = vmatpush1.bf16.msra.mxu0 %v331
    %1342 = vmatprep.subr.bf16.mxu0 0
    %1343 = vmatpush1.bf16.msra.mxu0 %v332
    %1344 = vmatprep.subr.bf16.mxu0 0
    %1345 = vmatpush1.bf16.msra.mxu0 %v333
    %1346 = vmatprep.subr.bf16.mxu0 0
    %1347 = vmatpush1.bf16.msra.mxu0 %v334
    %1348 = vmatprep.subr.bf16.mxu0 0
    %1349 = vmatpush1.bf16.msra.mxu0 %v335
    %1350 = vmatprep.subr.bf16.mxu0 0
    %1351 = vmatpush1.bf16.msra.mxu0 %v336
    %1352 = vmatprep.subr.bf16.mxu0 0
    %1353 = vmatpush1.bf16.msra.mxu0 %v337
    %1354 = vmatprep.subr.bf16.mxu0 0
    %1355 = vmatpush1.bf16.msra.mxu0 %v338
    %1356 = vmatprep.subr.bf16.mxu0 0
    %1357 = vmatpush1.bf16.msra.mxu0 %v339
    %1358 = vmatprep.subr.bf16.mxu0 0
    %1359 = vmatpush1.bf16.msra.mxu0 %v340
    %1360 = vmatprep.subr.bf16.mxu0 0
    %1361 = vmatpush1.bf16.msra.mxu0 %v341
    %1362 = vmatprep.mubr.bf16.mxu0 %v1320
    %1363 = vmatmul.mubr.bf16.gmra.mrb[0].mxu0 %v1306
    %v1364 = vpop.f32.mrb[0].mxu0
    %v1365 = vadd.f32 %v136, %v1364
    %v1366 = vpop.f32.mrb[0].mxu0
    %v1367 = vpop.f32.mrb[0].mxu0
    %v1368 = vpop.f32.mrb[0].mxu0
    %1369 = vdwg.mxu0
    %1370 = vmatprep.subr.bf16.mxu0 0
    %1371 = vmatpush1.bf16.msra.mxu0 %v342
    %1372 = vmatprep.subr.bf16.mxu0 0
    %1373 = vmatpush1.bf16.msra.mxu0 %v343
    %1374 = vmatprep.subr.bf16.mxu0 0
    %1375 = vmatpush1.bf16.msra.mxu0 %v344
    %1376 = vmatprep.subr.bf16.mxu0 0
    %1377 = vmatpush1.bf16.msra.mxu0 %v345
    %1378 = vmatprep.subr.bf16.mxu0 0
    %1379 = vmatpush1.bf16.msra.mxu0 %v346
    %1380 = vmatprep.subr.bf16.mxu0 0
    %1381 = vmatpush1.bf16.msra.mxu0 %v347
    %1382 = vmatprep.subr.bf16.mxu0 0
    %1383 = vmatpush1.bf16.msra.mxu0 %v348
    %1384 = vmatprep.subr.bf16.mxu0 0
    %1385 = vmatpush1.bf16.msra.mxu0 %v349
    %1386 = vmatprep.subr.bf16.mxu0 0
    %1387 = vmatpush1.bf16.msra.mxu0 %v350
    %1388 = vmatprep.subr.bf16.mxu0 0
    %1389 = vmatpush1.bf16.msra.mxu0 %v351
    %1390 = vmatprep.subr.bf16.mxu0 0
    %1391 = vmatpush1.bf16.msra.mxu0 %v352
    %1392 = vmatprep.subr.bf16.mxu0 0
    %1393 = vmatpush1.bf16.msra.mxu0 %v353
    %1394 = vmatprep.subr.bf16.mxu0 0
    %1395 = vmatpush1.bf16.msra.mxu0 %v354
    %1396 = vmatprep.subr.bf16.mxu0 0
    %1397 = vmatpush1.bf16.msra.mxu0 %v355
    %1398 = vmatprep.subr.bf16.mxu0 0
    %1399 = vmatpush1.bf16.msra.mxu0 %v356
    %1400 = vmatprep.subr.bf16.mxu0 0
    %1401 = vmatpush1.bf16.msra.mxu0 %v357
    %1402 = vmatprep.mubr.bf16.mxu0 %v1322
    %1403 = vmatmul.mubr.bf16.gmra.mrb[0].mxu0 %v1321
    %v1404 = vpop.f32.mrb[0].mxu0
    %v1405 = vadd.f32 %v1365, %v1404
    %v1406 = vpop.f32.mrb[0].mxu0
    %v1407 = vpop.f32.mrb[0].mxu0
    %v1408 = vpop.f32.mrb[0].mxu0
    %1409 = vdwg.mxu0
    %1410 = vmatprep.subr.bf16.mxu0 0
    %1411 = vmatpush1.bf16.msra.mxu0 %v358
    %1412 = vmatprep.subr.bf16.mxu0 0
    %1413 = vmatpush1.bf16.msra.mxu0 %v359
    %1414 = vmatprep.subr.bf16.mxu0 0
    %1415 = vmatpush1.bf16.msra.mxu0 %v360
    %1416 = vmatprep.subr.bf16.mxu0 0
    %1417 = vmatpush1.bf16.msra.mxu0 %v361
    %1418 = vmatprep.subr.bf16.mxu0 0
    %1419 = vmatpush1.bf16.msra.mxu0 0
    %1420 = vmatprep.subr.bf16.mxu0 0
    %1421 = vmatpush1.bf16.msra.mxu0 0
    %1422 = vmatprep.subr.bf16.mxu0 0
    %1423 = vmatpush1.bf16.msra.mxu0 0
    %1424 = vmatprep.subr.bf16.mxu0 0
    %1425 = vmatpush1.bf16.msra.mxu0 0
    %1426 = vmatprep.subr.bf16.mxu0 0
    %1427 = vmatpush1.bf16.msra.mxu0 0
    %1428 = vmatprep.subr.bf16.mxu0 0
    %1429 = vmatpush1.bf16.msra.mxu0 0
    %1430 = vmatprep.subr.bf16.mxu0 0
    %1431 = vmatpush1.bf16.msra.mxu0 0
    %1432 = vmatprep.subr.bf16.mxu0 0
    %1433 = vmatpush1.bf16.msra.mxu0 0
    %1434 = vmatprep.subr.bf16.mxu0 0
    %1435 = vmatpush1.bf16.msra.mxu0 0
    %1436 = vmatprep.subr.bf16.mxu0 0
    %1437 = vmatpush1.bf16.msra.mxu0 0
    %1438 = vmatprep.subr.bf16.mxu0 0
    %1439 = vmatpush1.bf16.msra.mxu0 0
    %1440 = vmatprep.subr.bf16.mxu0 0
    %1441 = vmatpush1.bf16.msra.mxu0 0
    %1442 = vmatprep.mubr.bf16.mxu0 0
    %1443 = vmatmul.mubr.bf16.gmra.mrb[0].mxu0 %v1328
    %v1444 = vpop.f32.mrb[0].mxu0
    %v1445 = vadd.f32 %v1405, %v1444
    %v1446 = vpop.f32.mrb[0].mxu0
    %v1447 = vpop.f32.mrb[0].mxu0
    %v1448 = vpop.f32.mrb[0].mxu0
    %1449 = vdwg.mxu0
    %v1450 = vmax.f32 %v1445, 0.0
    %v1451 = vpack.c.bf16 %v1450, %v1450
    %s1452 = scalar_lea.vmem %s3, 384
    %v1453 = vld [vmem:[%s1452] sm:$0xff]
    %v1454 = vld [vmem:[%s1452 + $0x8] sm:$0xff]
    %v1455 = vld [vmem:[%s1452 + $0x10] sm:$0xff]
    %v1456 = vld [vmem:[%s1452 + $0x18] sm:$0xff]
    %v1457 = vld [vmem:[%s1452 + $0x20] sm:$0xff]
    %v1458 = vld [vmem:[%s1452 + $0x28] sm:$0xff]
    %v1459 = vld [vmem:[%s1452 + $0x30] sm:$0xff]
    %v1460 = vld [vmem:[%s1452 + $0x38] sm:$0xff]
    %v1461 = vld [vmem:[%s1452 + $0x40] sm:$0xff]
    %v1462 = vld [vmem:[%s1452 + $0x48] sm:$0xff]
    %v1463 = vld [vmem:[%s1452 + $0x50] sm:$0xff]
    %v1464 = vld [vmem:[%s1452 + $0x58] sm:$0xff]
    %v1465 = vld [vmem:[%s1452 + $0x60] sm:$0xff]
    %v1466 = vld [vmem:[%s1452 + $0x68] sm:$0xff]
    %v1467 = vld [vmem:[%s1452 + $0x70] sm:$0xff]
    %v1468 = vld [vmem:[%s1452 + $0x78] sm:$0xff]
    %v1485 = vunpack.c.l.b16 %v1453
    %v1486 = vunpack.c.h.b16 %v1453
    %v1487 = vunpack.c.l.b16 %v1454
    %v1488 = vunpack.c.h.b16 %v1454
    %v1489 = vunpack.c.l.b16 %v1455
    %v1490 = vunpack.c.h.b16 %v1455
    %v1491 = vunpack.c.l.b16 %v1456
    %v1492 = vunpack.c.h.b16 %v1456
    %v1493 = vunpack.c.l.b16 %v1457
    %v1494 = vunpack.c.h.b16 %v1457
    %v1495 = vunpack.c.l.b16 %v1458
    %v1496 = vunpack.c.h.b16 %v1458
    %v1497 = vunpack.c.l.b16 %v1459
    %v1498 = vunpack.c.h.b16 %v1459
    %v1499 = vunpack.c.l.b16 %v1460
    %v1500 = vunpack.c.h.b16 %v1460
    %v1501 = vunpack.c.l.b16 %v1461
    %v1502 = vunpack.c.h.b16 %v1461
    %v1503 = vunpack.c.l.b16 %v1462
    %v1504 = vunpack.c.h.b16 %v1462
    %v1505 = vunpack.c.l.b16 %v1463
    %v1506 = vunpack.c.h.b16 %v1463
    %v1507 = vunpack.c.l.b16 %v1464
    %v1508 = vunpack.c.h.b16 %v1464
    %v1509 = vunpack.c.l.b16 %v1465
    %v1510 = vunpack.c.h.b16 %v1465
    %v1511 = vunpack.c.l.b16 %v1466
    %v1512 = vunpack.c.h.b16 %v1466
    %v1513 = vunpack.c.l.b16 %v1467
    %v1514 = vunpack.c.h.b16 %v1467
    %v1515 = vunpack.c.l.b16 %v1468
    %v1516 = vunpack.c.h.b16 %v1468
    %v1517 = vpack.c.b16 %v1487, %v1485
    %v1518 = vpack.c.b16 %v1488, %v1486
    %v1519 = vpack.c.b16 %v1491, %v1489
    %v1520 = vpack.c.b16 %v1492, %v1490
    %v1521 = vpack.c.b16 %v1495, %v1493
    %v1522 = vpack.c.b16 %v1496, %v1494
    %v1523 = vpack.c.b16 %v1499, %v1497
    %v1524 = vpack.c.b16 %v1500, %v1498
    %v1525 = vpack.c.b16 %v1503, %v1501
    %v1526 = vpack.c.b16 %v1504, %v1502
    %v1527 = vpack.c.b16 %v1507, %v1505
    %v1528 = vpack.c.b16 %v1508, %v1506
    %v1529 = vpack.c.b16 %v1511, %v1509
    %v1530 = vpack.c.b16 %v1512, %v1510
    %v1531 = vpack.c.b16 %v1515, %v1513
    %v1532 = vpack.c.b16 %v1516, %v1514
    %1549 = vmatprep.subr.bf16.mxu0 %v1518
    %1550 = vmatpush1.bf16.msra.mxu0 %v1517
    %1551 = vmatprep.subr.bf16.mxu0 %v1520
    %1552 = vmatpush1.bf16.msra.mxu0 %v1519
    %1553 = vmatprep.subr.bf16.mxu0 %v1522
    %1554 = vmatpush1.bf16.msra.mxu0 %v1521
    %1555 = vmatprep.subr.bf16.mxu0 %v1524
    %1556 = vmatpush1.bf16.msra.mxu0 %v1523
    %1557 = vmatprep.subr.bf16.mxu0 %v1526
    %1558 = vmatpush1.bf16.msra.mxu0 %v1525
    %1559 = vmatprep.subr.bf16.mxu0 %v1528
    %1560 = vmatpush1.bf16.msra.mxu0 %v1527
    %1561 = vmatprep.subr.bf16.mxu0 %v1530
    %1562 = vmatpush1.bf16.msra.mxu0 %v1529
    %1563 = vmatprep.subr.bf16.mxu0 %v1532
    %1564 = vmatpush1.bf16.msra.mxu0 %v1531
    %1565 = vmatprep.subr.bf16.mxu0 0
    %1566 = vmatpush1.bf16.msra.mxu0 0
    %1567 = vmatprep.subr.bf16.mxu0 0
    %1568 = vmatpush1.bf16.msra.mxu0 0
    %1569 = vmatprep.subr.bf16.mxu0 0
    %1570 = vmatpush1.bf16.msra.mxu0 0
    %1571 = vmatprep.subr.bf16.mxu0 0
    %1572 = vmatpush1.bf16.msra.mxu0 0
    %1573 = vmatprep.subr.bf16.mxu0 0
    %1574 = vmatpush1.bf16.msra.mxu0 0
    %1575 = vmatprep.subr.bf16.mxu0 0
    %1576 = vmatpush1.bf16.msra.mxu0 0
    %1577 = vmatprep.subr.bf16.mxu0 0
    %1578 = vmatpush1.bf16.msra.mxu0 0
    %1579 = vmatprep.subr.bf16.mxu0 0
    %1580 = vmatpush1.bf16.msra.mxu0 0
    %1581 = vmatprep.mubr.bf16.mxu0 0
    %1582 = vmatmul.mubr.bf16.gmra.mrb[0].mxu0 %v1451
    %v1583 = vpop.f32.mrb[0].mxu0
    %v1584 = vadd.f32 0.0, %v1583
    %v1585 = vpop.f32.mrb[0].mxu0
    %v1586 = vadd.f32 0.0, %v1585
    %v1587 = vpop.f32.mrb[0].mxu0
    %v1588 = vpop.f32.mrb[0].mxu0
    %1589 = vdwg.mxu0
    %v1590 = vadd.f32 %v1279, %v1584
    %v1591 = vadd.f32 %v1280, %v1586
    %s1592 = scalar_lea.vmem %s0, 20
    %v1593 = vld [vmem:[%s1592] sm:$0x1f]
    %v1595 = vcombine.high %v1593, %v1593
    %v1597 = vunpack.c.l.s4 1966171168
    %v1598 = vunpack.c.0.s8 %v1597
    %v1599 = vlaneseq
    %v1600 = vshrl.u32 %v1599, 7
    %v1601 = vsub.s32 %v1598, %v1600
    %v1602 = vrot.slane %v1593, %v1601
    %v1604 = vunpack.c.l.s4 1966171168
    %v1605 = vunpack.c.0.s8 %v1604
    %v1606 = vlaneseq
    %v1607 = vshrl.u32 %v1606, 7
    %v1608 = vsub.s32 %v1605, %v1607
    %v1609 = vrot.slane %v1595, %v1608
    %v1610 = vcombine.high %v1602, %v1602
    %v1612 = vunpack.c.l.s4 1966171168
    %v1613 = vunpack.c.0.s8 %v1612
    %v1614 = vlaneseq
    %v1615 = vshrl.u32 %v1614, 7
    %v1616 = vsub.s32 %v1613, %v1615
    %v1617 = vrot.slane %v1602, %v1616
    %v1619 = vunpack.c.l.s4 1966171168
    %v1620 = vunpack.c.0.s8 %v1619
    %v1621 = vlaneseq
    %v1622 = vshrl.u32 %v1621, 7
    %v1623 = vsub.s32 %v1620, %v1622
    %v1624 = vrot.slane %v1609, %v1623
    %v1626 = vunpack.c.l.s4 1966171168
    %v1627 = vunpack.c.0.s8 %v1626
    %v1628 = vlaneseq
    %v1629 = vshrl.u32 %v1628, 7
    %v1630 = vsub.s32 %v1627, %v1629
    %v1631 = vrot.slane %v1610, %v1630
    %v1632 = vcombine.high %v1617, %v1617
    %v1633 = vcombine.high %v1631, %v1631
    %v1639 = vsel %vm398, %v1624, 0
    %1641 = vmatprep.subr.bf16.mxu0 0
    %1642 = vmatpush1.bf16.msra.mxu0 %v326
    %1643 = vmatprep.subr.bf16.mxu0 0
    %1644 = vmatpush1.bf16.msra.mxu0 %v327
    %1645 = vmatprep.subr.bf16.mxu0 0
    %1646 = vmatpush1.bf16.msra.mxu0 %v328
    %1647 = vmatprep.subr.bf16.mxu0 0
    %1648 = vmatpush1.bf16.msra.mxu0 %v329
    %1649 = vmatprep.subr.bf16.mxu0 0
    %1650 = vmatpush1.bf16.msra.mxu0 %v330
    %1651 = vmatprep.subr.bf16.mxu0 0
    %1652 = vmatpush1.bf16.msra.mxu0 %v331
    %1653 = vmatprep.subr.bf16.mxu0 0
    %1654 = vmatpush1.bf16.msra.mxu0 %v332
    %1655 = vmatprep.subr.bf16.mxu0 0
    %1656 = vmatpush1.bf16.msra.mxu0 %v333
    %1657 = vmatprep.subr.bf16.mxu0 0
    %1658 = vmatpush1.bf16.msra.mxu0 %v334
    %1659 = vmatprep.subr.bf16.mxu0 0
    %1660 = vmatpush1.bf16.msra.mxu0 %v335
    %1661 = vmatprep.subr.bf16.mxu0 0
    %1662 = vmatpush1.bf16.msra.mxu0 %v336
    %1663 = vmatprep.subr.bf16.mxu0 0
    %1664 = vmatpush1.bf16.msra.mxu0 %v337
    %1665 = vmatprep.subr.bf16.mxu0 0
    %1666 = vmatpush1.bf16.msra.mxu0 %v338
    %1667 = vmatprep.subr.bf16.mxu0 0
    %1668 = vmatpush1.bf16.msra.mxu0 %v339
    %1669 = vmatprep.subr.bf16.mxu0 0
    %1670 = vmatpush1.bf16.msra.mxu0 %v340
    %1671 = vmatprep.subr.bf16.mxu0 0
    %1672 = vmatpush1.bf16.msra.mxu0 %v341
    %1673 = vmatprep.mubr.bf16.mxu0 %v1631
    %1674 = vmatmul.mubr.bf16.gmra.mrb[0].mxu0 %v1617
    %v1675 = vpop.f32.mrb[0].mxu0
    %v1676 = vadd.f32 %v136, %v1675
    %v1677 = vpop.f32.mrb[0].mxu0
    %v1678 = vpop.f32.mrb[0].mxu0
    %v1679 = vpop.f32.mrb[0].mxu0
    %1680 = vdwg.mxu0
    %1681 = vmatprep.subr.bf16.mxu0 0
    %1682 = vmatpush1.bf16.msra.mxu0 %v342
    %1683 = vmatprep.subr.bf16.mxu0 0
    %1684 = vmatpush1.bf16.msra.mxu0 %v343
    %1685 = vmatprep.subr.bf16.mxu0 0
    %1686 = vmatpush1.bf16.msra.mxu0 %v344
    %1687 = vmatprep.subr.bf16.mxu0 0
    %1688 = vmatpush1.bf16.msra.mxu0 %v345
    %1689 = vmatprep.subr.bf16.mxu0 0
    %1690 = vmatpush1.bf16.msra.mxu0 %v346
    %1691 = vmatprep.subr.bf16.mxu0 0
    %1692 = vmatpush1.bf16.msra.mxu0 %v347
    %1693 = vmatprep.subr.bf16.mxu0 0
    %1694 = vmatpush1.bf16.msra.mxu0 %v348
    %1695 = vmatprep.subr.bf16.mxu0 0
    %1696 = vmatpush1.bf16.msra.mxu0 %v349
    %1697 = vmatprep.subr.bf16.mxu0 0
    %1698 = vmatpush1.bf16.msra.mxu0 %v350
    %1699 = vmatprep.subr.bf16.mxu0 0
    %1700 = vmatpush1.bf16.msra.mxu0 %v351
    %1701 = vmatprep.subr.bf16.mxu0 0
    %1702 = vmatpush1.bf16.msra.mxu0 %v352
    %1703 = vmatprep.subr.bf16.mxu0 0
    %1704 = vmatpush1.bf16.msra.mxu0 %v353
    %1705 = vmatprep.subr.bf16.mxu0 0
    %1706 = vmatpush1.bf16.msra.mxu0 %v354
    %1707 = vmatprep.subr.bf16.mxu0 0
    %1708 = vmatpush1.bf16.msra.mxu0 %v355
    %1709 = vmatprep.subr.bf16.mxu0 0
    %1710 = vmatpush1.bf16.msra.mxu0 %v356
    %1711 = vmatprep.subr.bf16.mxu0 0
    %1712 = vmatpush1.bf16.msra.mxu0 %v357
    %1713 = vmatprep.mubr.bf16.mxu0 %v1633
    %1714 = vmatmul.mubr.bf16.gmra.mrb[0].mxu0 %v1632
    %v1715 = vpop.f32.mrb[0].mxu0
    %v1716 = vadd.f32 %v1676, %v1715
    %v1717 = vpop.f32.mrb[0].mxu0
    %v1718 = vpop.f32.mrb[0].mxu0
    %v1719 = vpop.f32.mrb[0].mxu0
    %1720 = vdwg.mxu0
    %1721 = vmatprep.subr.bf16.mxu0 0
    %1722 = vmatpush1.bf16.msra.mxu0 %v358
    %1723 = vmatprep.subr.bf16.mxu0 0
    %1724 = vmatpush1.bf16.msra.mxu0 %v359
    %1725 = vmatprep.subr.bf16.mxu0 0
    %1726 = vmatpush1.bf16.msra.mxu0 %v360
    %1727 = vmatprep.subr.bf16.mxu0 0
    %1728 = vmatpush1.bf16.msra.mxu0 %v361
    %1729 = vmatprep.subr.bf16.mxu0 0
    %1730 = vmatpush1.bf16.msra.mxu0 0
    %1731 = vmatprep.subr.bf16.mxu0 0
    %1732 = vmatpush1.bf16.msra.mxu0 0
    %1733 = vmatprep.subr.bf16.mxu0 0
    %1734 = vmatpush1.bf16.msra.mxu0 0
    %1735 = vmatprep.subr.bf16.mxu0 0
    %1736 = vmatpush1.bf16.msra.mxu0 0
    %1737 = vmatprep.subr.bf16.mxu0 0
    %1738 = vmatpush1.bf16.msra.mxu0 0
    %1739 = vmatprep.subr.bf16.mxu0 0
    %1740 = vmatpush1.bf16.msra.mxu0 0
    %1741 = vmatprep.subr.bf16.mxu0 0
    %1742 = vmatpush1.bf16.msra.mxu0 0
    %1743 = vmatprep.subr.bf16.mxu0 0
    %1744 = vmatpush1.bf16.msra.mxu0 0
    %1745 = vmatprep.subr.bf16.mxu0 0
    %1746 = vmatpush1.bf16.msra.mxu0 0
    %1747 = vmatprep.subr.bf16.mxu0 0
    %1748 = vmatpush1.bf16.msra.mxu0 0
    %1749 = vmatprep.subr.bf16.mxu0 0
    %1750 = vmatpush1.bf16.msra.mxu0 0
    %1751 = vmatprep.subr.bf16.mxu0 0
    %1752 = vmatpush1.bf16.msra.mxu0 0
    %1753 = vmatprep.mubr.bf16.mxu0 0
    %1754 = vmatmul.mubr.bf16.gmra.mrb[0].mxu0 %v1639
    %v1755 = vpop.f32.mrb[0].mxu0
    %v1756 = vadd.f32 %v1716, %v1755
    %v1757 = vpop.f32.mrb[0].mxu0
    %v1758 = vpop.f32.mrb[0].mxu0
    %v1759 = vpop.f32.mrb[0].mxu0
    %1760 = vdwg.mxu0
    %v1761 = vmax.f32 %v1756, 0.0
    %v1762 = vpack.c.bf16 %v1761, %v1761
    %s1763 = scalar_lea.vmem %s3, 512
    %v1764 = vld [vmem:[%s1763] sm:$0xff]
    %v1765 = vld [vmem:[%s1763 + $0x8] sm:$0xff]
    %v1766 = vld [vmem:[%s1763 + $0x10] sm:$0xff]
    %v1767 = vld [vmem:[%s1763 + $0x18] sm:$0xff]
    %v1768 = vld [vmem:[%s1763 + $0x20] sm:$0xff]
    %v1769 = vld [vmem:[%s1763 + $0x28] sm:$0xff]
    %v1770 = vld [vmem:[%s1763 + $0x30] sm:$0xff]
    %v1771 = vld [vmem:[%s1763 + $0x38] sm:$0xff]
    %v1772 = vld [vmem:[%s1763 + $0x40] sm:$0xff]
    %v1773 = vld [vmem:[%s1763 + $0x48] sm:$0xff]
    %v1774 = vld [vmem:[%s1763 + $0x50] sm:$0xff]
    %v1775 = vld [vmem:[%s1763 + $0x58] sm:$0xff]
    %v1776 = vld [vmem:[%s1763 + $0x60] sm:$0xff]
    %v1777 = vld [vmem:[%s1763 + $0x68] sm:$0xff]
    %v1778 = vld [vmem:[%s1763 + $0x70] sm:$0xff]
    %v1779 = vld [vmem:[%s1763 + $0x78] sm:$0xff]
    %v1796 = vunpack.c.l.b16 %v1764
    %v1797 = vunpack.c.h.b16 %v1764
    %v1798 = vunpack.c.l.b16 %v1765
    %v1799 = vunpack.c.h.b16 %v1765
    %v1800 = vunpack.c.l.b16 %v1766
    %v1801 = vunpack.c.h.b16 %v1766
    %v1802 = vunpack.c.l.b16 %v1767
    %v1803 = vunpack.c.h.b16 %v1767
    %v1804 = vunpack.c.l.b16 %v1768
    %v1805 = vunpack.c.h.b16 %v1768
    %v1806 = vunpack.c.l.b16 %v1769
    %v1807 = vunpack.c.h.b16 %v1769
    %v1808 = vunpack.c.l.b16 %v1770
    %v1809 = vunpack.c.h.b16 %v1770
    %v1810 = vunpack.c.l.b16 %v1771
    %v1811 = vunpack.c.h.b16 %v1771
    %v1812 = vunpack.c.l.b16 %v1772
    %v1813 = vunpack.c.h.b16 %v1772
    %v1814 = vunpack.c.l.b16 %v1773
    %v1815 = vunpack.c.h.b16 %v1773
    %v1816 = vunpack.c.l.b16 %v1774
    %v1817 = vunpack.c.h.b16 %v1774
    %v1818 = vunpack.c.l.b16 %v1775
    %v1819 = vunpack.c.h.b16 %v1775
    %v1820 = vunpack.c.l.b16 %v1776
    %v1821 = vunpack.c.h.b16 %v1776
    %v1822 = vunpack.c.l.b16 %v1777
    %v1823 = vunpack.c.h.b16 %v1777
    %v1824 = vunpack.c.l.b16 %v1778
    %v1825 = vunpack.c.h.b16 %v1778
    %v1826 = vunpack.c.l.b16 %v1779
    %v1827 = vunpack.c.h.b16 %v1779
    %v1828 = vpack.c.b16 %v1798, %v1796
    %v1829 = vpack.c.b16 %v1799, %v1797
    %v1830 = vpack.c.b16 %v1802, %v1800
    %v1831 = vpack.c.b16 %v1803, %v1801
    %v1832 = vpack.c.b16 %v1806, %v1804
    %v1833 = vpack.c.b16 %v1807, %v1805
    %v1834 = vpack.c.b16 %v1810, %v1808
    %v1835 = vpack.c.b16 %v1811, %v1809
    %v1836 = vpack.c.b16 %v1814, %v1812
    %v1837 = vpack.c.b16 %v1815, %v1813
    %v1838 = vpack.c.b16 %v1818, %v1816
    %v1839 = vpack.c.b16 %v1819, %v1817
    %v1840 = vpack.c.b16 %v1822, %v1820
    %v1841 = vpack.c.b16 %v1823, %v1821
    %v1842 = vpack.c.b16 %v1826, %v1824
    %v1843 = vpack.c.b16 %v1827, %v1825
    %1860 = vmatprep.subr.bf16.mxu0 %v1829
    %1861 = vmatpush1.bf16.msra.mxu0 %v1828
    %1862 = vmatprep.subr.bf16.mxu0 %v1831
    %1863 = vmatpush1.bf16.msra.mxu0 %v1830
    %1864 = vmatprep.subr.bf16.mxu0 %v1833
    %1865 = vmatpush1.bf16.msra.mxu0 %v1832
    %1866 = vmatprep.subr.bf16.mxu0 %v1835
    %1867 = vmatpush1.bf16.msra.mxu0 %v1834
    %1868 = vmatprep.subr.bf16.mxu0 %v1837
    %1869 = vmatpush1.bf16.msra.mxu0 %v1836
    %1870 = vmatprep.subr.bf16.mxu0 %v1839
    %1871 = vmatpush1.bf16.msra.mxu0 %v1838
    %1872 = vmatprep.subr.bf16.mxu0 %v1841
    %1873 = vmatpush1.bf16.msra.mxu0 %v1840
    %1874 = vmatprep.subr.bf16.mxu0 %v1843
    %1875 = vmatpush1.bf16.msra.mxu0 %v1842
    %1876 = vmatprep.subr.bf16.mxu0 0
    %1877 = vmatpush1.bf16.msra.mxu0 0
    %1878 = vmatprep.subr.bf16.mxu0 0
    %1879 = vmatpush1.bf16.msra.mxu0 0
    %1880 = vmatprep.subr.bf16.mxu0 0
    %1881 = vmatpush1.bf16.msra.mxu0 0
    %1882 = vmatprep.subr.bf16.mxu0 0
    %1883 = vmatpush1.bf16.msra.mxu0 0
    %1884 = vmatprep.subr.bf16.mxu0 0
    %1885 = vmatpush1.bf16.msra.mxu0 0
    %1886 = vmatprep.subr.bf16.mxu0 0
    %1887 = vmatpush1.bf16.msra.mxu0 0
    %1888 = vmatprep.subr.bf16.mxu0 0
    %1889 = vmatpush1.bf16.msra.mxu0 0
    %1890 = vmatprep.subr.bf16.mxu0 0
    %1891 = vmatpush1.bf16.msra.mxu0 0
    %1892 = vmatprep.mubr.bf16.mxu0 0
    %1893 = vmatmul.mubr.bf16.gmra.mrb[0].mxu0 %v1762
    %v1894 = vpop.f32.mrb[0].mxu0
    %v1895 = vadd.f32 0.0, %v1894
    %v1896 = vpop.f32.mrb[0].mxu0
    %v1897 = vadd.f32 0.0, %v1896
    %v1898 = vpop.f32.mrb[0].mxu0
    %v1899 = vpop.f32.mrb[0].mxu0
    %1900 = vdwg.mxu0
    %v1901 = vadd.f32 %v1590, %v1895
    %v1902 = vadd.f32 %v1591, %v1897
    %s1903 = scalar_lea.vmem %s0, 25
    %v1904 = vld [vmem:[%s1903] sm:$0x1f]
    %v1906 = vcombine.high %v1904, %v1904
    %v1908 = vunpack.c.l.s4 1966171168
    %v1909 = vunpack.c.0.s8 %v1908
    %v1910 = vlaneseq
    %v1911 = vshrl.u32 %v1910, 7
    %v1912 = vsub.s32 %v1909, %v1911
    %v1913 = vrot.slane %v1904, %v1912
    %v1915 = vunpack.c.l.s4 1966171168
    %v1916 = vunpack.c.0.s8 %v1915
    %v1917 = vlaneseq
    %v1918 = vshrl.u32 %v1917, 7
    %v1919 = vsub.s32 %v1916, %v1918
    %v1920 = vrot.slane %v1906, %v1919
    %v1921 = vcombine.high %v1913, %v1913
    %v1923 = vunpack.c.l.s4 1966171168
    %v1924 = vunpack.c.0.s8 %v1923
    %v1925 = vlaneseq
    %v1926 = vshrl.u32 %v1925, 7
    %v1927 = vsub.s32 %v1924, %v1926
    %v1928 = vrot.slane %v1913, %v1927
    %v1930 = vunpack.c.l.s4 1966171168
    %v1931 = vunpack.c.0.s8 %v1930
    %v1932 = vlaneseq
    %v1933 = vshrl.u32 %v1932, 7
    %v1934 = vsub.s32 %v1931, %v1933
    %v1935 = vrot.slane %v1920, %v1934
    %v1937 = vunpack.c.l.s4 1966171168
    %v1938 = vunpack.c.0.s8 %v1937
    %v1939 = vlaneseq
    %v1940 = vshrl.u32 %v1939, 7
    %v1941 = vsub.s32 %v1938, %v1940
    %v1942 = vrot.slane %v1921, %v1941
    %v1943 = vcombine.high %v1928, %v1928
    %v1944 = vcombine.high %v1942, %v1942
    %v1950 = vsel %vm398, %v1935, 0
    %1952 = vmatprep.subr.bf16.mxu0 0
    %1953 = vmatpush1.bf16.msra.mxu0 %v326
    %1954 = vmatprep.subr.bf16.mxu0 0
    %1955 = vmatpush1.bf16.msra.mxu0 %v327
    %1956 = vmatprep.subr.bf16.mxu0 0
    %1957 = vmatpush1.bf16.msra.mxu0 %v328
    %1958 = vmatprep.subr.bf16.mxu0 0
    %1959 = vmatpush1.bf16.msra.mxu0 %v329
    %1960 = vmatprep.subr.bf16.mxu0 0
    %1961 = vmatpush1.bf16.msra.mxu0 %v330
    %1962 = vmatprep.subr.bf16.mxu0 0
    %1963 = vmatpush1.bf16.msra.mxu0 %v331
    %1964 = vmatprep.subr.bf16.mxu0 0
    %1965 = vmatpush1.bf16.msra.mxu0 %v332
    %1966 = vmatprep.subr.bf16.mxu0 0
    %1967 = vmatpush1.bf16.msra.mxu0 %v333
    %1968 = vmatprep.subr.bf16.mxu0 0
    %1969 = vmatpush1.bf16.msra.mxu0 %v334
    %1970 = vmatprep.subr.bf16.mxu0 0
    %1971 = vmatpush1.bf16.msra.mxu0 %v335
    %1972 = vmatprep.subr.bf16.mxu0 0
    %1973 = vmatpush1.bf16.msra.mxu0 %v336
    %1974 = vmatprep.subr.bf16.mxu0 0
    %1975 = vmatpush1.bf16.msra.mxu0 %v337
    %1976 = vmatprep.subr.bf16.mxu0 0
    %1977 = vmatpush1.bf16.msra.mxu0 %v338
    %1978 = vmatprep.subr.bf16.mxu0 0
    %1979 = vmatpush1.bf16.msra.mxu0 %v339
    %1980 = vmatprep.subr.bf16.mxu0 0
    %1981 = vmatpush1.bf16.msra.mxu0 %v340
    %1982 = vmatprep.subr.bf16.mxu0 0
    %1983 = vmatpush1.bf16.msra.mxu0 %v341
    %1984 = vmatprep.mubr.bf16.mxu0 %v1942
    %1985 = vmatmul.mubr.bf16.gmra.mrb[0].mxu0 %v1928
    %v1986 = vpop.f32.mrb[0].mxu0
    %v1987 = vadd.f32 %v136, %v1986
    %v1988 = vpop.f32.mrb[0].mxu0
    %v1989 = vpop.f32.mrb[0].mxu0
    %v1990 = vpop.f32.mrb[0].mxu0
    %1991 = vdwg.mxu0
    %1992 = vmatprep.subr.bf16.mxu0 0
    %1993 = vmatpush1.bf16.msra.mxu0 %v342
    %1994 = vmatprep.subr.bf16.mxu0 0
    %1995 = vmatpush1.bf16.msra.mxu0 %v343
    %1996 = vmatprep.subr.bf16.mxu0 0
    %1997 = vmatpush1.bf16.msra.mxu0 %v344
    %1998 = vmatprep.subr.bf16.mxu0 0
    %1999 = vmatpush1.bf16.msra.mxu0 %v345
    %2000 = vmatprep.subr.bf16.mxu0 0
    %2001 = vmatpush1.bf16.msra.mxu0 %v346
    %2002 = vmatprep.subr.bf16.mxu0 0
    %2003 = vmatpush1.bf16.msra.mxu0 %v347
    %2004 = vmatprep.subr.bf16.mxu0 0
    %2005 = vmatpush1.bf16.msra.mxu0 %v348
    %2006 = vmatprep.subr.bf16.mxu0 0
    %2007 = vmatpush1.bf16.msra.mxu0 %v349
    %2008 = vmatprep.subr.bf16.mxu0 0
    %2009 = vmatpush1.bf16.msra.mxu0 %v350
    %2010 = vmatprep.subr.bf16.mxu0 0
    %2011 = vmatpush1.bf16.msra.mxu0 %v351
    %2012 = vmatprep.subr.bf16.mxu0 0
    %2013 = vmatpush1.bf16.msra.mxu0 %v352
    %2014 = vmatprep.subr.bf16.mxu0 0
    %2015 = vmatpush1.bf16.msra.mxu0 %v353
    %2016 = vmatprep.subr.bf16.mxu0 0
    %2017 = vmatpush1.bf16.msra.mxu0 %v354
    %2018 = vmatprep.subr.bf16.mxu0 0
    %2019 = vmatpush1.bf16.msra.mxu0 %v355
    %2020 = vmatprep.subr.bf16.mxu0 0
    %2021 = vmatpush1.bf16.msra.mxu0 %v356
    %2022 = vmatprep.subr.bf16.mxu0 0
    %2023 = vmatpush1.bf16.msra.mxu0 %v357
    %2024 = vmatprep.mubr.bf16.mxu0 %v1944
    %2025 = vmatmul.mubr.bf16.gmra.mrb[0].mxu0 %v1943
    %v2026 = vpop.f32.mrb[0].mxu0
    %v2027 = vadd.f32 %v1987, %v2026
    %v2028 = vpop.f32.mrb[0].mxu0
    %v2029 = vpop.f32.mrb[0].mxu0
    %v2030 = vpop.f32.mrb[0].mxu0
    %2031 = vdwg.mxu0
    %2032 = vmatprep.subr.bf16.mxu0 0
    %2033 = vmatpush1.bf16.msra.mxu0 %v358
    %2034 = vmatprep.subr.bf16.mxu0 0
    %2035 = vmatpush1.bf16.msra.mxu0 %v359
    %2036 = vmatprep.subr.bf16.mxu0 0
    %2037 = vmatpush1.bf16.msra.mxu0 %v360
    %2038 = vmatprep.subr.bf16.mxu0 0
    %2039 = vmatpush1.bf16.msra.mxu0 %v361
    %2040 = vmatprep.subr.bf16.mxu0 0
    %2041 = vmatpush1.bf16.msra.mxu0 0
    %2042 = vmatprep.subr.bf16.mxu0 0
    %2043 = vmatpush1.bf16.msra.mxu0 0
    %2044 = vmatprep.subr.bf16.mxu0 0
    %2045 = vmatpush1.bf16.msra.mxu0 0
    %2046 = vmatprep.subr.bf16.mxu0 0
    %2047 = vmatpush1.bf16.msra.mxu0 0
    %2048 = vmatprep.subr.bf16.mxu0 0
    %2049 = vmatpush1.bf16.msra.mxu0 0
    %2050 = vmatprep.subr.bf16.mxu0 0
    %2051 = vmatpush1.bf16.msra.mxu0 0
    %2052 = vmatprep.subr.bf16.mxu0 0
    %2053 = vmatpush1.bf16.msra.mxu0 0
    %2054 = vmatprep.subr.bf16.mxu0 0
    %2055 = vmatpush1.bf16.msra.mxu0 0
    %2056 = vmatprep.subr.bf16.mxu0 0
    %2057 = vmatpush1.bf16.msra.mxu0 0
    %2058 = vmatprep.subr.bf16.mxu0 0
    %2059 = vmatpush1.bf16.msra.mxu0 0
    %2060 = vmatprep.subr.bf16.mxu0 0
    %2061 = vmatpush1.bf16.msra.mxu0 0
    %2062 = vmatprep.subr.bf16.mxu0 0
    %2063 = vmatpush1.bf16.msra.mxu0 0
    %2064 = vmatprep.mubr.bf16.mxu0 0
    %2065 = vmatmul.mubr.bf16.gmra.mrb[0].mxu0 %v1950
    %v2066 = vpop.f32.mrb[0].mxu0
    %v2067 = vadd.f32 %v2027, %v2066
    %v2068 = vpop.f32.mrb[0].mxu0
    %v2069 = vpop.f32.mrb[0].mxu0
    %v2070 = vpop.f32.mrb[0].mxu0
    %2071 = vdwg.mxu0
    %v2072 = vmax.f32 %v2067, 0.0
    %v2073 = vpack.c.bf16 %v2072, %v2072
    %s2074 = scalar_lea.vmem %s3, 640
    %v2075 = vld [vmem:[%s2074] sm:$0xff]
    %v2076 = vld [vmem:[%s2074 + $0x8] sm:$0xff]
    %v2077 = vld [vmem:[%s2074 + $0x10] sm:$0xff]
    %v2078 = vld [vmem:[%s2074 + $0x18] sm:$0xff]
    %v2079 = vld [vmem:[%s2074 + $0x20] sm:$0xff]
    %v2080 = vld [vmem:[%s2074 + $0x28] sm:$0xff]
    %v2081 = vld [vmem:[%s2074 + $0x30] sm:$0xff]
    %v2082 = vld [vmem:[%s2074 + $0x38] sm:$0xff]
    %v2083 = vld [vmem:[%s2074 + $0x40] sm:$0xff]
    %v2084 = vld [vmem:[%s2074 + $0x48] sm:$0xff]
    %v2085 = vld [vmem:[%s2074 + $0x50] sm:$0xff]
    %v2086 = vld [vmem:[%s2074 + $0x58] sm:$0xff]
    %v2087 = vld [vmem:[%s2074 + $0x60] sm:$0xff]
    %v2088 = vld [vmem:[%s2074 + $0x68] sm:$0xff]
    %v2089 = vld [vmem:[%s2074 + $0x70] sm:$0xff]
    %v2090 = vld [vmem:[%s2074 + $0x78] sm:$0xff]
    %v2107 = vunpack.c.l.b16 %v2075
    %v2108 = vunpack.c.h.b16 %v2075
    %v2109 = vunpack.c.l.b16 %v2076
    %v2110 = vunpack.c.h.b16 %v2076
    %v2111 = vunpack.c.l.b16 %v2077
    %v2112 = vunpack.c.h.b16 %v2077
    %v2113 = vunpack.c.l.b16 %v2078
    %v2114 = vunpack.c.h.b16 %v2078
    %v2115 = vunpack.c.l.b16 %v2079
    %v2116 = vunpack.c.h.b16 %v2079
    %v2117 = vunpack.c.l.b16 %v2080
    %v2118 = vunpack.c.h.b16 %v2080
    %v2119 = vunpack.c.l.b16 %v2081
    %v2120 = vunpack.c.h.b16 %v2081
    %v2121 = vunpack.c.l.b16 %v2082
    %v2122 = vunpack.c.h.b16 %v2082
    %v2123 = vunpack.c.l.b16 %v2083
    %v2124 = vunpack.c.h.b16 %v2083
    %v2125 = vunpack.c.l.b16 %v2084
    %v2126 = vunpack.c.h.b16 %v2084
    %v2127 = vunpack.c.l.b16 %v2085
    %v2128 = vunpack.c.h.b16 %v2085
    %v2129 = vunpack.c.l.b16 %v2086
    %v2130 = vunpack.c.h.b16 %v2086
    %v2131 = vunpack.c.l.b16 %v2087
    %v2132 = vunpack.c.h.b16 %v2087
    %v2133 = vunpack.c.l.b16 %v2088
    %v2134 = vunpack.c.h.b16 %v2088
    %v2135 = vunpack.c.l.b16 %v2089
    %v2136 = vunpack.c.h.b16 %v2089
    %v2137 = vunpack.c.l.b16 %v2090
    %v2138 = vunpack.c.h.b16 %v2090
    %v2139 = vpack.c.b16 %v2109, %v2107
    %v2140 = vpack.c.b16 %v2110, %v2108
    %v2141 = vpack.c.b16 %v2113, %v2111
    %v2142 = vpack.c.b16 %v2114, %v2112
    %v2143 = vpack.c.b16 %v2117, %v2115
    %v2144 = vpack.c.b16 %v2118, %v2116
    %v2145 = vpack.c.b16 %v2121, %v2119
    %v2146 = vpack.c.b16 %v2122, %v2120
    %v2147 = vpack.c.b16 %v2125, %v2123
    %v2148 = vpack.c.b16 %v2126, %v2124
    %v2149 = vpack.c.b16 %v2129, %v2127
    %v2150 = vpack.c.b16 %v2130, %v2128
    %v2151 = vpack.c.b16 %v2133, %v2131
    %v2152 = vpack.c.b16 %v2134, %v2132
    %v2153 = vpack.c.b16 %v2137, %v2135
    %v2154 = vpack.c.b16 %v2138, %v2136
    %2171 = vmatprep.subr.bf16.mxu0 %v2140
    %2172 = vmatpush1.bf16.msra.mxu0 %v2139
    %2173 = vmatprep.subr.bf16.mxu0 %v2142
    %2174 = vmatpush1.bf16.msra.mxu0 %v2141
    %2175 = vmatprep.subr.bf16.mxu0 %v2144
    %2176 = vmatpush1.bf16.msra.mxu0 %v2143
    %2177 = vmatprep.subr.bf16.mxu0 %v2146
    %2178 = vmatpush1.bf16.msra.mxu0 %v2145
    %2179 = vmatprep.subr.bf16.mxu0 %v2148
    %2180 = vmatpush1.bf16.msra.mxu0 %v2147
    %2181 = vmatprep.subr.bf16.mxu0 %v2150
    %2182 = vmatpush1.bf16.msra.mxu0 %v2149
    %2183 = vmatprep.subr.bf16.mxu0 %v2152
    %2184 = vmatpush1.bf16.msra.mxu0 %v2151
    %2185 = vmatprep.subr.bf16.mxu0 %v2154
    %2186 = vmatpush1.bf16.msra.mxu0 %v2153
    %2187 = vmatprep.subr.bf16.mxu0 0
    %2188 = vmatpush1.bf16.msra.mxu0 0
    %2189 = vmatprep.subr.bf16.mxu0 0
    %2190 = vmatpush1.bf16.msra.mxu0 0
    %2191 = vmatprep.subr.bf16.mxu0 0
    %2192 = vmatpush1.bf16.msra.mxu0 0
    %2193 = vmatprep.subr.bf16.mxu0 0
    %2194 = vmatpush1.bf16.msra.mxu0 0
    %2195 = vmatprep.subr.bf16.mxu0 0
    %2196 = vmatpush1.bf16.msra.mxu0 0
    %2197 = vmatprep.subr.bf16.mxu0 0
    %2198 = vmatpush1.bf16.msra.mxu0 0
    %2199 = vmatprep.subr.bf16.mxu0 0
    %2200 = vmatpush1.bf16.msra.mxu0 0
    %2201 = vmatprep.subr.bf16.mxu0 0
    %2202 = vmatpush1.bf16.msra.mxu0 0
    %2203 = vmatprep.mubr.bf16.mxu0 0
    %2204 = vmatmul.mubr.bf16.gmra.mrb[0].mxu0 %v2073
    %v2205 = vpop.f32.mrb[0].mxu0
    %v2206 = vadd.f32 0.0, %v2205
    %v2207 = vpop.f32.mrb[0].mxu0
    %v2208 = vadd.f32 0.0, %v2207
    %v2209 = vpop.f32.mrb[0].mxu0
    %v2210 = vpop.f32.mrb[0].mxu0
    %2211 = vdwg.mxu0
    %v2212 = vadd.f32 %v1901, %v2206
    %v2213 = vadd.f32 %v1902, %v2208
    %s2214 = scalar_lea.vmem %s0, 30
    %v2215 = vld [vmem:[%s2214] sm:$0x1f]
    %v2217 = vcombine.high %v2215, %v2215
    %v2219 = vunpack.c.l.s4 1966171168
    %v2220 = vunpack.c.0.s8 %v2219
    %v2221 = vlaneseq
    %v2222 = vshrl.u32 %v2221, 7
    %v2223 = vsub.s32 %v2220, %v2222
    %v2224 = vrot.slane %v2215, %v2223
    %v2226 = vunpack.c.l.s4 1966171168
    %v2227 = vunpack.c.0.s8 %v2226
    %v2228 = vlaneseq
    %v2229 = vshrl.u32 %v2228, 7
    %v2230 = vsub.s32 %v2227, %v2229
    %v2231 = vrot.slane %v2217, %v2230
    %v2232 = vcombine.high %v2224, %v2224
    %v2234 = vunpack.c.l.s4 1966171168
    %v2235 = vunpack.c.0.s8 %v2234
    %v2236 = vlaneseq
    %v2237 = vshrl.u32 %v2236, 7
    %v2238 = vsub.s32 %v2235, %v2237
    %v2239 = vrot.slane %v2224, %v2238
    %v2241 = vunpack.c.l.s4 1966171168
    %v2242 = vunpack.c.0.s8 %v2241
    %v2243 = vlaneseq
    %v2244 = vshrl.u32 %v2243, 7
    %v2245 = vsub.s32 %v2242, %v2244
    %v2246 = vrot.slane %v2231, %v2245
    %v2248 = vunpack.c.l.s4 1966171168
    %v2249 = vunpack.c.0.s8 %v2248
    %v2250 = vlaneseq
    %v2251 = vshrl.u32 %v2250, 7
    %v2252 = vsub.s32 %v2249, %v2251
    %v2253 = vrot.slane %v2232, %v2252
    %v2254 = vcombine.high %v2239, %v2239
    %v2255 = vcombine.high %v2253, %v2253
    %v2261 = vsel %vm398, %v2246, 0
    %2263 = vmatprep.subr.bf16.mxu0 0
    %2264 = vmatpush1.bf16.msra.mxu0 %v326
    %2265 = vmatprep.subr.bf16.mxu0 0
    %2266 = vmatpush1.bf16.msra.mxu0 %v327
    %2267 = vmatprep.subr.bf16.mxu0 0
    %2268 = vmatpush1.bf16.msra.mxu0 %v328
    %2269 = vmatprep.subr.bf16.mxu0 0
    %2270 = vmatpush1.bf16.msra.mxu0 %v329
    %2271 = vmatprep.subr.bf16.mxu0 0
    %2272 = vmatpush1.bf16.msra.mxu0 %v330
    %2273 = vmatprep.subr.bf16.mxu0 0
    %2274 = vmatpush1.bf16.msra.mxu0 %v331
    %2275 = vmatprep.subr.bf16.mxu0 0
    %2276 = vmatpush1.bf16.msra.mxu0 %v332
    %2277 = vmatprep.subr.bf16.mxu0 0
    %2278 = vmatpush1.bf16.msra.mxu0 %v333
    %2279 = vmatprep.subr.bf16.mxu0 0
    %2280 = vmatpush1.bf16.msra.mxu0 %v334
    %2281 = vmatprep.subr.bf16.mxu0 0
    %2282 = vmatpush1.bf16.msra.mxu0 %v335
    %2283 = vmatprep.subr.bf16.mxu0 0
    %2284 = vmatpush1.bf16.msra.mxu0 %v336
    %2285 = vmatprep.subr.bf16.mxu0 0
    %2286 = vmatpush1.bf16.msra.mxu0 %v337
    %2287 = vmatprep.subr.bf16.mxu0 0
    %2288 = vmatpush1.bf16.msra.mxu0 %v338
    %2289 = vmatprep.subr.bf16.mxu0 0
    %2290 = vmatpush1.bf16.msra.mxu0 %v339
    %2291 = vmatprep.subr.bf16.mxu0 0
    %2292 = vmatpush1.bf16.msra.mxu0 %v340
    %2293 = vmatprep.subr.bf16.mxu0 0
    %2294 = vmatpush1.bf16.msra.mxu0 %v341
    %2295 = vmatprep.mubr.bf16.mxu0 %v2253
    %2296 = vmatmul.mubr.bf16.gmra.mrb[0].mxu0 %v2239
    %v2297 = vpop.f32.mrb[0].mxu0
    %v2298 = vadd.f32 %v136, %v2297
    %v2299 = vpop.f32.mrb[0].mxu0
    %v2300 = vpop.f32.mrb[0].mxu0
    %v2301 = vpop.f32.mrb[0].mxu0
    %2302 = vdwg.mxu0
    %2303 = vmatprep.subr.bf16.mxu0 0
    %2304 = vmatpush1.bf16.msra.mxu0 %v342
    %2305 = vmatprep.subr.bf16.mxu0 0
    %2306 = vmatpush1.bf16.msra.mxu0 %v343
    %2307 = vmatprep.subr.bf16.mxu0 0
    %2308 = vmatpush1.bf16.msra.mxu0 %v344
    %2309 = vmatprep.subr.bf16.mxu0 0
    %2310 = vmatpush1.bf16.msra.mxu0 %v345
    %2311 = vmatprep.subr.bf16.mxu0 0
    %2312 = vmatpush1.bf16.msra.mxu0 %v346
    %2313 = vmatprep.subr.bf16.mxu0 0
    %2314 = vmatpush1.bf16.msra.mxu0 %v347
    %2315 = vmatprep.subr.bf16.mxu0 0
    %2316 = vmatpush1.bf16.msra.mxu0 %v348
    %2317 = vmatprep.subr.bf16.mxu0 0
    %2318 = vmatpush1.bf16.msra.mxu0 %v349
    %2319 = vmatprep.subr.bf16.mxu0 0
    %2320 = vmatpush1.bf16.msra.mxu0 %v350
    %2321 = vmatprep.subr.bf16.mxu0 0
    %2322 = vmatpush1.bf16.msra.mxu0 %v351
    %2323 = vmatprep.subr.bf16.mxu0 0
    %2324 = vmatpush1.bf16.msra.mxu0 %v352
    %2325 = vmatprep.subr.bf16.mxu0 0
    %2326 = vmatpush1.bf16.msra.mxu0 %v353
    %2327 = vmatprep.subr.bf16.mxu0 0
    %2328 = vmatpush1.bf16.msra.mxu0 %v354
    %2329 = vmatprep.subr.bf16.mxu0 0
    %2330 = vmatpush1.bf16.msra.mxu0 %v355
    %2331 = vmatprep.subr.bf16.mxu0 0
    %2332 = vmatpush1.bf16.msra.mxu0 %v356
    %2333 = vmatprep.subr.bf16.mxu0 0
    %2334 = vmatpush1.bf16.msra.mxu0 %v357
    %2335 = vmatprep.mubr.bf16.mxu0 %v2255
    %2336 = vmatmul.mubr.bf16.gmra.mrb[0].mxu0 %v2254
    %v2337 = vpop.f32.mrb[0].mxu0
    %v2338 = vadd.f32 %v2298, %v2337
    %v2339 = vpop.f32.mrb[0].mxu0
    %v2340 = vpop.f32.mrb[0].mxu0
    %v2341 = vpop.f32.mrb[0].mxu0
    %2342 = vdwg.mxu0
    %2343 = vmatprep.subr.bf16.mxu0 0
    %2344 = vmatpush1.bf16.msra.mxu0 %v358
    %2345 = vmatprep.subr.bf16.mxu0 0
    %2346 = vmatpush1.bf16.msra.mxu0 %v359
    %2347 = vmatprep.subr.bf16.mxu0 0
    %2348 = vmatpush1.bf16.msra.mxu0 %v360
    %2349 = vmatprep.subr.bf16.mxu0 0
    %2350 = vmatpush1.bf16.msra.mxu0 %v361
    %2351 = vmatprep.subr.bf16.mxu0 0
    %2352 = vmatpush1.bf16.msra.mxu0 0
    %2353 = vmatprep.subr.bf16.mxu0 0
    %2354 = vmatpush1.bf16.msra.mxu0 0
    %2355 = vmatprep.subr.bf16.mxu0 0
    %2356 = vmatpush1.bf16.msra.mxu0 0
    %2357 = vmatprep.subr.bf16.mxu0 0
    %2358 = vmatpush1.bf16.msra.mxu0 0
    %2359 = vmatprep.subr.bf16.mxu0 0
    %2360 = vmatpush1.bf16.msra.mxu0 0
    %2361 = vmatprep.subr.bf16.mxu0 0
    %2362 = vmatpush1.bf16.msra.mxu0 0
    %2363 = vmatprep.subr.bf16.mxu0 0
    %2364 = vmatpush1.bf16.msra.mxu0 0
    %2365 = vmatprep.subr.bf16.mxu0 0
    %2366 = vmatpush1.bf16.msra.mxu0 0
    %2367 = vmatprep.subr.bf16.mxu0 0
    %2368 = vmatpush1.bf16.msra.mxu0 0
    %2369 = vmatprep.subr.bf16.mxu0 0
    %2370 = vmatpush1.bf16.msra.mxu0 0
    %2371 = vmatprep.subr.bf16.mxu0 0
    %2372 = vmatpush1.bf16.msra.mxu0 0
    %2373 = vmatprep.subr.bf16.mxu0 0
    %2374 = vmatpush1.bf16.msra.mxu0 0
    %2375 = vmatprep.mubr.bf16.mxu0 0
    %2376 = vmatmul.mubr.bf16.gmra.mrb[0].mxu0 %v2261
    %v2377 = vpop.f32.mrb[0].mxu0
    %v2378 = vadd.f32 %v2338, %v2377
    %v2379 = vpop.f32.mrb[0].mxu0
    %v2380 = vpop.f32.mrb[0].mxu0
    %v2381 = vpop.f32.mrb[0].mxu0
    %2382 = vdwg.mxu0
    %v2383 = vmax.f32 %v2378, 0.0
    %v2384 = vpack.c.bf16 %v2383, %v2383
    %s2385 = scalar_lea.vmem %s3, 768
    %v2386 = vld [vmem:[%s2385] sm:$0xff]
    %v2387 = vld [vmem:[%s2385 + $0x8] sm:$0xff]
    %v2388 = vld [vmem:[%s2385 + $0x10] sm:$0xff]
    %v2389 = vld [vmem:[%s2385 + $0x18] sm:$0xff]
    %v2390 = vld [vmem:[%s2385 + $0x20] sm:$0xff]
    %v2391 = vld [vmem:[%s2385 + $0x28] sm:$0xff]
    %v2392 = vld [vmem:[%s2385 + $0x30] sm:$0xff]
    %v2393 = vld [vmem:[%s2385 + $0x38] sm:$0xff]
    %v2394 = vld [vmem:[%s2385 + $0x40] sm:$0xff]
    %v2395 = vld [vmem:[%s2385 + $0x48] sm:$0xff]
    %v2396 = vld [vmem:[%s2385 + $0x50] sm:$0xff]
    %v2397 = vld [vmem:[%s2385 + $0x58] sm:$0xff]
    %v2398 = vld [vmem:[%s2385 + $0x60] sm:$0xff]
    %v2399 = vld [vmem:[%s2385 + $0x68] sm:$0xff]
    %v2400 = vld [vmem:[%s2385 + $0x70] sm:$0xff]
    %v2401 = vld [vmem:[%s2385 + $0x78] sm:$0xff]
    %v2418 = vunpack.c.l.b16 %v2386
    %v2419 = vunpack.c.h.b16 %v2386
    %v2420 = vunpack.c.l.b16 %v2387
    %v2421 = vunpack.c.h.b16 %v2387
    %v2422 = vunpack.c.l.b16 %v2388
    %v2423 = vunpack.c.h.b16 %v2388
    %v2424 = vunpack.c.l.b16 %v2389
    %v2425 = vunpack.c.h.b16 %v2389
    %v2426 = vunpack.c.l.b16 %v2390
    %v2427 = vunpack.c.h.b16 %v2390
    %v2428 = vunpack.c.l.b16 %v2391
    %v2429 = vunpack.c.h.b16 %v2391
    %v2430 = vunpack.c.l.b16 %v2392
    %v2431 = vunpack.c.h.b16 %v2392
    %v2432 = vunpack.c.l.b16 %v2393
    %v2433 = vunpack.c.h.b16 %v2393
    %v2434 = vunpack.c.l.b16 %v2394
    %v2435 = vunpack.c.h.b16 %v2394
    %v2436 = vunpack.c.l.b16 %v2395
    %v2437 = vunpack.c.h.b16 %v2395
    %v2438 = vunpack.c.l.b16 %v2396
    %v2439 = vunpack.c.h.b16 %v2396
    %v2440 = vunpack.c.l.b16 %v2397
    %v2441 = vunpack.c.h.b16 %v2397
    %v2442 = vunpack.c.l.b16 %v2398
    %v2443 = vunpack.c.h.b16 %v2398
    %v2444 = vunpack.c.l.b16 %v2399
    %v2445 = vunpack.c.h.b16 %v2399
    %v2446 = vunpack.c.l.b16 %v2400
    %v2447 = vunpack.c.h.b16 %v2400
    %v2448 = vunpack.c.l.b16 %v2401
    %v2449 = vunpack.c.h.b16 %v2401
    %v2450 = vpack.c.b16 %v2420, %v2418
    %v2451 = vpack.c.b16 %v2421, %v2419
    %v2452 = vpack.c.b16 %v2424, %v2422
    %v2453 = vpack.c.b16 %v2425, %v2423
    %v2454 = vpack.c.b16 %v2428, %v2426
    %v2455 = vpack.c.b16 %v2429, %v2427
    %v2456 = vpack.c.b16 %v2432, %v2430
    %v2457 = vpack.c.b16 %v2433, %v2431
    %v2458 = vpack.c.b16 %v2436, %v2434
    %v2459 = vpack.c.b16 %v2437, %v2435
    %v2460 = vpack.c.b16 %v2440, %v2438
    %v2461 = vpack.c.b16 %v2441, %v2439
    %v2462 = vpack.c.b16 %v2444, %v2442
    %v2463 = vpack.c.b16 %v2445, %v2443
    %v2464 = vpack.c.b16 %v2448, %v2446
    %v2465 = vpack.c.b16 %v2449, %v2447
    %2482 = vmatprep.subr.bf16.mxu0 %v2451
    %2483 = vmatpush1.bf16.msra.mxu0 %v2450
    %2484 = vmatprep.subr.bf16.mxu0 %v2453
    %2485 = vmatpush1.bf16.msra.mxu0 %v2452
    %2486 = vmatprep.subr.bf16.mxu0 %v2455
    %2487 = vmatpush1.bf16.msra.mxu0 %v2454
    %2488 = vmatprep.subr.bf16.mxu0 %v2457
    %2489 = vmatpush1.bf16.msra.mxu0 %v2456
    %2490 = vmatprep.subr.bf16.mxu0 %v2459
    %2491 = vmatpush1.bf16.msra.mxu0 %v2458
    %2492 = vmatprep.subr.bf16.mxu0 %v2461
    %2493 = vmatpush1.bf16.msra.mxu0 %v2460
    %2494 = vmatprep.subr.bf16.mxu0 %v2463
    %2495 = vmatpush1.bf16.msra.mxu0 %v2462
    %2496 = vmatprep.subr.bf16.mxu0 %v2465
    %2497 = vmatpush1.bf16.msra.mxu0 %v2464
    %2498 = vmatprep.subr.bf16.mxu0 0
    %2499 = vmatpush1.bf16.msra.mxu0 0
    %2500 = vmatprep.subr.bf16.mxu0 0
    %2501 = vmatpush1.bf16.msra.mxu0 0
    %2502 = vmatprep.subr.bf16.mxu0 0
    %2503 = vmatpush1.bf16.msra.mxu0 0
    %2504 = vmatprep.subr.bf16.mxu0 0
    %2505 = vmatpush1.bf16.msra.mxu0 0
    %2506 = vmatprep.subr.bf16.mxu0 0
    %2507 = vmatpush1.bf16.msra.mxu0 0
    %2508 = vmatprep.subr.bf16.mxu0 0
    %2509 = vmatpush1.bf16.msra.mxu0 0
    %2510 = vmatprep.subr.bf16.mxu0 0
    %2511 = vmatpush1.bf16.msra.mxu0 0
    %2512 = vmatprep.subr.bf16.mxu0 0
    %2513 = vmatpush1.bf16.msra.mxu0 0
    %2514 = vmatprep.mubr.bf16.mxu0 0
    %2515 = vmatmul.mubr.bf16.gmra.mrb[0].mxu0 %v2384
    %v2516 = vpop.f32.mrb[0].mxu0
    %v2517 = vadd.f32 0.0, %v2516
    %v2518 = vpop.f32.mrb[0].mxu0
    %v2519 = vadd.f32 0.0, %v2518
    %v2520 = vpop.f32.mrb[0].mxu0
    %v2521 = vpop.f32.mrb[0].mxu0
    %2522 = vdwg.mxu0
    %v2523 = vadd.f32 %v2212, %v2517
    %v2524 = vadd.f32 %v2213, %v2519
    %s2525 = scalar_lea.vmem %s0, 35
    %v2526 = vld [vmem:[%s2525] sm:$0x1f]
    %v2528 = vcombine.high %v2526, %v2526
    %v2530 = vunpack.c.l.s4 1966171168
    %v2531 = vunpack.c.0.s8 %v2530
    %v2532 = vlaneseq
    %v2533 = vshrl.u32 %v2532, 7
    %v2534 = vsub.s32 %v2531, %v2533
    %v2535 = vrot.slane %v2526, %v2534
    %v2537 = vunpack.c.l.s4 1966171168
    %v2538 = vunpack.c.0.s8 %v2537
    %v2539 = vlaneseq
    %v2540 = vshrl.u32 %v2539, 7
    %v2541 = vsub.s32 %v2538, %v2540
    %v2542 = vrot.slane %v2528, %v2541
    %v2543 = vcombine.high %v2535, %v2535
    %v2545 = vunpack.c.l.s4 1966171168
    %v2546 = vunpack.c.0.s8 %v2545
    %v2547 = vlaneseq
    %v2548 = vshrl.u32 %v2547, 7
    %v2549 = vsub.s32 %v2546, %v2548
    %v2550 = vrot.slane %v2535, %v2549
    %v2552 = vunpack.c.l.s4 1966171168
    %v2553 = vunpack.c.0.s8 %v2552
    %v2554 = vlaneseq
    %v2555 = vshrl.u32 %v2554, 7
    %v2556 = vsub.s32 %v2553, %v2555
    %v2557 = vrot.slane %v2542, %v2556
    %v2559 = vunpack.c.l.s4 1966171168
    %v2560 = vunpack.c.0.s8 %v2559
    %v2561 = vlaneseq
    %v2562 = vshrl.u32 %v2561, 7
    %v2563 = vsub.s32 %v2560, %v2562
    %v2564 = vrot.slane %v2543, %v2563
    %v2565 = vcombine.high %v2550, %v2550
    %v2566 = vcombine.high %v2564, %v2564
    %v2572 = vsel %vm398, %v2557, 0
    %2574 = vmatprep.subr.bf16.mxu0 0
    %2575 = vmatpush1.bf16.msra.mxu0 %v326
    %2576 = vmatprep.subr.bf16.mxu0 0
    %2577 = vmatpush1.bf16.msra.mxu0 %v327
    %2578 = vmatprep.subr.bf16.mxu0 0
    %2579 = vmatpush1.bf16.msra.mxu0 %v328
    %2580 = vmatprep.subr.bf16.mxu0 0
    %2581 = vmatpush1.bf16.msra.mxu0 %v329
    %2582 = vmatprep.subr.bf16.mxu0 0
    %2583 = vmatpush1.bf16.msra.mxu0 %v330
    %2584 = vmatprep.subr.bf16.mxu0 0
    %2585 = vmatpush1.bf16.msra.mxu0 %v331
    %2586 = vmatprep.subr.bf16.mxu0 0
    %2587 = vmatpush1.bf16.msra.mxu0 %v332
    %2588 = vmatprep.subr.bf16.mxu0 0
    %2589 = vmatpush1.bf16.msra.mxu0 %v333
    %2590 = vmatprep.subr.bf16.mxu0 0
    %2591 = vmatpush1.bf16.msra.mxu0 %v334
    %2592 = vmatprep.subr.bf16.mxu0 0
    %2593 = vmatpush1.bf16.msra.mxu0 %v335
    %2594 = vmatprep.subr.bf16.mxu0 0
    %2595 = vmatpush1.bf16.msra.mxu0 %v336
    %2596 = vmatprep.subr.bf16.mxu0 0
    %2597 = vmatpush1.bf16.msra.mxu0 %v337
    %2598 = vmatprep.subr.bf16.mxu0 0
    %2599 = vmatpush1.bf16.msra.mxu0 %v338
    %2600 = vmatprep.subr.bf16.mxu0 0
    %2601 = vmatpush1.bf16.msra.mxu0 %v339
    %2602 = vmatprep.subr.bf16.mxu0 0
    %2603 = vmatpush1.bf16.msra.mxu0 %v340
    %2604 = vmatprep.subr.bf16.mxu0 0
    %2605 = vmatpush1.bf16.msra.mxu0 %v341
    %2606 = vmatprep.mubr.bf16.mxu0 %v2564
    %2607 = vmatmul.mubr.bf16.gmra.mrb[0].mxu0 %v2550
    %v2608 = vpop.f32.mrb[0].mxu0
    %v2609 = vadd.f32 %v136, %v2608
    %v2610 = vpop.f32.mrb[0].mxu0
    %v2611 = vpop.f32.mrb[0].mxu0
    %v2612 = vpop.f32.mrb[0].mxu0
    %2613 = vdwg.mxu0
    %2614 = vmatprep.subr.bf16.mxu0 0
    %2615 = vmatpush1.bf16.msra.mxu0 %v342
    %2616 = vmatprep.subr.bf16.mxu0 0
    %2617 = vmatpush1.bf16.msra.mxu0 %v343
    %2618 = vmatprep.subr.bf16.mxu0 0
    %2619 = vmatpush1.bf16.msra.mxu0 %v344
    %2620 = vmatprep.subr.bf16.mxu0 0
    %2621 = vmatpush1.bf16.msra.mxu0 %v345
    %2622 = vmatprep.subr.bf16.mxu0 0
    %2623 = vmatpush1.bf16.msra.mxu0 %v346
    %2624 = vmatprep.subr.bf16.mxu0 0
    %2625 = vmatpush1.bf16.msra.mxu0 %v347
    %2626 = vmatprep.subr.bf16.mxu0 0
    %2627 = vmatpush1.bf16.msra.mxu0 %v348
    %2628 = vmatprep.subr.bf16.mxu0 0
    %2629 = vmatpush1.bf16.msra.mxu0 %v349
    %2630 = vmatprep.subr.bf16.mxu0 0
    %2631 = vmatpush1.bf16.msra.mxu0 %v350
    %2632 = vmatprep.subr.bf16.mxu0 0
    %2633 = vmatpush1.bf16.msra.mxu0 %v351
    %2634 = vmatprep.subr.bf16.mxu0 0
    %2635 = vmatpush1.bf16.msra.mxu0 %v352
    %2636 = vmatprep.subr.bf16.mxu0 0
    %2637 = vmatpush1.bf16.msra.mxu0 %v353
    %2638 = vmatprep.subr.bf16.mxu0 0
    %2639 = vmatpush1.bf16.msra.mxu0 %v354
    %2640 = vmatprep.subr.bf16.mxu0 0
    %2641 = vmatpush1.bf16.msra.mxu0 %v355
    %2642 = vmatprep.subr.bf16.mxu0 0
    %2643 = vmatpush1.bf16.msra.mxu0 %v356
    %2644 = vmatprep.subr.bf16.mxu0 0
    %2645 = vmatpush1.bf16.msra.mxu0 %v357
    %2646 = vmatprep.mubr.bf16.mxu0 %v2566
    %2647 = vmatmul.mubr.bf16.gmra.mrb[0].mxu0 %v2565
    %v2648 = vpop.f32.mrb[0].mxu0
    %v2649 = vadd.f32 %v2609, %v2648
    %v2650 = vpop.f32.mrb[0].mxu0
    %v2651 = vpop.f32.mrb[0].mxu0
    %v2652 = vpop.f32.mrb[0].mxu0
    %2653 = vdwg.mxu0
    %2654 = vmatprep.subr.bf16.mxu0 0
    %2655 = vmatpush1.bf16.msra.mxu0 %v358
    %2656 = vmatprep.subr.bf16.mxu0 0
    %2657 = vmatpush1.bf16.msra.mxu0 %v359
    %2658 = vmatprep.subr.bf16.mxu0 0
    %2659 = vmatpush1.bf16.msra.mxu0 %v360
    %2660 = vmatprep.subr.bf16.mxu0 0
    %2661 = vmatpush1.bf16.msra.mxu0 %v361
    %2662 = vmatprep.subr.bf16.mxu0 0
    %2663 = vmatpush1.bf16.msra.mxu0 0
    %2664 = vmatprep.subr.bf16.mxu0 0
    %2665 = vmatpush1.bf16.msra.mxu0 0
    %2666 = vmatprep.subr.bf16.mxu0 0
    %2667 = vmatpush1.bf16.msra.mxu0 0
    %2668 = vmatprep.subr.bf16.mxu0 0
    %2669 = vmatpush1.bf16.msra.mxu0 0
    %2670 = vmatprep.subr.bf16.mxu0 0
    %2671 = vmatpush1.bf16.msra.mxu0 0
    %2672 = vmatprep.subr.bf16.mxu0 0
    %2673 = vmatpush1.bf16.msra.mxu0 0
    %2674 = vmatprep.subr.bf16.mxu0 0
    %2675 = vmatpush1.bf16.msra.mxu0 0
    %2676 = vmatprep.subr.bf16.mxu0 0
    %2677 = vmatpush1.bf16.msra.mxu0 0
    %2678 = vmatprep.subr.bf16.mxu0 0
    %2679 = vmatpush1.bf16.msra.mxu0 0
    %2680 = vmatprep.subr.bf16.mxu0 0
    %2681 = vmatpush1.bf16.msra.mxu0 0
    %2682 = vmatprep.subr.bf16.mxu0 0
    %2683 = vmatpush1.bf16.msra.mxu0 0
    %2684 = vmatprep.subr.bf16.mxu0 0
    %2685 = vmatpush1.bf16.msra.mxu0 0
    %2686 = vmatprep.mubr.bf16.mxu0 0
    %2687 = vmatmul.mubr.bf16.gmra.mrb[0].mxu0 %v2572
    %v2688 = vpop.f32.mrb[0].mxu0
    %v2689 = vadd.f32 %v2649, %v2688
    %v2690 = vpop.f32.mrb[0].mxu0
    %v2691 = vpop.f32.mrb[0].mxu0
    %v2692 = vpop.f32.mrb[0].mxu0
    %2693 = vdwg.mxu0
    %v2694 = vmax.f32 %v2689, 0.0
    %v2695 = vpack.c.bf16 %v2694, %v2694
    %s2696 = scalar_lea.vmem %s3, 896
    %v2697 = vld [vmem:[%s2696] sm:$0xff]
    %v2698 = vld [vmem:[%s2696 + $0x8] sm:$0xff]
    %v2699 = vld [vmem:[%s2696 + $0x10] sm:$0xff]
    %v2700 = vld [vmem:[%s2696 + $0x18] sm:$0xff]
    %v2701 = vld [vmem:[%s2696 + $0x20] sm:$0xff]
    %v2702 = vld [vmem:[%s2696 + $0x28] sm:$0xff]
    %v2703 = vld [vmem:[%s2696 + $0x30] sm:$0xff]
    %v2704 = vld [vmem:[%s2696 + $0x38] sm:$0xff]
    %v2705 = vld [vmem:[%s2696 + $0x40] sm:$0xff]
    %v2706 = vld [vmem:[%s2696 + $0x48] sm:$0xff]
    %v2707 = vld [vmem:[%s2696 + $0x50] sm:$0xff]
    %v2708 = vld [vmem:[%s2696 + $0x58] sm:$0xff]
    %v2709 = vld [vmem:[%s2696 + $0x60] sm:$0xff]
    %v2710 = vld [vmem:[%s2696 + $0x68] sm:$0xff]
    %v2711 = vld [vmem:[%s2696 + $0x70] sm:$0xff]
    %v2712 = vld [vmem:[%s2696 + $0x78] sm:$0xff]
    %v2729 = vunpack.c.l.b16 %v2697
    %v2730 = vunpack.c.h.b16 %v2697
    %v2731 = vunpack.c.l.b16 %v2698
    %v2732 = vunpack.c.h.b16 %v2698
    %v2733 = vunpack.c.l.b16 %v2699
    %v2734 = vunpack.c.h.b16 %v2699
    %v2735 = vunpack.c.l.b16 %v2700
    %v2736 = vunpack.c.h.b16 %v2700
    %v2737 = vunpack.c.l.b16 %v2701
    %v2738 = vunpack.c.h.b16 %v2701
    %v2739 = vunpack.c.l.b16 %v2702
    %v2740 = vunpack.c.h.b16 %v2702
    %v2741 = vunpack.c.l.b16 %v2703
    %v2742 = vunpack.c.h.b16 %v2703
    %v2743 = vunpack.c.l.b16 %v2704
    %v2744 = vunpack.c.h.b16 %v2704
    %v2745 = vunpack.c.l.b16 %v2705
    %v2746 = vunpack.c.h.b16 %v2705
    %v2747 = vunpack.c.l.b16 %v2706
    %v2748 = vunpack.c.h.b16 %v2706
    %v2749 = vunpack.c.l.b16 %v2707
    %v2750 = vunpack.c.h.b16 %v2707
    %v2751 = vunpack.c.l.b16 %v2708
    %v2752 = vunpack.c.h.b16 %v2708
    %v2753 = vunpack.c.l.b16 %v2709
    %v2754 = vunpack.c.h.b16 %v2709
    %v2755 = vunpack.c.l.b16 %v2710
    %v2756 = vunpack.c.h.b16 %v2710
    %v2757 = vunpack.c.l.b16 %v2711
    %v2758 = vunpack.c.h.b16 %v2711
    %v2759 = vunpack.c.l.b16 %v2712
    %v2760 = vunpack.c.h.b16 %v2712
    %v2761 = vpack.c.b16 %v2731, %v2729
    %v2762 = vpack.c.b16 %v2732, %v2730
    %v2763 = vpack.c.b16 %v2735, %v2733
    %v2764 = vpack.c.b16 %v2736, %v2734
    %v2765 = vpack.c.b16 %v2739, %v2737
    %v2766 = vpack.c.b16 %v2740, %v2738
    %v2767 = vpack.c.b16 %v2743, %v2741
    %v2768 = vpack.c.b16 %v2744, %v2742
    %v2769 = vpack.c.b16 %v2747, %v2745
    %v2770 = vpack.c.b16 %v2748, %v2746
    %v2771 = vpack.c.b16 %v2751, %v2749
    %v2772 = vpack.c.b16 %v2752, %v2750
    %v2773 = vpack.c.b16 %v2755, %v2753
    %v2774 = vpack.c.b16 %v2756, %v2754
    %v2775 = vpack.c.b16 %v2759, %v2757
    %v2776 = vpack.c.b16 %v2760, %v2758
    %2793 = vmatprep.subr.bf16.mxu0 %v2762
    %2794 = vmatpush1.bf16.msra.mxu0 %v2761
    %2795 = vmatprep.subr.bf16.mxu0 %v2764
    %2796 = vmatpush1.bf16.msra.mxu0 %v2763
    %2797 = vmatprep.subr.bf16.mxu0 %v2766
    %2798 = vmatpush1.bf16.msra.mxu0 %v2765
    %2799 = vmatprep.subr.bf16.mxu0 %v2768
    %2800 = vmatpush1.bf16.msra.mxu0 %v2767
    %2801 = vmatprep.subr.bf16.mxu0 %v2770
    %2802 = vmatpush1.bf16.msra.mxu0 %v2769
    %2803 = vmatprep.subr.bf16.mxu0 %v2772
    %2804 = vmatpush1.bf16.msra.mxu0 %v2771
    %2805 = vmatprep.subr.bf16.mxu0 %v2774
    %2806 = vmatpush1.bf16.msra.mxu0 %v2773
    %2807 = vmatprep.subr.bf16.mxu0 %v2776
    %2808 = vmatpush1.bf16.msra.mxu0 %v2775
    %2809 = vmatprep.subr.bf16.mxu0 0
    %2810 = vmatpush1.bf16.msra.mxu0 0
    %2811 = vmatprep.subr.bf16.mxu0 0
    %2812 = vmatpush1.bf16.msra.mxu0 0
    %2813 = vmatprep.subr.bf16.mxu0 0
    %2814 = vmatpush1.bf16.msra.mxu0 0
    %2815 = vmatprep.subr.bf16.mxu0 0
    %2816 = vmatpush1.bf16.msra.mxu0 0
    %2817 = vmatprep.subr.bf16.mxu0 0
    %2818 = vmatpush1.bf16.msra.mxu0 0
    %2819 = vmatprep.subr.bf16.mxu0 0
    %2820 = vmatpush1.bf16.msra.mxu0 0
    %2821 = vmatprep.subr.bf16.mxu0 0
    %2822 = vmatpush1.bf16.msra.mxu0 0
    %2823 = vmatprep.subr.bf16.mxu0 0
    %2824 = vmatpush1.bf16.msra.mxu0 0
    %2825 = vmatprep.mubr.bf16.mxu0 0
    %2826 = vmatmul.mubr.bf16.gmra.mrb[0].mxu0 %v2695
    %v2827 = vpop.f32.mrb[0].mxu0
    %v2828 = vadd.f32 0.0, %v2827
    %v2829 = vpop.f32.mrb[0].mxu0
    %v2830 = vadd.f32 0.0, %v2829
    %v2831 = vpop.f32.mrb[0].mxu0
    %v2832 = vpop.f32.mrb[0].mxu0
    %2833 = vdwg.mxu0
    %v2834 = vadd.f32 %v2523, %v2828
    %v2835 = vadd.f32 %v2524, %v2830
    %s2836 = scalar_lea.vmem %s0, 40
    %v2837 = vld [vmem:[%s2836] sm:$0x1f]
    %v2839 = vcombine.high %v2837, %v2837
    %v2841 = vunpack.c.l.s4 1966171168
    %v2842 = vunpack.c.0.s8 %v2841
    %v2843 = vlaneseq
    %v2844 = vshrl.u32 %v2843, 7
    %v2845 = vsub.s32 %v2842, %v2844
    %v2846 = vrot.slane %v2837, %v2845
    %v2848 = vunpack.c.l.s4 1966171168
    %v2849 = vunpack.c.0.s8 %v2848
    %v2850 = vlaneseq
    %v2851 = vshrl.u32 %v2850, 7
    %v2852 = vsub.s32 %v2849, %v2851
    %v2853 = vrot.slane %v2839, %v2852
    %v2854 = vcombine.high %v2846, %v2846
    %v2856 = vunpack.c.l.s4 1966171168
    %v2857 = vunpack.c.0.s8 %v2856
    %v2858 = vlaneseq
    %v2859 = vshrl.u32 %v2858, 7
    %v2860 = vsub.s32 %v2857, %v2859
    %v2861 = vrot.slane %v2846, %v2860
    %v2863 = vunpack.c.l.s4 1966171168
    %v2864 = vunpack.c.0.s8 %v2863
    %v2865 = vlaneseq
    %v2866 = vshrl.u32 %v2865, 7
    %v2867 = vsub.s32 %v2864, %v2866
    %v2868 = vrot.slane %v2853, %v2867
    %v2870 = vunpack.c.l.s4 1966171168
    %v2871 = vunpack.c.0.s8 %v2870
    %v2872 = vlaneseq
    %v2873 = vshrl.u32 %v2872, 7
    %v2874 = vsub.s32 %v2871, %v2873
    %v2875 = vrot.slane %v2854, %v2874
    %v2876 = vcombine.high %v2861, %v2861
    %v2877 = vcombine.high %v2875, %v2875
    %v2883 = vsel %vm398, %v2868, 0
    %2885 = vmatprep.subr.bf16.mxu0 0
    %2886 = vmatpush1.bf16.msra.mxu0 %v326
    %2887 = vmatprep.subr.bf16.mxu0 0
    %2888 = vmatpush1.bf16.msra.mxu0 %v327
    %2889 = vmatprep.subr.bf16.mxu0 0
    %2890 = vmatpush1.bf16.msra.mxu0 %v328
    %2891 = vmatprep.subr.bf16.mxu0 0
    %2892 = vmatpush1.bf16.msra.mxu0 %v329
    %2893 = vmatprep.subr.bf16.mxu0 0
    %2894 = vmatpush1.bf16.msra.mxu0 %v330
    %2895 = vmatprep.subr.bf16.mxu0 0
    %2896 = vmatpush1.bf16.msra.mxu0 %v331
    %2897 = vmatprep.subr.bf16.mxu0 0
    %2898 = vmatpush1.bf16.msra.mxu0 %v332
    %2899 = vmatprep.subr.bf16.mxu0 0
    %2900 = vmatpush1.bf16.msra.mxu0 %v333
    %2901 = vmatprep.subr.bf16.mxu0 0
    %2902 = vmatpush1.bf16.msra.mxu0 %v334
    %2903 = vmatprep.subr.bf16.mxu0 0
    %2904 = vmatpush1.bf16.msra.mxu0 %v335
    %2905 = vmatprep.subr.bf16.mxu0 0
    %2906 = vmatpush1.bf16.msra.mxu0 %v336
    %2907 = vmatprep.subr.bf16.mxu0 0
    %2908 = vmatpush1.bf16.msra.mxu0 %v337
    %2909 = vmatprep.subr.bf16.mxu0 0
    %2910 = vmatpush1.bf16.msra.mxu0 %v338
    %2911 = vmatprep.subr.bf16.mxu0 0
    %2912 = vmatpush1.bf16.msra.mxu0 %v339
    %2913 = vmatprep.subr.bf16.mxu0 0
    %2914 = vmatpush1.bf16.msra.mxu0 %v340
    %2915 = vmatprep.subr.bf16.mxu0 0
    %2916 = vmatpush1.bf16.msra.mxu0 %v341
    %2917 = vmatprep.mubr.bf16.mxu0 %v2875
    %2918 = vmatmul.mubr.bf16.gmra.mrb[0].mxu0 %v2861
    %v2919 = vpop.f32.mrb[0].mxu0
    %v2920 = vadd.f32 %v136, %v2919
    %v2921 = vpop.f32.mrb[0].mxu0
    %v2922 = vpop.f32.mrb[0].mxu0
    %v2923 = vpop.f32.mrb[0].mxu0
    %2924 = vdwg.mxu0
    %2925 = vmatprep.subr.bf16.mxu0 0
    %2926 = vmatpush1.bf16.msra.mxu0 %v342
    %2927 = vmatprep.subr.bf16.mxu0 0
    %2928 = vmatpush1.bf16.msra.mxu0 %v343
    %2929 = vmatprep.subr.bf16.mxu0 0
    %2930 = vmatpush1.bf16.msra.mxu0 %v344
    %2931 = vmatprep.subr.bf16.mxu0 0
    %2932 = vmatpush1.bf16.msra.mxu0 %v345
    %2933 = vmatprep.subr.bf16.mxu0 0
    %2934 = vmatpush1.bf16.msra.mxu0 %v346
    %2935 = vmatprep.subr.bf16.mxu0 0
    %2936 = vmatpush1.bf16.msra.mxu0 %v347
    %2937 = vmatprep.subr.bf16.mxu0 0
    %2938 = vmatpush1.bf16.msra.mxu0 %v348
    %2939 = vmatprep.subr.bf16.mxu0 0
    %2940 = vmatpush1.bf16.msra.mxu0 %v349
    %2941 = vmatprep.subr.bf16.mxu0 0
    %2942 = vmatpush1.bf16.msra.mxu0 %v350
    %2943 = vmatprep.subr.bf16.mxu0 0
    %2944 = vmatpush1.bf16.msra.mxu0 %v351
    %2945 = vmatprep.subr.bf16.mxu0 0
    %2946 = vmatpush1.bf16.msra.mxu0 %v352
    %2947 = vmatprep.subr.bf16.mxu0 0
    %2948 = vmatpush1.bf16.msra.mxu0 %v353
    %2949 = vmatprep.subr.bf16.mxu0 0
    %2950 = vmatpush1.bf16.msra.mxu0 %v354
    %2951 = vmatprep.subr.bf16.mxu0 0
    %2952 = vmatpush1.bf16.msra.mxu0 %v355
    %2953 = vmatprep.subr.bf16.mxu0 0
    %2954 = vmatpush1.bf16.msra.mxu0 %v356
    %2955 = vmatprep.subr.bf16.mxu0 0
    %2956 = vmatpush1.bf16.msra.mxu0 %v357
    %2957 = vmatprep.mubr.bf16.mxu0 %v2877
    %2958 = vmatmul.mubr.bf16.gmra.mrb[0].mxu0 %v2876
    %v2959 = vpop.f32.mrb[0].mxu0
    %v2960 = vadd.f32 %v2920, %v2959
    %v2961 = vpop.f32.mrb[0].mxu0
    %v2962 = vpop.f32.mrb[0].mxu0
    %v2963 = vpop.f32.mrb[0].mxu0
    %2964 = vdwg.mxu0
    %2965 = vmatprep.subr.bf16.mxu0 0
    %2966 = vmatpush1.bf16.msra.mxu0 %v358
    %2967 = vmatprep.subr.bf16.mxu0 0
    %2968 = vmatpush1.bf16.msra.mxu0 %v359
    %2969 = vmatprep.subr.bf16.mxu0 0
    %2970 = vmatpush1.bf16.msra.mxu0 %v360
    %2971 = vmatprep.subr.bf16.mxu0 0
    %2972 = vmatpush1.bf16.msra.mxu0 %v361
    %2973 = vmatprep.subr.bf16.mxu0 0
    %2974 = vmatpush1.bf16.msra.mxu0 0
    %2975 = vmatprep.subr.bf16.mxu0 0
    %2976 = vmatpush1.bf16.msra.mxu0 0
    %2977 = vmatprep.subr.bf16.mxu0 0
    %2978 = vmatpush1.bf16.msra.mxu0 0
    %2979 = vmatprep.subr.bf16.mxu0 0
    %2980 = vmatpush1.bf16.msra.mxu0 0
    %2981 = vmatprep.subr.bf16.mxu0 0
    %2982 = vmatpush1.bf16.msra.mxu0 0
    %2983 = vmatprep.subr.bf16.mxu0 0
    %2984 = vmatpush1.bf16.msra.mxu0 0
    %2985 = vmatprep.subr.bf16.mxu0 0
    %2986 = vmatpush1.bf16.msra.mxu0 0
    %2987 = vmatprep.subr.bf16.mxu0 0
    %2988 = vmatpush1.bf16.msra.mxu0 0
    %2989 = vmatprep.subr.bf16.mxu0 0
    %2990 = vmatpush1.bf16.msra.mxu0 0
    %2991 = vmatprep.subr.bf16.mxu0 0
    %2992 = vmatpush1.bf16.msra.mxu0 0
    %2993 = vmatprep.subr.bf16.mxu0 0
    %2994 = vmatpush1.bf16.msra.mxu0 0
    %2995 = vmatprep.subr.bf16.mxu0 0
    %2996 = vmatpush1.bf16.msra.mxu0 0
    %2997 = vmatprep.mubr.bf16.mxu0 0
    %2998 = vmatmul.mubr.bf16.gmra.mrb[0].mxu0 %v2883
    %v2999 = vpop.f32.mrb[0].mxu0
    %v3000 = vadd.f32 %v2960, %v2999
    %v3001 = vpop.f32.mrb[0].mxu0
    %v3002 = vpop.f32.mrb[0].mxu0
    %v3003 = vpop.f32.mrb[0].mxu0
    %3004 = vdwg.mxu0
    %v3005 = vmax.f32 %v3000, 0.0
    %v3006 = vpack.c.bf16 %v3005, %v3005
    %s3007 = scalar_lea.vmem %s3, 1024
    %v3008 = vld [vmem:[%s3007] sm:$0xff]
    %v3009 = vld [vmem:[%s3007 + $0x8] sm:$0xff]
    %v3010 = vld [vmem:[%s3007 + $0x10] sm:$0xff]
    %v3011 = vld [vmem:[%s3007 + $0x18] sm:$0xff]
    %v3012 = vld [vmem:[%s3007 + $0x20] sm:$0xff]
    %v3013 = vld [vmem:[%s3007 + $0x28] sm:$0xff]
    %v3014 = vld [vmem:[%s3007 + $0x30] sm:$0xff]
    %v3015 = vld [vmem:[%s3007 + $0x38] sm:$0xff]
    %v3016 = vld [vmem:[%s3007 + $0x40] sm:$0xff]
    %v3017 = vld [vmem:[%s3007 + $0x48] sm:$0xff]
    %v3018 = vld [vmem:[%s3007 + $0x50] sm:$0xff]
    %v3019 = vld [vmem:[%s3007 + $0x58] sm:$0xff]
    %v3020 = vld [vmem:[%s3007 + $0x60] sm:$0xff]
    %v3021 = vld [vmem:[%s3007 + $0x68] sm:$0xff]
    %v3022 = vld [vmem:[%s3007 + $0x70] sm:$0xff]
    %v3023 = vld [vmem:[%s3007 + $0x78] sm:$0xff]
    %v3040 = vunpack.c.l.b16 %v3008
    %v3041 = vunpack.c.h.b16 %v3008
    %v3042 = vunpack.c.l.b16 %v3009
    %v3043 = vunpack.c.h.b16 %v3009
    %v3044 = vunpack.c.l.b16 %v3010
    %v3045 = vunpack.c.h.b16 %v3010
    %v3046 = vunpack.c.l.b16 %v3011
    %v3047 = vunpack.c.h.b16 %v3011
    %v3048 = vunpack.c.l.b16 %v3012
    %v3049 = vunpack.c.h.b16 %v3012
    %v3050 = vunpack.c.l.b16 %v3013
    %v3051 = vunpack.c.h.b16 %v3013
    %v3052 = vunpack.c.l.b16 %v3014
    %v3053 = vunpack.c.h.b16 %v3014
    %v3054 = vunpack.c.l.b16 %v3015
    %v3055 = vunpack.c.h.b16 %v3015
    %v3056 = vunpack.c.l.b16 %v3016
    %v3057 = vunpack.c.h.b16 %v3016
    %v3058 = vunpack.c.l.b16 %v3017
    %v3059 = vunpack.c.h.b16 %v3017
    %v3060 = vunpack.c.l.b16 %v3018
    %v3061 = vunpack.c.h.b16 %v3018
    %v3062 = vunpack.c.l.b16 %v3019
    %v3063 = vunpack.c.h.b16 %v3019
    %v3064 = vunpack.c.l.b16 %v3020
    %v3065 = vunpack.c.h.b16 %v3020
    %v3066 = vunpack.c.l.b16 %v3021
    %v3067 = vunpack.c.h.b16 %v3021
    %v3068 = vunpack.c.l.b16 %v3022
    %v3069 = vunpack.c.h.b16 %v3022
    %v3070 = vunpack.c.l.b16 %v3023
    %v3071 = vunpack.c.h.b16 %v3023
    %v3072 = vpack.c.b16 %v3042, %v3040
    %v3073 = vpack.c.b16 %v3043, %v3041
    %v3074 = vpack.c.b16 %v3046, %v3044
    %v3075 = vpack.c.b16 %v3047, %v3045
    %v3076 = vpack.c.b16 %v3050, %v3048
    %v3077 = vpack.c.b16 %v3051, %v3049
    %v3078 = vpack.c.b16 %v3054, %v3052
    %v3079 = vpack.c.b16 %v3055, %v3053
    %v3080 = vpack.c.b16 %v3058, %v3056
    %v3081 = vpack.c.b16 %v3059, %v3057
    %v3082 = vpack.c.b16 %v3062, %v3060
    %v3083 = vpack.c.b16 %v3063, %v3061
    %v3084 = vpack.c.b16 %v3066, %v3064
    %v3085 = vpack.c.b16 %v3067, %v3065
    %v3086 = vpack.c.b16 %v3070, %v3068
    %v3087 = vpack.c.b16 %v3071, %v3069
    %3104 = vmatprep.subr.bf16.mxu0 %v3073
    %3105 = vmatpush1.bf16.msra.mxu0 %v3072
    %3106 = vmatprep.subr.bf16.mxu0 %v3075
    %3107 = vmatpush1.bf16.msra.mxu0 %v3074
    %3108 = vmatprep.subr.bf16.mxu0 %v3077
    %3109 = vmatpush1.bf16.msra.mxu0 %v3076
    %3110 = vmatprep.subr.bf16.mxu0 %v3079
    %3111 = vmatpush1.bf16.msra.mxu0 %v3078
    %3112 = vmatprep.subr.bf16.mxu0 %v3081
    %3113 = vmatpush1.bf16.msra.mxu0 %v3080
    %3114 = vmatprep.subr.bf16.mxu0 %v3083
    %3115 = vmatpush1.bf16.msra.mxu0 %v3082
    %3116 = vmatprep.subr.bf16.mxu0 %v3085
    %3117 = vmatpush1.bf16.msra.mxu0 %v3084
    %3118 = vmatprep.subr.bf16.mxu0 %v3087
    %3119 = vmatpush1.bf16.msra.mxu0 %v3086
    %3120 = vmatprep.subr.bf16.mxu0 0
    %3121 = vmatpush1.bf16.msra.mxu0 0
    %3122 = vmatprep.subr.bf16.mxu0 0
    %3123 = vmatpush1.bf16.msra.mxu0 0
    %3124 = vmatprep.subr.bf16.mxu0 0
    %3125 = vmatpush1.bf16.msra.mxu0 0
    %3126 = vmatprep.subr.bf16.mxu0 0
    %3127 = vmatpush1.bf16.msra.mxu0 0
    %3128 = vmatprep.subr.bf16.mxu0 0
    %3129 = vmatpush1.bf16.msra.mxu0 0
    %3130 = vmatprep.subr.bf16.mxu0 0
    %3131 = vmatpush1.bf16.msra.mxu0 0
    %3132 = vmatprep.subr.bf16.mxu0 0
    %3133 = vmatpush1.bf16.msra.mxu0 0
    %3134 = vmatprep.subr.bf16.mxu0 0
    %3135 = vmatpush1.bf16.msra.mxu0 0
    %3136 = vmatprep.mubr.bf16.mxu0 0
    %3137 = vmatmul.mubr.bf16.gmra.mrb[0].mxu0 %v3006
    %v3138 = vpop.f32.mrb[0].mxu0
    %v3139 = vadd.f32 0.0, %v3138
    %v3140 = vpop.f32.mrb[0].mxu0
    %v3141 = vadd.f32 0.0, %v3140
    %v3142 = vpop.f32.mrb[0].mxu0
    %v3143 = vpop.f32.mrb[0].mxu0
    %3144 = vdwg.mxu0
    %v3145 = vadd.f32 %v2834, %v3139
    %v3146 = vadd.f32 %v2835, %v3141
    %v3147 = vld [vmem:[%s4] sm:$0x3]
    %v3149 = vlaneseq
    %v3150 = vshrl.u32 %v3149, 7
    %v3151 = vsub.s32 0, %v3150
    %v3152 = vrot.slane %v3147, %v3151
    %v3153 = vlaneseq
    %v3154 = vshrl.u32 %v3153, 7
    %v3155 = vsub.s32 1, %v3154
    %v3156 = vrot.slane %v3147, %v3155
    %v3159 = vadd.f32 %v3145, %v3152
    %v3160 = vadd.f32 %v3146, %v3156
    %v3161 = vmax.f32 %v3159, 0.0
    %v3162 = vmax.f32 %v3160, 0.0
    %v3163 = vpack.c.bf16 %v3161, %v3161
    %v3164 = vpack.c.bf16 %v3162, %v3162
    %v3165 = vld [vmem:[%s5] sm:$0xf]
    %v3166 = vld [vmem:[%s5 + $0x4] sm:$0xf]
    %v3167 = vld [vmem:[%s5 + $0x8] sm:$0xf]
    %v3168 = vld [vmem:[%s5 + $0xc] sm:$0xf]
    %v3169 = vld [vmem:[%s5 + $0x10] sm:$0xf]
    %v3170 = vld [vmem:[%s5 + $0x14] sm:$0xf]
    %v3171 = vld [vmem:[%s5 + $0x18] sm:$0xf]
    %v3172 = vld [vmem:[%s5 + $0x1c] sm:$0xf]
    %v3173 = vld [vmem:[%s5 + $0x20] sm:$0xf]
    %v3174 = vld [vmem:[%s5 + $0x24] sm:$0xf]
    %v3175 = vld [vmem:[%s5 + $0x28] sm:$0xf]
    %v3176 = vld [vmem:[%s5 + $0x2c] sm:$0xf]
    %v3177 = vld [vmem:[%s5 + $0x30] sm:$0xf]
    %v3178 = vld [vmem:[%s5 + $0x34] sm:$0xf]
    %v3179 = vld [vmem:[%s5 + $0x38] sm:$0xf]
    %v3180 = vld [vmem:[%s5 + $0x3c] sm:$0xf]
    %v3181 = vld [vmem:[%s5 + $0x40] sm:$0xf]
    %v3182 = vld [vmem:[%s5 + $0x44] sm:$0xf]
    %v3183 = vld [vmem:[%s5 + $0x48] sm:$0xf]
    %v3184 = vld [vmem:[%s5 + $0x4c] sm:$0xf]
    %v3185 = vld [vmem:[%s5 + $0x50] sm:$0xf]
    %v3186 = vld [vmem:[%s5 + $0x54] sm:$0xf]
    %v3187 = vld [vmem:[%s5 + $0x58] sm:$0xf]
    %v3188 = vld [vmem:[%s5 + $0x5c] sm:$0xf]
    %v3189 = vld [vmem:[%s5 + $0x60] sm:$0xf]
    %v3190 = vld [vmem:[%s5 + $0x64] sm:$0xf]
    %v3191 = vld [vmem:[%s5 + $0x68] sm:$0xf]
    %v3192 = vld [vmem:[%s5 + $0x6c] sm:$0xf]
    %v3193 = vld [vmem:[%s5 + $0x70] sm:$0xf]
    %v3194 = vld [vmem:[%s5 + $0x74] sm:$0xf]
    %v3195 = vld [vmem:[%s5 + $0x78] sm:$0xf]
    %v3196 = vld [vmem:[%s5 + $0x7c] sm:$0xf]
    %v3197 = vld [vmem:[%s6] sm:$0x1]
    %v3199 = vlaneseq
    %v3200 = vshrl.u32 %v3199, 7
    %v3201 = vsub.s32 0, %v3200
    %v3202 = vrot.slane %v3197, %v3201
    %v3236 = vunpack.c.l.b16 %v3165
    %v3237 = vunpack.c.l.b16 %v3166
    %v3238 = vunpack.c.l.b16 %v3167
    %v3239 = vunpack.c.l.b16 %v3168
    %v3240 = vunpack.c.l.b16 %v3169
    %v3241 = vunpack.c.l.b16 %v3170
    %v3242 = vunpack.c.l.b16 %v3171
    %v3243 = vunpack.c.l.b16 %v3172
    %v3244 = vunpack.c.l.b16 %v3173
    %v3245 = vunpack.c.l.b16 %v3174
    %v3246 = vunpack.c.l.b16 %v3175
    %v3247 = vunpack.c.l.b16 %v3176
    %v3248 = vunpack.c.l.b16 %v3177
    %v3249 = vunpack.c.l.b16 %v3178
    %v3250 = vunpack.c.l.b16 %v3179
    %v3251 = vunpack.c.l.b16 %v3180
    %v3252 = vunpack.c.l.b16 %v3181
    %v3253 = vunpack.c.l.b16 %v3182
    %v3254 = vunpack.c.l.b16 %v3183
    %v3255 = vunpack.c.l.b16 %v3184
    %v3256 = vunpack.c.l.b16 %v3185
    %v3257 = vunpack.c.l.b16 %v3186
    %v3258 = vunpack.c.l.b16 %v3187
    %v3259 = vunpack.c.l.b16 %v3188
    %v3260 = vunpack.c.l.b16 %v3189
    %v3261 = vunpack.c.l.b16 %v3190
    %v3262 = vunpack.c.l.b16 %v3191
    %v3263 = vunpack.c.l.b16 %v3192
    %v3264 = vunpack.c.l.b16 %v3193
    %v3265 = vunpack.c.l.b16 %v3194
    %v3266 = vunpack.c.l.b16 %v3195
    %v3267 = vunpack.c.l.b16 %v3196
    %v3268 = vpack.c.b16 %v3237, %v3236
    %v3269 = vpack.c.b16 %v3239, %v3238
    %v3270 = vpack.c.b16 %v3241, %v3240
    %v3271 = vpack.c.b16 %v3243, %v3242
    %v3272 = vpack.c.b16 %v3245, %v3244
    %v3273 = vpack.c.b16 %v3247, %v3246
    %v3274 = vpack.c.b16 %v3249, %v3248
    %v3275 = vpack.c.b16 %v3251, %v3250
    %v3276 = vpack.c.b16 %v3253, %v3252
    %v3277 = vpack.c.b16 %v3255, %v3254
    %v3278 = vpack.c.b16 %v3257, %v3256
    %v3279 = vpack.c.b16 %v3259, %v3258
    %v3280 = vpack.c.b16 %v3261, %v3260
    %v3281 = vpack.c.b16 %v3263, %v3262
    %v3282 = vpack.c.b16 %v3265, %v3264
    %v3283 = vpack.c.b16 %v3267, %v3266
    %3300 = vmatprep.subr.bf16.mxu0 0
    %3301 = vmatpush1.bf16.msra.mxu0 %v3268
    %3302 = vmatprep.subr.bf16.mxu0 0
    %3303 = vmatpush1.bf16.msra.mxu0 %v3269
    %3304 = vmatprep.subr.bf16.mxu0 0
    %3305 = vmatpush1.bf16.msra.mxu0 %v3270
    %3306 = vmatprep.subr.bf16.mxu0 0
    %3307 = vmatpush1.bf16.msra.mxu0 %v3271
    %3308 = vmatprep.subr.bf16.mxu0 0
    %3309 = vmatpush1.bf16.msra.mxu0 %v3272
    %3310 = vmatprep.subr.bf16.mxu0 0
    %3311 = vmatpush1.bf16.msra.mxu0 %v3273
    %3312 = vmatprep.subr.bf16.mxu0 0
    %3313 = vmatpush1.bf16.msra.mxu0 %v3274
    %3314 = vmatprep.subr.bf16.mxu0 0
    %3315 = vmatpush1.bf16.msra.mxu0 %v3275
    %3316 = vmatprep.subr.bf16.mxu0 0
    %3317 = vmatpush1.bf16.msra.mxu0 %v3276
    %3318 = vmatprep.subr.bf16.mxu0 0
    %3319 = vmatpush1.bf16.msra.mxu0 %v3277
    %3320 = vmatprep.subr.bf16.mxu0 0
    %3321 = vmatpush1.bf16.msra.mxu0 %v3278
    %3322 = vmatprep.subr.bf16.mxu0 0
    %3323 = vmatpush1.bf16.msra.mxu0 %v3279
    %3324 = vmatprep.subr.bf16.mxu0 0
    %3325 = vmatpush1.bf16.msra.mxu0 %v3280
    %3326 = vmatprep.subr.bf16.mxu0 0
    %3327 = vmatpush1.bf16.msra.mxu0 %v3281
    %3328 = vmatprep.subr.bf16.mxu0 0
    %3329 = vmatpush1.bf16.msra.mxu0 %v3282
    %3330 = vmatprep.subr.bf16.mxu0 0
    %3331 = vmatpush1.bf16.msra.mxu0 %v3283
    %3332 = vmatprep.mubr.bf16.mxu0 %v3164
    %3333 = vmatmul.mubr.bf16.gmra.mrb[0].mxu0 %v3163
    %v3334 = vpop.f32.mrb[0].mxu0
    %v3335 = vadd.f32 %v3202, %v3334
    %v3336 = vpop.f32.mrb[0].mxu0
    %v3337 = vpop.f32.mrb[0].mxu0
    %v3338 = vpop.f32.mrb[0].mxu0
    %3339 = vdwg.mxu0
    %v3340 = vmax.f32 %v3335, 0.0
    %v3341 = vpack.c.bf16 %v3340, %v3340
    %v3342 = vld [vmem:[%s7] sm:$0xf]
    %v3343 = vld [vmem:[%s7 + $0x4] sm:$0xf]
    %v3344 = vld [vmem:[%s7 + $0x8] sm:$0xf]
    %v3345 = vld [vmem:[%s7 + $0xc] sm:$0xf]
    %v3346 = vld [vmem:[%s7 + $0x10] sm:$0xf]
    %v3347 = vld [vmem:[%s7 + $0x14] sm:$0xf]
    %v3348 = vld [vmem:[%s7 + $0x18] sm:$0xf]
    %v3349 = vld [vmem:[%s7 + $0x1c] sm:$0xf]
    %v3350 = vld [vmem:[%s7 + $0x20] sm:$0xf]
    %v3351 = vld [vmem:[%s7 + $0x24] sm:$0xf]
    %v3352 = vld [vmem:[%s7 + $0x28] sm:$0xf]
    %v3353 = vld [vmem:[%s7 + $0x2c] sm:$0xf]
    %v3354 = vld [vmem:[%s7 + $0x30] sm:$0x3]
    %v3355 = vld [vmem:[#allocation2] sm:$0x1]
    %v3357 = vlaneseq
    %v3358 = vshrl.u32 %v3357, 7
    %v3359 = vsub.s32 0, %v3358
    %v3360 = vrot.slane %v3355, %v3359
    %v3375 = vunpack.c.l.b16 %v3342
    %v3376 = vunpack.c.l.b16 %v3343
    %v3377 = vunpack.c.l.b16 %v3344
    %v3378 = vunpack.c.l.b16 %v3345
    %v3379 = vunpack.c.l.b16 %v3346
    %v3380 = vunpack.c.l.b16 %v3347
    %v3381 = vunpack.c.l.b16 %v3348
    %v3382 = vunpack.c.l.b16 %v3349
    %v3383 = vunpack.c.l.b16 %v3350
    %v3384 = vunpack.c.l.b16 %v3351
    %v3385 = vunpack.c.l.b16 %v3352
    %v3386 = vunpack.c.l.b16 %v3353
    %v3387 = vunpack.c.l.b16 %v3354
    %v3388 = vpack.c.b16 %v3376, %v3375
    %v3389 = vpack.c.b16 %v3378, %v3377
    %v3390 = vpack.c.b16 %v3380, %v3379
    %v3391 = vpack.c.b16 %v3382, %v3381
    %v3392 = vpack.c.b16 %v3384, %v3383
    %v3393 = vpack.c.b16 %v3386, %v3385
    %v3394 = vpack.c.b16 %v3387, %v3387
    %vm3401 = vcmask 818176
    %v3403 = vsel %vm3401, %v3341, 0
    %vm3405 = vcmask 1041408
    %v3407 = vsel %vm3405, %v3394, 0
    %3409 = vmatprep.subr.bf16.mxu0 0
    %3410 = vmatpush1.bf16.msra.mxu0 %v3388
    %3411 = vmatprep.subr.bf16.mxu0 0
    %3412 = vmatpush1.bf16.msra.mxu0 %v3389
    %3413 = vmatprep.subr.bf16.mxu0 0
    %3414 = vmatpush1.bf16.msra.mxu0 %v3390
    %3415 = vmatprep.subr.bf16.mxu0 0
    %3416 = vmatpush1.bf16.msra.mxu0 %v3391
    %3417 = vmatprep.subr.bf16.mxu0 0
    %3418 = vmatpush1.bf16.msra.mxu0 %v3392
    %3419 = vmatprep.subr.bf16.mxu0 0
    %3420 = vmatpush1.bf16.msra.mxu0 %v3393
    %3421 = vmatprep.subr.bf16.mxu0 0
    %3422 = vmatpush1.bf16.msra.mxu0 %v3407
    %3423 = vmatprep.subr.bf16.mxu0 0
    %3424 = vmatpush1.bf16.msra.mxu0 0
    %3425 = vmatprep.subr.bf16.mxu0 0
    %3426 = vmatpush1.bf16.msra.mxu0 0
    %3427 = vmatprep.subr.bf16.mxu0 0
    %3428 = vmatpush1.bf16.msra.mxu0 0
    %3429 = vmatprep.subr.bf16.mxu0 0
    %3430 = vmatpush1.bf16.msra.mxu0 0
    %3431 = vmatprep.subr.bf16.mxu0 0
    %3432 = vmatpush1.bf16.msra.mxu0 0
    %3433 = vmatprep.subr.bf16.mxu0 0
    %3434 = vmatpush1.bf16.msra.mxu0 0
    %3435 = vmatprep.subr.bf16.mxu0 0
    %3436 = vmatpush1.bf16.msra.mxu0 0
    %3437 = vmatprep.subr.bf16.mxu0 0
    %3438 = vmatpush1.bf16.msra.mxu0 0
    %3439 = vmatprep.subr.bf16.mxu0 0
    %3440 = vmatpush1.bf16.msra.mxu0 0
    %3441 = vmatprep.mubr.bf16.mxu0 0
    %3442 = vmatmul.mubr.bf16.gmra.mrb[0].mxu0 %v3403
    %v3443 = vpop.f32.mrb[0].mxu0
    %v3444 = vadd.f32 %v3360, %v3443
    %v3445 = vpop.f32.mrb[0].mxu0
    %v3446 = vpop.f32.mrb[0].mxu0
    %v3447 = vpop.f32.mrb[0].mxu0
    %3448 = vdwg.mxu0
    %vm3449 = vcmask 1024
    %3450 = vst.msk [vmem:[%s17] sm:$0x3] %vm3449, %v3444
    %v3451 = vld [vmem:[%s9] sm:$0xf]
    %v3452 = vld [vmem:[%s9 + $0x4] sm:$0xf]
    %v3453 = vld [vmem:[%s9 + $0x8] sm:$0xf]
    %v3454 = vld [vmem:[%s9 + $0xc] sm:$0xf]
    %v3455 = vld [vmem:[%s9 + $0x10] sm:$0xf]
    %v3456 = vld [vmem:[%s9 + $0x14] sm:$0xf]
    %v3457 = vld [vmem:[%s9 + $0x18] sm:$0xf]
    %v3458 = vld [vmem:[%s9 + $0x1c] sm:$0xf]
    %v3459 = vld [vmem:[%s9 + $0x20] sm:$0xf]
    %v3460 = vld [vmem:[%s9 + $0x24] sm:$0xf]
    %v3461 = vld [vmem:[%s9 + $0x28] sm:$0xf]
    %v3462 = vld [vmem:[%s9 + $0x2c] sm:$0xf]
    %v3463 = vld [vmem:[%s9 + $0x30] sm:$0xf]
    %v3464 = vld [vmem:[%s9 + $0x34] sm:$0xf]
    %v3465 = vld [vmem:[%s9 + $0x38] sm:$0xf]
    %v3466 = vld [vmem:[%s9 + $0x3c] sm:$0xf]
    %v3467 = vld [vmem:[%s9 + $0x40] sm:$0xf]
    %v3468 = vld [vmem:[%s9 + $0x44] sm:$0xf]
    %v3469 = vld [vmem:[%s9 + $0x48] sm:$0xf]
    %v3470 = vld [vmem:[%s9 + $0x4c] sm:$0xf]
    %v3471 = vld [vmem:[%s9 + $0x50] sm:$0xf]
    %v3472 = vld [vmem:[%s9 + $0x54] sm:$0xf]
    %v3473 = vld [vmem:[%s9 + $0x58] sm:$0xf]
    %v3474 = vld [vmem:[%s9 + $0x5c] sm:$0xf]
    %v3475 = vld [vmem:[%s9 + $0x60] sm:$0xf]
    %v3476 = vld [vmem:[%s9 + $0x64] sm:$0xf]
    %v3477 = vld [vmem:[%s9 + $0x68] sm:$0xf]
    %v3478 = vld [vmem:[%s9 + $0x6c] sm:$0xf]
    %v3479 = vld [vmem:[%s9 + $0x70] sm:$0xf]
    %v3480 = vld [vmem:[%s9 + $0x74] sm:$0xf]
    %v3481 = vld [vmem:[%s9 + $0x78] sm:$0xf]
    %v3482 = vld [vmem:[%s9 + $0x7c] sm:$0xf]
    %v3483 = vld [vmem:[%s10] sm:$0x1]
    %v3485 = vlaneseq
    %v3486 = vshrl.u32 %v3485, 7
    %v3487 = vsub.s32 0, %v3486
    %v3488 = vrot.slane %v3483, %v3487
    %v3522 = vunpack.c.l.b16 %v3451
    %v3523 = vunpack.c.l.b16 %v3452
    %v3524 = vunpack.c.l.b16 %v3453
    %v3525 = vunpack.c.l.b16 %v3454
    %v3526 = vunpack.c.l.b16 %v3455
    %v3527 = vunpack.c.l.b16 %v3456
    %v3528 = vunpack.c.l.b16 %v3457
    %v3529 = vunpack.c.l.b16 %v3458
    %v3530 = vunpack.c.l.b16 %v3459
    %v3531 = vunpack.c.l.b16 %v3460
    %v3532 = vunpack.c.l.b16 %v3461
    %v3533 = vunpack.c.l.b16 %v3462
    %v3534 = vunpack.c.l.b16 %v3463
    %v3535 = vunpack.c.l.b16 %v3464
    %v3536 = vunpack.c.l.b16 %v3465
    %v3537 = vunpack.c.l.b16 %v3466
    %v3538 = vunpack.c.l.b16 %v3467
    %v3539 = vunpack.c.l.b16 %v3468
    %v3540 = vunpack.c.l.b16 %v3469
    %v3541 = vunpack.c.l.b16 %v3470
    %v3542 = vunpack.c.l.b16 %v3471
    %v3543 = vunpack.c.l.b16 %v3472
    %v3544 = vunpack.c.l.b16 %v3473
    %v3545 = vunpack.c.l.b16 %v3474
    %v3546 = vunpack.c.l.b16 %v3475
    %v3547 = vunpack.c.l.b16 %v3476
    %v3548 = vunpack.c.l.b16 %v3477
    %v3549 = vunpack.c.l.b16 %v3478
    %v3550 = vunpack.c.l.b16 %v3479
    %v3551 = vunpack.c.l.b16 %v3480
    %v3552 = vunpack.c.l.b16 %v3481
    %v3553 = vunpack.c.l.b16 %v3482
    %v3554 = vpack.c.b16 %v3523, %v3522
    %v3555 = vpack.c.b16 %v3525, %v3524
    %v3556 = vpack.c.b16 %v3527, %v3526
    %v3557 = vpack.c.b16 %v3529, %v3528
    %v3558 = vpack.c.b16 %v3531, %v3530
    %v3559 = vpack.c.b16 %v3533, %v3532
    %v3560 = vpack.c.b16 %v3535, %v3534
    %v3561 = vpack.c.b16 %v3537, %v3536
    %v3562 = vpack.c.b16 %v3539, %v3538
    %v3563 = vpack.c.b16 %v3541, %v3540
    %v3564 = vpack.c.b16 %v3543, %v3542
    %v3565 = vpack.c.b16 %v3545, %v3544
    %v3566 = vpack.c.b16 %v3547, %v3546
    %v3567 = vpack.c.b16 %v3549, %v3548
    %v3568 = vpack.c.b16 %v3551, %v3550
    %v3569 = vpack.c.b16 %v3553, %v3552
    %3586 = vmatprep.subr.bf16.mxu0 0
    %3587 = vmatpush1.bf16.msra.mxu0 %v3554
    %3588 = vmatprep.subr.bf16.mxu0 0
    %3589 = vmatpush1.bf16.msra.mxu0 %v3555
    %3590 = vmatprep.subr.bf16.mxu0 0
    %3591 = vmatpush1.bf16.msra.mxu0 %v3556
    %3592 = vmatprep.subr.bf16.mxu0 0
    %3593 = vmatpush1.bf16.msra.mxu0 %v3557
    %3594 = vmatprep.subr.bf16.mxu0 0
    %3595 = vmatpush1.bf16.msra.mxu0 %v3558
    %3596 = vmatprep.subr.bf16.mxu0 0
    %3597 = vmatpush1.bf16.msra.mxu0 %v3559
    %3598 = vmatprep.subr.bf16.mxu0 0
    %3599 = vmatpush1.bf16.msra.mxu0 %v3560
    %3600 = vmatprep.subr.bf16.mxu0 0
    %3601 = vmatpush1.bf16.msra.mxu0 %v3561
    %3602 = vmatprep.subr.bf16.mxu0 0
    %3603 = vmatpush1.bf16.msra.mxu0 %v3562
    %3604 = vmatprep.subr.bf16.mxu0 0
    %3605 = vmatpush1.bf16.msra.mxu0 %v3563
    %3606 = vmatprep.subr.bf16.mxu0 0
    %3607 = vmatpush1.bf16.msra.mxu0 %v3564
    %3608 = vmatprep.subr.bf16.mxu0 0
    %3609 = vmatpush1.bf16.msra.mxu0 %v3565
    %3610 = vmatprep.subr.bf16.mxu0 0
    %3611 = vmatpush1.bf16.msra.mxu0 %v3566
    %3612 = vmatprep.subr.bf16.mxu0 0
    %3613 = vmatpush1.bf16.msra.mxu0 %v3567
    %3614 = vmatprep.subr.bf16.mxu0 0
    %3615 = vmatpush1.bf16.msra.mxu0 %v3568
    %3616 = vmatprep.subr.bf16.mxu0 0
    %3617 = vmatpush1.bf16.msra.mxu0 %v3569
    %3618 = vmatprep.mubr.bf16.mxu0 %v3164
    %3619 = vmatmul.mubr.bf16.gmra.mrb[0].mxu0 %v3163
    %v3620 = vpop.f32.mrb[0].mxu0
    %v3621 = vadd.f32 %v3488, %v3620
    %v3622 = vpop.f32.mrb[0].mxu0
    %v3623 = vpop.f32.mrb[0].mxu0
    %v3624 = vpop.f32.mrb[0].mxu0
    %3625 = vdwg.mxu0
    %v3626 = vmax.f32 %v3621, 0.0
    %v3627 = vpack.c.bf16 %v3626, %v3626
    %v3628 = vld [vmem:[%s11] sm:$0xf]
    %v3629 = vld [vmem:[%s11 + $0x4] sm:$0xf]
    %v3630 = vld [vmem:[%s11 + $0x8] sm:$0xf]
    %v3631 = vld [vmem:[%s11 + $0xc] sm:$0xf]
    %v3632 = vld [vmem:[%s11 + $0x10] sm:$0xf]
    %v3633 = vld [vmem:[%s11 + $0x14] sm:$0xf]
    %v3634 = vld [vmem:[%s11 + $0x18] sm:$0xf]
    %v3635 = vld [vmem:[%s11 + $0x1c] sm:$0xf]
    %v3636 = vld [vmem:[%s11 + $0x20] sm:$0xf]
    %v3637 = vld [vmem:[%s11 + $0x24] sm:$0xf]
    %v3638 = vld [vmem:[%s11 + $0x28] sm:$0xf]
    %v3639 = vld [vmem:[%s11 + $0x2c] sm:$0xf]
    %v3640 = vld [vmem:[%s11 + $0x30] sm:$0x3]
    %v3641 = vld [vmem:[%s12] sm:$0x1]
    %v3643 = vlaneseq
    %v3644 = vshrl.u32 %v3643, 7
    %v3645 = vsub.s32 0, %v3644
    %v3646 = vrot.slane %v3641, %v3645
    %v3661 = vunpack.c.l.b16 %v3628
    %v3662 = vunpack.c.l.b16 %v3629
    %v3663 = vunpack.c.l.b16 %v3630
    %v3664 = vunpack.c.l.b16 %v3631
    %v3665 = vunpack.c.l.b16 %v3632
    %v3666 = vunpack.c.l.b16 %v3633
    %v3667 = vunpack.c.l.b16 %v3634
    %v3668 = vunpack.c.l.b16 %v3635
    %v3669 = vunpack.c.l.b16 %v3636
    %v3670 = vunpack.c.l.b16 %v3637
    %v3671 = vunpack.c.l.b16 %v3638
    %v3672 = vunpack.c.l.b16 %v3639
    %v3673 = vunpack.c.l.b16 %v3640
    %v3674 = vpack.c.b16 %v3662, %v3661
    %v3675 = vpack.c.b16 %v3664, %v3663
    %v3676 = vpack.c.b16 %v3666, %v3665
    %v3677 = vpack.c.b16 %v3668, %v3667
    %v3678 = vpack.c.b16 %v3670, %v3669
    %v3679 = vpack.c.b16 %v3672, %v3671
    %v3680 = vpack.c.b16 %v3673, %v3673
    %v3688 = vsel %vm3401, %v3627, 0
    %v3691 = vsel %vm3405, %v3680, 0
    %3693 = vmatprep.subr.bf16.mxu0 0
    %3694 = vmatpush1.bf16.msra.mxu0 %v3674
    %3695 = vmatprep.subr.bf16.mxu0 0
    %3696 = vmatpush1.bf16.msra.mxu0 %v3675
    %3697 = vmatprep.subr.bf16.mxu0 0
    %3698 = vmatpush1.bf16.msra.mxu0 %v3676
    %3699 = vmatprep.subr.bf16.mxu0 0
    %3700 = vmatpush1.bf16.msra.mxu0 %v3677
    %3701 = vmatprep.subr.bf16.mxu0 0
    %3702 = vmatpush1.bf16.msra.mxu0 %v3678
    %3703 = vmatprep.subr.bf16.mxu0 0
    %3704 = vmatpush1.bf16.msra.mxu0 %v3679
    %3705 = vmatprep.subr.bf16.mxu0 0
    %3706 = vmatpush1.bf16.msra.mxu0 %v3691
    %3707 = vmatprep.subr.bf16.mxu0 0
    %3708 = vmatpush1.bf16.msra.mxu0 0
    %3709 = vmatprep.subr.bf16.mxu0 0
    %3710 = vmatpush1.bf16.msra.mxu0 0
    %3711 = vmatprep.subr.bf16.mxu0 0
    %3712 = vmatpush1.bf16.msra.mxu0 0
    %3713 = vmatprep.subr.bf16.mxu0 0
    %3714 = vmatpush1.bf16.msra.mxu0 0
    %3715 = vmatprep.subr.bf16.mxu0 0
    %3716 = vmatpush1.bf16.msra.mxu0 0
    %3717 = vmatprep.subr.bf16.mxu0 0
    %3718 = vmatpush1.bf16.msra.mxu0 0
    %3719 = vmatprep.subr.bf16.mxu0 0
    %3720 = vmatpush1.bf16.msra.mxu0 0
    %3721 = vmatprep.subr.bf16.mxu0 0
    %3722 = vmatpush1.bf16.msra.mxu0 0
    %3723 = vmatprep.subr.bf16.mxu0 0
    %3724 = vmatpush1.bf16.msra.mxu0 0
    %3725 = vmatprep.mubr.bf16.mxu0 0
    %3726 = vmatmul.mubr.bf16.gmra.mrb[0].mxu0 %v3688
    %v3727 = vpop.f32.mrb[0].mxu0
    %v3728 = vadd.f32 %v3646, %v3727
    %v3729 = vpop.f32.mrb[0].mxu0
    %v3730 = vpop.f32.mrb[0].mxu0
    %v3731 = vpop.f32.mrb[0].mxu0
    %3732 = vdwg.mxu0
    %v3733 = vld [vmem:[%s13] sm:$0xf]
    %v3734 = vld [vmem:[%s13 + $0x4] sm:$0xf]
    %v3735 = vld [vmem:[%s13 + $0x8] sm:$0xf]
    %v3736 = vld [vmem:[%s13 + $0xc] sm:$0xf]
    %v3737 = vld [vmem:[%s13 + $0x10] sm:$0xf]
    %v3738 = vld [vmem:[%s13 + $0x14] sm:$0xf]
    %v3739 = vld [vmem:[%s13 + $0x18] sm:$0xf]
    %v3740 = vld [vmem:[%s13 + $0x1c] sm:$0xf]
    %v3741 = vld [vmem:[%s13 + $0x20] sm:$0xf]
    %v3742 = vld [vmem:[%s13 + $0x24] sm:$0xf]
    %v3743 = vld [vmem:[%s13 + $0x28] sm:$0xf]
    %v3744 = vld [vmem:[%s13 + $0x2c] sm:$0xf]
    %v3745 = vld [vmem:[%s13 + $0x30] sm:$0x3]
    %v3746 = vld [vmem:[%s14] sm:$0x1]
    %v3748 = vlaneseq
    %v3749 = vshrl.u32 %v3748, 7
    %v3750 = vsub.s32 0, %v3749
    %v3751 = vrot.slane %v3746, %v3750
    %v3766 = vunpack.c.l.b16 %v3733
    %v3767 = vunpack.c.l.b16 %v3734
    %v3768 = vunpack.c.l.b16 %v3735
    %v3769 = vunpack.c.l.b16 %v3736
    %v3770 = vunpack.c.l.b16 %v3737
    %v3771 = vunpack.c.l.b16 %v3738
    %v3772 = vunpack.c.l.b16 %v3739
    %v3773 = vunpack.c.l.b16 %v3740
    %v3774 = vunpack.c.l.b16 %v3741
    %v3775 = vunpack.c.l.b16 %v3742
    %v3776 = vunpack.c.l.b16 %v3743
    %v3777 = vunpack.c.l.b16 %v3744
    %v3778 = vunpack.c.l.b16 %v3745
    %v3779 = vpack.c.b16 %v3767, %v3766
    %v3780 = vpack.c.b16 %v3769, %v3768
    %v3781 = vpack.c.b16 %v3771, %v3770
    %v3782 = vpack.c.b16 %v3773, %v3772
    %v3783 = vpack.c.b16 %v3775, %v3774
    %v3784 = vpack.c.b16 %v3777, %v3776
    %v3785 = vpack.c.b16 %v3778, %v3778
    %v3793 = vsel %vm3405, %v3785, 0
    %3795 = vmatprep.subr.bf16.mxu0 0
    %3796 = vmatpush1.bf16.msra.mxu0 %v3779
    %3797 = vmatprep.subr.bf16.mxu0 0
    %3798 = vmatpush1.bf16.msra.mxu0 %v3780
    %3799 = vmatprep.subr.bf16.mxu0 0
    %3800 = vmatpush1.bf16.msra.mxu0 %v3781
    %3801 = vmatprep.subr.bf16.mxu0 0
    %3802 = vmatpush1.bf16.msra.mxu0 %v3782
    %3803 = vmatprep.subr.bf16.mxu0 0
    %3804 = vmatpush1.bf16.msra.mxu0 %v3783
    %3805 = vmatprep.subr.bf16.mxu0 0
    %3806 = vmatpush1.bf16.msra.mxu0 %v3784
    %3807 = vmatprep.subr.bf16.mxu0 0
    %3808 = vmatpush1.bf16.msra.mxu0 %v3793
    %3809 = vmatprep.subr.bf16.mxu0 0
    %3810 = vmatpush1.bf16.msra.mxu0 0
    %3811 = vmatprep.subr.bf16.mxu0 0
    %3812 = vmatpush1.bf16.msra.mxu0 0
    %3813 = vmatprep.subr.bf16.mxu0 0
    %3814 = vmatpush1.bf16.msra.mxu0 0
    %3815 = vmatprep.subr.bf16.mxu0 0
    %3816 = vmatpush1.bf16.msra.mxu0 0
    %3817 = vmatprep.subr.bf16.mxu0 0
    %3818 = vmatpush1.bf16.msra.mxu0 0
    %3819 = vmatprep.subr.bf16.mxu0 0
    %3820 = vmatpush1.bf16.msra.mxu0 0
    %3821 = vmatprep.subr.bf16.mxu0 0
    %3822 = vmatpush1.bf16.msra.mxu0 0
    %3823 = vmatprep.subr.bf16.mxu0 0
    %3824 = vmatpush1.bf16.msra.mxu0 0
    %3825 = vmatprep.subr.bf16.mxu0 0
    %3826 = vmatpush1.bf16.msra.mxu0 0
    %3827 = vmatprep.mubr.bf16.mxu0 0
    %3828 = vmatmul.mubr.bf16.gmra.mrb[0].mxu0 %v3688
    %v3829 = vpop.f32.mrb[0].mxu0
    %v3830 = vadd.f32 %v3751, %v3829
    %v3831 = vpop.f32.mrb[0].mxu0
    %v3832 = vpop.f32.mrb[0].mxu0
    %v3833 = vpop.f32.mrb[0].mxu0
    %3834 = vdwg.mxu0
    %v3835 = vmax.f32 %v3728, 0.0
    %v3836 = vand.u32 2147483647, %v3728
    %v3837 = vsub.f32 0.0, %v3836
    %v3838 = vmul.f32 %v3837, 1.442695
    %v3839 = vpow.pop %v3838
    %v3840 = vadd.f32 %v3839, 1.0
    %v3841 = vlog2.pop %v3840
    %v3842 = vmul.f32 %v3841, 0.6931472
    %v3843 = vadd.f32 %v3835, %v3842
    %v3844 = vadd.f32 %v3843, 1.0
    %vm3845 = vcmask 17408
    %3846 = vst.msk [vmem:[#allocation3] sm:$0x3] %vm3845, %v3844
    %v3847 = vmax.f32 %v3830, 0.0
    %v3848 = vand.u32 2147483647, %v3830
    %v3849 = vsub.f32 0.0, %v3848
    %v3850 = vmul.f32 %v3849, 1.442695
    %v3851 = vpow.pop %v3850
    %v3852 = vadd.f32 %v3851, 1.0
    %v3853 = vlog2.pop %v3852
    %v3854 = vmul.f32 %v3853, 0.6931472
    %v3855 = vadd.f32 %v3847, %v3854
    %v3856 = vadd.f32 %v3855, 1.0
    %3857 = vst.msk [vmem:[#allocation5] sm:$0x3] %vm3845, %v3856
    // Predicated region
    $region62: #{ppo_forward.9} parent=1 // pred_check
      _
    $region63: #{ppo_forward.9} parent=1 // pred_check_branch
      %3859 = sbr.rel (0) target = $region65
    $region64: #{ppo_forward.9} parent=1 // pred_region
      %s3861 = ssub.s32 32, 32
      %3862 = vsyncadd [#allocation4], %s3861
      %s3864 = sshll.u32 [#allocation3], 4
      %s3865 = int_to_ptr.vmem [resolvable:$true] %s3864
      %3867 = dma.vmem_to_hbm [thread:$0]  %s3865, 32, %s15, [#allocation4]
    $region65: #{ppo_forward.9} parent=1 // pred_fallthru
      _
    // Predicated region
    $region66: #{ppo_forward.9} parent=1 // pred_check
      _
    $region67: #{ppo_forward.9} parent=1 // pred_check_branch
      %3869 = sbr.rel (0) target = $region69
    $region68: #{ppo_forward.9} parent=1 // pred_region
      %s3871 = ssub.s32 32, 32
      %3872 = vsyncadd [#allocation6], %s3871
      %s3874 = sshll.u32 [#allocation5], 4
      %s3875 = int_to_ptr.vmem [resolvable:$true] %s3874
      %3877 = dma.vmem_to_hbm [thread:$0]  %s3875, 32, %s16, [#allocation6]
    $region69: #{ppo_forward.9} parent=1 // pred_fallthru
      _
    // Predicated region
    $region70: #{ppo_forward.9} parent=1 // pred_check
      _
    $region71: #{ppo_forward.9} parent=1 // pred_check_branch
      %3879 = sbr.rel (0) target = $region73
    $region72: #{ppo_forward.9} parent=1 // pred_region
      _
    $region73: #{ppo_forward.9} parent=1 // pred_fallthru
      _
    // Predicated region
    $region74: #{ppo_forward.9} parent=1 // pred_check
      _
    $region75: #{ppo_forward.9} parent=1 // pred_check_branch
      %3881 = sbr.rel (0) target = $region77
    $region76: #{ppo_forward.9} parent=1 // pred_region
      %3882 = dma.done [#allocation4], 32
    $region77: #{ppo_forward.9} parent=1 // pred_fallthru
      _
    // Predicated region
    $region78: #{ppo_forward.9} parent=1 // pred_check
      _
    $region79: #{ppo_forward.9} parent=1 // pred_check_branch
      %3884 = sbr.rel (0) target = $region81
    $region80: #{ppo_forward.9} parent=1 // pred_region
      %3885 = dma.done [#allocation6], 32
    $region81: #{ppo_forward.9} parent=1 // pred_fallthru
      _
    // Predicated region
    $region82: #{ppo_forward.9} parent=1 // pred_check
      _
    $region83: #{ppo_forward.9} parent=1 // pred_check_branch
      %3887 = sbr.rel (0) target = $region85
    $region84: #{ppo_forward.9} parent=1 // pred_region
      _
    $region85: #{ppo_forward.9} parent=1 // pred_fallthru
      _
    %3888 = vsyncpa [#allocation4], 1
    %3889 = vsyncpa [#allocation6], 1

</llo_original>
